<compile_context>
chip_gen: v5e
topology: v5e:2x2
jax: 0.10.0
libtpu: 0.0.40
codegen_flags: <defaults>
</compile_context>

<pallas_src>
import jax
import jax.numpy as jnp
from jax.experimental import pallas as pl
from jax.experimental.pallas import tpu as pltpu


# ----------------------------- in-kernel helpers -----------------------------
def _zero_border2(ref):
    """Zero the 2-wide spatial border of a (Hp, Wp, C) padded scratch buffer."""
    Hp, Wp, C = ref.shape
    dt = ref.dtype
    ref[0:2, :, :] = jnp.zeros((2, Wp, C), dt)
    ref[Hp - 2:Hp, :, :] = jnp.zeros((2, Wp, C), dt)
    ref[2:Hp - 2, 0:2, :] = jnp.zeros((Hp - 4, 2, C), dt)
    ref[2:Hp - 2, Wp - 2:Wp, :] = jnp.zeros((Hp - 4, 2, C), dt)


def _build_im2col_w(pad_ref, im_ref, *, W, Cin):
    """im2col along W only: im[h, w, kw*Cin + c] = pad[h, w + kw, c], kw in 0..4."""
    for kw in range(5):
        im_ref[:, :, kw * Cin:(kw + 1) * Cin] = pad_ref[:, kw:kw + W, :]


def _conv5x5_bias_pool2(im_ref, w_ref, bias, sel, *, H, W, Cout, chunk_rows,
                        dst_ref, dst_r0=0, dst_c0=0, flat_dst=False):
    """5x5 'same' conv (kw folded into K) + bias + fused 2x2 max-pool.

    im_ref : (H+4, W, 5*Cin) bf16 im2col-along-W input
    w_ref  : (5, 5*Cin, Cout) bf16 weights
    bias   : (1, Cout) f32
    sel    : (cwv, cwv) bf16 0/1 permutation; rows [0:cwv/2] pick even source
             rows, rows [cwv/2:cwv] pick odd source rows (horizontal pooling).
    Pooled (H/2, W/2, Cout) result is written into dst_ref at (dst_r0, dst_c0),
    or as a flat (H/2 * W/2, Cout) slab when flat_dst (single chunk only).
    """
    Kc = w_ref.shape[1]              # 5 * Cin
    Wo = W // 2
    rows_out = chunk_rows // 2
    n_chunks = H // chunk_rows
    cw = chunk_rows * W              # matmul M per chunk
    cwv = cw // 2                    # rows after vertical pooling
    npool = rows_out * Wo            # pooled rows per chunk

    def compute_chunk(r0):
        acc = jnp.zeros((cw, Cout), jnp.float32)
        for kh in range(5):
            patch = im_ref[pl.ds(r0 + kh, chunk_rows), :, :]          # bf16
            acc = acc + jnp.dot(patch.reshape(cw, Kc), w_ref[kh],
                                preferred_element_type=jnp.float32)
        y = acc + bias                                                # f32
        # vertical (H) 2:1 max-pool via leading-dim reshapes (layout preserving)
        y = y.reshape(chunk_rows, W, Cout)
        y = jnp.max(y.reshape(rows_out, 2, W, Cout), axis=1)
        v = y.reshape(cwv, Cout)
        # horizontal (W) 2:1 max-pool: even/odd de-interleave via a 0/1
        # permutation matmul (MXU, bf16 - exact), then elementwise max in f32.
        r = jnp.dot(sel, v.astype(jnp.bfloat16),
                    preferred_element_type=jnp.float32)               # (cwv, Cout)
        return jnp.max(r.reshape(2, npool, Cout), axis=0)             # (npool, Cout)

    if flat_dst:
        # single chunk, flat 2-D destination (H/2*W/2, Cout)
        dst_ref[...] = compute_chunk(0).astype(dst_ref.dtype)
    else:
        def body(c, carry):
            r0 = pl.multiple_of(c * chunk_rows, chunk_rows)
            pooled = compute_chunk(r0).reshape(rows_out, Wo, Cout)
            dst_ref[pl.ds(dst_r0 + c * rows_out, rows_out),
                    dst_c0:dst_c0 + Wo, :] = pooled.astype(dst_ref.dtype)
            return carry
        jax.lax.fori_loop(0, n_chunks, body, 0)


# ----------------------------- whole network, one kernel per image -----------------------------
def _mynetwork_kernel(xim_ref,
                      c1w_ref, c1b_ref, c2w_ref, c2b_ref, c3w_ref, c3b_ref,
                      f1w_ref, f1b_ref, f2w_ref, f2b_ref,
                      sel64_ref, sel32_ref,
                      o_ref,
                      pad2_ref, im2_ref, pad3_ref, im3_ref, feat_ref):
    # zero only the 2-wide borders; interiors are fully overwritten below
    # (per-step, so each grid iteration is self-contained under megacore).
    _zero_border2(pad2_ref)
    _zero_border2(pad3_ref)

    sel64 = sel64_ref[...]
    sel32 = sel32_ref[...]

    # conv1 (Cin zero-padded 3->8, kw folded): 32x32 -> pooled 16x16x32 -> pad2 interior
    _conv5x5_bias_pool2(xim_ref, c1w_ref, c1b_ref[...], sel64,
                        H=32, W=32, Cout=32, chunk_rows=4,
                        dst_ref=pad2_ref, dst_r0=2, dst_c0=2)

    # conv2: 16x16x32 -> pooled 8x8x32 -> pad3 interior
    _build_im2col_w(pad2_ref, im2_ref, W=16, Cin=32)
    _conv5x5_bias_pool2(im2_ref, c2w_ref, c2b_ref[...], sel64,
                        H=16, W=16, Cout=32, chunk_rows=8,
                        dst_ref=pad3_ref, dst_r0=2, dst_c0=2)

    # conv3: 8x8x32 -> pooled 4x4x64 -> feat (16, 64), rows in (h, w) order
    _build_im2col_w(pad3_ref, im3_ref, W=8, Cin=32)
    _conv5x5_bias_pool2(im3_ref, c3w_ref, c3b_ref[...], sel32,
                        H=8, W=8, Cout=64, chunk_rows=8,
                        dst_ref=feat_ref, flat_dst=True)

    # Flatten (NHWC p-major order; Linear-1 weights were row-permuted at init so
    # this matches torch's NCHW Flatten exactly) -> ONE K=1024 matmul -> FC2.
    feat_flat = jnp.concatenate(
        [feat_ref[p:p + 1, :] for p in range(16)], axis=1)           # (1, 1024) bf16
    h = jnp.dot(feat_flat, f1w_ref[...],
                preferred_element_type=jnp.float32) + f1b_ref[...]   # (1, 64) f32
    o = jnp.dot(h, f2w_ref[...],
                preferred_element_type=jnp.float32) + f2b_ref[...]   # (1, 128) f32
    o_ref[...] = o.astype(o_ref.dtype)


def _pool_deinterleave_selector(n):
    """(n, n) 0/1 matrix; rows [0:n/2] pick even input rows, rows [n/2:n] odd."""
    npool = n // 2
    q = jnp.arange(n)[:, None]
    j = jnp.arange(n)[None, :]
    return (j == 2 * (q % npool) + q // npool).astype(jnp.bfloat16)


@jax.jit
def my_network_forward(x_nchw, p):
    N = x_nchw.shape[0]
    # NCHW -> NHWC, zero-pad Cin 3->8 and H,W by 2 ('same' padding), cast bf16,
    # and pre-build conv1's im2col-along-W slab (wrapper-side layout plumbing).
    x = jnp.transpose(x_nchw, (0, 2, 3, 1))
    x = jnp.pad(x, ((0, 0), (2, 2), (2, 2), (0, 5))).astype(jnp.bfloat16)
    x_im = jnp.concatenate([x[:, :, kw:kw + 32, :] for kw in range(5)], axis=-1)

    sel64 = _pool_deinterleave_selector(64)   # conv1 / conv2 pooling permutation
    sel32 = _pool_deinterleave_selector(32)   # conv3 pooling permutation

    out = pl.pallas_call(
        _mynetwork_kernel,
        out_shape=jax.ShapeDtypeStruct((N, 1, 128), jnp.float32),
        grid=(N,),
        in_specs=[
            pl.BlockSpec((None, 36, 32, 40), lambda n: (n, 0, 0, 0)),
            # weights / biases / selectors: constant index maps -> VMEM-resident
            pl.BlockSpec((5, 40, 32), lambda n: (0, 0, 0)),
            pl.BlockSpec((1, 32), lambda n: (0, 0)),
            pl.BlockSpec((5, 160, 32), lambda n: (0, 0, 0)),
            pl.BlockSpec((1, 32), lambda n: (0, 0)),
            pl.BlockSpec((5, 160, 64), lambda n: (0, 0, 0)),
            pl.BlockSpec((1, 64), lambda n: (0, 0)),
            pl.BlockSpec((1024, 64), lambda n: (0, 0)),
            pl.BlockSpec((1, 64), lambda n: (0, 0)),
            pl.BlockSpec((64, 128), lambda n: (0, 0)),
            pl.BlockSpec((1, 128), lambda n: (0, 0)),
            pl.BlockSpec((64, 64), lambda n: (0, 0)),
            pl.BlockSpec((32, 32), lambda n: (0, 0)),
        ],
        out_specs=pl.BlockSpec((None, 1, 128), lambda n: (n, 0, 0)),
        scratch_shapes=[
            pltpu.VMEM((20, 20, 32), jnp.bfloat16),   # conv2 padded input
            pltpu.VMEM((20, 16, 160), jnp.bfloat16),  # conv2 im2col-along-W
            pltpu.VMEM((12, 12, 32), jnp.bfloat16),   # conv3 padded input
            pltpu.VMEM((12, 8, 160), jnp.bfloat16),   # conv3 im2col-along-W
            pltpu.VMEM((16, 64), jnp.bfloat16),       # pooled conv3 features
        ],
        compiler_params=pltpu.CompilerParams(
            dimension_semantics=("parallel",)),       # one image per TC on v7x
    )(x_im,
      p["c1w_k"], p["c1b"].reshape(1, 32),
      p["c2w_k"], p["c2b"].reshape(1, 32),
      p["c3w_k"], p["c3b"].reshape(1, 64),
      p["f1w_k"], p["f1b"].reshape(1, 64),
      p["f2w_k"], p["f2b_k"],
      sel64, sel32)
    return out[:, 0, :10]


# ----------------------------- Parameters (deterministic, synthetic) -----------------------------
def init_params(key):
    ks = jax.random.split(key, 10)

    def conv_wb(kw_key, kb_key, cout, cin, ksz):
        # torch layout (Cout, Cin, K, K) -> HWIO (K, K, Cin, Cout)
        w = jax.random.normal(kw_key, (cout, cin, ksz, ksz), jnp.float32) * 0.05
        b = jax.random.normal(kb_key, (cout,), jnp.float32) * 0.05
        return jnp.transpose(w, (2, 3, 1, 0)), b

    def conv_kernel_form(w_hwio, cin_pad=None):
        # kw-folded, bf16 kernel form: (K, K*Cin, Cout), middle index = kw*Cin + ci
        w = w_hwio
        if cin_pad is not None:
            w = jnp.pad(w, ((0, 0), (0, 0), (0, cin_pad - w.shape[2]), (0, 0)))
        k, _, cin, cout = w.shape
        return w.reshape(k, k * cin, cout).astype(jnp.bfloat16)

    p = {}
    p["c1w"], p["c1b"] = conv_wb(ks[0], ks[1], 32, 3, 5)
    p["c2w"], p["c2b"] = conv_wb(ks[2], ks[3], 32, 32, 5)
    p["c3w"], p["c3b"] = conv_wb(ks[4], ks[5], 64, 32, 5)
    p["c1w_k"] = conv_kernel_form(p["c1w"], cin_pad=8)   # (5, 40, 32)
    p["c2w_k"] = conv_kernel_form(p["c2w"])              # (5, 160, 32)
    p["c3w_k"] = conv_kernel_form(p["c3w"])              # (5, 160, 64)

    # Linear(1024, 64): torch weight (64, 1024); inputs flattened in CHW order.
    w1_t = jax.random.normal(ks[6], (64, 1024), jnp.float32) * 0.05
    p["f1b"] = jax.random.normal(ks[7], (64,), jnp.float32) * 0.05
    p["f1w"] = jnp.transpose(w1_t, (1, 0))               # (1024, 64), CHW rows
    # kernel form: rows permuted to NHWC (h, w, c) flatten order, bf16
    p["f1w_k"] = (p["f1w"].reshape(64, 4, 4, 64)
                  .transpose(1, 2, 0, 3)
                  .reshape(1024, 64).astype(jnp.bfloat16))

    w2_t = jax.random.normal(ks[8], (10, 64), jnp.float32) * 0.05
    p["f2w"] = jnp.transpose(w2_t, (1, 0))               # (64, 10)
    p["f2b"] = jax.random.normal(ks[9], (10,), jnp.float32) * 0.05
    # lane-dense kernel form: pad 10 -> 128 output lanes with zeros
    p["f2w_k"] = jnp.pad(p["f2w"], ((0, 0), (0, 118)))   # (64, 128) f32
    p["f2b_k"] = jnp.pad(p["f2b"], (0, 118)).reshape(1, 128)
    return p


# ----------------------------- Pure-JAX reference -----------------------------
def ref_forward(x_nchw, p):
    x = jnp.transpose(x_nchw, (0, 2, 3, 1))
    for cw, cb in ((p["c1w"], p["c1b"]), (p["c2w"], p["c2b"]), (p["c3w"], p["c3b"])):
        x = jax.lax.conv_general_dilated(
            x, cw, (1, 1), ((2, 2), (2, 2)),
            dimension_numbers=("NHWC", "HWIO", "NHWC")) + cb
        x = jax.lax.reduce_window(x, -jnp.inf, jax.lax.max,
                                  (1, 2, 2, 1), (1, 2, 2, 1), "VALID")
    x = jnp.transpose(x, (0, 3, 1, 2)).reshape(x.shape[0], -1)  # torch Flatten (NCHW)
    x = x @ p["f1w"] + p["f1b"]
    x = x @ p["f2w"] + p["f2b"]
    return x


if __name__ == "__main__":
    key = jax.random.PRNGKey(0)
    kx, kp = jax.random.split(key)
    # Linear(in_features=1024) implies a 3x32x32 (CIFAR-10) input; batch=2.
    x = jax.random.normal(kx, (2, 3, 32, 32), jnp.float32)
    params = init_params(kp)

    out = jax.block_until_ready(my_network_forward(x, params))
    assert out.shape == (2, 10), out.shape

    ref = ref_forward(x, params)
    max_err = float(jnp.max(jnp.abs(out - ref)))
    # bf16 matmul inputs (f32 accumulation) -> slightly looser abs tolerance.
    assert jnp.allclose(out, ref, rtol=3e-2, atol=3e-2), f"max_err={max_err}"

    print("KERNEL_OK")
</pallas_src>

<mosaic_0001>
module attributes {stable_mosaic.version = 11 : i64} {
  func.func @_mynetwork_kernel(%arg0: i32, %arg1: memref<1x36x32x40xbf16, #tpu.memory_space<vmem>>, %arg2: memref<5x40x32xbf16, #tpu.memory_space<vmem>>, %arg3: memref<1x32xf32, #tpu.memory_space<vmem>>, %arg4: memref<5x160x32xbf16, #tpu.memory_space<vmem>>, %arg5: memref<1x32xf32, #tpu.memory_space<vmem>>, %arg6: memref<5x160x64xbf16, #tpu.memory_space<vmem>>, %arg7: memref<1x64xf32, #tpu.memory_space<vmem>>, %arg8: memref<1024x64xbf16, #tpu.memory_space<vmem>>, %arg9: memref<1x64xf32, #tpu.memory_space<vmem>>, %arg10: memref<64x128xf32, #tpu.memory_space<vmem>>, %arg11: memref<1x128xf32, #tpu.memory_space<vmem>>, %arg12: memref<64x64xbf16, #tpu.memory_space<vmem>>, %arg13: memref<32x32xbf16, #tpu.memory_space<vmem>>, %arg14: memref<1x1x128xf32, #tpu.memory_space<vmem>>, %arg15: memref<20x20x32xbf16, #tpu.memory_space<vmem>>, %arg16: memref<20x16x160xbf16, #tpu.memory_space<vmem>>, %arg17: memref<12x12x32xbf16, #tpu.memory_space<vmem>>, %arg18: memref<12x8x160xbf16, #tpu.memory_space<vmem>>, %arg19: memref<16x64xbf16, #tpu.memory_space<vmem>>) attributes {dimension_semantics = [#tpu.dimension_semantics<parallel>], iteration_bounds = array<i64: 2>, scalar_prefetch = 0 : i64, scratch_operands = 5 : i64, tpu.core_type = #tpu.core_type<tc>, window_params = [{transform_indices = @transform_0, window_bounds = array<i64: 1, 36, 32, 40>}, {pipeline_mode = #tpu.pipeline_mode<synchronous>, transform_indices = @transform_1, window_bounds = array<i64: 5, 40, 32>}, {pipeline_mode = #tpu.pipeline_mode<synchronous>, transform_indices = @transform_2, window_bounds = array<i64: 1, 32>}, {pipeline_mode = #tpu.pipeline_mode<synchronous>, transform_indices = @transform_3, window_bounds = array<i64: 5, 160, 32>}, {pipeline_mode = #tpu.pipeline_mode<synchronous>, transform_indices = @transform_4, window_bounds = array<i64: 1, 32>}, {pipeline_mode = #tpu.pipeline_mode<synchronous>, transform_indices = @transform_5, window_bounds = array<i64: 5, 160, 64>}, {pipeline_mode = #tpu.pipeline_mode<synchronous>, transform_indices = @transform_6, window_bounds = array<i64: 1, 64>}, {pipeline_mode = #tpu.pipeline_mode<synchronous>, transform_indices = @transform_7, window_bounds = array<i64: 1024, 64>}, {pipeline_mode = #tpu.pipeline_mode<synchronous>, transform_indices = @transform_8, window_bounds = array<i64: 1, 64>}, {pipeline_mode = #tpu.pipeline_mode<synchronous>, transform_indices = @transform_9, window_bounds = array<i64: 64, 128>}, {pipeline_mode = #tpu.pipeline_mode<synchronous>, transform_indices = @transform_10, window_bounds = array<i64: 1, 128>}, {pipeline_mode = #tpu.pipeline_mode<synchronous>, transform_indices = @transform_11, window_bounds = array<i64: 64, 64>}, {pipeline_mode = #tpu.pipeline_mode<synchronous>, transform_indices = @transform_12, window_bounds = array<i64: 32, 32>}, {transform_indices = @transform_13, window_bounds = array<i64: 1, 1, 128>}]} {
    %cst = arith.constant 0.000000e+00 : bf16
    %0 = vector.broadcast %cst : bf16 to vector<2x20x32xbf16>
    %c0 = arith.constant 0 : index
    %c0_0 = arith.constant 0 : index
    %c0_1 = arith.constant 0 : index
    %1 = vector.load %arg15[%c0, %c0_0, %c0_1] : memref<20x20x32xbf16, #tpu.memory_space<vmem>>, vector<2x20x32xbf16>
    tpu.vector_store %arg15[%c0, %c0_0, %c0_1], %0 {strides = array<i32>} : memref<20x20x32xbf16, #tpu.memory_space<vmem>>, vector<2x20x32xbf16>,
    %cst_2 = arith.constant 0.000000e+00 : bf16
    %2 = vector.broadcast %cst_2 : bf16 to vector<2x20x32xbf16>
    %c18 = arith.constant 18 : index
    %c0_3 = arith.constant 0 : index
    %c0_4 = arith.constant 0 : index
    %3 = vector.load %arg15[%c18, %c0_3, %c0_4] : memref<20x20x32xbf16, #tpu.memory_space<vmem>>, vector<2x20x32xbf16>
    tpu.vector_store %arg15[%c18, %c0_3, %c0_4], %2 {strides = array<i32>} : memref<20x20x32xbf16, #tpu.memory_space<vmem>>, vector<2x20x32xbf16>,
    %cst_5 = arith.constant 0.000000e+00 : bf16
    %4 = vector.broadcast %cst_5 : bf16 to vector<16x2x32xbf16>
    %c2 = arith.constant 2 : index
    %c0_6 = arith.constant 0 : index
    %c0_7 = arith.constant 0 : index
    %5 = vector.load %arg15[%c2, %c0_6, %c0_7] : memref<20x20x32xbf16, #tpu.memory_space<vmem>>, vector<16x2x32xbf16>
    tpu.vector_store %arg15[%c2, %c0_6, %c0_7], %4 {strides = array<i32>} : memref<20x20x32xbf16, #tpu.memory_space<vmem>>, vector<16x2x32xbf16>,
    %cst_8 = arith.constant 0.000000e+00 : bf16
    %6 = vector.broadcast %cst_8 : bf16 to vector<16x2x32xbf16>
    %c2_9 = arith.constant 2 : index
    %c18_10 = arith.constant 18 : index
    %c0_11 = arith.constant 0 : index
    %7 = vector.load %arg15[%c2_9, %c18_10, %c0_11] : memref<20x20x32xbf16, #tpu.memory_space<vmem>>, vector<16x2x32xbf16>
    tpu.vector_store %arg15[%c2_9, %c18_10, %c0_11], %6 {strides = array<i32>} : memref<20x20x32xbf16, #tpu.memory_space<vmem>>, vector<16x2x32xbf16>,
    %cst_12 = arith.constant 0.000000e+00 : bf16
    %8 = vector.broadcast %cst_12 : bf16 to vector<2x12x32xbf16>
    %c0_13 = arith.constant 0 : index
    %c0_14 = arith.constant 0 : index
    %c0_15 = arith.constant 0 : index
    %9 = vector.load %arg17[%c0_13, %c0_14, %c0_15] : memref<12x12x32xbf16, #tpu.memory_space<vmem>>, vector<2x12x32xbf16>
    tpu.vector_store %arg17[%c0_13, %c0_14, %c0_15], %8 {strides = array<i32>} : memref<12x12x32xbf16, #tpu.memory_space<vmem>>, vector<2x12x32xbf16>,
    %cst_16 = arith.constant 0.000000e+00 : bf16
    %10 = vector.broadcast %cst_16 : bf16 to vector<2x12x32xbf16>
    %c10 = arith.constant 10 : index
    %c0_17 = arith.constant 0 : index
    %c0_18 = arith.constant 0 : index
    %11 = vector.load %arg17[%c10, %c0_17, %c0_18] : memref<12x12x32xbf16, #tpu.memory_space<vmem>>, vector<2x12x32xbf16>
    tpu.vector_store %arg17[%c10, %c0_17, %c0_18], %10 {strides = array<i32>} : memref<12x12x32xbf16, #tpu.memory_space<vmem>>, vector<2x12x32xbf16>,
    %cst_19 = arith.constant 0.000000e+00 : bf16
    %12 = vector.broadcast %cst_19 : bf16 to vector<8x2x32xbf16>
    %c2_20 = arith.constant 2 : index
    %c0_21 = arith.constant 0 : index
    %c0_22 = arith.constant 0 : index
    %13 = vector.load %arg17[%c2_20, %c0_21, %c0_22] : memref<12x12x32xbf16, #tpu.memory_space<vmem>>, vector<8x2x32xbf16>
    tpu.vector_store %arg17[%c2_20, %c0_21, %c0_22], %12 {strides = array<i32>} : memref<12x12x32xbf16, #tpu.memory_space<vmem>>, vector<8x2x32xbf16>,
    %cst_23 = arith.constant 0.000000e+00 : bf16
    %14 = vector.broadcast %cst_23 : bf16 to vector<8x2x32xbf16>
    %c2_24 = arith.constant 2 : index
    %c10_25 = arith.constant 10 : index
    %c0_26 = arith.constant 0 : index
    %15 = vector.load %arg17[%c2_24, %c10_25, %c0_26] : memref<12x12x32xbf16, #tpu.memory_space<vmem>>, vector<8x2x32xbf16>
    tpu.vector_store %arg17[%c2_24, %c10_25, %c0_26], %14 {strides = array<i32>} : memref<12x12x32xbf16, #tpu.memory_space<vmem>>, vector<8x2x32xbf16>,
    %c0_27 = arith.constant 0 : index
    %c0_28 = arith.constant 0 : index
    %16 = vector.load %arg12[%c0_27, %c0_28] : memref<64x64xbf16, #tpu.memory_space<vmem>>, vector<64x64xbf16>
    %c0_29 = arith.constant 0 : index
    %c0_30 = arith.constant 0 : index
    %17 = vector.load %arg13[%c0_29, %c0_30] : memref<32x32xbf16, #tpu.memory_space<vmem>>, vector<32x32xbf16>
    %c0_31 = arith.constant 0 : index
    %c0_32 = arith.constant 0 : index
    %18 = vector.load %arg3[%c0_31, %c0_32] : memref<1x32xf32, #tpu.memory_space<vmem>>, vector<1x32xf32>
    %c0_i32 = arith.constant 0 : i32
    %c8_i32 = arith.constant 8 : i32
    %19 = arith.addi %c0_i32, %c8_i32 : i32
    %c1_i32 = arith.constant 1 : i32
    scf.for %arg20 = %c0_i32 to %19 step %c1_i32  : i32 {
      %c4_i32 = arith.constant 4 : i32
      %114 = arith.muli %arg20, %c4_i32 : i32
      %115 = tpu.assume_multiple %114, 4 : i32
      %cst_170 = arith.constant 0.000000e+00 : f32
      %116 = vector.broadcast %cst_170 : f32 to vector<128x32xf32>
      %c0_i32_171 = arith.constant 0 : i32
      %117 = arith.addi %115, %c0_i32_171 : i32
      %c0_172 = arith.constant 0 : index
      %118 = arith.index_cast %117 : i32 to index
      %c0_173 = arith.constant 0 : index
      %c0_174 = arith.constant 0 : index
      %119 = vector.load %arg1[%c0_172, %118, %c0_173, %c0_174] : memref<1x36x32x40xbf16, #tpu.memory_space<vmem>>, vector<1x4x32x40xbf16>
      %120 = vector.shape_cast %119 : vector<1x4x32x40xbf16> to vector<4x32x40xbf16>
      %121 = vector.shape_cast %120 : vector<4x32x40xbf16> to vector<128x40xbf16>
      %c0_175 = arith.constant 0 : index
      %c0_176 = arith.constant 0 : index
      %c0_177 = arith.constant 0 : index
      %122 = vector.load %arg2[%c0_175, %c0_176, %c0_177] : memref<5x40x32xbf16, #tpu.memory_space<vmem>>, vector<1x40x32xbf16>
      %123 = vector.shape_cast %122 : vector<1x40x32xbf16> to vector<40x32xbf16>
      %cst_178 = arith.constant dense<0.000000e+00> : vector<128x32xf32>
      %124 = tpu.matmul %121, %123, %cst_178 {dimension_numbers = #tpu.dot_dimension_numbers<[1], [0], [0], [1], [0, 0, 1, 1], [], []>} : vector<128x40xbf16>, vector<40x32xbf16>, vector<128x32xf32> -> vector<128x32xf32>
      %125 = arith.addf %116, %124 : vector<128x32xf32>
      %c1_i32_179 = arith.constant 1 : i32
      %126 = arith.addi %115, %c1_i32_179 : i32
      %c0_180 = arith.constant 0 : index
      %127 = arith.index_cast %126 : i32 to index
      %c0_181 = arith.constant 0 : index
      %c0_182 = arith.constant 0 : index
      %128 = vector.load %arg1[%c0_180, %127, %c0_181, %c0_182] : memref<1x36x32x40xbf16, #tpu.memory_space<vmem>>, vector<1x4x32x40xbf16>
      %129 = vector.shape_cast %128 : vector<1x4x32x40xbf16> to vector<4x32x40xbf16>
      %130 = vector.shape_cast %129 : vector<4x32x40xbf16> to vector<128x40xbf16>
      %c1_183 = arith.constant 1 : index
      %c0_184 = arith.constant 0 : index
      %c0_185 = arith.constant 0 : index
      %131 = vector.load %arg2[%c1_183, %c0_184, %c0_185] : memref<5x40x32xbf16, #tpu.memory_space<vmem>>, vector<1x40x32xbf16>
      %132 = vector.shape_cast %131 : vector<1x40x32xbf16> to vector<40x32xbf16>
      %cst_186 = arith.constant dense<0.000000e+00> : vector<128x32xf32>
      %133 = tpu.matmul %130, %132, %cst_186 {dimension_numbers = #tpu.dot_dimension_numbers<[1], [0], [0], [1], [0, 0, 1, 1], [], []>} : vector<128x40xbf16>, vector<40x32xbf16>, vector<128x32xf32> -> vector<128x32xf32>
      %134 = arith.addf %125, %133 : vector<128x32xf32>
      %c2_i32_187 = arith.constant 2 : i32
      %135 = arith.addi %115, %c2_i32_187 : i32
      %c0_188 = arith.constant 0 : index
      %136 = arith.index_cast %135 : i32 to index
      %c0_189 = arith.constant 0 : index
      %c0_190 = arith.constant 0 : index
      %137 = vector.load %arg1[%c0_188, %136, %c0_189, %c0_190] : memref<1x36x32x40xbf16, #tpu.memory_space<vmem>>, vector<1x4x32x40xbf16>
      %138 = vector.shape_cast %137 : vector<1x4x32x40xbf16> to vector<4x32x40xbf16>
      %139 = vector.shape_cast %138 : vector<4x32x40xbf16> to vector<128x40xbf16>
      %c2_191 = arith.constant 2 : index
      %c0_192 = arith.constant 0 : index
      %c0_193 = arith.constant 0 : index
      %140 = vector.load %arg2[%c2_191, %c0_192, %c0_193] : memref<5x40x32xbf16, #tpu.memory_space<vmem>>, vector<1x40x32xbf16>
      %141 = vector.shape_cast %140 : vector<1x40x32xbf16> to vector<40x32xbf16>
      %cst_194 = arith.constant dense<0.000000e+00> : vector<128x32xf32>
      %142 = tpu.matmul %139, %141, %cst_194 {dimension_numbers = #tpu.dot_dimension_numbers<[1], [0], [0], [1], [0, 0, 1, 1], [], []>} : vector<128x40xbf16>, vector<40x32xbf16>, vector<128x32xf32> -> vector<128x32xf32>
      %143 = arith.addf %134, %142 : vector<128x32xf32>
      %c3_i32 = arith.constant 3 : i32
      %144 = arith.addi %115, %c3_i32 : i32
      %c0_195 = arith.constant 0 : index
      %145 = arith.index_cast %144 : i32 to index
      %c0_196 = arith.constant 0 : index
      %c0_197 = arith.constant 0 : index
      %146 = vector.load %arg1[%c0_195, %145, %c0_196, %c0_197] : memref<1x36x32x40xbf16, #tpu.memory_space<vmem>>, vector<1x4x32x40xbf16>
      %147 = vector.shape_cast %146 : vector<1x4x32x40xbf16> to vector<4x32x40xbf16>
      %148 = vector.shape_cast %147 : vector<4x32x40xbf16> to vector<128x40xbf16>
      %c3_198 = arith.constant 3 : index
      %c0_199 = arith.constant 0 : index
      %c0_200 = arith.constant 0 : index
      %149 = vector.load %arg2[%c3_198, %c0_199, %c0_200] : memref<5x40x32xbf16, #tpu.memory_space<vmem>>, vector<1x40x32xbf16>
      %150 = vector.shape_cast %149 : vector<1x40x32xbf16> to vector<40x32xbf16>
      %cst_201 = arith.constant dense<0.000000e+00> : vector<128x32xf32>
      %151 = tpu.matmul %148, %150, %cst_201 {dimension_numbers = #tpu.dot_dimension_numbers<[1], [0], [0], [1], [0, 0, 1, 1], [], []>} : vector<128x40xbf16>, vector<40x32xbf16>, vector<128x32xf32> -> vector<128x32xf32>
      %152 = arith.addf %143, %151 : vector<128x32xf32>
      %c4_i32_202 = arith.constant 4 : i32
      %153 = arith.addi %115, %c4_i32_202 : i32
      %c0_203 = arith.constant 0 : index
      %154 = arith.index_cast %153 : i32 to index
      %c0_204 = arith.constant 0 : index
      %c0_205 = arith.constant 0 : index
      %155 = vector.load %arg1[%c0_203, %154, %c0_204, %c0_205] : memref<1x36x32x40xbf16, #tpu.memory_space<vmem>>, vector<1x4x32x40xbf16>
      %156 = vector.shape_cast %155 : vector<1x4x32x40xbf16> to vector<4x32x40xbf16>
      %157 = vector.shape_cast %156 : vector<4x32x40xbf16> to vector<128x40xbf16>
      %c4_206 = arith.constant 4 : index
      %c0_207 = arith.constant 0 : index
      %c0_208 = arith.constant 0 : index
      %158 = vector.load %arg2[%c4_206, %c0_207, %c0_208] : memref<5x40x32xbf16, #tpu.memory_space<vmem>>, vector<1x40x32xbf16>
      %159 = vector.shape_cast %158 : vector<1x40x32xbf16> to vector<40x32xbf16>
      %cst_209 = arith.constant dense<0.000000e+00> : vector<128x32xf32>
      %160 = tpu.matmul %157, %159, %cst_209 {dimension_numbers = #tpu.dot_dimension_numbers<[1], [0], [0], [1], [0, 0, 1, 1], [], []>} : vector<128x40xbf16>, vector<40x32xbf16>, vector<128x32xf32> -> vector<128x32xf32>
      %161 = arith.addf %152, %160 : vector<128x32xf32>
      %162 = vector.broadcast %18 : vector<1x32xf32> to vector<128x32xf32>
      %163 = arith.addf %161, %162 : vector<128x32xf32>
      %164 = vector.shape_cast %163 : vector<128x32xf32> to vector<4x32x32xf32>
      %165 = vector.shape_cast %164 : vector<4x32x32xf32> to vector<2x2x32x32xf32>
      %cst_210 = arith.constant dense<0xFF800000> : vector<2x32x32xf32>
      %166 = vector.multi_reduction <maximumf>, %165, %cst_210 [1] : vector<2x2x32x32xf32> to vector<2x32x32xf32>
      %167 = vector.shape_cast %166 : vector<2x32x32xf32> to vector<64x32xf32>
      %168 = arith.truncf %167 : vector<64x32xf32> to vector<64x32xbf16>
      %cst_211 = arith.constant dense<0.000000e+00> : vector<64x32xf32>
      %169 = tpu.matmul %16, %168, %cst_211 {dimension_numbers = #tpu.dot_dimension_numbers<[1], [0], [0], [1], [0, 0, 1, 1], [], []>} : vector<64x64xbf16>, vector<64x32xbf16>, vector<64x32xf32> -> vector<64x32xf32>
      %170 = vector.shape_cast %169 : vector<64x32xf32> to vector<2x32x32xf32>
      %cst_212 = arith.constant dense<0xFF800000> : vector<32x32xf32>
      %171 = vector.multi_reduction <maximumf>, %170, %cst_212 [0] : vector<2x32x32xf32> to vector<32x32xf32>
      %172 = vector.shape_cast %171 : vector<32x32xf32> to vector<2x16x32xf32>
      %173 = arith.truncf %172 : vector<2x16x32xf32> to vector<2x16x32xbf16>
      %c2_i32_213 = arith.constant 2 : i32
      %174 = arith.muli %arg20, %c2_i32_213 : i32
      %c2_i32_214 = arith.constant 2 : i32
      %175 = arith.addi %c2_i32_214, %174 : i32
      %176 = arith.index_cast %175 : i32 to index
      %c2_215 = arith.constant 2 : index
      %c0_216 = arith.constant 0 : index
      %177 = vector.load %arg15[%176, %c2_215, %c0_216] : memref<20x20x32xbf16, #tpu.memory_space<vmem>>, vector<2x16x32xbf16>
      tpu.vector_store %arg15[%176, %c2_215, %c0_216], %173 {strides = array<i32>} : memref<20x20x32xbf16, #tpu.memory_space<vmem>>, vector<2x16x32xbf16>,
    }
    %c8_i32_33 = arith.constant 8 : i32
    %c0_34 = arith.constant 0 : index
    %c0_35 = arith.constant 0 : index
    %c0_36 = arith.constant 0 : index
    %20 = vector.load %arg15[%c0_34, %c0_35, %c0_36] : memref<20x20x32xbf16, #tpu.memory_space<vmem>>, vector<20x16x32xbf16>
    %c0_37 = arith.constant 0 : index
    %c0_38 = arith.constant 0 : index
    %c0_39 = arith.constant 0 : index
    %21 = vector.load %arg16[%c0_37, %c0_38, %c0_39] : memref<20x16x160xbf16, #tpu.memory_space<vmem>>, vector<20x16x32xbf16>
    tpu.vector_store %arg16[%c0_37, %c0_38, %c0_39], %20 {strides = array<i32>} : memref<20x16x160xbf16, #tpu.memory_space<vmem>>, vector<20x16x32xbf16>,
    %c0_40 = arith.constant 0 : index
    %c1 = arith.constant 1 : index
    %c0_41 = arith.constant 0 : index
    %22 = vector.load %arg15[%c0_40, %c1, %c0_41] : memref<20x20x32xbf16, #tpu.memory_space<vmem>>, vector<20x16x32xbf16>
    %c0_42 = arith.constant 0 : index
    %c0_43 = arith.constant 0 : index
    %c32 = arith.constant 32 : index
    %23 = vector.load %arg16[%c0_42, %c0_43, %c32] : memref<20x16x160xbf16, #tpu.memory_space<vmem>>, vector<20x16x32xbf16>
    tpu.vector_store %arg16[%c0_42, %c0_43, %c32], %22 {strides = array<i32>} : memref<20x16x160xbf16, #tpu.memory_space<vmem>>, vector<20x16x32xbf16>,
    %c0_44 = arith.constant 0 : index
    %c2_45 = arith.constant 2 : index
    %c0_46 = arith.constant 0 : index
    %24 = vector.load %arg15[%c0_44, %c2_45, %c0_46] : memref<20x20x32xbf16, #tpu.memory_space<vmem>>, vector<20x16x32xbf16>
    %c0_47 = arith.constant 0 : index
    %c0_48 = arith.constant 0 : index
    %c64 = arith.constant 64 : index
    %25 = vector.load %arg16[%c0_47, %c0_48, %c64] : memref<20x16x160xbf16, #tpu.memory_space<vmem>>, vector<20x16x32xbf16>
    tpu.vector_store %arg16[%c0_47, %c0_48, %c64], %24 {strides = array<i32>} : memref<20x16x160xbf16, #tpu.memory_space<vmem>>, vector<20x16x32xbf16>,
    %c0_49 = arith.constant 0 : index
    %c3 = arith.constant 3 : index
    %c0_50 = arith.constant 0 : index
    %26 = vector.load %arg15[%c0_49, %c3, %c0_50] : memref<20x20x32xbf16, #tpu.memory_space<vmem>>, vector<20x16x32xbf16>
    %c0_51 = arith.constant 0 : index
    %c0_52 = arith.constant 0 : index
    %c96 = arith.constant 96 : index
    %27 = vector.load %arg16[%c0_51, %c0_52, %c96] : memref<20x16x160xbf16, #tpu.memory_space<vmem>>, vector<20x16x32xbf16>
    tpu.vector_store %arg16[%c0_51, %c0_52, %c96], %26 {strides = array<i32>} : memref<20x16x160xbf16, #tpu.memory_space<vmem>>, vector<20x16x32xbf16>,
    %c0_53 = arith.constant 0 : index
    %c4 = arith.constant 4 : index
    %c0_54 = arith.constant 0 : index
    %28 = vector.load %arg15[%c0_53, %c4, %c0_54] : memref<20x20x32xbf16, #tpu.memory_space<vmem>>, vector<20x16x32xbf16>
    %c0_55 = arith.constant 0 : index
    %c0_56 = arith.constant 0 : index
    %c128 = arith.constant 128 : index
    %29 = vector.load %arg16[%c0_55, %c0_56, %c128] : memref<20x16x160xbf16, #tpu.memory_space<vmem>>, vector<20x16x32xbf16>
    tpu.vector_store %arg16[%c0_55, %c0_56, %c128], %28 {strides = array<i32>} : memref<20x16x160xbf16, #tpu.memory_space<vmem>>, vector<20x16x32xbf16>,
    %c0_57 = arith.constant 0 : index
    %c0_58 = arith.constant 0 : index
    %30 = vector.load %arg5[%c0_57, %c0_58] : memref<1x32xf32, #tpu.memory_space<vmem>>, vector<1x32xf32>
    %c0_i32_59 = arith.constant 0 : i32
    %c2_i32 = arith.constant 2 : i32
    %31 = arith.addi %c0_i32_59, %c2_i32 : i32
    %c1_i32_60 = arith.constant 1 : i32
    scf.for %arg20 = %c0_i32_59 to %31 step %c1_i32_60  : i32 {
      %c8_i32_170 = arith.constant 8 : i32
      %114 = arith.muli %arg20, %c8_i32_170 : i32
      %115 = tpu.assume_multiple %114, 8 : i32
      %cst_171 = arith.constant 0.000000e+00 : f32
      %116 = vector.broadcast %cst_171 : f32 to vector<128x32xf32>
      %c0_i32_172 = arith.constant 0 : i32
      %117 = arith.addi %115, %c0_i32_172 : i32
      %118 = arith.index_cast %117 : i32 to index
      %c0_173 = arith.constant 0 : index
      %c0_174 = arith.constant 0 : index
      %119 = vector.load %arg16[%118, %c0_173, %c0_174] : memref<20x16x160xbf16, #tpu.memory_space<vmem>>, vector<8x16x160xbf16>
      %120 = vector.shape_cast %119 : vector<8x16x160xbf16> to vector<128x160xbf16>
      %c0_175 = arith.constant 0 : index
      %c0_176 = arith.constant 0 : index
      %c0_177 = arith.constant 0 : index
      %121 = vector.load %arg4[%c0_175, %c0_176, %c0_177] : memref<5x160x32xbf16, #tpu.memory_space<vmem>>, vector<1x160x32xbf16>
      %122 = vector.shape_cast %121 : vector<1x160x32xbf16> to vector<160x32xbf16>
      %cst_178 = arith.constant dense<0.000000e+00> : vector<128x32xf32>
      %123 = tpu.matmul %120, %122, %cst_178 {dimension_numbers = #tpu.dot_dimension_numbers<[1], [0], [0], [1], [0, 0, 1, 1], [], []>} : vector<128x160xbf16>, vector<160x32xbf16>, vector<128x32xf32> -> vector<128x32xf32>
      %124 = arith.addf %116, %123 : vector<128x32xf32>
      %c1_i32_179 = arith.constant 1 : i32
      %125 = arith.addi %115, %c1_i32_179 : i32
      %126 = arith.index_cast %125 : i32 to index
      %c0_180 = arith.constant 0 : index
      %c0_181 = arith.constant 0 : index
      %127 = vector.load %arg16[%126, %c0_180, %c0_181] : memref<20x16x160xbf16, #tpu.memory_space<vmem>>, vector<8x16x160xbf16>
      %128 = vector.shape_cast %127 : vector<8x16x160xbf16> to vector<128x160xbf16>
      %c1_182 = arith.constant 1 : index
      %c0_183 = arith.constant 0 : index
      %c0_184 = arith.constant 0 : index
      %129 = vector.load %arg4[%c1_182, %c0_183, %c0_184] : memref<5x160x32xbf16, #tpu.memory_space<vmem>>, vector<1x160x32xbf16>
      %130 = vector.shape_cast %129 : vector<1x160x32xbf16> to vector<160x32xbf16>
      %cst_185 = arith.constant dense<0.000000e+00> : vector<128x32xf32>
      %131 = tpu.matmul %128, %130, %cst_185 {dimension_numbers = #tpu.dot_dimension_numbers<[1], [0], [0], [1], [0, 0, 1, 1], [], []>} : vector<128x160xbf16>, vector<160x32xbf16>, vector<128x32xf32> -> vector<128x32xf32>
      %132 = arith.addf %124, %131 : vector<128x32xf32>
      %c2_i32_186 = arith.constant 2 : i32
      %133 = arith.addi %115, %c2_i32_186 : i32
      %134 = arith.index_cast %133 : i32 to index
      %c0_187 = arith.constant 0 : index
      %c0_188 = arith.constant 0 : index
      %135 = vector.load %arg16[%134, %c0_187, %c0_188] : memref<20x16x160xbf16, #tpu.memory_space<vmem>>, vector<8x16x160xbf16>
      %136 = vector.shape_cast %135 : vector<8x16x160xbf16> to vector<128x160xbf16>
      %c2_189 = arith.constant 2 : index
      %c0_190 = arith.constant 0 : index
      %c0_191 = arith.constant 0 : index
      %137 = vector.load %arg4[%c2_189, %c0_190, %c0_191] : memref<5x160x32xbf16, #tpu.memory_space<vmem>>, vector<1x160x32xbf16>
      %138 = vector.shape_cast %137 : vector<1x160x32xbf16> to vector<160x32xbf16>
      %cst_192 = arith.constant dense<0.000000e+00> : vector<128x32xf32>
      %139 = tpu.matmul %136, %138, %cst_192 {dimension_numbers = #tpu.dot_dimension_numbers<[1], [0], [0], [1], [0, 0, 1, 1], [], []>} : vector<128x160xbf16>, vector<160x32xbf16>, vector<128x32xf32> -> vector<128x32xf32>
      %140 = arith.addf %132, %139 : vector<128x32xf32>
      %c3_i32 = arith.constant 3 : i32
      %141 = arith.addi %115, %c3_i32 : i32
      %142 = arith.index_cast %141 : i32 to index
      %c0_193 = arith.constant 0 : index
      %c0_194 = arith.constant 0 : index
      %143 = vector.load %arg16[%142, %c0_193, %c0_194] : memref<20x16x160xbf16, #tpu.memory_space<vmem>>, vector<8x16x160xbf16>
      %144 = vector.shape_cast %143 : vector<8x16x160xbf16> to vector<128x160xbf16>
      %c3_195 = arith.constant 3 : index
      %c0_196 = arith.constant 0 : index
      %c0_197 = arith.constant 0 : index
      %145 = vector.load %arg4[%c3_195, %c0_196, %c0_197] : memref<5x160x32xbf16, #tpu.memory_space<vmem>>, vector<1x160x32xbf16>
      %146 = vector.shape_cast %145 : vector<1x160x32xbf16> to vector<160x32xbf16>
      %cst_198 = arith.constant dense<0.000000e+00> : vector<128x32xf32>
      %147 = tpu.matmul %144, %146, %cst_198 {dimension_numbers = #tpu.dot_dimension_numbers<[1], [0], [0], [1], [0, 0, 1, 1], [], []>} : vector<128x160xbf16>, vector<160x32xbf16>, vector<128x32xf32> -> vector<128x32xf32>
      %148 = arith.addf %140, %147 : vector<128x32xf32>
      %c4_i32 = arith.constant 4 : i32
      %149 = arith.addi %115, %c4_i32 : i32
      %150 = arith.index_cast %149 : i32 to index
      %c0_199 = arith.constant 0 : index
      %c0_200 = arith.constant 0 : index
      %151 = vector.load %arg16[%150, %c0_199, %c0_200] : memref<20x16x160xbf16, #tpu.memory_space<vmem>>, vector<8x16x160xbf16>
      %152 = vector.shape_cast %151 : vector<8x16x160xbf16> to vector<128x160xbf16>
      %c4_201 = arith.constant 4 : index
      %c0_202 = arith.constant 0 : index
      %c0_203 = arith.constant 0 : index
      %153 = vector.load %arg4[%c4_201, %c0_202, %c0_203] : memref<5x160x32xbf16, #tpu.memory_space<vmem>>, vector<1x160x32xbf16>
      %154 = vector.shape_cast %153 : vector<1x160x32xbf16> to vector<160x32xbf16>
      %cst_204 = arith.constant dense<0.000000e+00> : vector<128x32xf32>
      %155 = tpu.matmul %152, %154, %cst_204 {dimension_numbers = #tpu.dot_dimension_numbers<[1], [0], [0], [1], [0, 0, 1, 1], [], []>} : vector<128x160xbf16>, vector<160x32xbf16>, vector<128x32xf32> -> vector<128x32xf32>
      %156 = arith.addf %148, %155 : vector<128x32xf32>
      %157 = vector.broadcast %30 : vector<1x32xf32> to vector<128x32xf32>
      %158 = arith.addf %156, %157 : vector<128x32xf32>
      %159 = vector.shape_cast %158 : vector<128x32xf32> to vector<8x16x32xf32>
      %160 = vector.shape_cast %159 : vector<8x16x32xf32> to vector<4x2x16x32xf32>
      %cst_205 = arith.constant dense<0xFF800000> : vector<4x16x32xf32>
      %161 = vector.multi_reduction <maximumf>, %160, %cst_205 [1] : vector<4x2x16x32xf32> to vector<4x16x32xf32>
      %162 = vector.shape_cast %161 : vector<4x16x32xf32> to vector<64x32xf32>
      %163 = arith.truncf %162 : vector<64x32xf32> to vector<64x32xbf16>
      %cst_206 = arith.constant dense<0.000000e+00> : vector<64x32xf32>
      %164 = tpu.matmul %16, %163, %cst_206 {dimension_numbers = #tpu.dot_dimension_numbers<[1], [0], [0], [1], [0, 0, 1, 1], [], []>} : vector<64x64xbf16>, vector<64x32xbf16>, vector<64x32xf32> -> vector<64x32xf32>
      %165 = vector.shape_cast %164 : vector<64x32xf32> to vector<2x32x32xf32>
      %cst_207 = arith.constant dense<0xFF800000> : vector<32x32xf32>
      %166 = vector.multi_reduction <maximumf>, %165, %cst_207 [0] : vector<2x32x32xf32> to vector<32x32xf32>
      %167 = vector.shape_cast %166 : vector<32x32xf32> to vector<4x8x32xf32>
      %168 = arith.truncf %167 : vector<4x8x32xf32> to vector<4x8x32xbf16>
      %c4_i32_208 = arith.constant 4 : i32
      %169 = arith.muli %arg20, %c4_i32_208 : i32
      %c2_i32_209 = arith.constant 2 : i32
      %170 = arith.addi %c2_i32_209, %169 : i32
      %171 = arith.index_cast %170 : i32 to index
      %c2_210 = arith.constant 2 : index
      %c0_211 = arith.constant 0 : index
      %172 = vector.load %arg17[%171, %c2_210, %c0_211] : memref<12x12x32xbf16, #tpu.memory_space<vmem>>, vector<4x8x32xbf16>
      tpu.vector_store %arg17[%171, %c2_210, %c0_211], %168 {strides = array<i32>} : memref<12x12x32xbf16, #tpu.memory_space<vmem>>, vector<4x8x32xbf16>,
    }
    %c2_i32_61 = arith.constant 2 : i32
    %c0_62 = arith.constant 0 : index
    %c0_63 = arith.constant 0 : index
    %c0_64 = arith.constant 0 : index
    %32 = vector.load %arg17[%c0_62, %c0_63, %c0_64] : memref<12x12x32xbf16, #tpu.memory_space<vmem>>, vector<12x8x32xbf16>
    %c0_65 = arith.constant 0 : index
    %c0_66 = arith.constant 0 : index
    %c0_67 = arith.constant 0 : index
    %33 = vector.load %arg18[%c0_65, %c0_66, %c0_67] : memref<12x8x160xbf16, #tpu.memory_space<vmem>>, vector<12x8x32xbf16>
    tpu.vector_store %arg18[%c0_65, %c0_66, %c0_67], %32 {strides = array<i32>} : memref<12x8x160xbf16, #tpu.memory_space<vmem>>, vector<12x8x32xbf16>,
    %c0_68 = arith.constant 0 : index
    %c1_69 = arith.constant 1 : index
    %c0_70 = arith.constant 0 : index
    %34 = vector.load %arg17[%c0_68, %c1_69, %c0_70] : memref<12x12x32xbf16, #tpu.memory_space<vmem>>, vector<12x8x32xbf16>
    %c0_71 = arith.constant 0 : index
    %c0_72 = arith.constant 0 : index
    %c32_73 = arith.constant 32 : index
    %35 = vector.load %arg18[%c0_71, %c0_72, %c32_73] : memref<12x8x160xbf16, #tpu.memory_space<vmem>>, vector<12x8x32xbf16>
    tpu.vector_store %arg18[%c0_71, %c0_72, %c32_73], %34 {strides = array<i32>} : memref<12x8x160xbf16, #tpu.memory_space<vmem>>, vector<12x8x32xbf16>,
    %c0_74 = arith.constant 0 : index
    %c2_75 = arith.constant 2 : index
    %c0_76 = arith.constant 0 : index
    %36 = vector.load %arg17[%c0_74, %c2_75, %c0_76] : memref<12x12x32xbf16, #tpu.memory_space<vmem>>, vector<12x8x32xbf16>
    %c0_77 = arith.constant 0 : index
    %c0_78 = arith.constant 0 : index
    %c64_79 = arith.constant 64 : index
    %37 = vector.load %arg18[%c0_77, %c0_78, %c64_79] : memref<12x8x160xbf16, #tpu.memory_space<vmem>>, vector<12x8x32xbf16>
    tpu.vector_store %arg18[%c0_77, %c0_78, %c64_79], %36 {strides = array<i32>} : memref<12x8x160xbf16, #tpu.memory_space<vmem>>, vector<12x8x32xbf16>,
    %c0_80 = arith.constant 0 : index
    %c3_81 = arith.constant 3 : index
    %c0_82 = arith.constant 0 : index
    %38 = vector.load %arg17[%c0_80, %c3_81, %c0_82] : memref<12x12x32xbf16, #tpu.memory_space<vmem>>, vector<12x8x32xbf16>
    %c0_83 = arith.constant 0 : index
    %c0_84 = arith.constant 0 : index
    %c96_85 = arith.constant 96 : index
    %39 = vector.load %arg18[%c0_83, %c0_84, %c96_85] : memref<12x8x160xbf16, #tpu.memory_space<vmem>>, vector<12x8x32xbf16>
    tpu.vector_store %arg18[%c0_83, %c0_84, %c96_85], %38 {strides = array<i32>} : memref<12x8x160xbf16, #tpu.memory_space<vmem>>, vector<12x8x32xbf16>,
    %c0_86 = arith.constant 0 : index
    %c4_87 = arith.constant 4 : index
    %c0_88 = arith.constant 0 : index
    %40 = vector.load %arg17[%c0_86, %c4_87, %c0_88] : memref<12x12x32xbf16, #tpu.memory_space<vmem>>, vector<12x8x32xbf16>
    %c0_89 = arith.constant 0 : index
    %c0_90 = arith.constant 0 : index
    %c128_91 = arith.constant 128 : index
    %41 = vector.load %arg18[%c0_89, %c0_90, %c128_91] : memref<12x8x160xbf16, #tpu.memory_space<vmem>>, vector<12x8x32xbf16>
    tpu.vector_store %arg18[%c0_89, %c0_90, %c128_91], %40 {strides = array<i32>} : memref<12x8x160xbf16, #tpu.memory_space<vmem>>, vector<12x8x32xbf16>,
    %c0_92 = arith.constant 0 : index
    %c0_93 = arith.constant 0 : index
    %42 = vector.load %arg7[%c0_92, %c0_93] : memref<1x64xf32, #tpu.memory_space<vmem>>, vector<1x64xf32>
    %cst_94 = arith.constant 0.000000e+00 : f32
    %43 = vector.broadcast %cst_94 : f32 to vector<64x64xf32>
    %c0_95 = arith.constant 0 : index
    %c0_96 = arith.constant 0 : index
    %c0_97 = arith.constant 0 : index
    %44 = vector.load %arg18[%c0_95, %c0_96, %c0_97] : memref<12x8x160xbf16, #tpu.memory_space<vmem>>, vector<8x8x160xbf16>
    %45 = vector.shape_cast %44 : vector<8x8x160xbf16> to vector<64x160xbf16>
    %c0_98 = arith.constant 0 : index
    %c0_99 = arith.constant 0 : index
    %c0_100 = arith.constant 0 : index
    %46 = vector.load %arg6[%c0_98, %c0_99, %c0_100] : memref<5x160x64xbf16, #tpu.memory_space<vmem>>, vector<1x160x64xbf16>
    %47 = vector.shape_cast %46 : vector<1x160x64xbf16> to vector<160x64xbf16>
    %cst_101 = arith.constant dense<0.000000e+00> : vector<64x64xf32>
    %48 = tpu.matmul %45, %47, %cst_101 {dimension_numbers = #tpu.dot_dimension_numbers<[1], [0], [0], [1], [0, 0, 1, 1], [], []>} : vector<64x160xbf16>, vector<160x64xbf16>, vector<64x64xf32> -> vector<64x64xf32>
    %49 = arith.addf %43, %48 : vector<64x64xf32>
    %c1_102 = arith.constant 1 : index
    %c0_103 = arith.constant 0 : index
    %c0_104 = arith.constant 0 : index
    %50 = vector.load %arg18[%c1_102, %c0_103, %c0_104] : memref<12x8x160xbf16, #tpu.memory_space<vmem>>, vector<8x8x160xbf16>
    %51 = vector.shape_cast %50 : vector<8x8x160xbf16> to vector<64x160xbf16>
    %c1_105 = arith.constant 1 : index
    %c0_106 = arith.constant 0 : index
    %c0_107 = arith.constant 0 : index
    %52 = vector.load %arg6[%c1_105, %c0_106, %c0_107] : memref<5x160x64xbf16, #tpu.memory_space<vmem>>, vector<1x160x64xbf16>
    %53 = vector.shape_cast %52 : vector<1x160x64xbf16> to vector<160x64xbf16>
    %cst_108 = arith.constant dense<0.000000e+00> : vector<64x64xf32>
    %54 = tpu.matmul %51, %53, %cst_108 {dimension_numbers = #tpu.dot_dimension_numbers<[1], [0], [0], [1], [0, 0, 1, 1], [], []>} : vector<64x160xbf16>, vector<160x64xbf16>, vector<64x64xf32> -> vector<64x64xf32>
    %55 = arith.addf %49, %54 : vector<64x64xf32>
    %c2_109 = arith.constant 2 : index
    %c0_110 = arith.constant 0 : index
    %c0_111 = arith.constant 0 : index
    %56 = vector.load %arg18[%c2_109, %c0_110, %c0_111] : memref<12x8x160xbf16, #tpu.memory_space<vmem>>, vector<8x8x160xbf16>
    %57 = vector.shape_cast %56 : vector<8x8x160xbf16> to vector<64x160xbf16>
    %c2_112 = arith.constant 2 : index
    %c0_113 = arith.constant 0 : index
    %c0_114 = arith.constant 0 : index
    %58 = vector.load %arg6[%c2_112, %c0_113, %c0_114] : memref<5x160x64xbf16, #tpu.memory_space<vmem>>, vector<1x160x64xbf16>
    %59 = vector.shape_cast %58 : vector<1x160x64xbf16> to vector<160x64xbf16>
    %cst_115 = arith.constant dense<0.000000e+00> : vector<64x64xf32>
    %60 = tpu.matmul %57, %59, %cst_115 {dimension_numbers = #tpu.dot_dimension_numbers<[1], [0], [0], [1], [0, 0, 1, 1], [], []>} : vector<64x160xbf16>, vector<160x64xbf16>, vector<64x64xf32> -> vector<64x64xf32>
    %61 = arith.addf %55, %60 : vector<64x64xf32>
    %c3_116 = arith.constant 3 : index
    %c0_117 = arith.constant 0 : index
    %c0_118 = arith.constant 0 : index
    %62 = vector.load %arg18[%c3_116, %c0_117, %c0_118] : memref<12x8x160xbf16, #tpu.memory_space<vmem>>, vector<8x8x160xbf16>
    %63 = vector.shape_cast %62 : vector<8x8x160xbf16> to vector<64x160xbf16>
    %c3_119 = arith.constant 3 : index
    %c0_120 = arith.constant 0 : index
    %c0_121 = arith.constant 0 : index
    %64 = vector.load %arg6[%c3_119, %c0_120, %c0_121] : memref<5x160x64xbf16, #tpu.memory_space<vmem>>, vector<1x160x64xbf16>
    %65 = vector.shape_cast %64 : vector<1x160x64xbf16> to vector<160x64xbf16>
    %cst_122 = arith.constant dense<0.000000e+00> : vector<64x64xf32>
    %66 = tpu.matmul %63, %65, %cst_122 {dimension_numbers = #tpu.dot_dimension_numbers<[1], [0], [0], [1], [0, 0, 1, 1], [], []>} : vector<64x160xbf16>, vector<160x64xbf16>, vector<64x64xf32> -> vector<64x64xf32>
    %67 = arith.addf %61, %66 : vector<64x64xf32>
    %c4_123 = arith.constant 4 : index
    %c0_124 = arith.constant 0 : index
    %c0_125 = arith.constant 0 : index
    %68 = vector.load %arg18[%c4_123, %c0_124, %c0_125] : memref<12x8x160xbf16, #tpu.memory_space<vmem>>, vector<8x8x160xbf16>
    %69 = vector.shape_cast %68 : vector<8x8x160xbf16> to vector<64x160xbf16>
    %c4_126 = arith.constant 4 : index
    %c0_127 = arith.constant 0 : index
    %c0_128 = arith.constant 0 : index
    %70 = vector.load %arg6[%c4_126, %c0_127, %c0_128] : memref<5x160x64xbf16, #tpu.memory_space<vmem>>, vector<1x160x64xbf16>
    %71 = vector.shape_cast %70 : vector<1x160x64xbf16> to vector<160x64xbf16>
    %cst_129 = arith.constant dense<0.000000e+00> : vector<64x64xf32>
    %72 = tpu.matmul %69, %71, %cst_129 {dimension_numbers = #tpu.dot_dimension_numbers<[1], [0], [0], [1], [0, 0, 1, 1], [], []>} : vector<64x160xbf16>, vector<160x64xbf16>, vector<64x64xf32> -> vector<64x64xf32>
    %73 = arith.addf %67, %72 : vector<64x64xf32>
    %74 = vector.broadcast %42 : vector<1x64xf32> to vector<64x64xf32>
    %75 = arith.addf %73, %74 : vector<64x64xf32>
    %76 = vector.shape_cast %75 : vector<64x64xf32> to vector<8x8x64xf32>
    %77 = vector.shape_cast %76 : vector<8x8x64xf32> to vector<4x2x8x64xf32>
    %cst_130 = arith.constant dense<0xFF800000> : vector<4x8x64xf32>
    %78 = vector.multi_reduction <maximumf>, %77, %cst_130 [1] : vector<4x2x8x64xf32> to vector<4x8x64xf32>
    %79 = vector.shape_cast %78 : vector<4x8x64xf32> to vector<32x64xf32>
    %80 = arith.truncf %79 : vector<32x64xf32> to vector<32x64xbf16>
    %cst_131 = arith.constant dense<0.000000e+00> : vector<32x64xf32>
    %81 = tpu.matmul %17, %80, %cst_131 {dimension_numbers = #tpu.dot_dimension_numbers<[1], [0], [0], [1], [0, 0, 1, 1], [], []>} : vector<32x32xbf16>, vector<32x64xbf16>, vector<32x64xf32> -> vector<32x64xf32>
    %82 = vector.shape_cast %81 : vector<32x64xf32> to vector<2x16x64xf32>
    %cst_132 = arith.constant dense<0xFF800000> : vector<16x64xf32>
    %83 = vector.multi_reduction <maximumf>, %82, %cst_132 [0] : vector<2x16x64xf32> to vector<16x64xf32>
    %84 = arith.truncf %83 : vector<16x64xf32> to vector<16x64xbf16>
    %c0_133 = arith.constant 0 : index
    %c0_134 = arith.constant 0 : index
    %85 = vector.load %arg19[%c0_133, %c0_134] : memref<16x64xbf16, #tpu.memory_space<vmem>>, vector<16x64xbf16>
    tpu.vector_store %arg19[%c0_133, %c0_134], %84 {strides = array<i32>} : memref<16x64xbf16, #tpu.memory_space<vmem>>, vector<16x64xbf16>,
    %c0_135 = arith.constant 0 : index
    %c0_136 = arith.constant 0 : index
    %86 = vector.load %arg19[%c0_135, %c0_136] : memref<16x64xbf16, #tpu.memory_space<vmem>>, vector<1x64xbf16>
    %c1_137 = arith.constant 1 : index
    %c0_138 = arith.constant 0 : index
    %87 = vector.load %arg19[%c1_137, %c0_138] : memref<16x64xbf16, #tpu.memory_space<vmem>>, vector<1x64xbf16>
    %c2_139 = arith.constant 2 : index
    %c0_140 = arith.constant 0 : index
    %88 = vector.load %arg19[%c2_139, %c0_140] : memref<16x64xbf16, #tpu.memory_space<vmem>>, vector<1x64xbf16>
    %c3_141 = arith.constant 3 : index
    %c0_142 = arith.constant 0 : index
    %89 = vector.load %arg19[%c3_141, %c0_142] : memref<16x64xbf16, #tpu.memory_space<vmem>>, vector<1x64xbf16>
    %c4_143 = arith.constant 4 : index
    %c0_144 = arith.constant 0 : index
    %90 = vector.load %arg19[%c4_143, %c0_144] : memref<16x64xbf16, #tpu.memory_space<vmem>>, vector<1x64xbf16>
    %c5 = arith.constant 5 : index
    %c0_145 = arith.constant 0 : index
    %91 = vector.load %arg19[%c5, %c0_145] : memref<16x64xbf16, #tpu.memory_space<vmem>>, vector<1x64xbf16>
    %c6 = arith.constant 6 : index
    %c0_146 = arith.constant 0 : index
    %92 = vector.load %arg19[%c6, %c0_146] : memref<16x64xbf16, #tpu.memory_space<vmem>>, vector<1x64xbf16>
    %c7 = arith.constant 7 : index
    %c0_147 = arith.constant 0 : index
    %93 = vector.load %arg19[%c7, %c0_147] : memref<16x64xbf16, #tpu.memory_space<vmem>>, vector<1x64xbf16>
    %c8 = arith.constant 8 : index
    %c0_148 = arith.constant 0 : index
    %94 = vector.load %arg19[%c8, %c0_148] : memref<16x64xbf16, #tpu.memory_space<vmem>>, vector<1x64xbf16>
    %c9 = arith.constant 9 : index
    %c0_149 = arith.constant 0 : index
    %95 = vector.load %arg19[%c9, %c0_149] : memref<16x64xbf16, #tpu.memory_space<vmem>>, vector<1x64xbf16>
    %c10_150 = arith.constant 10 : index
    %c0_151 = arith.constant 0 : index
    %96 = vector.load %arg19[%c10_150, %c0_151] : memref<16x64xbf16, #tpu.memory_space<vmem>>, vector<1x64xbf16>
    %c11 = arith.constant 11 : index
    %c0_152 = arith.constant 0 : index
    %97 = vector.load %arg19[%c11, %c0_152] : memref<16x64xbf16, #tpu.memory_space<vmem>>, vector<1x64xbf16>
    %c12 = arith.constant 12 : index
    %c0_153 = arith.constant 0 : index
    %98 = vector.load %arg19[%c12, %c0_153] : memref<16x64xbf16, #tpu.memory_space<vmem>>, vector<1x64xbf16>
    %c13 = arith.constant 13 : index
    %c0_154 = arith.constant 0 : index
    %99 = vector.load %arg19[%c13, %c0_154] : memref<16x64xbf16, #tpu.memory_space<vmem>>, vector<1x64xbf16>
    %c14 = arith.constant 14 : index
    %c0_155 = arith.constant 0 : index
    %100 = vector.load %arg19[%c14, %c0_155] : memref<16x64xbf16, #tpu.memory_space<vmem>>, vector<1x64xbf16>
    %c15 = arith.constant 15 : index
    %c0_156 = arith.constant 0 : index
    %101 = vector.load %arg19[%c15, %c0_156] : memref<16x64xbf16, #tpu.memory_space<vmem>>, vector<1x64xbf16>
    %102 = tpu.concatenate %86, %87, %88, %89, %90, %91, %92, %93, %94, %95, %96, %97, %98, %99, %100, %101 in 1 : vector<1x64xbf16>, vector<1x64xbf16>, vector<1x64xbf16>, vector<1x64xbf16>, vector<1x64xbf16>, vector<1x64xbf16>, vector<1x64xbf16>, vector<1x64xbf16>, vector<1x64xbf16>, vector<1x64xbf16>, vector<1x64xbf16>, vector<1x64xbf16>, vector<1x64xbf16>, vector<1x64xbf16>, vector<1x64xbf16>, vector<1x64xbf16> -> vector<1x1024xbf16>
    %c0_157 = arith.constant 0 : index
    %c0_158 = arith.constant 0 : index
    %103 = vector.load %arg8[%c0_157, %c0_158] : memref<1024x64xbf16, #tpu.memory_space<vmem>>, vector<1024x64xbf16>
    %cst_159 = arith.constant dense<0.000000e+00> : vector<1x64xf32>
    %104 = tpu.matmul %102, %103, %cst_159 {dimension_numbers = #tpu.dot_dimension_numbers<[1], [0], [0], [1], [0, 0, 1, 1], [], []>} : vector<1x1024xbf16>, vector<1024x64xbf16>, vector<1x64xf32> -> vector<1x64xf32>
    %c0_160 = arith.constant 0 : index
    %c0_161 = arith.constant 0 : index
    %105 = vector.load %arg9[%c0_160, %c0_161] : memref<1x64xf32, #tpu.memory_space<vmem>>, vector<1x64xf32>
    %106 = arith.addf %104, %105 : vector<1x64xf32>
    %c0_162 = arith.constant 0 : index
    %c0_163 = arith.constant 0 : index
    %107 = vector.load %arg10[%c0_162, %c0_163] : memref<64x128xf32, #tpu.memory_space<vmem>>, vector<64x128xf32>
    %cst_164 = arith.constant dense<0.000000e+00> : vector<1x128xf32>
    %108 = tpu.matmul %106, %107, %cst_164 {dimension_numbers = #tpu.dot_dimension_numbers<[1], [0], [0], [1], [0, 0, 1, 1], [], []>} : vector<1x64xf32>, vector<64x128xf32>, vector<1x128xf32> -> vector<1x128xf32>
    %c0_165 = arith.constant 0 : index
    %c0_166 = arith.constant 0 : index
    %109 = vector.load %arg11[%c0_165, %c0_166] : memref<1x128xf32, #tpu.memory_space<vmem>>, vector<1x128xf32>
    %110 = arith.addf %108, %109 : vector<1x128xf32>
    %c0_167 = arith.constant 0 : index
    %c0_168 = arith.constant 0 : index
    %c0_169 = arith.constant 0 : index
    %111 = vector.load %arg14[%c0_167, %c0_168, %c0_169] : memref<1x1x128xf32, #tpu.memory_space<vmem>>, vector<1x1x128xf32>
    %112 = vector.shape_cast %111 : vector<1x1x128xf32> to vector<1x128xf32>
    %113 = vector.shape_cast %110 : vector<1x128xf32> to vector<1x1x128xf32>
    tpu.vector_store %arg14[%c0_167, %c0_168, %c0_169], %113 {strides = array<i32>} : memref<1x1x128xf32, #tpu.memory_space<vmem>>, vector<1x1x128xf32>,
    return
  }
  func.func @transform_0(%arg0: i32) -> (i32, i32, i32, i32) {
    %c0_i32 = arith.constant 0 : i32
    %c0_i32_0 = arith.constant 0 : i32
    %c0_i32_1 = arith.constant 0 : i32
    %c0_i32_2 = arith.constant 0 : i32
    return %arg0, %c0_i32, %c0_i32_0, %c0_i32_1 : i32, i32, i32, i32
  }
  func.func @transform_1(%arg0: i32) -> (i32, i32, i32) {
    %c0_i32 = arith.constant 0 : i32
    %c0_i32_0 = arith.constant 0 : i32
    %c0_i32_1 = arith.constant 0 : i32
    %c0_i32_2 = arith.constant 0 : i32
    return %c0_i32, %c0_i32_0, %c0_i32_1 : i32, i32, i32
  }
  func.func @transform_2(%arg0: i32) -> (i32, i32) {
    %c0_i32 = arith.constant 0 : i32
    %c0_i32_0 = arith.constant 0 : i32
    %c0_i32_1 = arith.constant 0 : i32
    return %c0_i32, %c0_i32_0 : i32, i32
  }
  func.func @transform_3(%arg0: i32) -> (i32, i32, i32) {
    %c0_i32 = arith.constant 0 : i32
    %c0_i32_0 = arith.constant 0 : i32
    %c0_i32_1 = arith.constant 0 : i32
    %c0_i32_2 = arith.constant 0 : i32
    return %c0_i32, %c0_i32_0, %c0_i32_1 : i32, i32, i32
  }
  func.func @transform_4(%arg0: i32) -> (i32, i32) {
    %c0_i32 = arith.constant 0 : i32
    %c0_i32_0 = arith.constant 0 : i32
    %c0_i32_1 = arith.constant 0 : i32
    return %c0_i32, %c0_i32_0 : i32, i32
  }
  func.func @transform_5(%arg0: i32) -> (i32, i32, i32) {
    %c0_i32 = arith.constant 0 : i32
    %c0_i32_0 = arith.constant 0 : i32
    %c0_i32_1 = arith.constant 0 : i32
    %c0_i32_2 = arith.constant 0 : i32
    return %c0_i32, %c0_i32_0, %c0_i32_1 : i32, i32, i32
  }
  func.func @transform_6(%arg0: i32) -> (i32, i32) {
    %c0_i32 = arith.constant 0 : i32
    %c0_i32_0 = arith.constant 0 : i32
    %c0_i32_1 = arith.constant 0 : i32
    return %c0_i32, %c0_i32_0 : i32, i32
  }
  func.func @transform_7(%arg0: i32) -> (i32, i32) {
    %c0_i32 = arith.constant 0 : i32
    %c0_i32_0 = arith.constant 0 : i32
    %c0_i32_1 = arith.constant 0 : i32
    return %c0_i32, %c0_i32_0 : i32, i32
  }
  func.func @transform_8(%arg0: i32) -> (i32, i32) {
    %c0_i32 = arith.constant 0 : i32
    %c0_i32_0 = arith.constant 0 : i32
    %c0_i32_1 = arith.constant 0 : i32
    return %c0_i32, %c0_i32_0 : i32, i32
  }
  func.func @transform_9(%arg0: i32) -> (i32, i32) {
    %c0_i32 = arith.constant 0 : i32
    %c0_i32_0 = arith.constant 0 : i32
    %c0_i32_1 = arith.constant 0 : i32
    return %c0_i32, %c0_i32_0 : i32, i32
  }
  func.func @transform_10(%arg0: i32) -> (i32, i32) {
    %c0_i32 = arith.constant 0 : i32
    %c0_i32_0 = arith.constant 0 : i32
    %c0_i32_1 = arith.constant 0 : i32
    return %c0_i32, %c0_i32_0 : i32, i32
  }
  func.func @transform_11(%arg0: i32) -> (i32, i32) {
    %c0_i32 = arith.constant 0 : i32
    %c0_i32_0 = arith.constant 0 : i32
    %c0_i32_1 = arith.constant 0 : i32
    return %c0_i32, %c0_i32_0 : i32, i32
  }
  func.func @transform_12(%arg0: i32) -> (i32, i32) {
    %c0_i32 = arith.constant 0 : i32
    %c0_i32_0 = arith.constant 0 : i32
    %c0_i32_1 = arith.constant 0 : i32
    return %c0_i32, %c0_i32_0 : i32, i32
  }
  func.func @transform_13(%arg0: i32) -> (i32, i32, i32) {
    %c0_i32 = arith.constant 0 : i32
    %c0_i32_0 = arith.constant 0 : i32
    %c0_i32_1 = arith.constant 0 : i32
    return %arg0, %c0_i32, %c0_i32_0 : i32, i32, i32
  }
}

</mosaic_0001>

<llo_original>
// kernel: my_network_forward.1
$region0: #{my_network_forward.1}
  #allocation0 [shape = 'u32[]', space=smem, size = 0x4, offset = 0x4, fixed_abs, tag = 'smem constant byte address 0x4 - core index']
  #allocation1 [shape = 'u32[72,128]{1,0:T(1,128)}', space=vmem, size = 0x9000, scoped, tag = 'internal scratch']
  #allocation2 [shape = 'bf16[20,20,32]{2,1,0:T(8,128)(2,1)}', space=vmem, size = 0x1e000, scoped, tag = 'scratch operand']
  #allocation3 [shape = 'bf16[20,16,160]{2,1,0:T(8,128)(2,1)}', space=vmem, size = 0x28000, scoped, tag = 'scratch operand']
  #allocation4 [shape = 'bf16[12,12,32]{2,1,0:T(8,128)(2,1)}', space=vmem, size = 0xc000, scoped, tag = 'scratch operand']
  #allocation5 [shape = 'bf16[12,8,160]{2,1,0:T(8,128)(2,1)}', space=vmem, size = 0xc000, scoped, tag = 'scratch operand']
  #allocation6 [shape = 'bf16[16,64]{1,0:T(8,128)(2,1)}', space=vmem, size = 0x1000, scoped, tag = 'scratch operand']
  %s0 = inlined_call_operand.vmem [shape: bf16[2,36,32,40], index: 0, kind: input, shape index: {}]
  %s1 = inlined_call_operand.vmem [shape: bf16[5,40,32], index: 1, kind: input, shape index: {}]
  %s2 = inlined_call_operand.vmem [shape: f32[1,32], index: 2, kind: input, shape index: {}]
  %s3 = inlined_call_operand.vmem [shape: bf16[5,160,32], index: 3, kind: input, shape index: {}]
  %s4 = inlined_call_operand.vmem [shape: f32[1,32], index: 4, kind: input, shape index: {}]
  %s5 = inlined_call_operand.vmem [shape: bf16[5,160,64], index: 5, kind: input, shape index: {}]
  %s6 = inlined_call_operand.vmem [shape: f32[1,64], index: 6, kind: input, shape index: {}]
  %s7 = inlined_call_operand.vmem [shape: bf16[1024,64], index: 7, kind: input, shape index: {}]
  %s8 = inlined_call_operand.vmem [shape: f32[1,64], index: 8, kind: input, shape index: {}]
  %s9 = inlined_call_operand.vmem [shape: f32[64,128], index: 9, kind: input, shape index: {}]
  %s10 = inlined_call_operand.vmem [shape: f32[1,128], index: 10, kind: input, shape index: {}]
  %s11 = inlined_call_operand.vmem [shape: bf16[64,64], index: 11, kind: input, shape index: {}]
  %s12 = inlined_call_operand.vmem [shape: bf16[32,32], index: 12, kind: input, shape index: {}]
  %s13 = inlined_call_operand.hbm [shape: f32[2,1,128], index: 13, kind: output, shape index: {}]
  %s14 = sld [smem:[#allocation0]]
  $region99: #{my_network_forward.1} parent=0
    _
  %s16 = ssub.s32 1, %s14
  %s17 = scalar_select 0, %s16, %s14
  $region1: #{my_network_forward.1} parent=0
    #allocation7 [shape = 'u8[1024]{0}', space=vmem, size = 0x400, scoped, tag = 'output window, operand 0']
    #allocation8 [shape = 's32[2]{0}', space=sflag, size = 0x8, scoped, tag = 'scoped memory for my_network_forward.1']
    %18 = vsyncpa [#allocation8], 0
    %s19 = scalar_lea.sflag [#allocation8], 1
    %20 = vsyncpa %s19, 0
    loop: start=0, step=1, limit=4
    $region2: #{my_network_forward.1} parent=1 // loop_pre_header
      _
    $region3: #{my_network_forward.1} parent=1 // loop_header
      %s22 = sphi 0, %s26
      %p23 = scmp.ge.s32.totalorder %s22, 4
      %s32 = sphi 0, %s34
      %s35 = sphi 0, %s32
      %s36 = sphi 0, %s35
      %s52 = sphi 0, %s36
      %s56 = sphi 0, %s56
      %s58 = sphi 0, %s56
      %s59 = sphi 0, %s58
      %s73 = sphi 0, %s59
      %s77 = sphi 0, %s77
      %s79 = sphi 0, %s77
      %s80 = sphi 0, %s79
      %s94 = sphi 0, %s80
      %s98 = sphi 0, %s98
      %s100 = sphi 0, %s98
      %s101 = sphi 0, %s100
      %s115 = sphi 0, %s101
      %s119 = sphi 0, %s119
      %s121 = sphi 0, %s119
      %s122 = sphi 0, %s121
      %s136 = sphi 0, %s122
      %s140 = sphi 0, %s140
      %s142 = sphi 0, %s140
      %s143 = sphi 0, %s142
      %s157 = sphi 0, %s143
      %s161 = sphi 0, %s161
      %s163 = sphi 0, %s161
      %s164 = sphi 0, %s163
      %s178 = sphi 0, %s164
      %s182 = sphi 0, %s182
      %s184 = sphi 0, %s182
      %s185 = sphi 0, %s184
      %s199 = sphi 0, %s185
      %s203 = sphi 0, %s203
      %s205 = sphi 0, %s203
      %s206 = sphi 0, %s205
      %s220 = sphi 0, %s206
      %s224 = sphi 0, %s224
      %s226 = sphi 0, %s224
      %s227 = sphi 0, %s226
      %s241 = sphi 0, %s227
      %s245 = sphi 0, %s245
      %s247 = sphi 0, %s245
      %s248 = sphi 0, %s247
      %s262 = sphi 0, %s248
      %s266 = sphi 0, %s266
      %s268 = sphi 0, %s266
      %s269 = sphi 0, %s268
      %s283 = sphi 0, %s269
      %s287 = sphi 0, %s287
      %s289 = sphi 0, %s287
      %s290 = sphi 0, %s289
      %s304 = sphi 0, %s290
      %s310 = sphi 0, %s312
      %s313 = sphi 0, %s310
      %s314 = sphi 0, %s313
      %s330 = sphi 0, %s314
    $region4: #{my_network_forward.1} parent=1 // loop_header_branch
      %25 = sbr.rel (%p23) target = $region8
    $region5: #{my_network_forward.1} parent=1 // loop_body
      %s27 = ssub.s32 %s22, 1
      %s28 = ssub.s32 %s22, 2
      %s29 = sadd.s32 %s22, 1
      %s30 = ssub.s32 %s22, %s29
      %p31 = scmp.eq.s32.totalorder %s30, 0
      %s33 = sadd.s32 %s32, 1
      %s34 = scalar_select %p31, %s32, %s33
      %p37 = pneg %p31
      %p38 = scmp.eq.s32.totalorder %s22, 1
      %p39 = por %p37, %p38
      %p40 = scmp.ne.s32.totalorder %s32, %s35
      %p41 = scmp.eq.s32.totalorder %s22, 0
      %p42 = por %p40, %p41
      %p43 = scmp.ne.s32.totalorder %s32, %s35
      %p44 = scmp.eq.s32.totalorder %s27, 1
      %p45 = por %p43, %p44
      %p46 = scmp.ne.s32.totalorder %s35, %s36
      %p47 = scmp.eq.s32.totalorder %s27, 0
      %p48 = por %p46, %p47
      %p49 = scmp.ne.s32.totalorder %s35, %s36
      %p50 = scmp.eq.s32.totalorder %s28, 1
      %p51 = por %p49, %p50
      %p53 = scmp.ne.s32.totalorder %s36, %s52
      %p54 = scmp.eq.s32.totalorder %s28, 0
      %p55 = por %p53, %p54
      %s57 = sadd.s32 %s56, 1
      %p60 = scmp.eq.s32.totalorder %s22, 1
      %p61 = scmp.ne.s32.totalorder %s56, %s58
      %p62 = scmp.eq.s32.totalorder %s22, 0
      %p63 = por %p61, %p62
      %p64 = scmp.ne.s32.totalorder %s56, %s58
      %p65 = scmp.eq.s32.totalorder %s27, 1
      %p66 = por %p64, %p65
      %p67 = scmp.ne.s32.totalorder %s58, %s59
      %p68 = scmp.eq.s32.totalorder %s27, 0
      %p69 = por %p67, %p68
      %p70 = scmp.ne.s32.totalorder %s58, %s59
      %p71 = scmp.eq.s32.totalorder %s28, 1
      %p72 = por %p70, %p71
      %p74 = scmp.ne.s32.totalorder %s59, %s73
      %p75 = scmp.eq.s32.totalorder %s28, 0
      %p76 = por %p74, %p75
      %s78 = sadd.s32 %s77, 1
      %p81 = scmp.eq.s32.totalorder %s22, 1
      %p82 = scmp.ne.s32.totalorder %s77, %s79
      %p83 = scmp.eq.s32.totalorder %s22, 0
      %p84 = por %p82, %p83
      %p85 = scmp.ne.s32.totalorder %s77, %s79
      %p86 = scmp.eq.s32.totalorder %s27, 1
      %p87 = por %p85, %p86
      %p88 = scmp.ne.s32.totalorder %s79, %s80
      %p89 = scmp.eq.s32.totalorder %s27, 0
      %p90 = por %p88, %p89
      %p91 = scmp.ne.s32.totalorder %s79, %s80
      %p92 = scmp.eq.s32.totalorder %s28, 1
      %p93 = por %p91, %p92
      %p95 = scmp.ne.s32.totalorder %s80, %s94
      %p96 = scmp.eq.s32.totalorder %s28, 0
      %p97 = por %p95, %p96
      %s99 = sadd.s32 %s98, 1
      %p102 = scmp.eq.s32.totalorder %s22, 1
      %p103 = scmp.ne.s32.totalorder %s98, %s100
      %p104 = scmp.eq.s32.totalorder %s22, 0
      %p105 = por %p103, %p104
      %p106 = scmp.ne.s32.totalorder %s98, %s100
      %p107 = scmp.eq.s32.totalorder %s27, 1
      %p108 = por %p106, %p107
      %p109 = scmp.ne.s32.totalorder %s100, %s101
      %p110 = scmp.eq.s32.totalorder %s27, 0
      %p111 = por %p109, %p110
      %p112 = scmp.ne.s32.totalorder %s100, %s101
      %p113 = scmp.eq.s32.totalorder %s28, 1
      %p114 = por %p112, %p113
      %p116 = scmp.ne.s32.totalorder %s101, %s115
      %p117 = scmp.eq.s32.totalorder %s28, 0
      %p118 = por %p116, %p117
      %s120 = sadd.s32 %s119, 1
      %p123 = scmp.eq.s32.totalorder %s22, 1
      %p124 = scmp.ne.s32.totalorder %s119, %s121
      %p125 = scmp.eq.s32.totalorder %s22, 0
      %p126 = por %p124, %p125
      %p127 = scmp.ne.s32.totalorder %s119, %s121
      %p128 = scmp.eq.s32.totalorder %s27, 1
      %p129 = por %p127, %p128
      %p130 = scmp.ne.s32.totalorder %s121, %s122
      %p131 = scmp.eq.s32.totalorder %s27, 0
      %p132 = por %p130, %p131
      %p133 = scmp.ne.s32.totalorder %s121, %s122
      %p134 = scmp.eq.s32.totalorder %s28, 1
      %p135 = por %p133, %p134
      %p137 = scmp.ne.s32.totalorder %s122, %s136
      %p138 = scmp.eq.s32.totalorder %s28, 0
      %p139 = por %p137, %p138
      %s141 = sadd.s32 %s140, 1
      %p144 = scmp.eq.s32.totalorder %s22, 1
      %p145 = scmp.ne.s32.totalorder %s140, %s142
      %p146 = scmp.eq.s32.totalorder %s22, 0
      %p147 = por %p145, %p146
      %p148 = scmp.ne.s32.totalorder %s140, %s142
      %p149 = scmp.eq.s32.totalorder %s27, 1
      %p150 = por %p148, %p149
      %p151 = scmp.ne.s32.totalorder %s142, %s143
      %p152 = scmp.eq.s32.totalorder %s27, 0
      %p153 = por %p151, %p152
      %p154 = scmp.ne.s32.totalorder %s142, %s143
      %p155 = scmp.eq.s32.totalorder %s28, 1
      %p156 = por %p154, %p155
      %p158 = scmp.ne.s32.totalorder %s143, %s157
      %p159 = scmp.eq.s32.totalorder %s28, 0
      %p160 = por %p158, %p159
      %s162 = sadd.s32 %s161, 1
      %p165 = scmp.eq.s32.totalorder %s22, 1
      %p166 = scmp.ne.s32.totalorder %s161, %s163
      %p167 = scmp.eq.s32.totalorder %s22, 0
      %p168 = por %p166, %p167
      %p169 = scmp.ne.s32.totalorder %s161, %s163
      %p170 = scmp.eq.s32.totalorder %s27, 1
      %p171 = por %p169, %p170
      %p172 = scmp.ne.s32.totalorder %s163, %s164
      %p173 = scmp.eq.s32.totalorder %s27, 0
      %p174 = por %p172, %p173
      %p175 = scmp.ne.s32.totalorder %s163, %s164
      %p176 = scmp.eq.s32.totalorder %s28, 1
      %p177 = por %p175, %p176
      %p179 = scmp.ne.s32.totalorder %s164, %s178
      %p180 = scmp.eq.s32.totalorder %s28, 0
      %p181 = por %p179, %p180
      %s183 = sadd.s32 %s182, 1
      %p186 = scmp.eq.s32.totalorder %s22, 1
      %p187 = scmp.ne.s32.totalorder %s182, %s184
      %p188 = scmp.eq.s32.totalorder %s22, 0
      %p189 = por %p187, %p188
      %p190 = scmp.ne.s32.totalorder %s182, %s184
      %p191 = scmp.eq.s32.totalorder %s27, 1
      %p192 = por %p190, %p191
      %p193 = scmp.ne.s32.totalorder %s184, %s185
      %p194 = scmp.eq.s32.totalorder %s27, 0
      %p195 = por %p193, %p194
      %p196 = scmp.ne.s32.totalorder %s184, %s185
      %p197 = scmp.eq.s32.totalorder %s28, 1
      %p198 = por %p196, %p197
      %p200 = scmp.ne.s32.totalorder %s185, %s199
      %p201 = scmp.eq.s32.totalorder %s28, 0
      %p202 = por %p200, %p201
      %s204 = sadd.s32 %s203, 1
      %p207 = scmp.eq.s32.totalorder %s22, 1
      %p208 = scmp.ne.s32.totalorder %s203, %s205
      %p209 = scmp.eq.s32.totalorder %s22, 0
      %p210 = por %p208, %p209
      %p211 = scmp.ne.s32.totalorder %s203, %s205
      %p212 = scmp.eq.s32.totalorder %s27, 1
      %p213 = por %p211, %p212
      %p214 = scmp.ne.s32.totalorder %s205, %s206
      %p215 = scmp.eq.s32.totalorder %s27, 0
      %p216 = por %p214, %p215
      %p217 = scmp.ne.s32.totalorder %s205, %s206
      %p218 = scmp.eq.s32.totalorder %s28, 1
      %p219 = por %p217, %p218
      %p221 = scmp.ne.s32.totalorder %s206, %s220
      %p222 = scmp.eq.s32.totalorder %s28, 0
      %p223 = por %p221, %p222
      %s225 = sadd.s32 %s224, 1
      %p228 = scmp.eq.s32.totalorder %s22, 1
      %p229 = scmp.ne.s32.totalorder %s224, %s226
      %p230 = scmp.eq.s32.totalorder %s22, 0
      %p231 = por %p229, %p230
      %p232 = scmp.ne.s32.totalorder %s224, %s226
      %p233 = scmp.eq.s32.totalorder %s27, 1
      %p234 = por %p232, %p233
      %p235 = scmp.ne.s32.totalorder %s226, %s227
      %p236 = scmp.eq.s32.totalorder %s27, 0
      %p237 = por %p235, %p236
      %p238 = scmp.ne.s32.totalorder %s226, %s227
      %p239 = scmp.eq.s32.totalorder %s28, 1
      %p240 = por %p238, %p239
      %p242 = scmp.ne.s32.totalorder %s227, %s241
      %p243 = scmp.eq.s32.totalorder %s28, 0
      %p244 = por %p242, %p243
      %s246 = sadd.s32 %s245, 1
      %p249 = scmp.eq.s32.totalorder %s22, 1
      %p250 = scmp.ne.s32.totalorder %s245, %s247
      %p251 = scmp.eq.s32.totalorder %s22, 0
      %p252 = por %p250, %p251
      %p253 = scmp.ne.s32.totalorder %s245, %s247
      %p254 = scmp.eq.s32.totalorder %s27, 1
      %p255 = por %p253, %p254
      %p256 = scmp.ne.s32.totalorder %s247, %s248
      %p257 = scmp.eq.s32.totalorder %s27, 0
      %p258 = por %p256, %p257
      %p259 = scmp.ne.s32.totalorder %s247, %s248
      %p260 = scmp.eq.s32.totalorder %s28, 1
      %p261 = por %p259, %p260
      %p263 = scmp.ne.s32.totalorder %s248, %s262
      %p264 = scmp.eq.s32.totalorder %s28, 0
      %p265 = por %p263, %p264
      %s267 = sadd.s32 %s266, 1
      %p270 = scmp.eq.s32.totalorder %s22, 1
      %p271 = scmp.ne.s32.totalorder %s266, %s268
      %p272 = scmp.eq.s32.totalorder %s22, 0
      %p273 = por %p271, %p272
      %p274 = scmp.ne.s32.totalorder %s266, %s268
      %p275 = scmp.eq.s32.totalorder %s27, 1
      %p276 = por %p274, %p275
      %p277 = scmp.ne.s32.totalorder %s268, %s269
      %p278 = scmp.eq.s32.totalorder %s27, 0
      %p279 = por %p277, %p278
      %p280 = scmp.ne.s32.totalorder %s268, %s269
      %p281 = scmp.eq.s32.totalorder %s28, 1
      %p282 = por %p280, %p281
      %p284 = scmp.ne.s32.totalorder %s269, %s283
      %p285 = scmp.eq.s32.totalorder %s28, 0
      %p286 = por %p284, %p285
      %s288 = sadd.s32 %s287, 1
      %p291 = scmp.eq.s32.totalorder %s22, 1
      %p292 = scmp.ne.s32.totalorder %s287, %s289
      %p293 = scmp.eq.s32.totalorder %s22, 0
      %p294 = por %p292, %p293
      %p295 = scmp.ne.s32.totalorder %s287, %s289
      %p296 = scmp.eq.s32.totalorder %s27, 1
      %p297 = por %p295, %p296
      %p298 = scmp.ne.s32.totalorder %s289, %s290
      %p299 = scmp.eq.s32.totalorder %s27, 0
      %p300 = por %p298, %p299
      %p301 = scmp.ne.s32.totalorder %s289, %s290
      %p302 = scmp.eq.s32.totalorder %s28, 1
      %p303 = por %p301, %p302
      %p305 = scmp.ne.s32.totalorder %s290, %s304
      %p306 = scmp.eq.s32.totalorder %s28, 0
      %p307 = por %p305, %p306
      %s308 = ssub.s32 %s22, %s29
      %p309 = scmp.eq.s32.totalorder %s308, 0
      %s311 = sadd.s32 %s310, 1
      %s312 = scalar_select %p309, %s310, %s311
      %p315 = pneg %p309
      %p316 = scmp.eq.s32.totalorder %s22, 1
      %p317 = por %p315, %p316
      %p318 = scmp.ne.s32.totalorder %s310, %s313
      %p319 = scmp.eq.s32.totalorder %s22, 0
      %p320 = por %p318, %p319
      %p321 = scmp.ne.s32.totalorder %s310, %s313
      %p322 = scmp.eq.s32.totalorder %s27, 1
      %p323 = por %p321, %p322
      %p324 = scmp.ne.s32.totalorder %s313, %s314
      %p325 = scmp.eq.s32.totalorder %s27, 0
      %p326 = por %p324, %p325
      %p327 = scmp.ne.s32.totalorder %s313, %s314
      %p328 = scmp.eq.s32.totalorder %s28, 1
      %p329 = por %p327, %p328
      %p331 = scmp.ne.s32.totalorder %s314, %s330
      %p332 = scmp.eq.s32.totalorder %s28, 0
      %p333 = por %p331, %p332
      %p334 = scmp.le.s32.totalorder 1, %s22
      %p335 = scmp.lt.s32.totalorder %s22, 3
      %p336 = pnand %p334, %p335
      %p337 = pneg %p336
      // Predicated region
      $region9: #{my_network_forward.1} parent=5 // pred_check
        _
      $region10: #{my_network_forward.1} parent=5 // pred_check_branch
        %339 = sbr.rel (%p336) target = $region12
      $region11: #{my_network_forward.1} parent=5 // pred_region
        %s340 = ssub.s32 %s22, 1
        // Predicated region
        $region13: #{my_network_forward.1} parent=11 // pred_check
          %p341 = pneg %p69
        $region14: #{my_network_forward.1} parent=11 // pred_check_branch
          %343 = sbr.rel (%p341) target = $region16
        $region15: #{my_network_forward.1} parent=11 // pred_region
          _
        $region16: #{my_network_forward.1} parent=11 // pred_fallthru
          _
        // Predicated region
        $region17: #{my_network_forward.1} parent=11 // pred_check
          %p344 = pneg %p90
        $region18: #{my_network_forward.1} parent=11 // pred_check_branch
          %346 = sbr.rel (%p344) target = $region20
        $region19: #{my_network_forward.1} parent=11 // pred_region
          _
        $region20: #{my_network_forward.1} parent=11 // pred_fallthru
          _
        // Predicated region
        $region21: #{my_network_forward.1} parent=11 // pred_check
          %p347 = pneg %p111
        $region22: #{my_network_forward.1} parent=11 // pred_check_branch
          %349 = sbr.rel (%p347) target = $region24
        $region23: #{my_network_forward.1} parent=11 // pred_region
          _
        $region24: #{my_network_forward.1} parent=11 // pred_fallthru
          _
        // Predicated region
        $region25: #{my_network_forward.1} parent=11 // pred_check
          %p350 = pneg %p132
        $region26: #{my_network_forward.1} parent=11 // pred_check_branch
          %352 = sbr.rel (%p350) target = $region28
        $region27: #{my_network_forward.1} parent=11 // pred_region
          _
        $region28: #{my_network_forward.1} parent=11 // pred_fallthru
          _
        // Predicated region
        $region29: #{my_network_forward.1} parent=11 // pred_check
          %p353 = pneg %p153
        $region30: #{my_network_forward.1} parent=11 // pred_check_branch
          %355 = sbr.rel (%p353) target = $region32
        $region31: #{my_network_forward.1} parent=11 // pred_region
          _
        $region32: #{my_network_forward.1} parent=11 // pred_fallthru
          _
        // Predicated region
        $region33: #{my_network_forward.1} parent=11 // pred_check
          %p356 = pneg %p174
        $region34: #{my_network_forward.1} parent=11 // pred_check_branch
          %358 = sbr.rel (%p356) target = $region36
        $region35: #{my_network_forward.1} parent=11 // pred_region
          _
        $region36: #{my_network_forward.1} parent=11 // pred_fallthru
          _
        // Predicated region
        $region37: #{my_network_forward.1} parent=11 // pred_check
          %p359 = pneg %p195
        $region38: #{my_network_forward.1} parent=11 // pred_check_branch
          %361 = sbr.rel (%p359) target = $region40
        $region39: #{my_network_forward.1} parent=11 // pred_region
          _
        $region40: #{my_network_forward.1} parent=11 // pred_fallthru
          _
        // Predicated region
        $region41: #{my_network_forward.1} parent=11 // pred_check
          %p362 = pneg %p216
        $region42: #{my_network_forward.1} parent=11 // pred_check_branch
          %364 = sbr.rel (%p362) target = $region44
        $region43: #{my_network_forward.1} parent=11 // pred_region
          _
        $region44: #{my_network_forward.1} parent=11 // pred_fallthru
          _
        // Predicated region
        $region45: #{my_network_forward.1} parent=11 // pred_check
          %p365 = pneg %p237
        $region46: #{my_network_forward.1} parent=11 // pred_check_branch
          %367 = sbr.rel (%p365) target = $region48
        $region47: #{my_network_forward.1} parent=11 // pred_region
          _
        $region48: #{my_network_forward.1} parent=11 // pred_fallthru
          _
        // Predicated region
        $region49: #{my_network_forward.1} parent=11 // pred_check
          %p368 = pneg %p258
        $region50: #{my_network_forward.1} parent=11 // pred_check_branch
          %370 = sbr.rel (%p368) target = $region52
        $region51: #{my_network_forward.1} parent=11 // pred_region
          _
        $region52: #{my_network_forward.1} parent=11 // pred_fallthru
          _
        // Predicated region
        $region53: #{my_network_forward.1} parent=11 // pred_check
          %p371 = pneg %p279
        $region54: #{my_network_forward.1} parent=11 // pred_check_branch
          %373 = sbr.rel (%p371) target = $region56
        $region55: #{my_network_forward.1} parent=11 // pred_region
          _
        $region56: #{my_network_forward.1} parent=11 // pred_fallthru
          _
        // Predicated region
        $region57: #{my_network_forward.1} parent=11 // pred_check
          %p374 = pneg %p300
        $region58: #{my_network_forward.1} parent=11 // pred_check_branch
          %376 = sbr.rel (%p374) target = $region60
        $region59: #{my_network_forward.1} parent=11 // pred_region
          _
        $region60: #{my_network_forward.1} parent=11 // pred_fallthru
          _
      $region12: #{my_network_forward.1} parent=5 // pred_fallthru
        _
      %p377 = scmp.lt.s32.totalorder %s22, 2
      // Predicated region
      $region61: #{my_network_forward.1} parent=5 // pred_check
        %p378 = pneg %p377
      $region62: #{my_network_forward.1} parent=5 // pred_check_branch
        %380 = sbr.rel (%p378) target = $region64
      $region63: #{my_network_forward.1} parent=5 // pred_region
        // Predicated region
        $region65: #{my_network_forward.1} parent=63 // pred_check
          %p381 = pneg %p42
        $region66: #{my_network_forward.1} parent=63 // pred_check_branch
          %383 = sbr.rel (%p381) target = $region68
        $region67: #{my_network_forward.1} parent=63 // pred_region
          %p384 = scmp.lt.s32.totalorder %s22, 1
          %s385 = scalar_select %p384, %s22, 1
          %s386 = smul.addr %s385, 144
          %s387 = smul.addr %s386, 4
          %s388 = scalar_lea.vmem %s0, %s387
        $region68: #{my_network_forward.1} parent=63 // pred_fallthru
          _
      $region64: #{my_network_forward.1} parent=5 // pred_fallthru
        _
      %p389 = scmp.le.s32.totalorder 1, %s22
      %p390 = scmp.lt.s32.totalorder %s22, 3
      %p391 = pnand %p389, %p390
      %p392 = pneg %p391
      // Predicated region
      $region69: #{my_network_forward.1} parent=5 // pred_check
        _
      $region70: #{my_network_forward.1} parent=5 // pred_check_branch
        %394 = sbr.rel (%p391) target = $region72
      $region71: #{my_network_forward.1} parent=5 // pred_region
        %s395 = ssub.s32 %s22, 1
        %p396 = scmp.lt.s32.totalorder %s27, 1
        %s397 = scalar_select %p396, %s27, 1
        %s398 = smul.addr %s397, 144
        %s399 = smul.addr %s398, 4
        %s400 = scalar_lea.vmem %s0, %s399
        %p401 = pneg %p48
        %p402 = pneg %p45
        %p403 = pneg %p69
        %p404 = pneg %p66
        %p405 = pneg %p90
        %p406 = pneg %p87
        %p407 = pneg %p111
        %p408 = pneg %p108
        %p409 = pneg %p132
        %p410 = pneg %p129
        %p411 = pneg %p153
        %p412 = pneg %p150
        %p413 = pneg %p174
        %p414 = pneg %p171
        %p415 = pneg %p195
        %p416 = pneg %p192
        %p417 = pneg %p216
        %p418 = pneg %p213
        %p419 = pneg %p237
        %p420 = pneg %p234
        %p421 = pneg %p258
        %p422 = pneg %p255
        %p423 = pneg %p279
        %p424 = pneg %p276
        %p425 = pneg %p300
        %p426 = pneg %p297
        %p427 = pneg %p326
        %p428 = pneg %p323
        %s429 = sand.u32 %s313, 1
        %s430 = scalar_lea.sflag [#allocation8], %s429
        %s431 = sand.u32 %s313, 1
        %s432 = scalar_lea.vmem [#allocation7], %s431
        %p433 = scmp.lt.s32.totalorder %s27, 1
        %s434 = scalar_select %p433, %s27, 1
        %s435 = smul.addr %s434, 144
        %s436 = smul.addr %s435, 4
        %s437 = scalar_lea.vmem %s0, %s436
        %vm439 = vcmask 257024
        %440 = vst.msk [vmem:[#allocation2] sm:$0xf] %vm439, 0
        %441 = vst.msk [vmem:[#allocation2 + $0x4] sm:$0xf] %vm439, 0
        %vm442 = vcmask 254976
        %443 = vst.msk [vmem:[#allocation2 + $0x8] sm:$0x3] %vm442, 0
        %444 = vst.msk [vmem:[#allocation2 + $0xc] sm:$0xf] %vm439, 0
        %445 = vst.msk [vmem:[#allocation2 + $0x10] sm:$0xf] %vm439, 0
        %446 = vst.msk [vmem:[#allocation2 + $0x14] sm:$0x3] %vm442, 0
        %s447 = scalar_lea.vmem [#allocation2], 216
        %448 = vst.msk [vmem:[%s447] sm:$0xf] %vm439, 0
        %449 = vst.msk [vmem:[%s447 + $0x4] sm:$0xf] %vm439, 0
        %450 = vst.msk [vmem:[%s447 + $0x8] sm:$0x3] %vm442, 0
        %451 = vst.msk [vmem:[%s447 + $0xc] sm:$0xf] %vm439, 0
        %452 = vst.msk [vmem:[%s447 + $0x10] sm:$0xf] %vm439, 0
        %453 = vst.msk [vmem:[%s447 + $0x14] sm:$0x3] %vm442, 0
        %s454 = scalar_lea.vmem [#allocation2], 24
        %vm455 = vcmask 253952
        %456 = vst.msk [vmem:[%s454] sm:$0x1] %vm455, 0
        %457 = vst.msk [vmem:[%s454 + $0xc] sm:$0x1] %vm455, 0
        %458 = vst.msk [vmem:[%s454 + $0x18] sm:$0x1] %vm455, 0
        %459 = vst.msk [vmem:[%s454 + $0x24] sm:$0x1] %vm455, 0
        %460 = vst.msk [vmem:[%s454 + $0x30] sm:$0x1] %vm455, 0
        %461 = vst.msk [vmem:[%s454 + $0x3c] sm:$0x1] %vm455, 0
        %462 = vst.msk [vmem:[%s454 + $0x48] sm:$0x1] %vm455, 0
        %463 = vst.msk [vmem:[%s454 + $0x54] sm:$0x1] %vm455, 0
        %464 = vst.msk [vmem:[%s454 + $0x60] sm:$0x1] %vm455, 0
        %465 = vst.msk [vmem:[%s454 + $0x6c] sm:$0x1] %vm455, 0
        %466 = vst.msk [vmem:[%s454 + $0x78] sm:$0x1] %vm455, 0
        %467 = vst.msk [vmem:[%s454 + $0x84] sm:$0x1] %vm455, 0
        %468 = vst.msk [vmem:[%s454 + $0x90] sm:$0x1] %vm455, 0
        %469 = vst.msk [vmem:[%s454 + $0x9c] sm:$0x1] %vm455, 0
        %470 = vst.msk [vmem:[%s454 + $0xa8] sm:$0x1] %vm455, 0
        %471 = vst.msk [vmem:[%s454 + $0xb4] sm:$0x1] %vm455, 0
        %vm472 = vcmask 254977
        %473 = vst.msk [vmem:[%s454 + $0x8] sm:$0x2] %vm472, 0
        %474 = vst.msk [vmem:[%s454 + $0x14] sm:$0x2] %vm472, 0
        %475 = vst.msk [vmem:[%s454 + $0x20] sm:$0x2] %vm472, 0
        %476 = vst.msk [vmem:[%s454 + $0x2c] sm:$0x2] %vm472, 0
        %477 = vst.msk [vmem:[%s454 + $0x38] sm:$0x2] %vm472, 0
        %478 = vst.msk [vmem:[%s454 + $0x44] sm:$0x2] %vm472, 0
        %479 = vst.msk [vmem:[%s454 + $0x50] sm:$0x2] %vm472, 0
        %480 = vst.msk [vmem:[%s454 + $0x5c] sm:$0x2] %vm472, 0
        %481 = vst.msk [vmem:[%s454 + $0x68] sm:$0x2] %vm472, 0
        %482 = vst.msk [vmem:[%s454 + $0x74] sm:$0x2] %vm472, 0
        %483 = vst.msk [vmem:[%s454 + $0x80] sm:$0x2] %vm472, 0
        %484 = vst.msk [vmem:[%s454 + $0x8c] sm:$0x2] %vm472, 0
        %485 = vst.msk [vmem:[%s454 + $0x98] sm:$0x2] %vm472, 0
        %486 = vst.msk [vmem:[%s454 + $0xa4] sm:$0x2] %vm472, 0
        %487 = vst.msk [vmem:[%s454 + $0xb0] sm:$0x2] %vm472, 0
        %488 = vst.msk [vmem:[%s454 + $0xbc] sm:$0x2] %vm472, 0
        %489 = vst.msk [vmem:[#allocation4] sm:$0xf] %vm439, 0
        %490 = vst.msk [vmem:[#allocation4 + $0x4] sm:$0x3] %vm442, 0
        %491 = vst.msk [vmem:[#allocation4 + $0x8] sm:$0xf] %vm439, 0
        %492 = vst.msk [vmem:[#allocation4 + $0xc] sm:$0x3] %vm442, 0
        %s493 = scalar_lea.vmem [#allocation4], 80
        %494 = vst.msk [vmem:[%s493] sm:$0xf] %vm439, 0
        %495 = vst.msk [vmem:[%s493 + $0x4] sm:$0x3] %vm442, 0
        %496 = vst.msk [vmem:[%s493 + $0x8] sm:$0xf] %vm439, 0
        %497 = vst.msk [vmem:[%s493 + $0xc] sm:$0x3] %vm442, 0
        %s498 = scalar_lea.vmem [#allocation4], 16
        %499 = vst.msk [vmem:[%s498] sm:$0x1] %vm455, 0
        %500 = vst.msk [vmem:[%s498 + $0x8] sm:$0x1] %vm455, 0
        %501 = vst.msk [vmem:[%s498 + $0x10] sm:$0x1] %vm455, 0
        %502 = vst.msk [vmem:[%s498 + $0x18] sm:$0x1] %vm455, 0
        %503 = vst.msk [vmem:[%s498 + $0x20] sm:$0x1] %vm455, 0
        %504 = vst.msk [vmem:[%s498 + $0x28] sm:$0x1] %vm455, 0
        %505 = vst.msk [vmem:[%s498 + $0x30] sm:$0x1] %vm455, 0
        %506 = vst.msk [vmem:[%s498 + $0x38] sm:$0x1] %vm455, 0
        %507 = vst.msk [vmem:[%s498 + $0x4] sm:$0x2] %vm472, 0
        %508 = vst.msk [vmem:[%s498 + $0xc] sm:$0x2] %vm472, 0
        %509 = vst.msk [vmem:[%s498 + $0x14] sm:$0x2] %vm472, 0
        %510 = vst.msk [vmem:[%s498 + $0x1c] sm:$0x2] %vm472, 0
        %511 = vst.msk [vmem:[%s498 + $0x24] sm:$0x2] %vm472, 0
        %512 = vst.msk [vmem:[%s498 + $0x2c] sm:$0x2] %vm472, 0
        %513 = vst.msk [vmem:[%s498 + $0x34] sm:$0x2] %vm472, 0
        %514 = vst.msk [vmem:[%s498 + $0x3c] sm:$0x2] %vm472, 0
        %v515 = vld [vmem:[%s11] sm:$0xf]
        %v516 = vld [vmem:[%s11 + $0x4] sm:$0xf]
        %v517 = vld [vmem:[%s11 + $0x8] sm:$0xf]
        %v518 = vld [vmem:[%s11 + $0xc] sm:$0xf]
        %v519 = vld [vmem:[%s11 + $0x10] sm:$0xf]
        %v520 = vld [vmem:[%s11 + $0x14] sm:$0xf]
        %v521 = vld [vmem:[%s11 + $0x18] sm:$0xf]
        %v522 = vld [vmem:[%s11 + $0x1c] sm:$0xf]
        %v523 = vld [vmem:[%s12] sm:$0xf]
        %v524 = vld [vmem:[%s12 + $0x4] sm:$0xf]
        %v525 = vld [vmem:[%s12 + $0x8] sm:$0xf]
        %v526 = vld [vmem:[%s12 + $0xc] sm:$0xf]
        %v527 = vld [vmem:[%s2] sm:$0x1]
        loop: start=0, step=1, limit=8
        $region73: #{my_network_forward.1} parent=71 // loop_pre_header
          _
        $region74: #{my_network_forward.1} parent=71 // loop_header
          %s529 = sphi 0, %s533
          %p530 = scmp.ge.s32.totalorder %s529, 8
        $region75: #{my_network_forward.1} parent=71 // loop_header_branch
          %532 = sbr.rel (%p530) target = $region79
        $region76: #{my_network_forward.1} parent=71 // loop_body
          %s534 = smul.u32 %s529, 4
          %s535 = smul.u32 %s534, 4
          %s536 = smul.addr %s535, 4
          %s537 = scalar_lea.vmem %s437, %s536
          %v538 = vld [vmem:[%s537] sm:$0xf]
          %v539 = vld [vmem:[%s537 + $0x4] sm:$0xf]
          %v540 = vld [vmem:[%s537 + $0x8] sm:$0xf]
          %v541 = vld [vmem:[%s537 + $0xc] sm:$0xf]
          %v542 = vld [vmem:[%s537 + $0x10] sm:$0xf]
          %v543 = vld [vmem:[%s537 + $0x14] sm:$0xf]
          %v544 = vld [vmem:[%s537 + $0x18] sm:$0xf]
          %v545 = vld [vmem:[%s537 + $0x1c] sm:$0xf]
          %v546 = vld [vmem:[%s537 + $0x20] sm:$0xf]
          %v547 = vld [vmem:[%s537 + $0x24] sm:$0xf]
          %v548 = vld [vmem:[%s537 + $0x28] sm:$0xf]
          %v549 = vld [vmem:[%s537 + $0x2c] sm:$0xf]
          %v550 = vld [vmem:[%s537 + $0x30] sm:$0xf]
          %v551 = vld [vmem:[%s537 + $0x34] sm:$0xf]
          %v552 = vld [vmem:[%s537 + $0x38] sm:$0xf]
          %v553 = vld [vmem:[%s537 + $0x3c] sm:$0xf]
          %v554 = vld [vmem:[%s1] sm:$0xf]
          %v555 = vld [vmem:[%s1 + $0x4] sm:$0xf]
          %v556 = vld [vmem:[%s1 + $0x8] sm:$0xf]
          %v557 = vld [vmem:[%s1 + $0xc] sm:$0xf]
          %v558 = vld [vmem:[%s1 + $0x10] sm:$0xf]
          %s559 = sadd.s32 %s534, 1
          %s560 = smul.u32 %s559, 4
          %s561 = smul.addr %s560, 4
          %s562 = scalar_lea.vmem %s437, %s561
          %v563 = vld [vmem:[%s562] sm:$0xf]
          %v564 = vld [vmem:[%s562 + $0x4] sm:$0xf]
          %v565 = vld [vmem:[%s562 + $0x8] sm:$0xf]
          %v566 = vld [vmem:[%s562 + $0xc] sm:$0xf]
          %v567 = vld [vmem:[%s562 + $0x10] sm:$0xf]
          %v568 = vld [vmem:[%s562 + $0x14] sm:$0xf]
          %v569 = vld [vmem:[%s562 + $0x18] sm:$0xf]
          %v570 = vld [vmem:[%s562 + $0x1c] sm:$0xf]
          %v571 = vld [vmem:[%s562 + $0x20] sm:$0xf]
          %v572 = vld [vmem:[%s562 + $0x24] sm:$0xf]
          %v573 = vld [vmem:[%s562 + $0x28] sm:$0xf]
          %v574 = vld [vmem:[%s562 + $0x2c] sm:$0xf]
          %v575 = vld [vmem:[%s562 + $0x30] sm:$0xf]
          %v576 = vld [vmem:[%s562 + $0x34] sm:$0xf]
          %v577 = vld [vmem:[%s562 + $0x38] sm:$0xf]
          %v578 = vld [vmem:[%s562 + $0x3c] sm:$0xf]
          %s579 = scalar_lea.vmem %s1, 20
          %v580 = vld [vmem:[%s579] sm:$0xf]
          %v581 = vld [vmem:[%s579 + $0x4] sm:$0xf]
          %v582 = vld [vmem:[%s579 + $0x8] sm:$0xf]
          %v583 = vld [vmem:[%s579 + $0xc] sm:$0xf]
          %v584 = vld [vmem:[%s579 + $0x10] sm:$0xf]
          %v601 = vunpack.c.l.b16 %v563
          %v602 = vunpack.c.l.b16 %v564
          %v603 = vunpack.c.l.b16 %v565
          %v604 = vunpack.c.l.b16 %v566
          %v605 = vunpack.c.l.b16 %v567
          %v606 = vunpack.c.l.b16 %v568
          %v607 = vunpack.c.l.b16 %v569
          %v608 = vunpack.c.l.b16 %v570
          %v609 = vunpack.c.l.b16 %v571
          %v610 = vunpack.c.l.b16 %v572
          %v611 = vunpack.c.l.b16 %v573
          %v612 = vunpack.c.l.b16 %v574
          %v613 = vunpack.c.l.b16 %v575
          %v614 = vunpack.c.l.b16 %v576
          %v615 = vunpack.c.l.b16 %v577
          %v616 = vunpack.c.l.b16 %v578
          %v617 = vpack.c.b16 %v602, %v601
          %v618 = vpack.c.b16 %v604, %v603
          %v619 = vpack.c.b16 %v606, %v605
          %v620 = vpack.c.b16 %v608, %v607
          %v621 = vpack.c.b16 %v610, %v609
          %v622 = vpack.c.b16 %v612, %v611
          %v623 = vpack.c.b16 %v614, %v613
          %v624 = vpack.c.b16 %v616, %v615
          %v630 = vunpack.c.l.b16 %v580
          %v631 = vunpack.c.l.b16 %v581
          %v632 = vunpack.c.l.b16 %v582
          %v633 = vunpack.c.l.b16 %v583
          %v634 = vunpack.c.l.b16 %v584
          %v635 = vpack.c.b16 %v631, %v630
          %v636 = vpack.c.b16 %v633, %v632
          %v637 = vpack.c.b16 %v634, %v634
          %vm640 = vcmask 326656
          %v642 = vsel %vm640, %v617, 0
          %v645 = vsel %vm640, %v618, 0
          %v648 = vsel %vm640, %v619, 0
          %v651 = vsel %vm640, %v620, 0
          %v654 = vsel %vm640, %v621, 0
          %v657 = vsel %vm640, %v622, 0
          %v660 = vsel %vm640, %v623, 0
          %v663 = vsel %vm640, %v624, 0
          %vm665 = vcmask 1043456
          %v667 = vsel %vm665, %v637, 0
          %669 = vmatpush.bf16.msra.mxu0 0
          %670 = vmatpush.bf16.msra.mxu0 0
          %671 = vmatpush.bf16.msra.mxu0 0
          %672 = vmatpush.bf16.msra.mxu0 0
          %673 = vmatpush.bf16.msra.mxu0 0
          %674 = vmatpush.bf16.msra.mxu0 %v667
          %675 = vmatpush.bf16.msra.mxu0 %v636
          %676 = vmatpush.bf16.msra.mxu0 %v635
          %677 = vmatmul.bf16.gmra.mxu0 %v642
          %v678 = vpop.f32.mrf.mxu0
          %v679 = vadd.f32 0.0, %v678
          %v680 = vpop.f32.mrf.mxu0
          %v681 = vadd.f32 0.0, %v680
          %682 = vmatmul.bf16.gmra.mxu0 %v645
          %v683 = vpop.f32.mrf.mxu0
          %v684 = vadd.f32 0.0, %v683
          %v685 = vpop.f32.mrf.mxu0
          %v686 = vadd.f32 0.0, %v685
          %687 = vmatmul.bf16.gmra.mxu0 %v648
          %v688 = vpop.f32.mrf.mxu0
          %v689 = vadd.f32 0.0, %v688
          %v690 = vpop.f32.mrf.mxu0
          %v691 = vadd.f32 0.0, %v690
          %692 = vmatmul.bf16.gmra.mxu0 %v651
          %v693 = vpop.f32.mrf.mxu0
          %v694 = vadd.f32 0.0, %v693
          %v695 = vpop.f32.mrf.mxu0
          %v696 = vadd.f32 0.0, %v695
          %697 = vmatmul.bf16.gmra.mxu0 %v654
          %v698 = vpop.f32.mrf.mxu0
          %v699 = vadd.f32 0.0, %v698
          %v700 = vpop.f32.mrf.mxu0
          %v701 = vadd.f32 0.0, %v700
          %702 = vmatmul.bf16.gmra.mxu0 %v657
          %v703 = vpop.f32.mrf.mxu0
          %v704 = vadd.f32 0.0, %v703
          %v705 = vpop.f32.mrf.mxu0
          %v706 = vadd.f32 0.0, %v705
          %707 = vmatmul.bf16.gmra.mxu0 %v660
          %v708 = vpop.f32.mrf.mxu0
          %v709 = vadd.f32 0.0, %v708
          %v710 = vpop.f32.mrf.mxu0
          %v711 = vadd.f32 0.0, %v710
          %712 = vmatmul.bf16.gmra.mxu0 %v663
          %v713 = vpop.f32.mrf.mxu0
          %v714 = vadd.f32 0.0, %v713
          %v715 = vpop.f32.mrf.mxu0
          %v716 = vadd.f32 0.0, %v715
          %717 = vdwg.mxu0
          %v734 = vunpack.c.l.b16 %v538
          %v735 = vunpack.c.l.b16 %v539
          %v736 = vunpack.c.l.b16 %v540
          %v737 = vunpack.c.l.b16 %v541
          %v738 = vunpack.c.l.b16 %v542
          %v739 = vunpack.c.l.b16 %v543
          %v740 = vunpack.c.l.b16 %v544
          %v741 = vunpack.c.l.b16 %v545
          %v742 = vunpack.c.l.b16 %v546
          %v743 = vunpack.c.l.b16 %v547
          %v744 = vunpack.c.l.b16 %v548
          %v745 = vunpack.c.l.b16 %v549
          %v746 = vunpack.c.l.b16 %v550
          %v747 = vunpack.c.l.b16 %v551
          %v748 = vunpack.c.l.b16 %v552
          %v749 = vunpack.c.l.b16 %v553
          %v750 = vpack.c.b16 %v735, %v734
          %v751 = vpack.c.b16 %v737, %v736
          %v752 = vpack.c.b16 %v739, %v738
          %v753 = vpack.c.b16 %v741, %v740
          %v754 = vpack.c.b16 %v743, %v742
          %v755 = vpack.c.b16 %v745, %v744
          %v756 = vpack.c.b16 %v747, %v746
          %v757 = vpack.c.b16 %v749, %v748
          %v763 = vunpack.c.l.b16 %v554
          %v764 = vunpack.c.l.b16 %v555
          %v765 = vunpack.c.l.b16 %v556
          %v766 = vunpack.c.l.b16 %v557
          %v767 = vunpack.c.l.b16 %v558
          %v768 = vpack.c.b16 %v764, %v763
          %v769 = vpack.c.b16 %v766, %v765
          %v770 = vpack.c.b16 %v767, %v767
          %v774 = vsel %vm640, %v750, 0
          %v777 = vsel %vm640, %v751, 0
          %v780 = vsel %vm640, %v752, 0
          %v783 = vsel %vm640, %v753, 0
          %v786 = vsel %vm640, %v754, 0
          %v789 = vsel %vm640, %v755, 0
          %v792 = vsel %vm640, %v756, 0
          %v795 = vsel %vm640, %v757, 0
          %v798 = vsel %vm665, %v770, 0
          %800 = vmatpush.bf16.msra.mxu0 0
          %801 = vmatpush.bf16.msra.mxu0 0
          %802 = vmatpush.bf16.msra.mxu0 0
          %803 = vmatpush.bf16.msra.mxu0 0
          %804 = vmatpush.bf16.msra.mxu0 0
          %805 = vmatpush.bf16.msra.mxu0 %v798
          %806 = vmatpush.bf16.msra.mxu0 %v769
          %807 = vmatpush.bf16.msra.mxu0 %v768
          %808 = vmatmul.bf16.gmra.mxu0 %v774
          %v809 = vpop.f32.mrf.mxu0
          %v810 = vadd.f32 %v679, %v809
          %v811 = vpop.f32.mrf.mxu0
          %v812 = vadd.f32 %v681, %v811
          %813 = vmatmul.bf16.gmra.mxu0 %v777
          %v814 = vpop.f32.mrf.mxu0
          %v815 = vadd.f32 %v684, %v814
          %v816 = vpop.f32.mrf.mxu0
          %v817 = vadd.f32 %v686, %v816
          %818 = vmatmul.bf16.gmra.mxu0 %v780
          %v819 = vpop.f32.mrf.mxu0
          %v820 = vadd.f32 %v689, %v819
          %v821 = vpop.f32.mrf.mxu0
          %v822 = vadd.f32 %v691, %v821
          %823 = vmatmul.bf16.gmra.mxu0 %v783
          %v824 = vpop.f32.mrf.mxu0
          %v825 = vadd.f32 %v694, %v824
          %v826 = vpop.f32.mrf.mxu0
          %v827 = vadd.f32 %v696, %v826
          %828 = vmatmul.bf16.gmra.mxu0 %v786
          %v829 = vpop.f32.mrf.mxu0
          %v830 = vadd.f32 %v699, %v829
          %v831 = vpop.f32.mrf.mxu0
          %v832 = vadd.f32 %v701, %v831
          %833 = vmatmul.bf16.gmra.mxu0 %v789
          %v834 = vpop.f32.mrf.mxu0
          %v835 = vadd.f32 %v704, %v834
          %v836 = vpop.f32.mrf.mxu0
          %v837 = vadd.f32 %v706, %v836
          %838 = vmatmul.bf16.gmra.mxu0 %v792
          %v839 = vpop.f32.mrf.mxu0
          %v840 = vadd.f32 %v709, %v839
          %v841 = vpop.f32.mrf.mxu0
          %v842 = vadd.f32 %v711, %v841
          %843 = vmatmul.bf16.gmra.mxu0 %v795
          %v844 = vpop.f32.mrf.mxu0
          %v845 = vadd.f32 %v714, %v844
          %v846 = vpop.f32.mrf.mxu0
          %v847 = vadd.f32 %v716, %v846
          %848 = vdwg.mxu0
          %s849 = sadd.s32 %s534, 2
          %s850 = smul.u32 %s849, 4
          %s851 = smul.addr %s850, 4
          %s852 = scalar_lea.vmem %s437, %s851
          %v853 = vld [vmem:[%s852] sm:$0xf]
          %v854 = vld [vmem:[%s852 + $0x4] sm:$0xf]
          %v855 = vld [vmem:[%s852 + $0x8] sm:$0xf]
          %v856 = vld [vmem:[%s852 + $0xc] sm:$0xf]
          %v857 = vld [vmem:[%s852 + $0x10] sm:$0xf]
          %v858 = vld [vmem:[%s852 + $0x14] sm:$0xf]
          %v859 = vld [vmem:[%s852 + $0x18] sm:$0xf]
          %v860 = vld [vmem:[%s852 + $0x1c] sm:$0xf]
          %v861 = vld [vmem:[%s852 + $0x20] sm:$0xf]
          %v862 = vld [vmem:[%s852 + $0x24] sm:$0xf]
          %v863 = vld [vmem:[%s852 + $0x28] sm:$0xf]
          %v864 = vld [vmem:[%s852 + $0x2c] sm:$0xf]
          %v865 = vld [vmem:[%s852 + $0x30] sm:$0xf]
          %v866 = vld [vmem:[%s852 + $0x34] sm:$0xf]
          %v867 = vld [vmem:[%s852 + $0x38] sm:$0xf]
          %v868 = vld [vmem:[%s852 + $0x3c] sm:$0xf]
          %s869 = scalar_lea.vmem %s1, 40
          %v870 = vld [vmem:[%s869] sm:$0xf]
          %v871 = vld [vmem:[%s869 + $0x4] sm:$0xf]
          %v872 = vld [vmem:[%s869 + $0x8] sm:$0xf]
          %v873 = vld [vmem:[%s869 + $0xc] sm:$0xf]
          %v874 = vld [vmem:[%s869 + $0x10] sm:$0xf]
          %v891 = vunpack.c.l.b16 %v853
          %v892 = vunpack.c.l.b16 %v854
          %v893 = vunpack.c.l.b16 %v855
          %v894 = vunpack.c.l.b16 %v856
          %v895 = vunpack.c.l.b16 %v857
          %v896 = vunpack.c.l.b16 %v858
          %v897 = vunpack.c.l.b16 %v859
          %v898 = vunpack.c.l.b16 %v860
          %v899 = vunpack.c.l.b16 %v861
          %v900 = vunpack.c.l.b16 %v862
          %v901 = vunpack.c.l.b16 %v863
          %v902 = vunpack.c.l.b16 %v864
          %v903 = vunpack.c.l.b16 %v865
          %v904 = vunpack.c.l.b16 %v866
          %v905 = vunpack.c.l.b16 %v867
          %v906 = vunpack.c.l.b16 %v868
          %v907 = vpack.c.b16 %v892, %v891
          %v908 = vpack.c.b16 %v894, %v893
          %v909 = vpack.c.b16 %v896, %v895
          %v910 = vpack.c.b16 %v898, %v897
          %v911 = vpack.c.b16 %v900, %v899
          %v912 = vpack.c.b16 %v902, %v901
          %v913 = vpack.c.b16 %v904, %v903
          %v914 = vpack.c.b16 %v906, %v905
          %v920 = vunpack.c.l.b16 %v870
          %v921 = vunpack.c.l.b16 %v871
          %v922 = vunpack.c.l.b16 %v872
          %v923 = vunpack.c.l.b16 %v873
          %v924 = vunpack.c.l.b16 %v874
          %v925 = vpack.c.b16 %v921, %v920
          %v926 = vpack.c.b16 %v923, %v922
          %v927 = vpack.c.b16 %v924, %v924
          %v931 = vsel %vm640, %v907, 0
          %v934 = vsel %vm640, %v908, 0
          %v937 = vsel %vm640, %v909, 0
          %v940 = vsel %vm640, %v910, 0
          %v943 = vsel %vm640, %v911, 0
          %v946 = vsel %vm640, %v912, 0
          %v949 = vsel %vm640, %v913, 0
          %v952 = vsel %vm640, %v914, 0
          %v955 = vsel %vm665, %v927, 0
          %957 = vmatpush.bf16.msra.mxu0 0
          %958 = vmatpush.bf16.msra.mxu0 0
          %959 = vmatpush.bf16.msra.mxu0 0
          %960 = vmatpush.bf16.msra.mxu0 0
          %961 = vmatpush.bf16.msra.mxu0 0
          %962 = vmatpush.bf16.msra.mxu0 %v955
          %963 = vmatpush.bf16.msra.mxu0 %v926
          %964 = vmatpush.bf16.msra.mxu0 %v925
          %965 = vmatmul.bf16.gmra.mxu0 %v931
          %v966 = vpop.f32.mrf.mxu0
          %v967 = vadd.f32 0.0, %v966
          %v968 = vpop.f32.mrf.mxu0
          %v969 = vadd.f32 0.0, %v968
          %970 = vmatmul.bf16.gmra.mxu0 %v934
          %v971 = vpop.f32.mrf.mxu0
          %v972 = vadd.f32 0.0, %v971
          %v973 = vpop.f32.mrf.mxu0
          %v974 = vadd.f32 0.0, %v973
          %975 = vmatmul.bf16.gmra.mxu0 %v937
          %v976 = vpop.f32.mrf.mxu0
          %v977 = vadd.f32 0.0, %v976
          %v978 = vpop.f32.mrf.mxu0
          %v979 = vadd.f32 0.0, %v978
          %980 = vmatmul.bf16.gmra.mxu0 %v940
          %v981 = vpop.f32.mrf.mxu0
          %v982 = vadd.f32 0.0, %v981
          %v983 = vpop.f32.mrf.mxu0
          %v984 = vadd.f32 0.0, %v983
          %985 = vmatmul.bf16.gmra.mxu0 %v943
          %v986 = vpop.f32.mrf.mxu0
          %v987 = vadd.f32 0.0, %v986
          %v988 = vpop.f32.mrf.mxu0
          %v989 = vadd.f32 0.0, %v988
          %990 = vmatmul.bf16.gmra.mxu0 %v946
          %v991 = vpop.f32.mrf.mxu0
          %v992 = vadd.f32 0.0, %v991
          %v993 = vpop.f32.mrf.mxu0
          %v994 = vadd.f32 0.0, %v993
          %995 = vmatmul.bf16.gmra.mxu0 %v949
          %v996 = vpop.f32.mrf.mxu0
          %v997 = vadd.f32 0.0, %v996
          %v998 = vpop.f32.mrf.mxu0
          %v999 = vadd.f32 0.0, %v998
          %1000 = vmatmul.bf16.gmra.mxu0 %v952
          %v1001 = vpop.f32.mrf.mxu0
          %v1002 = vadd.f32 0.0, %v1001
          %v1003 = vpop.f32.mrf.mxu0
          %v1004 = vadd.f32 0.0, %v1003
          %1005 = vdwg.mxu0
          %v1006 = vadd.f32 %v810, %v967
          %v1007 = vadd.f32 %v812, %v969
          %v1008 = vadd.f32 %v815, %v972
          %v1009 = vadd.f32 %v817, %v974
          %v1010 = vadd.f32 %v820, %v977
          %v1011 = vadd.f32 %v822, %v979
          %v1012 = vadd.f32 %v825, %v982
          %v1013 = vadd.f32 %v827, %v984
          %v1014 = vadd.f32 %v830, %v987
          %v1015 = vadd.f32 %v832, %v989
          %v1016 = vadd.f32 %v835, %v992
          %v1017 = vadd.f32 %v837, %v994
          %v1018 = vadd.f32 %v840, %v997
          %v1019 = vadd.f32 %v842, %v999
          %v1020 = vadd.f32 %v845, %v1002
          %v1021 = vadd.f32 %v847, %v1004
          %s1022 = sadd.s32 %s534, 3
          %s1023 = smul.u32 %s1022, 4
          %s1024 = smul.addr %s1023, 4
          %s1025 = scalar_lea.vmem %s437, %s1024
          %v1026 = vld [vmem:[%s1025] sm:$0xf]
          %v1027 = vld [vmem:[%s1025 + $0x4] sm:$0xf]
          %v1028 = vld [vmem:[%s1025 + $0x8] sm:$0xf]
          %v1029 = vld [vmem:[%s1025 + $0xc] sm:$0xf]
          %v1030 = vld [vmem:[%s1025 + $0x10] sm:$0xf]
          %v1031 = vld [vmem:[%s1025 + $0x14] sm:$0xf]
          %v1032 = vld [vmem:[%s1025 + $0x18] sm:$0xf]
          %v1033 = vld [vmem:[%s1025 + $0x1c] sm:$0xf]
          %v1034 = vld [vmem:[%s1025 + $0x20] sm:$0xf]
          %v1035 = vld [vmem:[%s1025 + $0x24] sm:$0xf]
          %v1036 = vld [vmem:[%s1025 + $0x28] sm:$0xf]
          %v1037 = vld [vmem:[%s1025 + $0x2c] sm:$0xf]
          %v1038 = vld [vmem:[%s1025 + $0x30] sm:$0xf]
          %v1039 = vld [vmem:[%s1025 + $0x34] sm:$0xf]
          %v1040 = vld [vmem:[%s1025 + $0x38] sm:$0xf]
          %v1041 = vld [vmem:[%s1025 + $0x3c] sm:$0xf]
          %s1042 = scalar_lea.vmem %s1, 60
          %v1043 = vld [vmem:[%s1042] sm:$0xf]
          %v1044 = vld [vmem:[%s1042 + $0x4] sm:$0xf]
          %v1045 = vld [vmem:[%s1042 + $0x8] sm:$0xf]
          %v1046 = vld [vmem:[%s1042 + $0xc] sm:$0xf]
          %v1047 = vld [vmem:[%s1042 + $0x10] sm:$0xf]
          %v1064 = vunpack.c.l.b16 %v1026
          %v1065 = vunpack.c.l.b16 %v1027
          %v1066 = vunpack.c.l.b16 %v1028
          %v1067 = vunpack.c.l.b16 %v1029
          %v1068 = vunpack.c.l.b16 %v1030
          %v1069 = vunpack.c.l.b16 %v1031
          %v1070 = vunpack.c.l.b16 %v1032
          %v1071 = vunpack.c.l.b16 %v1033
          %v1072 = vunpack.c.l.b16 %v1034
          %v1073 = vunpack.c.l.b16 %v1035
          %v1074 = vunpack.c.l.b16 %v1036
          %v1075 = vunpack.c.l.b16 %v1037
          %v1076 = vunpack.c.l.b16 %v1038
          %v1077 = vunpack.c.l.b16 %v1039
          %v1078 = vunpack.c.l.b16 %v1040
          %v1079 = vunpack.c.l.b16 %v1041
          %v1080 = vpack.c.b16 %v1065, %v1064
          %v1081 = vpack.c.b16 %v1067, %v1066
          %v1082 = vpack.c.b16 %v1069, %v1068
          %v1083 = vpack.c.b16 %v1071, %v1070
          %v1084 = vpack.c.b16 %v1073, %v1072
          %v1085 = vpack.c.b16 %v1075, %v1074
          %v1086 = vpack.c.b16 %v1077, %v1076
          %v1087 = vpack.c.b16 %v1079, %v1078
          %v1093 = vunpack.c.l.b16 %v1043
          %v1094 = vunpack.c.l.b16 %v1044
          %v1095 = vunpack.c.l.b16 %v1045
          %v1096 = vunpack.c.l.b16 %v1046
          %v1097 = vunpack.c.l.b16 %v1047
          %v1098 = vpack.c.b16 %v1094, %v1093
          %v1099 = vpack.c.b16 %v1096, %v1095
          %v1100 = vpack.c.b16 %v1097, %v1097
          %v1104 = vsel %vm640, %v1080, 0
          %v1107 = vsel %vm640, %v1081, 0
          %v1110 = vsel %vm640, %v1082, 0
          %v1113 = vsel %vm640, %v1083, 0
          %v1116 = vsel %vm640, %v1084, 0
          %v1119 = vsel %vm640, %v1085, 0
          %v1122 = vsel %vm640, %v1086, 0
          %v1125 = vsel %vm640, %v1087, 0
          %v1128 = vsel %vm665, %v1100, 0
          %1130 = vmatpush.bf16.msra.mxu0 0
          %1131 = vmatpush.bf16.msra.mxu0 0
          %1132 = vmatpush.bf16.msra.mxu0 0
          %1133 = vmatpush.bf16.msra.mxu0 0
          %1134 = vmatpush.bf16.msra.mxu0 0
          %1135 = vmatpush.bf16.msra.mxu0 %v1128
          %1136 = vmatpush.bf16.msra.mxu0 %v1099
          %1137 = vmatpush.bf16.msra.mxu0 %v1098
          %1138 = vmatmul.bf16.gmra.mxu0 %v1104
          %v1139 = vpop.f32.mrf.mxu0
          %v1140 = vadd.f32 0.0, %v1139
          %v1141 = vpop.f32.mrf.mxu0
          %v1142 = vadd.f32 0.0, %v1141
          %1143 = vmatmul.bf16.gmra.mxu0 %v1107
          %v1144 = vpop.f32.mrf.mxu0
          %v1145 = vadd.f32 0.0, %v1144
          %v1146 = vpop.f32.mrf.mxu0
          %v1147 = vadd.f32 0.0, %v1146
          %1148 = vmatmul.bf16.gmra.mxu0 %v1110
          %v1149 = vpop.f32.mrf.mxu0
          %v1150 = vadd.f32 0.0, %v1149
          %v1151 = vpop.f32.mrf.mxu0
          %v1152 = vadd.f32 0.0, %v1151
          %1153 = vmatmul.bf16.gmra.mxu0 %v1113
          %v1154 = vpop.f32.mrf.mxu0
          %v1155 = vadd.f32 0.0, %v1154
          %v1156 = vpop.f32.mrf.mxu0
          %v1157 = vadd.f32 0.0, %v1156
          %1158 = vmatmul.bf16.gmra.mxu0 %v1116
          %v1159 = vpop.f32.mrf.mxu0
          %v1160 = vadd.f32 0.0, %v1159
          %v1161 = vpop.f32.mrf.mxu0
          %v1162 = vadd.f32 0.0, %v1161
          %1163 = vmatmul.bf16.gmra.mxu0 %v1119
          %v1164 = vpop.f32.mrf.mxu0
          %v1165 = vadd.f32 0.0, %v1164
          %v1166 = vpop.f32.mrf.mxu0
          %v1167 = vadd.f32 0.0, %v1166
          %1168 = vmatmul.bf16.gmra.mxu0 %v1122
          %v1169 = vpop.f32.mrf.mxu0
          %v1170 = vadd.f32 0.0, %v1169
          %v1171 = vpop.f32.mrf.mxu0
          %v1172 = vadd.f32 0.0, %v1171
          %1173 = vmatmul.bf16.gmra.mxu0 %v1125
          %v1174 = vpop.f32.mrf.mxu0
          %v1175 = vadd.f32 0.0, %v1174
          %v1176 = vpop.f32.mrf.mxu0
          %v1177 = vadd.f32 0.0, %v1176
          %1178 = vdwg.mxu0
          %v1179 = vadd.f32 %v1006, %v1140
          %v1180 = vadd.f32 %v1007, %v1142
          %v1181 = vadd.f32 %v1008, %v1145
          %v1182 = vadd.f32 %v1009, %v1147
          %v1183 = vadd.f32 %v1010, %v1150
          %v1184 = vadd.f32 %v1011, %v1152
          %v1185 = vadd.f32 %v1012, %v1155
          %v1186 = vadd.f32 %v1013, %v1157
          %v1187 = vadd.f32 %v1014, %v1160
          %v1188 = vadd.f32 %v1015, %v1162
          %v1189 = vadd.f32 %v1016, %v1165
          %v1190 = vadd.f32 %v1017, %v1167
          %v1191 = vadd.f32 %v1018, %v1170
          %v1192 = vadd.f32 %v1019, %v1172
          %v1193 = vadd.f32 %v1020, %v1175
          %v1194 = vadd.f32 %v1021, %v1177
          %s1195 = sadd.s32 %s534, 4
          %s1196 = smul.u32 %s1195, 4
          %s1197 = smul.addr %s1196, 4
          %s1198 = scalar_lea.vmem %s437, %s1197
          %v1199 = vld [vmem:[%s1198] sm:$0xf]
          %v1200 = vld [vmem:[%s1198 + $0x4] sm:$0xf]
          %v1201 = vld [vmem:[%s1198 + $0x8] sm:$0xf]
          %v1202 = vld [vmem:[%s1198 + $0xc] sm:$0xf]
          %v1203 = vld [vmem:[%s1198 + $0x10] sm:$0xf]
          %v1204 = vld [vmem:[%s1198 + $0x14] sm:$0xf]
          %v1205 = vld [vmem:[%s1198 + $0x18] sm:$0xf]
          %v1206 = vld [vmem:[%s1198 + $0x1c] sm:$0xf]
          %v1207 = vld [vmem:[%s1198 + $0x20] sm:$0xf]
          %v1208 = vld [vmem:[%s1198 + $0x24] sm:$0xf]
          %v1209 = vld [vmem:[%s1198 + $0x28] sm:$0xf]
          %v1210 = vld [vmem:[%s1198 + $0x2c] sm:$0xf]
          %v1211 = vld [vmem:[%s1198 + $0x30] sm:$0xf]
          %v1212 = vld [vmem:[%s1198 + $0x34] sm:$0xf]
          %v1213 = vld [vmem:[%s1198 + $0x38] sm:$0xf]
          %v1214 = vld [vmem:[%s1198 + $0x3c] sm:$0xf]
          %s1215 = scalar_lea.vmem %s1, 80
          %v1216 = vld [vmem:[%s1215] sm:$0xf]
          %v1217 = vld [vmem:[%s1215 + $0x4] sm:$0xf]
          %v1218 = vld [vmem:[%s1215 + $0x8] sm:$0xf]
          %v1219 = vld [vmem:[%s1215 + $0xc] sm:$0xf]
          %v1220 = vld [vmem:[%s1215 + $0x10] sm:$0xf]
          %v1237 = vunpack.c.l.b16 %v1199
          %v1238 = vunpack.c.l.b16 %v1200
          %v1239 = vunpack.c.l.b16 %v1201
          %v1240 = vunpack.c.l.b16 %v1202
          %v1241 = vunpack.c.l.b16 %v1203
          %v1242 = vunpack.c.l.b16 %v1204
          %v1243 = vunpack.c.l.b16 %v1205
          %v1244 = vunpack.c.l.b16 %v1206
          %v1245 = vunpack.c.l.b16 %v1207
          %v1246 = vunpack.c.l.b16 %v1208
          %v1247 = vunpack.c.l.b16 %v1209
          %v1248 = vunpack.c.l.b16 %v1210
          %v1249 = vunpack.c.l.b16 %v1211
          %v1250 = vunpack.c.l.b16 %v1212
          %v1251 = vunpack.c.l.b16 %v1213
          %v1252 = vunpack.c.l.b16 %v1214
          %v1253 = vpack.c.b16 %v1238, %v1237
          %v1254 = vpack.c.b16 %v1240, %v1239
          %v1255 = vpack.c.b16 %v1242, %v1241
          %v1256 = vpack.c.b16 %v1244, %v1243
          %v1257 = vpack.c.b16 %v1246, %v1245
          %v1258 = vpack.c.b16 %v1248, %v1247
          %v1259 = vpack.c.b16 %v1250, %v1249
          %v1260 = vpack.c.b16 %v1252, %v1251
          %v1266 = vunpack.c.l.b16 %v1216
          %v1267 = vunpack.c.l.b16 %v1217
          %v1268 = vunpack.c.l.b16 %v1218
          %v1269 = vunpack.c.l.b16 %v1219
          %v1270 = vunpack.c.l.b16 %v1220
          %v1271 = vpack.c.b16 %v1267, %v1266
          %v1272 = vpack.c.b16 %v1269, %v1268
          %v1273 = vpack.c.b16 %v1270, %v1270
          %v1277 = vsel %vm640, %v1253, 0
          %v1280 = vsel %vm640, %v1254, 0
          %v1283 = vsel %vm640, %v1255, 0
          %v1286 = vsel %vm640, %v1256, 0
          %v1289 = vsel %vm640, %v1257, 0
          %v1292 = vsel %vm640, %v1258, 0
          %v1295 = vsel %vm640, %v1259, 0
          %v1298 = vsel %vm640, %v1260, 0
          %v1301 = vsel %vm665, %v1273, 0
          %1303 = vmatpush.bf16.msra.mxu0 0
          %1304 = vmatpush.bf16.msra.mxu0 0
          %1305 = vmatpush.bf16.msra.mxu0 0
          %1306 = vmatpush.bf16.msra.mxu0 0
          %1307 = vmatpush.bf16.msra.mxu0 0
          %1308 = vmatpush.bf16.msra.mxu0 %v1301
          %1309 = vmatpush.bf16.msra.mxu0 %v1272
          %1310 = vmatpush.bf16.msra.mxu0 %v1271
          %1311 = vmatmul.bf16.gmra.mxu0 %v1277
          %v1312 = vpop.f32.mrf.mxu0
          %v1313 = vadd.f32 0.0, %v1312
          %v1314 = vpop.f32.mrf.mxu0
          %v1315 = vadd.f32 0.0, %v1314
          %1316 = vmatmul.bf16.gmra.mxu0 %v1280
          %v1317 = vpop.f32.mrf.mxu0
          %v1318 = vadd.f32 0.0, %v1317
          %v1319 = vpop.f32.mrf.mxu0
          %v1320 = vadd.f32 0.0, %v1319
          %1321 = vmatmul.bf16.gmra.mxu0 %v1283
          %v1322 = vpop.f32.mrf.mxu0
          %v1323 = vadd.f32 0.0, %v1322
          %v1324 = vpop.f32.mrf.mxu0
          %v1325 = vadd.f32 0.0, %v1324
          %1326 = vmatmul.bf16.gmra.mxu0 %v1286
          %v1327 = vpop.f32.mrf.mxu0
          %v1328 = vadd.f32 0.0, %v1327
          %v1329 = vpop.f32.mrf.mxu0
          %v1330 = vadd.f32 0.0, %v1329
          %1331 = vmatmul.bf16.gmra.mxu0 %v1289
          %v1332 = vpop.f32.mrf.mxu0
          %v1333 = vadd.f32 0.0, %v1332
          %v1334 = vpop.f32.mrf.mxu0
          %v1335 = vadd.f32 0.0, %v1334
          %1336 = vmatmul.bf16.gmra.mxu0 %v1292
          %v1337 = vpop.f32.mrf.mxu0
          %v1338 = vadd.f32 0.0, %v1337
          %v1339 = vpop.f32.mrf.mxu0
          %v1340 = vadd.f32 0.0, %v1339
          %1341 = vmatmul.bf16.gmra.mxu0 %v1295
          %v1342 = vpop.f32.mrf.mxu0
          %v1343 = vadd.f32 0.0, %v1342
          %v1344 = vpop.f32.mrf.mxu0
          %v1345 = vadd.f32 0.0, %v1344
          %1346 = vmatmul.bf16.gmra.mxu0 %v1298
          %v1347 = vpop.f32.mrf.mxu0
          %v1348 = vadd.f32 0.0, %v1347
          %v1349 = vpop.f32.mrf.mxu0
          %v1350 = vadd.f32 0.0, %v1349
          %1351 = vdwg.mxu0
          %v1352 = vadd.f32 %v1179, %v1313
          %v1353 = vadd.f32 %v1180, %v1315
          %v1354 = vadd.f32 %v1181, %v1318
          %v1355 = vadd.f32 %v1182, %v1320
          %v1356 = vadd.f32 %v1183, %v1323
          %v1357 = vadd.f32 %v1184, %v1325
          %v1358 = vadd.f32 %v1185, %v1328
          %v1359 = vadd.f32 %v1186, %v1330
          %v1360 = vadd.f32 %v1187, %v1333
          %v1361 = vadd.f32 %v1188, %v1335
          %v1362 = vadd.f32 %v1189, %v1338
          %v1363 = vadd.f32 %v1190, %v1340
          %v1364 = vadd.f32 %v1191, %v1343
          %v1365 = vadd.f32 %v1192, %v1345
          %v1366 = vadd.f32 %v1193, %v1348
          %v1367 = vadd.f32 %v1194, %v1350
          %v1369 = vperm.slane %v527, 0
          %v1371 = vadd.f32 %v1352, %v1369
          %v1372 = vadd.f32 %v1353, %v1369
          %v1373 = vadd.f32 %v1354, %v1369
          %v1374 = vadd.f32 %v1355, %v1369
          %v1375 = vadd.f32 %v1356, %v1369
          %v1376 = vadd.f32 %v1357, %v1369
          %v1377 = vadd.f32 %v1358, %v1369
          %v1378 = vadd.f32 %v1359, %v1369
          %v1379 = vadd.f32 %v1360, %v1369
          %v1380 = vadd.f32 %v1361, %v1369
          %v1381 = vadd.f32 %v1362, %v1369
          %v1382 = vadd.f32 %v1363, %v1369
          %v1383 = vadd.f32 %v1364, %v1369
          %v1384 = vadd.f32 %v1365, %v1369
          %v1385 = vadd.f32 %v1366, %v1369
          %v1386 = vadd.f32 %v1367, %v1369
          %vm1387 = vcmask 261120
          %v1388 = vsel %vm1387, %v1371, -inf
          %v1389 = vsel %vm1387, %v1375, -inf
          %v1390 = vmax.f32 %v1388, %v1389
          %v1391 = vsel %vm1387, %v1372, -inf
          %v1392 = vsel %vm1387, %v1376, -inf
          %v1393 = vmax.f32 %v1391, %v1392
          %v1394 = vsel %vm1387, %v1373, -inf
          %v1395 = vsel %vm1387, %v1377, -inf
          %v1396 = vmax.f32 %v1394, %v1395
          %v1397 = vsel %vm1387, %v1374, -inf
          %v1398 = vsel %vm1387, %v1378, -inf
          %v1399 = vmax.f32 %v1397, %v1398
          %v1400 = vsel %vm1387, %v1379, -inf
          %v1401 = vsel %vm1387, %v1383, -inf
          %v1402 = vmax.f32 %v1400, %v1401
          %v1403 = vsel %vm1387, %v1380, -inf
          %v1404 = vsel %vm1387, %v1384, -inf
          %v1405 = vmax.f32 %v1403, %v1404
          %v1406 = vsel %vm1387, %v1381, -inf
          %v1407 = vsel %vm1387, %v1385, -inf
          %v1408 = vmax.f32 %v1406, %v1407
          %v1409 = vsel %vm1387, %v1382, -inf
          %v1410 = vsel %vm1387, %v1386, -inf
          %v1411 = vmax.f32 %v1409, %v1410
          %v1412 = vpack.c.bf16 %v1393, %v1390
          %v1413 = vpack.c.bf16 %v1399, %v1396
          %v1414 = vpack.c.bf16 %v1405, %v1402
          %v1415 = vpack.c.bf16 %v1411, %v1408
          %v1424 = vunpack.c.l.b16 %v515
          %v1425 = vunpack.c.l.b16 %v516
          %v1426 = vunpack.c.l.b16 %v517
          %v1427 = vunpack.c.l.b16 %v518
          %v1428 = vunpack.c.l.b16 %v519
          %v1429 = vunpack.c.l.b16 %v520
          %v1430 = vunpack.c.l.b16 %v521
          %v1431 = vunpack.c.l.b16 %v522
          %v1432 = vpack.c.b16 %v1425, %v1424
          %v1433 = vpack.c.b16 %v1427, %v1426
          %v1434 = vpack.c.b16 %v1429, %v1428
          %v1435 = vpack.c.b16 %v1431, %v1430
          %vm1436 = vcmask 523264
          %v1438 = vsel %vm1436, %v1432, 0
          %v1441 = vsel %vm1436, %v1433, 0
          %v1444 = vsel %vm1436, %v1434, 0
          %v1447 = vsel %vm1436, %v1435, 0
          %1449 = vmatpush.bf16.msra.mxu0 0
          %1450 = vmatpush.bf16.msra.mxu0 0
          %1451 = vmatpush.bf16.msra.mxu0 0
          %1452 = vmatpush.bf16.msra.mxu0 0
          %1453 = vmatpush.bf16.msra.mxu0 %v1415
          %1454 = vmatpush.bf16.msra.mxu0 %v1414
          %1455 = vmatpush.bf16.msra.mxu0 %v1413
          %1456 = vmatpush.bf16.msra.mxu0 %v1412
          %1457 = vmatmul.bf16.gmra.mxu0 %v1438
          %v1458 = vpop.f32.mrf.mxu0
          %v1459 = vadd.f32 0.0, %v1458
          %v1460 = vpop.f32.mrf.mxu0
          %v1461 = vadd.f32 0.0, %v1460
          %1462 = vmatmul.bf16.gmra.mxu0 %v1441
          %v1463 = vpop.f32.mrf.mxu0
          %v1464 = vadd.f32 0.0, %v1463
          %v1465 = vpop.f32.mrf.mxu0
          %v1466 = vadd.f32 0.0, %v1465
          %1467 = vmatmul.bf16.gmra.mxu0 %v1444
          %v1468 = vpop.f32.mrf.mxu0
          %v1469 = vadd.f32 0.0, %v1468
          %v1470 = vpop.f32.mrf.mxu0
          %v1471 = vadd.f32 0.0, %v1470
          %1472 = vmatmul.bf16.gmra.mxu0 %v1447
          %v1473 = vpop.f32.mrf.mxu0
          %v1474 = vadd.f32 0.0, %v1473
          %v1475 = vpop.f32.mrf.mxu0
          %v1476 = vadd.f32 0.0, %v1475
          %1477 = vdwg.mxu0
          %v1478 = vsel %vm1387, %v1459, -inf
          %v1479 = vsel %vm1387, %v1469, -inf
          %v1480 = vmax.f32 %v1478, %v1479
          %v1481 = vsel %vm1387, %v1461, -inf
          %v1482 = vsel %vm1387, %v1471, -inf
          %v1483 = vmax.f32 %v1481, %v1482
          %v1484 = vsel %vm1387, %v1464, -inf
          %v1485 = vsel %vm1387, %v1474, -inf
          %v1486 = vmax.f32 %v1484, %v1485
          %v1487 = vsel %vm1387, %v1466, -inf
          %v1488 = vsel %vm1387, %v1476, -inf
          %v1489 = vmax.f32 %v1487, %v1488
          %v1490 = vpack.c.bf16 %v1480, %v1480
          %v1491 = vpack.c.bf16 %v1483, %v1483
          %v1492 = vpack.c.bf16 %v1486, %v1486
          %v1493 = vpack.c.bf16 %v1489, %v1489
          %s1494 = smul.u32 %s529, 2
          %s1495 = sadd.s32 %s1494, 2
          %vm1500 = vcmask 1040384
          %vm1501 = vcmask 1044484
          %vm1502 = vmor %vm1500, %vm1501
          %v1503 = vrot.slane %v1490, 7
          %v1504 = vrot.slane %v1503, 4
          %v1505 = vrot.slane %v1491, 7
          %v1506 = vsel %vm1502, %v1504, %v1505
          %v1507 = vrot.slane %v1505, 4
          %v1508 = vrot.slane %v1492, 7
          %v1509 = vrot.slane %v1508, 4
          %v1510 = vrot.slane %v1493, 7
          %v1511 = vsel %vm1502, %v1509, %v1510
          %v1512 = vrot.slane %v1510, 4
          %s1519 = smul.u32 %s1495, 3
          %s1520 = smul.addr %s1519, 4
          %s1521 = scalar_lea.vmem [#allocation2], %s1520
          %vm1522 = vcmask 257025
          %1523 = vst.msk [vmem:[%s1521] sm:$0xe] %vm1522, %v1503
          %1524 = vst.msk [vmem:[%s1521 + $0x4] sm:$0xf] %vm439, %v1506
          %1525 = vst.msk [vmem:[%s1521 + $0x8] sm:$0x1] %vm455, %v1507
          %1526 = vst.msk [vmem:[%s1521 + $0xc] sm:$0xe] %vm1522, %v1508
          %1527 = vst.msk [vmem:[%s1521 + $0x10] sm:$0xf] %vm439, %v1511
          %1528 = vst.msk [vmem:[%s1521 + $0x14] sm:$0x1] %vm455, %v1512
        $region77: #{my_network_forward.1} parent=71 // loop_footer
          %s533 = sadd.s32 1, %s529
        $region78: #{my_network_forward.1} parent=71 // loop_footer_branch
          %528 = sbr.rel target = $region74
        $region79: #{my_network_forward.1} parent=71 // loop_exit
          _
        %v1529 = vld [vmem:[#allocation2] sm:$0xf]
        %v1530 = vld [vmem:[#allocation2 + $0x4] sm:$0xf]
        %v1531 = vld [vmem:[#allocation2 + $0xc] sm:$0xf]
        %v1532 = vld [vmem:[#allocation2 + $0x10] sm:$0xf]
        %v1533 = vld [vmem:[#allocation2 + $0x18] sm:$0xf]
        %v1534 = vld [vmem:[#allocation2 + $0x1c] sm:$0xf]
        %v1535 = vld [vmem:[#allocation2 + $0x24] sm:$0xf]
        %v1536 = vld [vmem:[#allocation2 + $0x28] sm:$0xf]
        %v1537 = vld [vmem:[#allocation2 + $0x30] sm:$0xf]
        %v1538 = vld [vmem:[#allocation2 + $0x34] sm:$0xf]
        %v1539 = vld [vmem:[#allocation2 + $0x3c] sm:$0xf]
        %v1540 = vld [vmem:[#allocation2 + $0x40] sm:$0xf]
        %v1541 = vld [vmem:[#allocation2 + $0x48] sm:$0xf]
        %v1542 = vld [vmem:[#allocation2 + $0x4c] sm:$0xf]
        %v1543 = vld [vmem:[#allocation2 + $0x54] sm:$0xf]
        %v1544 = vld [vmem:[#allocation2 + $0x58] sm:$0xf]
        %v1545 = vld [vmem:[#allocation2 + $0x60] sm:$0xf]
        %v1546 = vld [vmem:[#allocation2 + $0x64] sm:$0xf]
        %v1547 = vld [vmem:[#allocation2 + $0x6c] sm:$0xf]
        %v1548 = vld [vmem:[#allocation2 + $0x70] sm:$0xf]
        %v1549 = vld [vmem:[#allocation2 + $0x78] sm:$0xf]
        %v1550 = vld [vmem:[#allocation2 + $0x7c] sm:$0xf]
        %v1551 = vld [vmem:[#allocation2 + $0x84] sm:$0xf]
        %v1552 = vld [vmem:[#allocation2 + $0x88] sm:$0xf]
        %v1553 = vld [vmem:[#allocation2 + $0x90] sm:$0xf]
        %v1554 = vld [vmem:[#allocation2 + $0x94] sm:$0xf]
        %v1555 = vld [vmem:[#allocation2 + $0x9c] sm:$0xf]
        %v1556 = vld [vmem:[#allocation2 + $0xa0] sm:$0xf]
        %v1557 = vld [vmem:[#allocation2 + $0xa8] sm:$0xf]
        %v1558 = vld [vmem:[#allocation2 + $0xac] sm:$0xf]
        %v1559 = vld [vmem:[#allocation2 + $0xb4] sm:$0xf]
        %v1560 = vld [vmem:[#allocation2 + $0xb8] sm:$0xf]
        %v1561 = vld [vmem:[#allocation2 + $0xc0] sm:$0xf]
        %v1562 = vld [vmem:[#allocation2 + $0xc4] sm:$0xf]
        %v1563 = vld [vmem:[#allocation2 + $0xcc] sm:$0xf]
        %v1564 = vld [vmem:[#allocation2 + $0xd0] sm:$0xf]
        %v1565 = vld [vmem:[#allocation2 + $0xd8] sm:$0xf]
        %v1566 = vld [vmem:[#allocation2 + $0xdc] sm:$0xf]
        %v1567 = vld [vmem:[#allocation2 + $0xe4] sm:$0xf]
        %v1568 = vld [vmem:[#allocation2 + $0xe8] sm:$0xf]
        %1569 = vst.msk [vmem:[#allocation3] sm:$0xf] %vm439, %v1529
        %1570 = vst.msk [vmem:[#allocation3 + $0x8] sm:$0xf] %vm439, %v1530
        %1571 = vst.msk [vmem:[#allocation3 + $0x10] sm:$0xf] %vm439, %v1531
        %1572 = vst.msk [vmem:[#allocation3 + $0x18] sm:$0xf] %vm439, %v1532
        %1573 = vst.msk [vmem:[#allocation3 + $0x20] sm:$0xf] %vm439, %v1533
        %1574 = vst.msk [vmem:[#allocation3 + $0x28] sm:$0xf] %vm439, %v1534
        %1575 = vst.msk [vmem:[#allocation3 + $0x30] sm:$0xf] %vm439, %v1535
        %1576 = vst.msk [vmem:[#allocation3 + $0x38] sm:$0xf] %vm439, %v1536
        %1577 = vst.msk [vmem:[#allocation3 + $0x40] sm:$0xf] %vm439, %v1537
        %1578 = vst.msk [vmem:[#allocation3 + $0x48] sm:$0xf] %vm439, %v1538
        %1579 = vst.msk [vmem:[#allocation3 + $0x50] sm:$0xf] %vm439, %v1539
        %1580 = vst.msk [vmem:[#allocation3 + $0x58] sm:$0xf] %vm439, %v1540
        %1581 = vst.msk [vmem:[#allocation3 + $0x60] sm:$0xf] %vm439, %v1541
        %1582 = vst.msk [vmem:[#allocation3 + $0x68] sm:$0xf] %vm439, %v1542
        %1583 = vst.msk [vmem:[#allocation3 + $0x70] sm:$0xf] %vm439, %v1543
        %1584 = vst.msk [vmem:[#allocation3 + $0x78] sm:$0xf] %vm439, %v1544
        %1585 = vst.msk [vmem:[#allocation3 + $0x80] sm:$0xf] %vm439, %v1545
        %1586 = vst.msk [vmem:[#allocation3 + $0x88] sm:$0xf] %vm439, %v1546
        %1587 = vst.msk [vmem:[#allocation3 + $0x90] sm:$0xf] %vm439, %v1547
        %1588 = vst.msk [vmem:[#allocation3 + $0x98] sm:$0xf] %vm439, %v1548
        %1589 = vst.msk [vmem:[#allocation3 + $0xa0] sm:$0xf] %vm439, %v1549
        %1590 = vst.msk [vmem:[#allocation3 + $0xa8] sm:$0xf] %vm439, %v1550
        %1591 = vst.msk [vmem:[#allocation3 + $0xb0] sm:$0xf] %vm439, %v1551
        %1592 = vst.msk [vmem:[#allocation3 + $0xb8] sm:$0xf] %vm439, %v1552
        %1593 = vst.msk [vmem:[#allocation3 + $0xc0] sm:$0xf] %vm439, %v1553
        %1594 = vst.msk [vmem:[#allocation3 + $0xc8] sm:$0xf] %vm439, %v1554
        %1595 = vst.msk [vmem:[#allocation3 + $0xd0] sm:$0xf] %vm439, %v1555
        %1596 = vst.msk [vmem:[#allocation3 + $0xd8] sm:$0xf] %vm439, %v1556
        %1597 = vst.msk [vmem:[#allocation3 + $0xe0] sm:$0xf] %vm439, %v1557
        %1598 = vst.msk [vmem:[#allocation3 + $0xe8] sm:$0xf] %vm439, %v1558
        %1599 = vst.msk [vmem:[#allocation3 + $0xf0] sm:$0xf] %vm439, %v1559
        %1600 = vst.msk [vmem:[#allocation3 + $0xf8] sm:$0xf] %vm439, %v1560
        %1601 = vst.msk [vmem:[#allocation3 + $0x100] sm:$0xf] %vm439, %v1561
        %1602 = vst.msk [vmem:[#allocation3 + $0x108] sm:$0xf] %vm439, %v1562
        %1603 = vst.msk [vmem:[#allocation3 + $0x110] sm:$0xf] %vm439, %v1563
        %1604 = vst.msk [vmem:[#allocation3 + $0x118] sm:$0xf] %vm439, %v1564
        %1605 = vst.msk [vmem:[#allocation3 + $0x120] sm:$0xf] %vm439, %v1565
        %1606 = vst.msk [vmem:[#allocation3 + $0x128] sm:$0xf] %vm439, %v1566
        %1607 = vst.msk [vmem:[#allocation3 + $0x130] sm:$0xf] %vm439, %v1567
        %1608 = vst.msk [vmem:[#allocation3 + $0x138] sm:$0xf] %vm439, %v1568
        %v1609 = vld [vmem:[#allocation2] sm:$0xf]
        %v1610 = vld [vmem:[#allocation2 + $0x4] sm:$0xf]
        %v1611 = vld [vmem:[#allocation2 + $0x8] sm:$0x1]
        %v1612 = vld [vmem:[#allocation2 + $0xc] sm:$0xf]
        %v1613 = vld [vmem:[#allocation2 + $0x10] sm:$0xf]
        %v1614 = vld [vmem:[#allocation2 + $0x14] sm:$0x1]
        %v1615 = vld [vmem:[#allocation2 + $0x18] sm:$0xf]
        %v1616 = vld [vmem:[#allocation2 + $0x1c] sm:$0xf]
        %v1617 = vld [vmem:[#allocation2 + $0x20] sm:$0x1]
        %v1618 = vld [vmem:[#allocation2 + $0x24] sm:$0xf]
        %v1619 = vld [vmem:[#allocation2 + $0x28] sm:$0xf]
        %v1620 = vld [vmem:[#allocation2 + $0x2c] sm:$0x1]
        %v1621 = vld [vmem:[#allocation2 + $0x30] sm:$0xf]
        %v1622 = vld [vmem:[#allocation2 + $0x34] sm:$0xf]
        %v1623 = vld [vmem:[#allocation2 + $0x38] sm:$0x1]
        %v1624 = vld [vmem:[#allocation2 + $0x3c] sm:$0xf]
        %v1625 = vld [vmem:[#allocation2 + $0x40] sm:$0xf]
        %v1626 = vld [vmem:[#allocation2 + $0x44] sm:$0x1]
        %v1627 = vld [vmem:[#allocation2 + $0x48] sm:$0xf]
        %v1628 = vld [vmem:[#allocation2 + $0x4c] sm:$0xf]
        %v1629 = vld [vmem:[#allocation2 + $0x50] sm:$0x1]
        %v1630 = vld [vmem:[#allocation2 + $0x54] sm:$0xf]
        %v1631 = vld [vmem:[#allocation2 + $0x58] sm:$0xf]
        %v1632 = vld [vmem:[#allocation2 + $0x5c] sm:$0x1]
        %v1633 = vld [vmem:[#allocation2 + $0x60] sm:$0xf]
        %v1634 = vld [vmem:[#allocation2 + $0x64] sm:$0xf]
        %v1635 = vld [vmem:[#allocation2 + $0x68] sm:$0x1]
        %v1636 = vld [vmem:[#allocation2 + $0x6c] sm:$0xf]
        %v1637 = vld [vmem:[#allocation2 + $0x70] sm:$0xf]
        %v1638 = vld [vmem:[#allocation2 + $0x74] sm:$0x1]
        %v1639 = vld [vmem:[#allocation2 + $0x78] sm:$0xf]
        %v1640 = vld [vmem:[#allocation2 + $0x7c] sm:$0xf]
        %v1641 = vld [vmem:[#allocation2 + $0x80] sm:$0x1]
        %v1642 = vld [vmem:[#allocation2 + $0x84] sm:$0xf]
        %v1643 = vld [vmem:[#allocation2 + $0x88] sm:$0xf]
        %v1644 = vld [vmem:[#allocation2 + $0x8c] sm:$0x1]
        %v1645 = vld [vmem:[#allocation2 + $0x90] sm:$0xf]
        %v1646 = vld [vmem:[#allocation2 + $0x94] sm:$0xf]
        %v1647 = vld [vmem:[#allocation2 + $0x98] sm:$0x1]
        %v1648 = vld [vmem:[#allocation2 + $0x9c] sm:$0xf]
        %v1649 = vld [vmem:[#allocation2 + $0xa0] sm:$0xf]
        %v1650 = vld [vmem:[#allocation2 + $0xa4] sm:$0x1]
        %v1651 = vld [vmem:[#allocation2 + $0xa8] sm:$0xf]
        %v1652 = vld [vmem:[#allocation2 + $0xac] sm:$0xf]
        %v1653 = vld [vmem:[#allocation2 + $0xb0] sm:$0x1]
        %v1654 = vld [vmem:[#allocation2 + $0xb4] sm:$0xf]
        %v1655 = vld [vmem:[#allocation2 + $0xb8] sm:$0xf]
        %v1656 = vld [vmem:[#allocation2 + $0xbc] sm:$0x1]
        %v1657 = vld [vmem:[#allocation2 + $0xc0] sm:$0xf]
        %v1658 = vld [vmem:[#allocation2 + $0xc4] sm:$0xf]
        %v1659 = vld [vmem:[#allocation2 + $0xc8] sm:$0x1]
        %v1660 = vld [vmem:[#allocation2 + $0xcc] sm:$0xf]
        %v1661 = vld [vmem:[#allocation2 + $0xd0] sm:$0xf]
        %v1662 = vld [vmem:[#allocation2 + $0xd4] sm:$0x1]
        %v1663 = vld [vmem:[#allocation2 + $0xd8] sm:$0xf]
        %v1664 = vld [vmem:[#allocation2 + $0xdc] sm:$0xf]
        %v1665 = vld [vmem:[#allocation2 + $0xe0] sm:$0x1]
        %v1666 = vld [vmem:[#allocation2 + $0xe4] sm:$0xf]
        %v1667 = vld [vmem:[#allocation2 + $0xe8] sm:$0xf]
        %v1668 = vld [vmem:[#allocation2 + $0xec] sm:$0x1]
        %vm1669 = vsmask.f32 3328
        %vm1670 = vsmask.f32 7440
        %vm1671 = vmor %vm1669, %vm1670
        %v1673 = vshrl.u32 %v1609, 16
        %v1675 = vrot.slane %v1673, 4
        %v1676 = vshll.u32 %v1609, 16
        %v1678 = vrot.slane %v1676, 5
        %v1679 = vor.u32 %v1675, %v1678
        %v1680 = vrot.slane %v1679, 4
        %v1682 = vshll.u32 %v1610, 16
        %v1684 = vrot.slane %v1682, 5
        %v1685 = vsel %vm1671, %v1680, %v1684
        %v1686 = vshrl.u32 %v1610, 16
        %v1688 = vrot.slane %v1686, 4
        %v1689 = vor.u32 %v1688, %v1684
        %v1690 = vrot.slane %v1689, 4
        %v1692 = vshll.u32 %v1611, 16
        %v1694 = vrot.slane %v1692, 5
        %v1695 = vsel %vm1671, %v1690, %v1694
        %v1697 = vshrl.u32 %v1612, 16
        %v1699 = vrot.slane %v1697, 4
        %v1700 = vshll.u32 %v1612, 16
        %v1702 = vrot.slane %v1700, 5
        %v1703 = vor.u32 %v1699, %v1702
        %v1704 = vrot.slane %v1703, 4
        %v1706 = vshll.u32 %v1613, 16
        %v1708 = vrot.slane %v1706, 5
        %v1709 = vsel %vm1671, %v1704, %v1708
        %v1710 = vshrl.u32 %v1613, 16
        %v1712 = vrot.slane %v1710, 4
        %v1713 = vor.u32 %v1712, %v1708
        %v1714 = vrot.slane %v1713, 4
        %v1716 = vshll.u32 %v1614, 16
        %v1718 = vrot.slane %v1716, 5
        %v1719 = vsel %vm1671, %v1714, %v1718
        %v1721 = vshrl.u32 %v1615, 16
        %v1723 = vrot.slane %v1721, 4
        %v1724 = vshll.u32 %v1615, 16
        %v1726 = vrot.slane %v1724, 5
        %v1727 = vor.u32 %v1723, %v1726
        %v1728 = vrot.slane %v1727, 4
        %v1730 = vshll.u32 %v1616, 16
        %v1732 = vrot.slane %v1730, 5
        %v1733 = vsel %vm1671, %v1728, %v1732
        %v1734 = vshrl.u32 %v1616, 16
        %v1736 = vrot.slane %v1734, 4
        %v1737 = vor.u32 %v1736, %v1732
        %v1738 = vrot.slane %v1737, 4
        %v1740 = vshll.u32 %v1617, 16
        %v1742 = vrot.slane %v1740, 5
        %v1743 = vsel %vm1671, %v1738, %v1742
        %v1745 = vshrl.u32 %v1618, 16
        %v1747 = vrot.slane %v1745, 4
        %v1748 = vshll.u32 %v1618, 16
        %v1750 = vrot.slane %v1748, 5
        %v1751 = vor.u32 %v1747, %v1750
        %v1752 = vrot.slane %v1751, 4
        %v1754 = vshll.u32 %v1619, 16
        %v1756 = vrot.slane %v1754, 5
        %v1757 = vsel %vm1671, %v1752, %v1756
        %v1758 = vshrl.u32 %v1619, 16
        %v1760 = vrot.slane %v1758, 4
        %v1761 = vor.u32 %v1760, %v1756
        %v1762 = vrot.slane %v1761, 4
        %v1764 = vshll.u32 %v1620, 16
        %v1766 = vrot.slane %v1764, 5
        %v1767 = vsel %vm1671, %v1762, %v1766
        %v1769 = vshrl.u32 %v1621, 16
        %v1771 = vrot.slane %v1769, 4
        %v1772 = vshll.u32 %v1621, 16
        %v1774 = vrot.slane %v1772, 5
        %v1775 = vor.u32 %v1771, %v1774
        %v1776 = vrot.slane %v1775, 4
        %v1778 = vshll.u32 %v1622, 16
        %v1780 = vrot.slane %v1778, 5
        %v1781 = vsel %vm1671, %v1776, %v1780
        %v1782 = vshrl.u32 %v1622, 16
        %v1784 = vrot.slane %v1782, 4
        %v1785 = vor.u32 %v1784, %v1780
        %v1786 = vrot.slane %v1785, 4
        %v1788 = vshll.u32 %v1623, 16
        %v1790 = vrot.slane %v1788, 5
        %v1791 = vsel %vm1671, %v1786, %v1790
        %v1793 = vshrl.u32 %v1624, 16
        %v1795 = vrot.slane %v1793, 4
        %v1796 = vshll.u32 %v1624, 16
        %v1798 = vrot.slane %v1796, 5
        %v1799 = vor.u32 %v1795, %v1798
        %v1800 = vrot.slane %v1799, 4
        %v1802 = vshll.u32 %v1625, 16
        %v1804 = vrot.slane %v1802, 5
        %v1805 = vsel %vm1671, %v1800, %v1804
        %v1806 = vshrl.u32 %v1625, 16
        %v1808 = vrot.slane %v1806, 4
        %v1809 = vor.u32 %v1808, %v1804
        %v1810 = vrot.slane %v1809, 4
        %v1812 = vshll.u32 %v1626, 16
        %v1814 = vrot.slane %v1812, 5
        %v1815 = vsel %vm1671, %v1810, %v1814
        %v1817 = vshrl.u32 %v1627, 16
        %v1819 = vrot.slane %v1817, 4
        %v1820 = vshll.u32 %v1627, 16
        %v1822 = vrot.slane %v1820, 5
        %v1823 = vor.u32 %v1819, %v1822
        %v1824 = vrot.slane %v1823, 4
        %v1826 = vshll.u32 %v1628, 16
        %v1828 = vrot.slane %v1826, 5
        %v1829 = vsel %vm1671, %v1824, %v1828
        %v1830 = vshrl.u32 %v1628, 16
        %v1832 = vrot.slane %v1830, 4
        %v1833 = vor.u32 %v1832, %v1828
        %v1834 = vrot.slane %v1833, 4
        %v1836 = vshll.u32 %v1629, 16
        %v1838 = vrot.slane %v1836, 5
        %v1839 = vsel %vm1671, %v1834, %v1838
        %v1841 = vshrl.u32 %v1630, 16
        %v1843 = vrot.slane %v1841, 4
        %v1844 = vshll.u32 %v1630, 16
        %v1846 = vrot.slane %v1844, 5
        %v1847 = vor.u32 %v1843, %v1846
        %v1848 = vrot.slane %v1847, 4
        %v1850 = vshll.u32 %v1631, 16
        %v1852 = vrot.slane %v1850, 5
        %v1853 = vsel %vm1671, %v1848, %v1852
        %v1854 = vshrl.u32 %v1631, 16
        %v1856 = vrot.slane %v1854, 4
        %v1857 = vor.u32 %v1856, %v1852
        %v1858 = vrot.slane %v1857, 4
        %v1860 = vshll.u32 %v1632, 16
        %v1862 = vrot.slane %v1860, 5
        %v1863 = vsel %vm1671, %v1858, %v1862
        %v1865 = vshrl.u32 %v1633, 16
        %v1867 = vrot.slane %v1865, 4
        %v1868 = vshll.u32 %v1633, 16
        %v1870 = vrot.slane %v1868, 5
        %v1871 = vor.u32 %v1867, %v1870
        %v1872 = vrot.slane %v1871, 4
        %v1874 = vshll.u32 %v1634, 16
        %v1876 = vrot.slane %v1874, 5
        %v1877 = vsel %vm1671, %v1872, %v1876
        %v1878 = vshrl.u32 %v1634, 16
        %v1880 = vrot.slane %v1878, 4
        %v1881 = vor.u32 %v1880, %v1876
        %v1882 = vrot.slane %v1881, 4
        %v1884 = vshll.u32 %v1635, 16
        %v1886 = vrot.slane %v1884, 5
        %v1887 = vsel %vm1671, %v1882, %v1886
        %v1889 = vshrl.u32 %v1636, 16
        %v1891 = vrot.slane %v1889, 4
        %v1892 = vshll.u32 %v1636, 16
        %v1894 = vrot.slane %v1892, 5
        %v1895 = vor.u32 %v1891, %v1894
        %v1896 = vrot.slane %v1895, 4
        %v1898 = vshll.u32 %v1637, 16
        %v1900 = vrot.slane %v1898, 5
        %v1901 = vsel %vm1671, %v1896, %v1900
        %v1902 = vshrl.u32 %v1637, 16
        %v1904 = vrot.slane %v1902, 4
        %v1905 = vor.u32 %v1904, %v1900
        %v1906 = vrot.slane %v1905, 4
        %v1908 = vshll.u32 %v1638, 16
        %v1910 = vrot.slane %v1908, 5
        %v1911 = vsel %vm1671, %v1906, %v1910
        %v1913 = vshrl.u32 %v1639, 16
        %v1915 = vrot.slane %v1913, 4
        %v1916 = vshll.u32 %v1639, 16
        %v1918 = vrot.slane %v1916, 5
        %v1919 = vor.u32 %v1915, %v1918
        %v1920 = vrot.slane %v1919, 4
        %v1922 = vshll.u32 %v1640, 16
        %v1924 = vrot.slane %v1922, 5
        %v1925 = vsel %vm1671, %v1920, %v1924
        %v1926 = vshrl.u32 %v1640, 16
        %v1928 = vrot.slane %v1926, 4
        %v1929 = vor.u32 %v1928, %v1924
        %v1930 = vrot.slane %v1929, 4
        %v1932 = vshll.u32 %v1641, 16
        %v1934 = vrot.slane %v1932, 5
        %v1935 = vsel %vm1671, %v1930, %v1934
        %v1937 = vshrl.u32 %v1642, 16
        %v1939 = vrot.slane %v1937, 4
        %v1940 = vshll.u32 %v1642, 16
        %v1942 = vrot.slane %v1940, 5
        %v1943 = vor.u32 %v1939, %v1942
        %v1944 = vrot.slane %v1943, 4
        %v1946 = vshll.u32 %v1643, 16
        %v1948 = vrot.slane %v1946, 5
        %v1949 = vsel %vm1671, %v1944, %v1948
        %v1950 = vshrl.u32 %v1643, 16
        %v1952 = vrot.slane %v1950, 4
        %v1953 = vor.u32 %v1952, %v1948
        %v1954 = vrot.slane %v1953, 4
        %v1956 = vshll.u32 %v1644, 16
        %v1958 = vrot.slane %v1956, 5
        %v1959 = vsel %vm1671, %v1954, %v1958
        %v1961 = vshrl.u32 %v1645, 16
        %v1963 = vrot.slane %v1961, 4
        %v1964 = vshll.u32 %v1645, 16
        %v1966 = vrot.slane %v1964, 5
        %v1967 = vor.u32 %v1963, %v1966
        %v1968 = vrot.slane %v1967, 4
        %v1970 = vshll.u32 %v1646, 16
        %v1972 = vrot.slane %v1970, 5
        %v1973 = vsel %vm1671, %v1968, %v1972
        %v1974 = vshrl.u32 %v1646, 16
        %v1976 = vrot.slane %v1974, 4
        %v1977 = vor.u32 %v1976, %v1972
        %v1978 = vrot.slane %v1977, 4
        %v1980 = vshll.u32 %v1647, 16
        %v1982 = vrot.slane %v1980, 5
        %v1983 = vsel %vm1671, %v1978, %v1982
        %v1985 = vshrl.u32 %v1648, 16
        %v1987 = vrot.slane %v1985, 4
        %v1988 = vshll.u32 %v1648, 16
        %v1990 = vrot.slane %v1988, 5
        %v1991 = vor.u32 %v1987, %v1990
        %v1992 = vrot.slane %v1991, 4
        %v1994 = vshll.u32 %v1649, 16
        %v1996 = vrot.slane %v1994, 5
        %v1997 = vsel %vm1671, %v1992, %v1996
        %v1998 = vshrl.u32 %v1649, 16
        %v2000 = vrot.slane %v1998, 4
        %v2001 = vor.u32 %v2000, %v1996
        %v2002 = vrot.slane %v2001, 4
        %v2004 = vshll.u32 %v1650, 16
        %v2006 = vrot.slane %v2004, 5
        %v2007 = vsel %vm1671, %v2002, %v2006
        %v2009 = vshrl.u32 %v1651, 16
        %v2011 = vrot.slane %v2009, 4
        %v2012 = vshll.u32 %v1651, 16
        %v2014 = vrot.slane %v2012, 5
        %v2015 = vor.u32 %v2011, %v2014
        %v2016 = vrot.slane %v2015, 4
        %v2018 = vshll.u32 %v1652, 16
        %v2020 = vrot.slane %v2018, 5
        %v2021 = vsel %vm1671, %v2016, %v2020
        %v2022 = vshrl.u32 %v1652, 16
        %v2024 = vrot.slane %v2022, 4
        %v2025 = vor.u32 %v2024, %v2020
        %v2026 = vrot.slane %v2025, 4
        %v2028 = vshll.u32 %v1653, 16
        %v2030 = vrot.slane %v2028, 5
        %v2031 = vsel %vm1671, %v2026, %v2030
        %v2033 = vshrl.u32 %v1654, 16
        %v2035 = vrot.slane %v2033, 4
        %v2036 = vshll.u32 %v1654, 16
        %v2038 = vrot.slane %v2036, 5
        %v2039 = vor.u32 %v2035, %v2038
        %v2040 = vrot.slane %v2039, 4
        %v2042 = vshll.u32 %v1655, 16
        %v2044 = vrot.slane %v2042, 5
        %v2045 = vsel %vm1671, %v2040, %v2044
        %v2046 = vshrl.u32 %v1655, 16
        %v2048 = vrot.slane %v2046, 4
        %v2049 = vor.u32 %v2048, %v2044
        %v2050 = vrot.slane %v2049, 4
        %v2052 = vshll.u32 %v1656, 16
        %v2054 = vrot.slane %v2052, 5
        %v2055 = vsel %vm1671, %v2050, %v2054
        %v2057 = vshrl.u32 %v1657, 16
        %v2059 = vrot.slane %v2057, 4
        %v2060 = vshll.u32 %v1657, 16
        %v2062 = vrot.slane %v2060, 5
        %v2063 = vor.u32 %v2059, %v2062
        %v2064 = vrot.slane %v2063, 4
        %v2066 = vshll.u32 %v1658, 16
        %v2068 = vrot.slane %v2066, 5
        %v2069 = vsel %vm1671, %v2064, %v2068
        %v2070 = vshrl.u32 %v1658, 16
        %v2072 = vrot.slane %v2070, 4
        %v2073 = vor.u32 %v2072, %v2068
        %v2074 = vrot.slane %v2073, 4
        %v2076 = vshll.u32 %v1659, 16
        %v2078 = vrot.slane %v2076, 5
        %v2079 = vsel %vm1671, %v2074, %v2078
        %v2081 = vshrl.u32 %v1660, 16
        %v2083 = vrot.slane %v2081, 4
        %v2084 = vshll.u32 %v1660, 16
        %v2086 = vrot.slane %v2084, 5
        %v2087 = vor.u32 %v2083, %v2086
        %v2088 = vrot.slane %v2087, 4
        %v2090 = vshll.u32 %v1661, 16
        %v2092 = vrot.slane %v2090, 5
        %v2093 = vsel %vm1671, %v2088, %v2092
        %v2094 = vshrl.u32 %v1661, 16
        %v2096 = vrot.slane %v2094, 4
        %v2097 = vor.u32 %v2096, %v2092
        %v2098 = vrot.slane %v2097, 4
        %v2100 = vshll.u32 %v1662, 16
        %v2102 = vrot.slane %v2100, 5
        %v2103 = vsel %vm1671, %v2098, %v2102
        %v2105 = vshrl.u32 %v1663, 16
        %v2107 = vrot.slane %v2105, 4
        %v2108 = vshll.u32 %v1663, 16
        %v2110 = vrot.slane %v2108, 5
        %v2111 = vor.u32 %v2107, %v2110
        %v2112 = vrot.slane %v2111, 4
        %v2114 = vshll.u32 %v1664, 16
        %v2116 = vrot.slane %v2114, 5
        %v2117 = vsel %vm1671, %v2112, %v2116
        %v2118 = vshrl.u32 %v1664, 16
        %v2120 = vrot.slane %v2118, 4
        %v2121 = vor.u32 %v2120, %v2116
        %v2122 = vrot.slane %v2121, 4
        %v2124 = vshll.u32 %v1665, 16
        %v2126 = vrot.slane %v2124, 5
        %v2127 = vsel %vm1671, %v2122, %v2126
        %v2129 = vshrl.u32 %v1666, 16
        %v2131 = vrot.slane %v2129, 4
        %v2132 = vshll.u32 %v1666, 16
        %v2134 = vrot.slane %v2132, 5
        %v2135 = vor.u32 %v2131, %v2134
        %v2136 = vrot.slane %v2135, 4
        %v2138 = vshll.u32 %v1667, 16
        %v2140 = vrot.slane %v2138, 5
        %v2141 = vsel %vm1671, %v2136, %v2140
        %v2142 = vshrl.u32 %v1667, 16
        %v2144 = vrot.slane %v2142, 4
        %v2145 = vor.u32 %v2144, %v2140
        %v2146 = vrot.slane %v2145, 4
        %v2148 = vshll.u32 %v1668, 16
        %v2150 = vrot.slane %v2148, 5
        %v2151 = vsel %vm1671, %v2146, %v2150
        %2152 = vrot.lane.b32.xlu0 %v1685, 32
        %v2153 = vpop.permute.xlu0 %2152
        %2154 = vrot.lane.b32.xlu0 %v1695, 32
        %v2155 = vpop.permute.xlu0 %2154
        %2156 = vrot.lane.b32.xlu0 %v1709, 32
        %v2157 = vpop.permute.xlu0 %2156
        %2158 = vrot.lane.b32.xlu0 %v1719, 32
        %v2159 = vpop.permute.xlu0 %2158
        %2160 = vrot.lane.b32.xlu0 %v1733, 32
        %v2161 = vpop.permute.xlu0 %2160
        %2162 = vrot.lane.b32.xlu0 %v1743, 32
        %v2163 = vpop.permute.xlu0 %2162
        %2164 = vrot.lane.b32.xlu0 %v1757, 32
        %v2165 = vpop.permute.xlu0 %2164
        %2166 = vrot.lane.b32.xlu0 %v1767, 32
        %v2167 = vpop.permute.xlu0 %2166
        %2168 = vrot.lane.b32.xlu0 %v1781, 32
        %v2169 = vpop.permute.xlu0 %2168
        %2170 = vrot.lane.b32.xlu0 %v1791, 32
        %v2171 = vpop.permute.xlu0 %2170
        %2172 = vrot.lane.b32.xlu0 %v1805, 32
        %v2173 = vpop.permute.xlu0 %2172
        %2174 = vrot.lane.b32.xlu0 %v1815, 32
        %v2175 = vpop.permute.xlu0 %2174
        %2176 = vrot.lane.b32.xlu0 %v1829, 32
        %v2177 = vpop.permute.xlu0 %2176
        %2178 = vrot.lane.b32.xlu0 %v1839, 32
        %v2179 = vpop.permute.xlu0 %2178
        %2180 = vrot.lane.b32.xlu0 %v1853, 32
        %v2181 = vpop.permute.xlu0 %2180
        %2182 = vrot.lane.b32.xlu0 %v1863, 32
        %v2183 = vpop.permute.xlu0 %2182
        %2184 = vrot.lane.b32.xlu0 %v1877, 32
        %v2185 = vpop.permute.xlu0 %2184
        %2186 = vrot.lane.b32.xlu0 %v1887, 32
        %v2187 = vpop.permute.xlu0 %2186
        %2188 = vrot.lane.b32.xlu0 %v1901, 32
        %v2189 = vpop.permute.xlu0 %2188
        %2190 = vrot.lane.b32.xlu0 %v1911, 32
        %v2191 = vpop.permute.xlu0 %2190
        %2192 = vrot.lane.b32.xlu0 %v1925, 32
        %v2193 = vpop.permute.xlu0 %2192
        %2194 = vrot.lane.b32.xlu0 %v1935, 32
        %v2195 = vpop.permute.xlu0 %2194
        %2196 = vrot.lane.b32.xlu0 %v1949, 32
        %v2197 = vpop.permute.xlu0 %2196
        %2198 = vrot.lane.b32.xlu0 %v1959, 32
        %v2199 = vpop.permute.xlu0 %2198
        %2200 = vrot.lane.b32.xlu0 %v1973, 32
        %v2201 = vpop.permute.xlu0 %2200
        %2202 = vrot.lane.b32.xlu0 %v1983, 32
        %v2203 = vpop.permute.xlu0 %2202
        %2204 = vrot.lane.b32.xlu0 %v1997, 32
        %v2205 = vpop.permute.xlu0 %2204
        %2206 = vrot.lane.b32.xlu0 %v2007, 32
        %v2207 = vpop.permute.xlu0 %2206
        %2208 = vrot.lane.b32.xlu0 %v2021, 32
        %v2209 = vpop.permute.xlu0 %2208
        %2210 = vrot.lane.b32.xlu0 %v2031, 32
        %v2211 = vpop.permute.xlu0 %2210
        %2212 = vrot.lane.b32.xlu0 %v2045, 32
        %v2213 = vpop.permute.xlu0 %2212
        %2214 = vrot.lane.b32.xlu0 %v2055, 32
        %v2215 = vpop.permute.xlu0 %2214
        %2216 = vrot.lane.b32.xlu0 %v2069, 32
        %v2217 = vpop.permute.xlu0 %2216
        %2218 = vrot.lane.b32.xlu0 %v2079, 32
        %v2219 = vpop.permute.xlu0 %2218
        %2220 = vrot.lane.b32.xlu0 %v2093, 32
        %v2221 = vpop.permute.xlu0 %2220
        %2222 = vrot.lane.b32.xlu0 %v2103, 32
        %v2223 = vpop.permute.xlu0 %2222
        %2224 = vrot.lane.b32.xlu0 %v2117, 32
        %v2225 = vpop.permute.xlu0 %2224
        %2226 = vrot.lane.b32.xlu0 %v2127, 32
        %v2227 = vpop.permute.xlu0 %2226
        %2228 = vrot.lane.b32.xlu0 %v2141, 32
        %v2229 = vpop.permute.xlu0 %2228
        %2230 = vrot.lane.b32.xlu0 %v2151, 32
        %v2231 = vpop.permute.xlu0 %2230
        %vm2272 = vcmask 519424
        %2273 = vst.msk [vmem:[#allocation3] sm:$0xf] %vm2272, %v2153
        %2274 = vst.msk [vmem:[#allocation3 + $0x8] sm:$0xf] %vm2272, %v2155
        %2275 = vst.msk [vmem:[#allocation3 + $0x10] sm:$0xf] %vm2272, %v2157
        %2276 = vst.msk [vmem:[#allocation3 + $0x18] sm:$0xf] %vm2272, %v2159
        %2277 = vst.msk [vmem:[#allocation3 + $0x20] sm:$0xf] %vm2272, %v2161
        %2278 = vst.msk [vmem:[#allocation3 + $0x28] sm:$0xf] %vm2272, %v2163
        %2279 = vst.msk [vmem:[#allocation3 + $0x30] sm:$0xf] %vm2272, %v2165
        %2280 = vst.msk [vmem:[#allocation3 + $0x38] sm:$0xf] %vm2272, %v2167
        %2281 = vst.msk [vmem:[#allocation3 + $0x40] sm:$0xf] %vm2272, %v2169
        %2282 = vst.msk [vmem:[#allocation3 + $0x48] sm:$0xf] %vm2272, %v2171
        %2283 = vst.msk [vmem:[#allocation3 + $0x50] sm:$0xf] %vm2272, %v2173
        %2284 = vst.msk [vmem:[#allocation3 + $0x58] sm:$0xf] %vm2272, %v2175
        %2285 = vst.msk [vmem:[#allocation3 + $0x60] sm:$0xf] %vm2272, %v2177
        %2286 = vst.msk [vmem:[#allocation3 + $0x68] sm:$0xf] %vm2272, %v2179
        %2287 = vst.msk [vmem:[#allocation3 + $0x70] sm:$0xf] %vm2272, %v2181
        %2288 = vst.msk [vmem:[#allocation3 + $0x78] sm:$0xf] %vm2272, %v2183
        %2289 = vst.msk [vmem:[#allocation3 + $0x80] sm:$0xf] %vm2272, %v2185
        %2290 = vst.msk [vmem:[#allocation3 + $0x88] sm:$0xf] %vm2272, %v2187
        %2291 = vst.msk [vmem:[#allocation3 + $0x90] sm:$0xf] %vm2272, %v2189
        %2292 = vst.msk [vmem:[#allocation3 + $0x98] sm:$0xf] %vm2272, %v2191
        %2293 = vst.msk [vmem:[#allocation3 + $0xa0] sm:$0xf] %vm2272, %v2193
        %2294 = vst.msk [vmem:[#allocation3 + $0xa8] sm:$0xf] %vm2272, %v2195
        %2295 = vst.msk [vmem:[#allocation3 + $0xb0] sm:$0xf] %vm2272, %v2197
        %2296 = vst.msk [vmem:[#allocation3 + $0xb8] sm:$0xf] %vm2272, %v2199
        %2297 = vst.msk [vmem:[#allocation3 + $0xc0] sm:$0xf] %vm2272, %v2201
        %2298 = vst.msk [vmem:[#allocation3 + $0xc8] sm:$0xf] %vm2272, %v2203
        %2299 = vst.msk [vmem:[#allocation3 + $0xd0] sm:$0xf] %vm2272, %v2205
        %2300 = vst.msk [vmem:[#allocation3 + $0xd8] sm:$0xf] %vm2272, %v2207
        %2301 = vst.msk [vmem:[#allocation3 + $0xe0] sm:$0xf] %vm2272, %v2209
        %2302 = vst.msk [vmem:[#allocation3 + $0xe8] sm:$0xf] %vm2272, %v2211
        %2303 = vst.msk [vmem:[#allocation3 + $0xf0] sm:$0xf] %vm2272, %v2213
        %2304 = vst.msk [vmem:[#allocation3 + $0xf8] sm:$0xf] %vm2272, %v2215
        %2305 = vst.msk [vmem:[#allocation3 + $0x100] sm:$0xf] %vm2272, %v2217
        %2306 = vst.msk [vmem:[#allocation3 + $0x108] sm:$0xf] %vm2272, %v2219
        %2307 = vst.msk [vmem:[#allocation3 + $0x110] sm:$0xf] %vm2272, %v2221
        %2308 = vst.msk [vmem:[#allocation3 + $0x118] sm:$0xf] %vm2272, %v2223
        %2309 = vst.msk [vmem:[#allocation3 + $0x120] sm:$0xf] %vm2272, %v2225
        %2310 = vst.msk [vmem:[#allocation3 + $0x128] sm:$0xf] %vm2272, %v2227
        %2311 = vst.msk [vmem:[#allocation3 + $0x130] sm:$0xf] %vm2272, %v2229
        %2312 = vst.msk [vmem:[#allocation3 + $0x138] sm:$0xf] %vm2272, %v2231
        %v2313 = vld [vmem:[#allocation2] sm:$0xe]
        %v2314 = vld [vmem:[#allocation2 + $0x4] sm:$0xf]
        %v2315 = vld [vmem:[#allocation2 + $0x8] sm:$0x1]
        %v2316 = vld [vmem:[#allocation2 + $0xc] sm:$0xe]
        %v2317 = vld [vmem:[#allocation2 + $0x10] sm:$0xf]
        %v2318 = vld [vmem:[#allocation2 + $0x14] sm:$0x1]
        %v2319 = vld [vmem:[#allocation2 + $0x18] sm:$0xe]
        %v2320 = vld [vmem:[#allocation2 + $0x1c] sm:$0xf]
        %v2321 = vld [vmem:[#allocation2 + $0x20] sm:$0x1]
        %v2322 = vld [vmem:[#allocation2 + $0x24] sm:$0xe]
        %v2323 = vld [vmem:[#allocation2 + $0x28] sm:$0xf]
        %v2324 = vld [vmem:[#allocation2 + $0x2c] sm:$0x1]
        %v2325 = vld [vmem:[#allocation2 + $0x30] sm:$0xe]
        %v2326 = vld [vmem:[#allocation2 + $0x34] sm:$0xf]
        %v2327 = vld [vmem:[#allocation2 + $0x38] sm:$0x1]
        %v2328 = vld [vmem:[#allocation2 + $0x3c] sm:$0xe]
        %v2329 = vld [vmem:[#allocation2 + $0x40] sm:$0xf]
        %v2330 = vld [vmem:[#allocation2 + $0x44] sm:$0x1]
        %v2331 = vld [vmem:[#allocation2 + $0x48] sm:$0xe]
        %v2332 = vld [vmem:[#allocation2 + $0x4c] sm:$0xf]
        %v2333 = vld [vmem:[#allocation2 + $0x50] sm:$0x1]
        %v2334 = vld [vmem:[#allocation2 + $0x54] sm:$0xe]
        %v2335 = vld [vmem:[#allocation2 + $0x58] sm:$0xf]
        %v2336 = vld [vmem:[#allocation2 + $0x5c] sm:$0x1]
        %v2337 = vld [vmem:[#allocation2 + $0x60] sm:$0xe]
        %v2338 = vld [vmem:[#allocation2 + $0x64] sm:$0xf]
        %v2339 = vld [vmem:[#allocation2 + $0x68] sm:$0x1]
        %v2340 = vld [vmem:[#allocation2 + $0x6c] sm:$0xe]
        %v2341 = vld [vmem:[#allocation2 + $0x70] sm:$0xf]
        %v2342 = vld [vmem:[#allocation2 + $0x74] sm:$0x1]
        %v2343 = vld [vmem:[#allocation2 + $0x78] sm:$0xe]
        %v2344 = vld [vmem:[#allocation2 + $0x7c] sm:$0xf]
        %v2345 = vld [vmem:[#allocation2 + $0x80] sm:$0x1]
        %v2346 = vld [vmem:[#allocation2 + $0x84] sm:$0xe]
        %v2347 = vld [vmem:[#allocation2 + $0x88] sm:$0xf]
        %v2348 = vld [vmem:[#allocation2 + $0x8c] sm:$0x1]
        %v2349 = vld [vmem:[#allocation2 + $0x90] sm:$0xe]
        %v2350 = vld [vmem:[#allocation2 + $0x94] sm:$0xf]
        %v2351 = vld [vmem:[#allocation2 + $0x98] sm:$0x1]
        %v2352 = vld [vmem:[#allocation2 + $0x9c] sm:$0xe]
        %v2353 = vld [vmem:[#allocation2 + $0xa0] sm:$0xf]
        %v2354 = vld [vmem:[#allocation2 + $0xa4] sm:$0x1]
        %v2355 = vld [vmem:[#allocation2 + $0xa8] sm:$0xe]
        %v2356 = vld [vmem:[#allocation2 + $0xac] sm:$0xf]
        %v2357 = vld [vmem:[#allocation2 + $0xb0] sm:$0x1]
        %v2358 = vld [vmem:[#allocation2 + $0xb4] sm:$0xe]
        %v2359 = vld [vmem:[#allocation2 + $0xb8] sm:$0xf]
        %v2360 = vld [vmem:[#allocation2 + $0xbc] sm:$0x1]
        %v2361 = vld [vmem:[#allocation2 + $0xc0] sm:$0xe]
        %v2362 = vld [vmem:[#allocation2 + $0xc4] sm:$0xf]
        %v2363 = vld [vmem:[#allocation2 + $0xc8] sm:$0x1]
        %v2364 = vld [vmem:[#allocation2 + $0xcc] sm:$0xe]
        %v2365 = vld [vmem:[#allocation2 + $0xd0] sm:$0xf]
        %v2366 = vld [vmem:[#allocation2 + $0xd4] sm:$0x1]
        %v2367 = vld [vmem:[#allocation2 + $0xd8] sm:$0xe]
        %v2368 = vld [vmem:[#allocation2 + $0xdc] sm:$0xf]
        %v2369 = vld [vmem:[#allocation2 + $0xe0] sm:$0x1]
        %v2370 = vld [vmem:[#allocation2 + $0xe4] sm:$0xe]
        %v2371 = vld [vmem:[#allocation2 + $0xe8] sm:$0xf]
        %v2372 = vld [vmem:[#allocation2 + $0xec] sm:$0x1]
        %vm2433 = vcmask 1042432
        %vm2434 = vcmask 1046532
        %vm2435 = vmor %vm2433, %vm2434
        %v2436 = vrot.slane %v2313, 5
        %v2437 = vrot.slane %v2436, 4
        %v2438 = vrot.slane %v2314, 5
        %v2439 = vsel %vm2435, %v2437, %v2438
        %v2440 = vrot.slane %v2438, 4
        %v2441 = vrot.slane %v2315, 5
        %v2442 = vsel %vm2435, %v2440, %v2441
        %v2443 = vrot.slane %v2316, 5
        %v2444 = vrot.slane %v2443, 4
        %v2445 = vrot.slane %v2317, 5
        %v2446 = vsel %vm2435, %v2444, %v2445
        %v2447 = vrot.slane %v2445, 4
        %v2448 = vrot.slane %v2318, 5
        %v2449 = vsel %vm2435, %v2447, %v2448
        %v2450 = vrot.slane %v2319, 5
        %v2451 = vrot.slane %v2450, 4
        %v2452 = vrot.slane %v2320, 5
        %v2453 = vsel %vm2435, %v2451, %v2452
        %v2454 = vrot.slane %v2452, 4
        %v2455 = vrot.slane %v2321, 5
        %v2456 = vsel %vm2435, %v2454, %v2455
        %v2457 = vrot.slane %v2322, 5
        %v2458 = vrot.slane %v2457, 4
        %v2459 = vrot.slane %v2323, 5
        %v2460 = vsel %vm2435, %v2458, %v2459
        %v2461 = vrot.slane %v2459, 4
        %v2462 = vrot.slane %v2324, 5
        %v2463 = vsel %vm2435, %v2461, %v2462
        %v2464 = vrot.slane %v2325, 5
        %v2465 = vrot.slane %v2464, 4
        %v2466 = vrot.slane %v2326, 5
        %v2467 = vsel %vm2435, %v2465, %v2466
        %v2468 = vrot.slane %v2466, 4
        %v2469 = vrot.slane %v2327, 5
        %v2470 = vsel %vm2435, %v2468, %v2469
        %v2471 = vrot.slane %v2328, 5
        %v2472 = vrot.slane %v2471, 4
        %v2473 = vrot.slane %v2329, 5
        %v2474 = vsel %vm2435, %v2472, %v2473
        %v2475 = vrot.slane %v2473, 4
        %v2476 = vrot.slane %v2330, 5
        %v2477 = vsel %vm2435, %v2475, %v2476
        %v2478 = vrot.slane %v2331, 5
        %v2479 = vrot.slane %v2478, 4
        %v2480 = vrot.slane %v2332, 5
        %v2481 = vsel %vm2435, %v2479, %v2480
        %v2482 = vrot.slane %v2480, 4
        %v2483 = vrot.slane %v2333, 5
        %v2484 = vsel %vm2435, %v2482, %v2483
        %v2485 = vrot.slane %v2334, 5
        %v2486 = vrot.slane %v2485, 4
        %v2487 = vrot.slane %v2335, 5
        %v2488 = vsel %vm2435, %v2486, %v2487
        %v2489 = vrot.slane %v2487, 4
        %v2490 = vrot.slane %v2336, 5
        %v2491 = vsel %vm2435, %v2489, %v2490
        %v2492 = vrot.slane %v2337, 5
        %v2493 = vrot.slane %v2492, 4
        %v2494 = vrot.slane %v2338, 5
        %v2495 = vsel %vm2435, %v2493, %v2494
        %v2496 = vrot.slane %v2494, 4
        %v2497 = vrot.slane %v2339, 5
        %v2498 = vsel %vm2435, %v2496, %v2497
        %v2499 = vrot.slane %v2340, 5
        %v2500 = vrot.slane %v2499, 4
        %v2501 = vrot.slane %v2341, 5
        %v2502 = vsel %vm2435, %v2500, %v2501
        %v2503 = vrot.slane %v2501, 4
        %v2504 = vrot.slane %v2342, 5
        %v2505 = vsel %vm2435, %v2503, %v2504
        %v2506 = vrot.slane %v2343, 5
        %v2507 = vrot.slane %v2506, 4
        %v2508 = vrot.slane %v2344, 5
        %v2509 = vsel %vm2435, %v2507, %v2508
        %v2510 = vrot.slane %v2508, 4
        %v2511 = vrot.slane %v2345, 5
        %v2512 = vsel %vm2435, %v2510, %v2511
        %v2513 = vrot.slane %v2346, 5
        %v2514 = vrot.slane %v2513, 4
        %v2515 = vrot.slane %v2347, 5
        %v2516 = vsel %vm2435, %v2514, %v2515
        %v2517 = vrot.slane %v2515, 4
        %v2518 = vrot.slane %v2348, 5
        %v2519 = vsel %vm2435, %v2517, %v2518
        %v2520 = vrot.slane %v2349, 5
        %v2521 = vrot.slane %v2520, 4
        %v2522 = vrot.slane %v2350, 5
        %v2523 = vsel %vm2435, %v2521, %v2522
        %v2524 = vrot.slane %v2522, 4
        %v2525 = vrot.slane %v2351, 5
        %v2526 = vsel %vm2435, %v2524, %v2525
        %v2527 = vrot.slane %v2352, 5
        %v2528 = vrot.slane %v2527, 4
        %v2529 = vrot.slane %v2353, 5
        %v2530 = vsel %vm2435, %v2528, %v2529
        %v2531 = vrot.slane %v2529, 4
        %v2532 = vrot.slane %v2354, 5
        %v2533 = vsel %vm2435, %v2531, %v2532
        %v2534 = vrot.slane %v2355, 5
        %v2535 = vrot.slane %v2534, 4
        %v2536 = vrot.slane %v2356, 5
        %v2537 = vsel %vm2435, %v2535, %v2536
        %v2538 = vrot.slane %v2536, 4
        %v2539 = vrot.slane %v2357, 5
        %v2540 = vsel %vm2435, %v2538, %v2539
        %v2541 = vrot.slane %v2358, 5
        %v2542 = vrot.slane %v2541, 4
        %v2543 = vrot.slane %v2359, 5
        %v2544 = vsel %vm2435, %v2542, %v2543
        %v2545 = vrot.slane %v2543, 4
        %v2546 = vrot.slane %v2360, 5
        %v2547 = vsel %vm2435, %v2545, %v2546
        %v2548 = vrot.slane %v2361, 5
        %v2549 = vrot.slane %v2548, 4
        %v2550 = vrot.slane %v2362, 5
        %v2551 = vsel %vm2435, %v2549, %v2550
        %v2552 = vrot.slane %v2550, 4
        %v2553 = vrot.slane %v2363, 5
        %v2554 = vsel %vm2435, %v2552, %v2553
        %v2555 = vrot.slane %v2364, 5
        %v2556 = vrot.slane %v2555, 4
        %v2557 = vrot.slane %v2365, 5
        %v2558 = vsel %vm2435, %v2556, %v2557
        %v2559 = vrot.slane %v2557, 4
        %v2560 = vrot.slane %v2366, 5
        %v2561 = vsel %vm2435, %v2559, %v2560
        %v2562 = vrot.slane %v2367, 5
        %v2563 = vrot.slane %v2562, 4
        %v2564 = vrot.slane %v2368, 5
        %v2565 = vsel %vm2435, %v2563, %v2564
        %v2566 = vrot.slane %v2564, 4
        %v2567 = vrot.slane %v2369, 5
        %v2568 = vsel %vm2435, %v2566, %v2567
        %v2569 = vrot.slane %v2370, 5
        %v2570 = vrot.slane %v2569, 4
        %v2571 = vrot.slane %v2371, 5
        %v2572 = vsel %vm2435, %v2570, %v2571
        %v2573 = vrot.slane %v2571, 4
        %v2574 = vrot.slane %v2372, 5
        %v2575 = vsel %vm2435, %v2573, %v2574
        %2576 = vrot.lane.b32.xlu0 %v2439, 64
        %v2577 = vpop.permute.xlu0 %2576
        %2578 = vrot.lane.b32.xlu0 %v2442, 64
        %v2579 = vpop.permute.xlu0 %2578
        %2580 = vrot.lane.b32.xlu0 %v2446, 64
        %v2581 = vpop.permute.xlu0 %2580
        %2582 = vrot.lane.b32.xlu0 %v2449, 64
        %v2583 = vpop.permute.xlu0 %2582
        %2584 = vrot.lane.b32.xlu0 %v2453, 64
        %v2585 = vpop.permute.xlu0 %2584
        %2586 = vrot.lane.b32.xlu0 %v2456, 64
        %v2587 = vpop.permute.xlu0 %2586
        %2588 = vrot.lane.b32.xlu0 %v2460, 64
        %v2589 = vpop.permute.xlu0 %2588
        %2590 = vrot.lane.b32.xlu0 %v2463, 64
        %v2591 = vpop.permute.xlu0 %2590
        %2592 = vrot.lane.b32.xlu0 %v2467, 64
        %v2593 = vpop.permute.xlu0 %2592
        %2594 = vrot.lane.b32.xlu0 %v2470, 64
        %v2595 = vpop.permute.xlu0 %2594
        %2596 = vrot.lane.b32.xlu0 %v2474, 64
        %v2597 = vpop.permute.xlu0 %2596
        %2598 = vrot.lane.b32.xlu0 %v2477, 64
        %v2599 = vpop.permute.xlu0 %2598
        %2600 = vrot.lane.b32.xlu0 %v2481, 64
        %v2601 = vpop.permute.xlu0 %2600
        %2602 = vrot.lane.b32.xlu0 %v2484, 64
        %v2603 = vpop.permute.xlu0 %2602
        %2604 = vrot.lane.b32.xlu0 %v2488, 64
        %v2605 = vpop.permute.xlu0 %2604
        %2606 = vrot.lane.b32.xlu0 %v2491, 64
        %v2607 = vpop.permute.xlu0 %2606
        %2608 = vrot.lane.b32.xlu0 %v2495, 64
        %v2609 = vpop.permute.xlu0 %2608
        %2610 = vrot.lane.b32.xlu0 %v2498, 64
        %v2611 = vpop.permute.xlu0 %2610
        %2612 = vrot.lane.b32.xlu0 %v2502, 64
        %v2613 = vpop.permute.xlu0 %2612
        %2614 = vrot.lane.b32.xlu0 %v2505, 64
        %v2615 = vpop.permute.xlu0 %2614
        %2616 = vrot.lane.b32.xlu0 %v2509, 64
        %v2617 = vpop.permute.xlu0 %2616
        %2618 = vrot.lane.b32.xlu0 %v2512, 64
        %v2619 = vpop.permute.xlu0 %2618
        %2620 = vrot.lane.b32.xlu0 %v2516, 64
        %v2621 = vpop.permute.xlu0 %2620
        %2622 = vrot.lane.b32.xlu0 %v2519, 64
        %v2623 = vpop.permute.xlu0 %2622
        %2624 = vrot.lane.b32.xlu0 %v2523, 64
        %v2625 = vpop.permute.xlu0 %2624
        %2626 = vrot.lane.b32.xlu0 %v2526, 64
        %v2627 = vpop.permute.xlu0 %2626
        %2628 = vrot.lane.b32.xlu0 %v2530, 64
        %v2629 = vpop.permute.xlu0 %2628
        %2630 = vrot.lane.b32.xlu0 %v2533, 64
        %v2631 = vpop.permute.xlu0 %2630
        %2632 = vrot.lane.b32.xlu0 %v2537, 64
        %v2633 = vpop.permute.xlu0 %2632
        %2634 = vrot.lane.b32.xlu0 %v2540, 64
        %v2635 = vpop.permute.xlu0 %2634
        %2636 = vrot.lane.b32.xlu0 %v2544, 64
        %v2637 = vpop.permute.xlu0 %2636
        %2638 = vrot.lane.b32.xlu0 %v2547, 64
        %v2639 = vpop.permute.xlu0 %2638
        %2640 = vrot.lane.b32.xlu0 %v2551, 64
        %v2641 = vpop.permute.xlu0 %2640
        %2642 = vrot.lane.b32.xlu0 %v2554, 64
        %v2643 = vpop.permute.xlu0 %2642
        %2644 = vrot.lane.b32.xlu0 %v2558, 64
        %v2645 = vpop.permute.xlu0 %2644
        %2646 = vrot.lane.b32.xlu0 %v2561, 64
        %v2647 = vpop.permute.xlu0 %2646
        %2648 = vrot.lane.b32.xlu0 %v2565, 64
        %v2649 = vpop.permute.xlu0 %2648
        %2650 = vrot.lane.b32.xlu0 %v2568, 64
        %v2651 = vpop.permute.xlu0 %2650
        %2652 = vrot.lane.b32.xlu0 %v2572, 64
        %v2653 = vpop.permute.xlu0 %2652
        %2654 = vrot.lane.b32.xlu0 %v2575, 64
        %v2655 = vpop.permute.xlu0 %2654
        %vm2696 = vcmask 781824
        %2697 = vst.msk [vmem:[#allocation3] sm:$0xf] %vm2696, %v2577
        %2698 = vst.msk [vmem:[#allocation3 + $0x8] sm:$0xf] %vm2696, %v2579
        %2699 = vst.msk [vmem:[#allocation3 + $0x10] sm:$0xf] %vm2696, %v2581
        %2700 = vst.msk [vmem:[#allocation3 + $0x18] sm:$0xf] %vm2696, %v2583
        %2701 = vst.msk [vmem:[#allocation3 + $0x20] sm:$0xf] %vm2696, %v2585
        %2702 = vst.msk [vmem:[#allocation3 + $0x28] sm:$0xf] %vm2696, %v2587
        %2703 = vst.msk [vmem:[#allocation3 + $0x30] sm:$0xf] %vm2696, %v2589
        %2704 = vst.msk [vmem:[#allocation3 + $0x38] sm:$0xf] %vm2696, %v2591
        %2705 = vst.msk [vmem:[#allocation3 + $0x40] sm:$0xf] %vm2696, %v2593
        %2706 = vst.msk [vmem:[#allocation3 + $0x48] sm:$0xf] %vm2696, %v2595
        %2707 = vst.msk [vmem:[#allocation3 + $0x50] sm:$0xf] %vm2696, %v2597
        %2708 = vst.msk [vmem:[#allocation3 + $0x58] sm:$0xf] %vm2696, %v2599
        %2709 = vst.msk [vmem:[#allocation3 + $0x60] sm:$0xf] %vm2696, %v2601
        %2710 = vst.msk [vmem:[#allocation3 + $0x68] sm:$0xf] %vm2696, %v2603
        %2711 = vst.msk [vmem:[#allocation3 + $0x70] sm:$0xf] %vm2696, %v2605
        %2712 = vst.msk [vmem:[#allocation3 + $0x78] sm:$0xf] %vm2696, %v2607
        %2713 = vst.msk [vmem:[#allocation3 + $0x80] sm:$0xf] %vm2696, %v2609
        %2714 = vst.msk [vmem:[#allocation3 + $0x88] sm:$0xf] %vm2696, %v2611
        %2715 = vst.msk [vmem:[#allocation3 + $0x90] sm:$0xf] %vm2696, %v2613
        %2716 = vst.msk [vmem:[#allocation3 + $0x98] sm:$0xf] %vm2696, %v2615
        %2717 = vst.msk [vmem:[#allocation3 + $0xa0] sm:$0xf] %vm2696, %v2617
        %2718 = vst.msk [vmem:[#allocation3 + $0xa8] sm:$0xf] %vm2696, %v2619
        %2719 = vst.msk [vmem:[#allocation3 + $0xb0] sm:$0xf] %vm2696, %v2621
        %2720 = vst.msk [vmem:[#allocation3 + $0xb8] sm:$0xf] %vm2696, %v2623
        %2721 = vst.msk [vmem:[#allocation3 + $0xc0] sm:$0xf] %vm2696, %v2625
        %2722 = vst.msk [vmem:[#allocation3 + $0xc8] sm:$0xf] %vm2696, %v2627
        %2723 = vst.msk [vmem:[#allocation3 + $0xd0] sm:$0xf] %vm2696, %v2629
        %2724 = vst.msk [vmem:[#allocation3 + $0xd8] sm:$0xf] %vm2696, %v2631
        %2725 = vst.msk [vmem:[#allocation3 + $0xe0] sm:$0xf] %vm2696, %v2633
        %2726 = vst.msk [vmem:[#allocation3 + $0xe8] sm:$0xf] %vm2696, %v2635
        %2727 = vst.msk [vmem:[#allocation3 + $0xf0] sm:$0xf] %vm2696, %v2637
        %2728 = vst.msk [vmem:[#allocation3 + $0xf8] sm:$0xf] %vm2696, %v2639
        %2729 = vst.msk [vmem:[#allocation3 + $0x100] sm:$0xf] %vm2696, %v2641
        %2730 = vst.msk [vmem:[#allocation3 + $0x108] sm:$0xf] %vm2696, %v2643
        %2731 = vst.msk [vmem:[#allocation3 + $0x110] sm:$0xf] %vm2696, %v2645
        %2732 = vst.msk [vmem:[#allocation3 + $0x118] sm:$0xf] %vm2696, %v2647
        %2733 = vst.msk [vmem:[#allocation3 + $0x120] sm:$0xf] %vm2696, %v2649
        %2734 = vst.msk [vmem:[#allocation3 + $0x128] sm:$0xf] %vm2696, %v2651
        %2735 = vst.msk [vmem:[#allocation3 + $0x130] sm:$0xf] %vm2696, %v2653
        %2736 = vst.msk [vmem:[#allocation3 + $0x138] sm:$0xf] %vm2696, %v2655
        %v2737 = vld [vmem:[#allocation2] sm:$0xe]
        %v2738 = vld [vmem:[#allocation2 + $0x4] sm:$0xf]
        %v2739 = vld [vmem:[#allocation2 + $0x8] sm:$0x3]
        %v2740 = vld [vmem:[#allocation2 + $0xc] sm:$0xe]
        %v2741 = vld [vmem:[#allocation2 + $0x10] sm:$0xf]
        %v2742 = vld [vmem:[#allocation2 + $0x14] sm:$0x3]
        %v2743 = vld [vmem:[#allocation2 + $0x18] sm:$0xe]
        %v2744 = vld [vmem:[#allocation2 + $0x1c] sm:$0xf]
        %v2745 = vld [vmem:[#allocation2 + $0x20] sm:$0x3]
        %v2746 = vld [vmem:[#allocation2 + $0x24] sm:$0xe]
        %v2747 = vld [vmem:[#allocation2 + $0x28] sm:$0xf]
        %v2748 = vld [vmem:[#allocation2 + $0x2c] sm:$0x3]
        %v2749 = vld [vmem:[#allocation2 + $0x30] sm:$0xe]
        %v2750 = vld [vmem:[#allocation2 + $0x34] sm:$0xf]
        %v2751 = vld [vmem:[#allocation2 + $0x38] sm:$0x3]
        %v2752 = vld [vmem:[#allocation2 + $0x3c] sm:$0xe]
        %v2753 = vld [vmem:[#allocation2 + $0x40] sm:$0xf]
        %v2754 = vld [vmem:[#allocation2 + $0x44] sm:$0x3]
        %v2755 = vld [vmem:[#allocation2 + $0x48] sm:$0xe]
        %v2756 = vld [vmem:[#allocation2 + $0x4c] sm:$0xf]
        %v2757 = vld [vmem:[#allocation2 + $0x50] sm:$0x3]
        %v2758 = vld [vmem:[#allocation2 + $0x54] sm:$0xe]
        %v2759 = vld [vmem:[#allocation2 + $0x58] sm:$0xf]
        %v2760 = vld [vmem:[#allocation2 + $0x5c] sm:$0x3]
        %v2761 = vld [vmem:[#allocation2 + $0x60] sm:$0xe]
        %v2762 = vld [vmem:[#allocation2 + $0x64] sm:$0xf]
        %v2763 = vld [vmem:[#allocation2 + $0x68] sm:$0x3]
        %v2764 = vld [vmem:[#allocation2 + $0x6c] sm:$0xe]
        %v2765 = vld [vmem:[#allocation2 + $0x70] sm:$0xf]
        %v2766 = vld [vmem:[#allocation2 + $0x74] sm:$0x3]
        %v2767 = vld [vmem:[#allocation2 + $0x78] sm:$0xe]
        %v2768 = vld [vmem:[#allocation2 + $0x7c] sm:$0xf]
        %v2769 = vld [vmem:[#allocation2 + $0x80] sm:$0x3]
        %v2770 = vld [vmem:[#allocation2 + $0x84] sm:$0xe]
        %v2771 = vld [vmem:[#allocation2 + $0x88] sm:$0xf]
        %v2772 = vld [vmem:[#allocation2 + $0x8c] sm:$0x3]
        %v2773 = vld [vmem:[#allocation2 + $0x90] sm:$0xe]
        %v2774 = vld [vmem:[#allocation2 + $0x94] sm:$0xf]
        %v2775 = vld [vmem:[#allocation2 + $0x98] sm:$0x3]
        %v2776 = vld [vmem:[#allocation2 + $0x9c] sm:$0xe]
        %v2777 = vld [vmem:[#allocation2 + $0xa0] sm:$0xf]
        %v2778 = vld [vmem:[#allocation2 + $0xa4] sm:$0x3]
        %v2779 = vld [vmem:[#allocation2 + $0xa8] sm:$0xe]
        %v2780 = vld [vmem:[#allocation2 + $0xac] sm:$0xf]
        %v2781 = vld [vmem:[#allocation2 + $0xb0] sm:$0x3]
        %v2782 = vld [vmem:[#allocation2 + $0xb4] sm:$0xe]
        %v2783 = vld [vmem:[#allocation2 + $0xb8] sm:$0xf]
        %v2784 = vld [vmem:[#allocation2 + $0xbc] sm:$0x3]
        %v2785 = vld [vmem:[#allocation2 + $0xc0] sm:$0xe]
        %v2786 = vld [vmem:[#allocation2 + $0xc4] sm:$0xf]
        %v2787 = vld [vmem:[#allocation2 + $0xc8] sm:$0x3]
        %v2788 = vld [vmem:[#allocation2 + $0xcc] sm:$0xe]
        %v2789 = vld [vmem:[#allocation2 + $0xd0] sm:$0xf]
        %v2790 = vld [vmem:[#allocation2 + $0xd4] sm:$0x3]
        %v2791 = vld [vmem:[#allocation2 + $0xd8] sm:$0xe]
        %v2792 = vld [vmem:[#allocation2 + $0xdc] sm:$0xf]
        %v2793 = vld [vmem:[#allocation2 + $0xe0] sm:$0x3]
        %v2794 = vld [vmem:[#allocation2 + $0xe4] sm:$0xe]
        %v2795 = vld [vmem:[#allocation2 + $0xe8] sm:$0xf]
        %v2796 = vld [vmem:[#allocation2 + $0xec] sm:$0x3]
        %vm2797 = vsmask.f32 2304
        %vm2798 = vsmask.f32 6416
        %vm2799 = vmor %vm2797, %vm2798
        %v2801 = vshrl.u32 %v2737, 16
        %v2803 = vrot.slane %v2801, 5
        %v2804 = vshll.u32 %v2737, 16
        %v2806 = vrot.slane %v2804, 6
        %v2807 = vor.u32 %v2803, %v2806
        %v2808 = vrot.slane %v2807, 4
        %v2810 = vshrl.u32 %v2738, 16
        %v2812 = vrot.slane %v2810, 5
        %v2813 = vshll.u32 %v2738, 16
        %v2815 = vrot.slane %v2813, 6
        %v2816 = vor.u32 %v2812, %v2815
        %v2817 = vsel %vm2799, %v2808, %v2816
        %v2818 = vrot.slane %v2816, 4
        %v2820 = vshrl.u32 %v2739, 16
        %v2822 = vrot.slane %v2820, 5
        %v2823 = vshll.u32 %v2739, 16
        %v2825 = vrot.slane %v2823, 6
        %v2826 = vor.u32 %v2822, %v2825
        %v2827 = vsel %vm2799, %v2818, %v2826
        %v2829 = vshrl.u32 %v2740, 16
        %v2831 = vrot.slane %v2829, 5
        %v2832 = vshll.u32 %v2740, 16
        %v2834 = vrot.slane %v2832, 6
        %v2835 = vor.u32 %v2831, %v2834
        %v2836 = vrot.slane %v2835, 4
        %v2838 = vshrl.u32 %v2741, 16
        %v2840 = vrot.slane %v2838, 5
        %v2841 = vshll.u32 %v2741, 16
        %v2843 = vrot.slane %v2841, 6
        %v2844 = vor.u32 %v2840, %v2843
        %v2845 = vsel %vm2799, %v2836, %v2844
        %v2846 = vrot.slane %v2844, 4
        %v2848 = vshrl.u32 %v2742, 16
        %v2850 = vrot.slane %v2848, 5
        %v2851 = vshll.u32 %v2742, 16
        %v2853 = vrot.slane %v2851, 6
        %v2854 = vor.u32 %v2850, %v2853
        %v2855 = vsel %vm2799, %v2846, %v2854
        %v2857 = vshrl.u32 %v2743, 16
        %v2859 = vrot.slane %v2857, 5
        %v2860 = vshll.u32 %v2743, 16
        %v2862 = vrot.slane %v2860, 6
        %v2863 = vor.u32 %v2859, %v2862
        %v2864 = vrot.slane %v2863, 4
        %v2866 = vshrl.u32 %v2744, 16
        %v2868 = vrot.slane %v2866, 5
        %v2869 = vshll.u32 %v2744, 16
        %v2871 = vrot.slane %v2869, 6
        %v2872 = vor.u32 %v2868, %v2871
        %v2873 = vsel %vm2799, %v2864, %v2872
        %v2874 = vrot.slane %v2872, 4
        %v2876 = vshrl.u32 %v2745, 16
        %v2878 = vrot.slane %v2876, 5
        %v2879 = vshll.u32 %v2745, 16
        %v2881 = vrot.slane %v2879, 6
        %v2882 = vor.u32 %v2878, %v2881
        %v2883 = vsel %vm2799, %v2874, %v2882
        %v2885 = vshrl.u32 %v2746, 16
        %v2887 = vrot.slane %v2885, 5
        %v2888 = vshll.u32 %v2746, 16
        %v2890 = vrot.slane %v2888, 6
        %v2891 = vor.u32 %v2887, %v2890
        %v2892 = vrot.slane %v2891, 4
        %v2894 = vshrl.u32 %v2747, 16
        %v2896 = vrot.slane %v2894, 5
        %v2897 = vshll.u32 %v2747, 16
        %v2899 = vrot.slane %v2897, 6
        %v2900 = vor.u32 %v2896, %v2899
        %v2901 = vsel %vm2799, %v2892, %v2900
        %v2902 = vrot.slane %v2900, 4
        %v2904 = vshrl.u32 %v2748, 16
        %v2906 = vrot.slane %v2904, 5
        %v2907 = vshll.u32 %v2748, 16
        %v2909 = vrot.slane %v2907, 6
        %v2910 = vor.u32 %v2906, %v2909
        %v2911 = vsel %vm2799, %v2902, %v2910
        %v2913 = vshrl.u32 %v2749, 16
        %v2915 = vrot.slane %v2913, 5
        %v2916 = vshll.u32 %v2749, 16
        %v2918 = vrot.slane %v2916, 6
        %v2919 = vor.u32 %v2915, %v2918
        %v2920 = vrot.slane %v2919, 4
        %v2922 = vshrl.u32 %v2750, 16
        %v2924 = vrot.slane %v2922, 5
        %v2925 = vshll.u32 %v2750, 16
        %v2927 = vrot.slane %v2925, 6
        %v2928 = vor.u32 %v2924, %v2927
        %v2929 = vsel %vm2799, %v2920, %v2928
        %v2930 = vrot.slane %v2928, 4
        %v2932 = vshrl.u32 %v2751, 16
        %v2934 = vrot.slane %v2932, 5
        %v2935 = vshll.u32 %v2751, 16
        %v2937 = vrot.slane %v2935, 6
        %v2938 = vor.u32 %v2934, %v2937
        %v2939 = vsel %vm2799, %v2930, %v2938
        %v2941 = vshrl.u32 %v2752, 16
        %v2943 = vrot.slane %v2941, 5
        %v2944 = vshll.u32 %v2752, 16
        %v2946 = vrot.slane %v2944, 6
        %v2947 = vor.u32 %v2943, %v2946
        %v2948 = vrot.slane %v2947, 4
        %v2950 = vshrl.u32 %v2753, 16
        %v2952 = vrot.slane %v2950, 5
        %v2953 = vshll.u32 %v2753, 16
        %v2955 = vrot.slane %v2953, 6
        %v2956 = vor.u32 %v2952, %v2955
        %v2957 = vsel %vm2799, %v2948, %v2956
        %v2958 = vrot.slane %v2956, 4
        %v2960 = vshrl.u32 %v2754, 16
        %v2962 = vrot.slane %v2960, 5
        %v2963 = vshll.u32 %v2754, 16
        %v2965 = vrot.slane %v2963, 6
        %v2966 = vor.u32 %v2962, %v2965
        %v2967 = vsel %vm2799, %v2958, %v2966
        %v2969 = vshrl.u32 %v2755, 16
        %v2971 = vrot.slane %v2969, 5
        %v2972 = vshll.u32 %v2755, 16
        %v2974 = vrot.slane %v2972, 6
        %v2975 = vor.u32 %v2971, %v2974
        %v2976 = vrot.slane %v2975, 4
        %v2978 = vshrl.u32 %v2756, 16
        %v2980 = vrot.slane %v2978, 5
        %v2981 = vshll.u32 %v2756, 16
        %v2983 = vrot.slane %v2981, 6
        %v2984 = vor.u32 %v2980, %v2983
        %v2985 = vsel %vm2799, %v2976, %v2984
        %v2986 = vrot.slane %v2984, 4
        %v2988 = vshrl.u32 %v2757, 16
        %v2990 = vrot.slane %v2988, 5
        %v2991 = vshll.u32 %v2757, 16
        %v2993 = vrot.slane %v2991, 6
        %v2994 = vor.u32 %v2990, %v2993
        %v2995 = vsel %vm2799, %v2986, %v2994
        %v2997 = vshrl.u32 %v2758, 16
        %v2999 = vrot.slane %v2997, 5
        %v3000 = vshll.u32 %v2758, 16
        %v3002 = vrot.slane %v3000, 6
        %v3003 = vor.u32 %v2999, %v3002
        %v3004 = vrot.slane %v3003, 4
        %v3006 = vshrl.u32 %v2759, 16
        %v3008 = vrot.slane %v3006, 5
        %v3009 = vshll.u32 %v2759, 16
        %v3011 = vrot.slane %v3009, 6
        %v3012 = vor.u32 %v3008, %v3011
        %v3013 = vsel %vm2799, %v3004, %v3012
        %v3014 = vrot.slane %v3012, 4
        %v3016 = vshrl.u32 %v2760, 16
        %v3018 = vrot.slane %v3016, 5
        %v3019 = vshll.u32 %v2760, 16
        %v3021 = vrot.slane %v3019, 6
        %v3022 = vor.u32 %v3018, %v3021
        %v3023 = vsel %vm2799, %v3014, %v3022
        %v3025 = vshrl.u32 %v2761, 16
        %v3027 = vrot.slane %v3025, 5
        %v3028 = vshll.u32 %v2761, 16
        %v3030 = vrot.slane %v3028, 6
        %v3031 = vor.u32 %v3027, %v3030
        %v3032 = vrot.slane %v3031, 4
        %v3034 = vshrl.u32 %v2762, 16
        %v3036 = vrot.slane %v3034, 5
        %v3037 = vshll.u32 %v2762, 16
        %v3039 = vrot.slane %v3037, 6
        %v3040 = vor.u32 %v3036, %v3039
        %v3041 = vsel %vm2799, %v3032, %v3040
        %v3042 = vrot.slane %v3040, 4
        %v3044 = vshrl.u32 %v2763, 16
        %v3046 = vrot.slane %v3044, 5
        %v3047 = vshll.u32 %v2763, 16
        %v3049 = vrot.slane %v3047, 6
        %v3050 = vor.u32 %v3046, %v3049
        %v3051 = vsel %vm2799, %v3042, %v3050
        %v3053 = vshrl.u32 %v2764, 16
        %v3055 = vrot.slane %v3053, 5
        %v3056 = vshll.u32 %v2764, 16
        %v3058 = vrot.slane %v3056, 6
        %v3059 = vor.u32 %v3055, %v3058
        %v3060 = vrot.slane %v3059, 4
        %v3062 = vshrl.u32 %v2765, 16
        %v3064 = vrot.slane %v3062, 5
        %v3065 = vshll.u32 %v2765, 16
        %v3067 = vrot.slane %v3065, 6
        %v3068 = vor.u32 %v3064, %v3067
        %v3069 = vsel %vm2799, %v3060, %v3068
        %v3070 = vrot.slane %v3068, 4
        %v3072 = vshrl.u32 %v2766, 16
        %v3074 = vrot.slane %v3072, 5
        %v3075 = vshll.u32 %v2766, 16
        %v3077 = vrot.slane %v3075, 6
        %v3078 = vor.u32 %v3074, %v3077
        %v3079 = vsel %vm2799, %v3070, %v3078
        %v3081 = vshrl.u32 %v2767, 16
        %v3083 = vrot.slane %v3081, 5
        %v3084 = vshll.u32 %v2767, 16
        %v3086 = vrot.slane %v3084, 6
        %v3087 = vor.u32 %v3083, %v3086
        %v3088 = vrot.slane %v3087, 4
        %v3090 = vshrl.u32 %v2768, 16
        %v3092 = vrot.slane %v3090, 5
        %v3093 = vshll.u32 %v2768, 16
        %v3095 = vrot.slane %v3093, 6
        %v3096 = vor.u32 %v3092, %v3095
        %v3097 = vsel %vm2799, %v3088, %v3096
        %v3098 = vrot.slane %v3096, 4
        %v3100 = vshrl.u32 %v2769, 16
        %v3102 = vrot.slane %v3100, 5
        %v3103 = vshll.u32 %v2769, 16
        %v3105 = vrot.slane %v3103, 6
        %v3106 = vor.u32 %v3102, %v3105
        %v3107 = vsel %vm2799, %v3098, %v3106
        %v3109 = vshrl.u32 %v2770, 16
        %v3111 = vrot.slane %v3109, 5
        %v3112 = vshll.u32 %v2770, 16
        %v3114 = vrot.slane %v3112, 6
        %v3115 = vor.u32 %v3111, %v3114
        %v3116 = vrot.slane %v3115, 4
        %v3118 = vshrl.u32 %v2771, 16
        %v3120 = vrot.slane %v3118, 5
        %v3121 = vshll.u32 %v2771, 16
        %v3123 = vrot.slane %v3121, 6
        %v3124 = vor.u32 %v3120, %v3123
        %v3125 = vsel %vm2799, %v3116, %v3124
        %v3126 = vrot.slane %v3124, 4
        %v3128 = vshrl.u32 %v2772, 16
        %v3130 = vrot.slane %v3128, 5
        %v3131 = vshll.u32 %v2772, 16
        %v3133 = vrot.slane %v3131, 6
        %v3134 = vor.u32 %v3130, %v3133
        %v3135 = vsel %vm2799, %v3126, %v3134
        %v3137 = vshrl.u32 %v2773, 16
        %v3139 = vrot.slane %v3137, 5
        %v3140 = vshll.u32 %v2773, 16
        %v3142 = vrot.slane %v3140, 6
        %v3143 = vor.u32 %v3139, %v3142
        %v3144 = vrot.slane %v3143, 4
        %v3146 = vshrl.u32 %v2774, 16
        %v3148 = vrot.slane %v3146, 5
        %v3149 = vshll.u32 %v2774, 16
        %v3151 = vrot.slane %v3149, 6
        %v3152 = vor.u32 %v3148, %v3151
        %v3153 = vsel %vm2799, %v3144, %v3152
        %v3154 = vrot.slane %v3152, 4
        %v3156 = vshrl.u32 %v2775, 16
        %v3158 = vrot.slane %v3156, 5
        %v3159 = vshll.u32 %v2775, 16
        %v3161 = vrot.slane %v3159, 6
        %v3162 = vor.u32 %v3158, %v3161
        %v3163 = vsel %vm2799, %v3154, %v3162
        %v3165 = vshrl.u32 %v2776, 16
        %v3167 = vrot.slane %v3165, 5
        %v3168 = vshll.u32 %v2776, 16
        %v3170 = vrot.slane %v3168, 6
        %v3171 = vor.u32 %v3167, %v3170
        %v3172 = vrot.slane %v3171, 4
        %v3174 = vshrl.u32 %v2777, 16
        %v3176 = vrot.slane %v3174, 5
        %v3177 = vshll.u32 %v2777, 16
        %v3179 = vrot.slane %v3177, 6
        %v3180 = vor.u32 %v3176, %v3179
        %v3181 = vsel %vm2799, %v3172, %v3180
        %v3182 = vrot.slane %v3180, 4
        %v3184 = vshrl.u32 %v2778, 16
        %v3186 = vrot.slane %v3184, 5
        %v3187 = vshll.u32 %v2778, 16
        %v3189 = vrot.slane %v3187, 6
        %v3190 = vor.u32 %v3186, %v3189
        %v3191 = vsel %vm2799, %v3182, %v3190
        %v3193 = vshrl.u32 %v2779, 16
        %v3195 = vrot.slane %v3193, 5
        %v3196 = vshll.u32 %v2779, 16
        %v3198 = vrot.slane %v3196, 6
        %v3199 = vor.u32 %v3195, %v3198
        %v3200 = vrot.slane %v3199, 4
        %v3202 = vshrl.u32 %v2780, 16
        %v3204 = vrot.slane %v3202, 5
        %v3205 = vshll.u32 %v2780, 16
        %v3207 = vrot.slane %v3205, 6
        %v3208 = vor.u32 %v3204, %v3207
        %v3209 = vsel %vm2799, %v3200, %v3208
        %v3210 = vrot.slane %v3208, 4
        %v3212 = vshrl.u32 %v2781, 16
        %v3214 = vrot.slane %v3212, 5
        %v3215 = vshll.u32 %v2781, 16
        %v3217 = vrot.slane %v3215, 6
        %v3218 = vor.u32 %v3214, %v3217
        %v3219 = vsel %vm2799, %v3210, %v3218
        %v3221 = vshrl.u32 %v2782, 16
        %v3223 = vrot.slane %v3221, 5
        %v3224 = vshll.u32 %v2782, 16
        %v3226 = vrot.slane %v3224, 6
        %v3227 = vor.u32 %v3223, %v3226
        %v3228 = vrot.slane %v3227, 4
        %v3230 = vshrl.u32 %v2783, 16
        %v3232 = vrot.slane %v3230, 5
        %v3233 = vshll.u32 %v2783, 16
        %v3235 = vrot.slane %v3233, 6
        %v3236 = vor.u32 %v3232, %v3235
        %v3237 = vsel %vm2799, %v3228, %v3236
        %v3238 = vrot.slane %v3236, 4
        %v3240 = vshrl.u32 %v2784, 16
        %v3242 = vrot.slane %v3240, 5
        %v3243 = vshll.u32 %v2784, 16
        %v3245 = vrot.slane %v3243, 6
        %v3246 = vor.u32 %v3242, %v3245
        %v3247 = vsel %vm2799, %v3238, %v3246
        %v3249 = vshrl.u32 %v2785, 16
        %v3251 = vrot.slane %v3249, 5
        %v3252 = vshll.u32 %v2785, 16
        %v3254 = vrot.slane %v3252, 6
        %v3255 = vor.u32 %v3251, %v3254
        %v3256 = vrot.slane %v3255, 4
        %v3258 = vshrl.u32 %v2786, 16
        %v3260 = vrot.slane %v3258, 5
        %v3261 = vshll.u32 %v2786, 16
        %v3263 = vrot.slane %v3261, 6
        %v3264 = vor.u32 %v3260, %v3263
        %v3265 = vsel %vm2799, %v3256, %v3264
        %v3266 = vrot.slane %v3264, 4
        %v3268 = vshrl.u32 %v2787, 16
        %v3270 = vrot.slane %v3268, 5
        %v3271 = vshll.u32 %v2787, 16
        %v3273 = vrot.slane %v3271, 6
        %v3274 = vor.u32 %v3270, %v3273
        %v3275 = vsel %vm2799, %v3266, %v3274
        %v3277 = vshrl.u32 %v2788, 16
        %v3279 = vrot.slane %v3277, 5
        %v3280 = vshll.u32 %v2788, 16
        %v3282 = vrot.slane %v3280, 6
        %v3283 = vor.u32 %v3279, %v3282
        %v3284 = vrot.slane %v3283, 4
        %v3286 = vshrl.u32 %v2789, 16
        %v3288 = vrot.slane %v3286, 5
        %v3289 = vshll.u32 %v2789, 16
        %v3291 = vrot.slane %v3289, 6
        %v3292 = vor.u32 %v3288, %v3291
        %v3293 = vsel %vm2799, %v3284, %v3292
        %v3294 = vrot.slane %v3292, 4
        %v3296 = vshrl.u32 %v2790, 16
        %v3298 = vrot.slane %v3296, 5
        %v3299 = vshll.u32 %v2790, 16
        %v3301 = vrot.slane %v3299, 6
        %v3302 = vor.u32 %v3298, %v3301
        %v3303 = vsel %vm2799, %v3294, %v3302
        %v3305 = vshrl.u32 %v2791, 16
        %v3307 = vrot.slane %v3305, 5
        %v3308 = vshll.u32 %v2791, 16
        %v3310 = vrot.slane %v3308, 6
        %v3311 = vor.u32 %v3307, %v3310
        %v3312 = vrot.slane %v3311, 4
        %v3314 = vshrl.u32 %v2792, 16
        %v3316 = vrot.slane %v3314, 5
        %v3317 = vshll.u32 %v2792, 16
        %v3319 = vrot.slane %v3317, 6
        %v3320 = vor.u32 %v3316, %v3319
        %v3321 = vsel %vm2799, %v3312, %v3320
        %v3322 = vrot.slane %v3320, 4
        %v3324 = vshrl.u32 %v2793, 16
        %v3326 = vrot.slane %v3324, 5
        %v3327 = vshll.u32 %v2793, 16
        %v3329 = vrot.slane %v3327, 6
        %v3330 = vor.u32 %v3326, %v3329
        %v3331 = vsel %vm2799, %v3322, %v3330
        %v3333 = vshrl.u32 %v2794, 16
        %v3335 = vrot.slane %v3333, 5
        %v3336 = vshll.u32 %v2794, 16
        %v3338 = vrot.slane %v3336, 6
        %v3339 = vor.u32 %v3335, %v3338
        %v3340 = vrot.slane %v3339, 4
        %v3342 = vshrl.u32 %v2795, 16
        %v3344 = vrot.slane %v3342, 5
        %v3345 = vshll.u32 %v2795, 16
        %v3347 = vrot.slane %v3345, 6
        %v3348 = vor.u32 %v3344, %v3347
        %v3349 = vsel %vm2799, %v3340, %v3348
        %v3350 = vrot.slane %v3348, 4
        %v3352 = vshrl.u32 %v2796, 16
        %v3354 = vrot.slane %v3352, 5
        %v3355 = vshll.u32 %v2796, 16
        %v3357 = vrot.slane %v3355, 6
        %v3358 = vor.u32 %v3354, %v3357
        %v3359 = vsel %vm2799, %v3350, %v3358
        %3360 = vrot.lane.b32.xlu0 %v2817, 96
        %v3361 = vpop.permute.xlu0 %3360
        %3362 = vrot.lane.b32.xlu0 %v2827, 96
        %v3363 = vpop.permute.xlu0 %3362
        %3364 = vrot.lane.b32.xlu0 %v2845, 96
        %v3365 = vpop.permute.xlu0 %3364
        %3366 = vrot.lane.b32.xlu0 %v2855, 96
        %v3367 = vpop.permute.xlu0 %3366
        %3368 = vrot.lane.b32.xlu0 %v2873, 96
        %v3369 = vpop.permute.xlu0 %3368
        %3370 = vrot.lane.b32.xlu0 %v2883, 96
        %v3371 = vpop.permute.xlu0 %3370
        %3372 = vrot.lane.b32.xlu0 %v2901, 96
        %v3373 = vpop.permute.xlu0 %3372
        %3374 = vrot.lane.b32.xlu0 %v2911, 96
        %v3375 = vpop.permute.xlu0 %3374
        %3376 = vrot.lane.b32.xlu0 %v2929, 96
        %v3377 = vpop.permute.xlu0 %3376
        %3378 = vrot.lane.b32.xlu0 %v2939, 96
        %v3379 = vpop.permute.xlu0 %3378
        %3380 = vrot.lane.b32.xlu0 %v2957, 96
        %v3381 = vpop.permute.xlu0 %3380
        %3382 = vrot.lane.b32.xlu0 %v2967, 96
        %v3383 = vpop.permute.xlu0 %3382
        %3384 = vrot.lane.b32.xlu0 %v2985, 96
        %v3385 = vpop.permute.xlu0 %3384
        %3386 = vrot.lane.b32.xlu0 %v2995, 96
        %v3387 = vpop.permute.xlu0 %3386
        %3388 = vrot.lane.b32.xlu0 %v3013, 96
        %v3389 = vpop.permute.xlu0 %3388
        %3390 = vrot.lane.b32.xlu0 %v3023, 96
        %v3391 = vpop.permute.xlu0 %3390
        %3392 = vrot.lane.b32.xlu0 %v3041, 96
        %v3393 = vpop.permute.xlu0 %3392
        %3394 = vrot.lane.b32.xlu0 %v3051, 96
        %v3395 = vpop.permute.xlu0 %3394
        %3396 = vrot.lane.b32.xlu0 %v3069, 96
        %v3397 = vpop.permute.xlu0 %3396
        %3398 = vrot.lane.b32.xlu0 %v3079, 96
        %v3399 = vpop.permute.xlu0 %3398
        %3400 = vrot.lane.b32.xlu0 %v3097, 96
        %v3401 = vpop.permute.xlu0 %3400
        %3402 = vrot.lane.b32.xlu0 %v3107, 96
        %v3403 = vpop.permute.xlu0 %3402
        %3404 = vrot.lane.b32.xlu0 %v3125, 96
        %v3405 = vpop.permute.xlu0 %3404
        %3406 = vrot.lane.b32.xlu0 %v3135, 96
        %v3407 = vpop.permute.xlu0 %3406
        %3408 = vrot.lane.b32.xlu0 %v3153, 96
        %v3409 = vpop.permute.xlu0 %3408
        %3410 = vrot.lane.b32.xlu0 %v3163, 96
        %v3411 = vpop.permute.xlu0 %3410
        %3412 = vrot.lane.b32.xlu0 %v3181, 96
        %v3413 = vpop.permute.xlu0 %3412
        %3414 = vrot.lane.b32.xlu0 %v3191, 96
        %v3415 = vpop.permute.xlu0 %3414
        %3416 = vrot.lane.b32.xlu0 %v3209, 96
        %v3417 = vpop.permute.xlu0 %3416
        %3418 = vrot.lane.b32.xlu0 %v3219, 96
        %v3419 = vpop.permute.xlu0 %3418
        %3420 = vrot.lane.b32.xlu0 %v3237, 96
        %v3421 = vpop.permute.xlu0 %3420
        %3422 = vrot.lane.b32.xlu0 %v3247, 96
        %v3423 = vpop.permute.xlu0 %3422
        %3424 = vrot.lane.b32.xlu0 %v3265, 96
        %v3425 = vpop.permute.xlu0 %3424
        %3426 = vrot.lane.b32.xlu0 %v3275, 96
        %v3427 = vpop.permute.xlu0 %3426
        %3428 = vrot.lane.b32.xlu0 %v3293, 96
        %v3429 = vpop.permute.xlu0 %3428
        %3430 = vrot.lane.b32.xlu0 %v3303, 96
        %v3431 = vpop.permute.xlu0 %3430
        %3432 = vrot.lane.b32.xlu0 %v3321, 96
        %v3433 = vpop.permute.xlu0 %3432
        %3434 = vrot.lane.b32.xlu0 %v3331, 96
        %v3435 = vpop.permute.xlu0 %3434
        %3436 = vrot.lane.b32.xlu0 %v3349, 96
        %v3437 = vpop.permute.xlu0 %3436
        %3438 = vrot.lane.b32.xlu0 %v3359, 96
        %v3439 = vpop.permute.xlu0 %3438
        %vm3480 = vcmask 1044224
        %3481 = vst.msk [vmem:[#allocation3] sm:$0xf] %vm3480, %v3361
        %3482 = vst.msk [vmem:[#allocation3 + $0x8] sm:$0xf] %vm3480, %v3363
        %3483 = vst.msk [vmem:[#allocation3 + $0x10] sm:$0xf] %vm3480, %v3365
        %3484 = vst.msk [vmem:[#allocation3 + $0x18] sm:$0xf] %vm3480, %v3367
        %3485 = vst.msk [vmem:[#allocation3 + $0x20] sm:$0xf] %vm3480, %v3369
        %3486 = vst.msk [vmem:[#allocation3 + $0x28] sm:$0xf] %vm3480, %v3371
        %3487 = vst.msk [vmem:[#allocation3 + $0x30] sm:$0xf] %vm3480, %v3373
        %3488 = vst.msk [vmem:[#allocation3 + $0x38] sm:$0xf] %vm3480, %v3375
        %3489 = vst.msk [vmem:[#allocation3 + $0x40] sm:$0xf] %vm3480, %v3377
        %3490 = vst.msk [vmem:[#allocation3 + $0x48] sm:$0xf] %vm3480, %v3379
        %3491 = vst.msk [vmem:[#allocation3 + $0x50] sm:$0xf] %vm3480, %v3381
        %3492 = vst.msk [vmem:[#allocation3 + $0x58] sm:$0xf] %vm3480, %v3383
        %3493 = vst.msk [vmem:[#allocation3 + $0x60] sm:$0xf] %vm3480, %v3385
        %3494 = vst.msk [vmem:[#allocation3 + $0x68] sm:$0xf] %vm3480, %v3387
        %3495 = vst.msk [vmem:[#allocation3 + $0x70] sm:$0xf] %vm3480, %v3389
        %3496 = vst.msk [vmem:[#allocation3 + $0x78] sm:$0xf] %vm3480, %v3391
        %3497 = vst.msk [vmem:[#allocation3 + $0x80] sm:$0xf] %vm3480, %v3393
        %3498 = vst.msk [vmem:[#allocation3 + $0x88] sm:$0xf] %vm3480, %v3395
        %3499 = vst.msk [vmem:[#allocation3 + $0x90] sm:$0xf] %vm3480, %v3397
        %3500 = vst.msk [vmem:[#allocation3 + $0x98] sm:$0xf] %vm3480, %v3399
        %3501 = vst.msk [vmem:[#allocation3 + $0xa0] sm:$0xf] %vm3480, %v3401
        %3502 = vst.msk [vmem:[#allocation3 + $0xa8] sm:$0xf] %vm3480, %v3403
        %3503 = vst.msk [vmem:[#allocation3 + $0xb0] sm:$0xf] %vm3480, %v3405
        %3504 = vst.msk [vmem:[#allocation3 + $0xb8] sm:$0xf] %vm3480, %v3407
        %3505 = vst.msk [vmem:[#allocation3 + $0xc0] sm:$0xf] %vm3480, %v3409
        %3506 = vst.msk [vmem:[#allocation3 + $0xc8] sm:$0xf] %vm3480, %v3411
        %3507 = vst.msk [vmem:[#allocation3 + $0xd0] sm:$0xf] %vm3480, %v3413
        %3508 = vst.msk [vmem:[#allocation3 + $0xd8] sm:$0xf] %vm3480, %v3415
        %3509 = vst.msk [vmem:[#allocation3 + $0xe0] sm:$0xf] %vm3480, %v3417
        %3510 = vst.msk [vmem:[#allocation3 + $0xe8] sm:$0xf] %vm3480, %v3419
        %3511 = vst.msk [vmem:[#allocation3 + $0xf0] sm:$0xf] %vm3480, %v3421
        %3512 = vst.msk [vmem:[#allocation3 + $0xf8] sm:$0xf] %vm3480, %v3423
        %3513 = vst.msk [vmem:[#allocation3 + $0x100] sm:$0xf] %vm3480, %v3425
        %3514 = vst.msk [vmem:[#allocation3 + $0x108] sm:$0xf] %vm3480, %v3427
        %3515 = vst.msk [vmem:[#allocation3 + $0x110] sm:$0xf] %vm3480, %v3429
        %3516 = vst.msk [vmem:[#allocation3 + $0x118] sm:$0xf] %vm3480, %v3431
        %3517 = vst.msk [vmem:[#allocation3 + $0x120] sm:$0xf] %vm3480, %v3433
        %3518 = vst.msk [vmem:[#allocation3 + $0x128] sm:$0xf] %vm3480, %v3435
        %3519 = vst.msk [vmem:[#allocation3 + $0x130] sm:$0xf] %vm3480, %v3437
        %3520 = vst.msk [vmem:[#allocation3 + $0x138] sm:$0xf] %vm3480, %v3439
        %v3521 = vld [vmem:[#allocation2] sm:$0xc]
        %v3522 = vld [vmem:[#allocation2 + $0x4] sm:$0xf]
        %v3523 = vld [vmem:[#allocation2 + $0x8] sm:$0x3]
        %v3524 = vld [vmem:[#allocation2 + $0xc] sm:$0xc]
        %v3525 = vld [vmem:[#allocation2 + $0x10] sm:$0xf]
        %v3526 = vld [vmem:[#allocation2 + $0x14] sm:$0x3]
        %v3527 = vld [vmem:[#allocation2 + $0x18] sm:$0xc]
        %v3528 = vld [vmem:[#allocation2 + $0x1c] sm:$0xf]
        %v3529 = vld [vmem:[#allocation2 + $0x20] sm:$0x3]
        %v3530 = vld [vmem:[#allocation2 + $0x24] sm:$0xc]
        %v3531 = vld [vmem:[#allocation2 + $0x28] sm:$0xf]
        %v3532 = vld [vmem:[#allocation2 + $0x2c] sm:$0x3]
        %v3533 = vld [vmem:[#allocation2 + $0x30] sm:$0xc]
        %v3534 = vld [vmem:[#allocation2 + $0x34] sm:$0xf]
        %v3535 = vld [vmem:[#allocation2 + $0x38] sm:$0x3]
        %v3536 = vld [vmem:[#allocation2 + $0x3c] sm:$0xc]
        %v3537 = vld [vmem:[#allocation2 + $0x40] sm:$0xf]
        %v3538 = vld [vmem:[#allocation2 + $0x44] sm:$0x3]
        %v3539 = vld [vmem:[#allocation2 + $0x48] sm:$0xc]
        %v3540 = vld [vmem:[#allocation2 + $0x4c] sm:$0xf]
        %v3541 = vld [vmem:[#allocation2 + $0x50] sm:$0x3]
        %v3542 = vld [vmem:[#allocation2 + $0x54] sm:$0xc]
        %v3543 = vld [vmem:[#allocation2 + $0x58] sm:$0xf]
        %v3544 = vld [vmem:[#allocation2 + $0x5c] sm:$0x3]
        %v3545 = vld [vmem:[#allocation2 + $0x60] sm:$0xc]
        %v3546 = vld [vmem:[#allocation2 + $0x64] sm:$0xf]
        %v3547 = vld [vmem:[#allocation2 + $0x68] sm:$0x3]
        %v3548 = vld [vmem:[#allocation2 + $0x6c] sm:$0xc]
        %v3549 = vld [vmem:[#allocation2 + $0x70] sm:$0xf]
        %v3550 = vld [vmem:[#allocation2 + $0x74] sm:$0x3]
        %v3551 = vld [vmem:[#allocation2 + $0x78] sm:$0xc]
        %v3552 = vld [vmem:[#allocation2 + $0x7c] sm:$0xf]
        %v3553 = vld [vmem:[#allocation2 + $0x80] sm:$0x3]
        %v3554 = vld [vmem:[#allocation2 + $0x84] sm:$0xc]
        %v3555 = vld [vmem:[#allocation2 + $0x88] sm:$0xf]
        %v3556 = vld [vmem:[#allocation2 + $0x8c] sm:$0x3]
        %v3557 = vld [vmem:[#allocation2 + $0x90] sm:$0xc]
        %v3558 = vld [vmem:[#allocation2 + $0x94] sm:$0xf]
        %v3559 = vld [vmem:[#allocation2 + $0x98] sm:$0x3]
        %v3560 = vld [vmem:[#allocation2 + $0x9c] sm:$0xc]
        %v3561 = vld [vmem:[#allocation2 + $0xa0] sm:$0xf]
        %v3562 = vld [vmem:[#allocation2 + $0xa4] sm:$0x3]
        %v3563 = vld [vmem:[#allocation2 + $0xa8] sm:$0xc]
        %v3564 = vld [vmem:[#allocation2 + $0xac] sm:$0xf]
        %v3565 = vld [vmem:[#allocation2 + $0xb0] sm:$0x3]
        %v3566 = vld [vmem:[#allocation2 + $0xb4] sm:$0xc]
        %v3567 = vld [vmem:[#allocation2 + $0xb8] sm:$0xf]
        %v3568 = vld [vmem:[#allocation2 + $0xbc] sm:$0x3]
        %v3569 = vld [vmem:[#allocation2 + $0xc0] sm:$0xc]
        %v3570 = vld [vmem:[#allocation2 + $0xc4] sm:$0xf]
        %v3571 = vld [vmem:[#allocation2 + $0xc8] sm:$0x3]
        %v3572 = vld [vmem:[#allocation2 + $0xcc] sm:$0xc]
        %v3573 = vld [vmem:[#allocation2 + $0xd0] sm:$0xf]
        %v3574 = vld [vmem:[#allocation2 + $0xd4] sm:$0x3]
        %v3575 = vld [vmem:[#allocation2 + $0xd8] sm:$0xc]
        %v3576 = vld [vmem:[#allocation2 + $0xdc] sm:$0xf]
        %v3577 = vld [vmem:[#allocation2 + $0xe0] sm:$0x3]
        %v3578 = vld [vmem:[#allocation2 + $0xe4] sm:$0xc]
        %v3579 = vld [vmem:[#allocation2 + $0xe8] sm:$0xf]
        %v3580 = vld [vmem:[#allocation2 + $0xec] sm:$0x3]
        %vm3641 = vcmask 1041408
        %vm3642 = vcmask 1045508
        %vm3643 = vmor %vm3641, %vm3642
        %v3644 = vrot.slane %v3521, 6
        %v3645 = vrot.slane %v3644, 4
        %v3646 = vrot.slane %v3522, 6
        %v3647 = vsel %vm3643, %v3645, %v3646
        %v3648 = vrot.slane %v3646, 4
        %v3649 = vrot.slane %v3523, 6
        %v3650 = vsel %vm3643, %v3648, %v3649
        %v3651 = vrot.slane %v3524, 6
        %v3652 = vrot.slane %v3651, 4
        %v3653 = vrot.slane %v3525, 6
        %v3654 = vsel %vm3643, %v3652, %v3653
        %v3655 = vrot.slane %v3653, 4
        %v3656 = vrot.slane %v3526, 6
        %v3657 = vsel %vm3643, %v3655, %v3656
        %v3658 = vrot.slane %v3527, 6
        %v3659 = vrot.slane %v3658, 4
        %v3660 = vrot.slane %v3528, 6
        %v3661 = vsel %vm3643, %v3659, %v3660
        %v3662 = vrot.slane %v3660, 4
        %v3663 = vrot.slane %v3529, 6
        %v3664 = vsel %vm3643, %v3662, %v3663
        %v3665 = vrot.slane %v3530, 6
        %v3666 = vrot.slane %v3665, 4
        %v3667 = vrot.slane %v3531, 6
        %v3668 = vsel %vm3643, %v3666, %v3667
        %v3669 = vrot.slane %v3667, 4
        %v3670 = vrot.slane %v3532, 6
        %v3671 = vsel %vm3643, %v3669, %v3670
        %v3672 = vrot.slane %v3533, 6
        %v3673 = vrot.slane %v3672, 4
        %v3674 = vrot.slane %v3534, 6
        %v3675 = vsel %vm3643, %v3673, %v3674
        %v3676 = vrot.slane %v3674, 4
        %v3677 = vrot.slane %v3535, 6
        %v3678 = vsel %vm3643, %v3676, %v3677
        %v3679 = vrot.slane %v3536, 6
        %v3680 = vrot.slane %v3679, 4
        %v3681 = vrot.slane %v3537, 6
        %v3682 = vsel %vm3643, %v3680, %v3681
        %v3683 = vrot.slane %v3681, 4
        %v3684 = vrot.slane %v3538, 6
        %v3685 = vsel %vm3643, %v3683, %v3684
        %v3686 = vrot.slane %v3539, 6
        %v3687 = vrot.slane %v3686, 4
        %v3688 = vrot.slane %v3540, 6
        %v3689 = vsel %vm3643, %v3687, %v3688
        %v3690 = vrot.slane %v3688, 4
        %v3691 = vrot.slane %v3541, 6
        %v3692 = vsel %vm3643, %v3690, %v3691
        %v3693 = vrot.slane %v3542, 6
        %v3694 = vrot.slane %v3693, 4
        %v3695 = vrot.slane %v3543, 6
        %v3696 = vsel %vm3643, %v3694, %v3695
        %v3697 = vrot.slane %v3695, 4
        %v3698 = vrot.slane %v3544, 6
        %v3699 = vsel %vm3643, %v3697, %v3698
        %v3700 = vrot.slane %v3545, 6
        %v3701 = vrot.slane %v3700, 4
        %v3702 = vrot.slane %v3546, 6
        %v3703 = vsel %vm3643, %v3701, %v3702
        %v3704 = vrot.slane %v3702, 4
        %v3705 = vrot.slane %v3547, 6
        %v3706 = vsel %vm3643, %v3704, %v3705
        %v3707 = vrot.slane %v3548, 6
        %v3708 = vrot.slane %v3707, 4
        %v3709 = vrot.slane %v3549, 6
        %v3710 = vsel %vm3643, %v3708, %v3709
        %v3711 = vrot.slane %v3709, 4
        %v3712 = vrot.slane %v3550, 6
        %v3713 = vsel %vm3643, %v3711, %v3712
        %v3714 = vrot.slane %v3551, 6
        %v3715 = vrot.slane %v3714, 4
        %v3716 = vrot.slane %v3552, 6
        %v3717 = vsel %vm3643, %v3715, %v3716
        %v3718 = vrot.slane %v3716, 4
        %v3719 = vrot.slane %v3553, 6
        %v3720 = vsel %vm3643, %v3718, %v3719
        %v3721 = vrot.slane %v3554, 6
        %v3722 = vrot.slane %v3721, 4
        %v3723 = vrot.slane %v3555, 6
        %v3724 = vsel %vm3643, %v3722, %v3723
        %v3725 = vrot.slane %v3723, 4
        %v3726 = vrot.slane %v3556, 6
        %v3727 = vsel %vm3643, %v3725, %v3726
        %v3728 = vrot.slane %v3557, 6
        %v3729 = vrot.slane %v3728, 4
        %v3730 = vrot.slane %v3558, 6
        %v3731 = vsel %vm3643, %v3729, %v3730
        %v3732 = vrot.slane %v3730, 4
        %v3733 = vrot.slane %v3559, 6
        %v3734 = vsel %vm3643, %v3732, %v3733
        %v3735 = vrot.slane %v3560, 6
        %v3736 = vrot.slane %v3735, 4
        %v3737 = vrot.slane %v3561, 6
        %v3738 = vsel %vm3643, %v3736, %v3737
        %v3739 = vrot.slane %v3737, 4
        %v3740 = vrot.slane %v3562, 6
        %v3741 = vsel %vm3643, %v3739, %v3740
        %v3742 = vrot.slane %v3563, 6
        %v3743 = vrot.slane %v3742, 4
        %v3744 = vrot.slane %v3564, 6
        %v3745 = vsel %vm3643, %v3743, %v3744
        %v3746 = vrot.slane %v3744, 4
        %v3747 = vrot.slane %v3565, 6
        %v3748 = vsel %vm3643, %v3746, %v3747
        %v3749 = vrot.slane %v3566, 6
        %v3750 = vrot.slane %v3749, 4
        %v3751 = vrot.slane %v3567, 6
        %v3752 = vsel %vm3643, %v3750, %v3751
        %v3753 = vrot.slane %v3751, 4
        %v3754 = vrot.slane %v3568, 6
        %v3755 = vsel %vm3643, %v3753, %v3754
        %v3756 = vrot.slane %v3569, 6
        %v3757 = vrot.slane %v3756, 4
        %v3758 = vrot.slane %v3570, 6
        %v3759 = vsel %vm3643, %v3757, %v3758
        %v3760 = vrot.slane %v3758, 4
        %v3761 = vrot.slane %v3571, 6
        %v3762 = vsel %vm3643, %v3760, %v3761
        %v3763 = vrot.slane %v3572, 6
        %v3764 = vrot.slane %v3763, 4
        %v3765 = vrot.slane %v3573, 6
        %v3766 = vsel %vm3643, %v3764, %v3765
        %v3767 = vrot.slane %v3765, 4
        %v3768 = vrot.slane %v3574, 6
        %v3769 = vsel %vm3643, %v3767, %v3768
        %v3770 = vrot.slane %v3575, 6
        %v3771 = vrot.slane %v3770, 4
        %v3772 = vrot.slane %v3576, 6
        %v3773 = vsel %vm3643, %v3771, %v3772
        %v3774 = vrot.slane %v3772, 4
        %v3775 = vrot.slane %v3577, 6
        %v3776 = vsel %vm3643, %v3774, %v3775
        %v3777 = vrot.slane %v3578, 6
        %v3778 = vrot.slane %v3777, 4
        %v3779 = vrot.slane %v3579, 6
        %v3780 = vsel %vm3643, %v3778, %v3779
        %v3781 = vrot.slane %v3779, 4
        %v3782 = vrot.slane %v3580, 6
        %v3783 = vsel %vm3643, %v3781, %v3782
        %3824 = vst.msk [vmem:[#allocation3 + $0x4] sm:$0xf] %vm439, %v3647
        %3825 = vst.msk [vmem:[#allocation3 + $0xc] sm:$0xf] %vm439, %v3650
        %3826 = vst.msk [vmem:[#allocation3 + $0x14] sm:$0xf] %vm439, %v3654
        %3827 = vst.msk [vmem:[#allocation3 + $0x1c] sm:$0xf] %vm439, %v3657
        %3828 = vst.msk [vmem:[#allocation3 + $0x24] sm:$0xf] %vm439, %v3661
        %3829 = vst.msk [vmem:[#allocation3 + $0x2c] sm:$0xf] %vm439, %v3664
        %3830 = vst.msk [vmem:[#allocation3 + $0x34] sm:$0xf] %vm439, %v3668
        %3831 = vst.msk [vmem:[#allocation3 + $0x3c] sm:$0xf] %vm439, %v3671
        %3832 = vst.msk [vmem:[#allocation3 + $0x44] sm:$0xf] %vm439, %v3675
        %3833 = vst.msk [vmem:[#allocation3 + $0x4c] sm:$0xf] %vm439, %v3678
        %3834 = vst.msk [vmem:[#allocation3 + $0x54] sm:$0xf] %vm439, %v3682
        %3835 = vst.msk [vmem:[#allocation3 + $0x5c] sm:$0xf] %vm439, %v3685
        %3836 = vst.msk [vmem:[#allocation3 + $0x64] sm:$0xf] %vm439, %v3689
        %3837 = vst.msk [vmem:[#allocation3 + $0x6c] sm:$0xf] %vm439, %v3692
        %3838 = vst.msk [vmem:[#allocation3 + $0x74] sm:$0xf] %vm439, %v3696
        %3839 = vst.msk [vmem:[#allocation3 + $0x7c] sm:$0xf] %vm439, %v3699
        %3840 = vst.msk [vmem:[#allocation3 + $0x84] sm:$0xf] %vm439, %v3703
        %3841 = vst.msk [vmem:[#allocation3 + $0x8c] sm:$0xf] %vm439, %v3706
        %3842 = vst.msk [vmem:[#allocation3 + $0x94] sm:$0xf] %vm439, %v3710
        %3843 = vst.msk [vmem:[#allocation3 + $0x9c] sm:$0xf] %vm439, %v3713
        %3844 = vst.msk [vmem:[#allocation3 + $0xa4] sm:$0xf] %vm439, %v3717
        %3845 = vst.msk [vmem:[#allocation3 + $0xac] sm:$0xf] %vm439, %v3720
        %3846 = vst.msk [vmem:[#allocation3 + $0xb4] sm:$0xf] %vm439, %v3724
        %3847 = vst.msk [vmem:[#allocation3 + $0xbc] sm:$0xf] %vm439, %v3727
        %3848 = vst.msk [vmem:[#allocation3 + $0xc4] sm:$0xf] %vm439, %v3731
        %3849 = vst.msk [vmem:[#allocation3 + $0xcc] sm:$0xf] %vm439, %v3734
        %3850 = vst.msk [vmem:[#allocation3 + $0xd4] sm:$0xf] %vm439, %v3738
        %3851 = vst.msk [vmem:[#allocation3 + $0xdc] sm:$0xf] %vm439, %v3741
        %3852 = vst.msk [vmem:[#allocation3 + $0xe4] sm:$0xf] %vm439, %v3745
        %3853 = vst.msk [vmem:[#allocation3 + $0xec] sm:$0xf] %vm439, %v3748
        %3854 = vst.msk [vmem:[#allocation3 + $0xf4] sm:$0xf] %vm439, %v3752
        %3855 = vst.msk [vmem:[#allocation3 + $0xfc] sm:$0xf] %vm439, %v3755
        %3856 = vst.msk [vmem:[#allocation3 + $0x104] sm:$0xf] %vm439, %v3759
        %3857 = vst.msk [vmem:[#allocation3 + $0x10c] sm:$0xf] %vm439, %v3762
        %3858 = vst.msk [vmem:[#allocation3 + $0x114] sm:$0xf] %vm439, %v3766
        %3859 = vst.msk [vmem:[#allocation3 + $0x11c] sm:$0xf] %vm439, %v3769
        %3860 = vst.msk [vmem:[#allocation3 + $0x124] sm:$0xf] %vm439, %v3773
        %3861 = vst.msk [vmem:[#allocation3 + $0x12c] sm:$0xf] %vm439, %v3776
        %3862 = vst.msk [vmem:[#allocation3 + $0x134] sm:$0xf] %vm439, %v3780
        %3863 = vst.msk [vmem:[#allocation3 + $0x13c] sm:$0xf] %vm439, %v3783
        %v3864 = vld [vmem:[%s4] sm:$0x1]
        loop: start=0, step=1, limit=2
        $region80: #{my_network_forward.1} parent=71 // loop_pre_header
          _
        $region81: #{my_network_forward.1} parent=71 // loop_header
          %s3866 = sphi 0, %s3870
          %p3867 = scmp.ge.s32.totalorder %s3866, 2
        $region82: #{my_network_forward.1} parent=71 // loop_header_branch
          %3869 = sbr.rel (%p3867) target = $region86
        $region83: #{my_network_forward.1} parent=71 // loop_body
          %s3871 = smul.u32 %s3866, 8
          %s3872 = smul.u32 %s3871, 4
          %s3873 = smul.addr %s3872, 4
          %s3874 = scalar_lea.vmem [#allocation3], %s3873
          %v3875 = vld [vmem:[%s3874] sm:$0xff]
          %v3876 = vld [vmem:[%s3874 + $0x8] sm:$0xff]
          %v3877 = vld [vmem:[%s3874 + $0x10] sm:$0xff]
          %v3878 = vld [vmem:[%s3874 + $0x18] sm:$0xff]
          %v3879 = vld [vmem:[%s3874 + $0x20] sm:$0xff]
          %v3880 = vld [vmem:[%s3874 + $0x28] sm:$0xff]
          %v3881 = vld [vmem:[%s3874 + $0x30] sm:$0xff]
          %v3882 = vld [vmem:[%s3874 + $0x38] sm:$0xff]
          %v3883 = vld [vmem:[%s3874 + $0x40] sm:$0xff]
          %v3884 = vld [vmem:[%s3874 + $0x48] sm:$0xff]
          %v3885 = vld [vmem:[%s3874 + $0x50] sm:$0xff]
          %v3886 = vld [vmem:[%s3874 + $0x58] sm:$0xff]
          %v3887 = vld [vmem:[%s3874 + $0x60] sm:$0xff]
          %v3888 = vld [vmem:[%s3874 + $0x68] sm:$0xff]
          %v3889 = vld [vmem:[%s3874 + $0x70] sm:$0xff]
          %v3890 = vld [vmem:[%s3874 + $0x78] sm:$0xff]
          %v3891 = vld [vmem:[%s3] sm:$0xf]
          %v3892 = vld [vmem:[%s3 + $0x4] sm:$0xf]
          %v3893 = vld [vmem:[%s3 + $0x8] sm:$0xf]
          %v3894 = vld [vmem:[%s3 + $0xc] sm:$0xf]
          %v3895 = vld [vmem:[%s3 + $0x10] sm:$0xf]
          %v3896 = vld [vmem:[%s3 + $0x14] sm:$0xf]
          %v3897 = vld [vmem:[%s3 + $0x18] sm:$0xf]
          %v3898 = vld [vmem:[%s3 + $0x1c] sm:$0xf]
          %v3899 = vld [vmem:[%s3 + $0x20] sm:$0xf]
          %v3900 = vld [vmem:[%s3 + $0x24] sm:$0xf]
          %v3901 = vld [vmem:[%s3 + $0x28] sm:$0xf]
          %v3902 = vld [vmem:[%s3 + $0x2c] sm:$0xf]
          %v3903 = vld [vmem:[%s3 + $0x30] sm:$0xf]
          %v3904 = vld [vmem:[%s3 + $0x34] sm:$0xf]
          %v3905 = vld [vmem:[%s3 + $0x38] sm:$0xf]
          %v3906 = vld [vmem:[%s3 + $0x3c] sm:$0xf]
          %v3907 = vld [vmem:[%s3 + $0x40] sm:$0xf]
          %v3908 = vld [vmem:[%s3 + $0x44] sm:$0xf]
          %v3909 = vld [vmem:[%s3 + $0x48] sm:$0xf]
          %v3910 = vld [vmem:[%s3 + $0x4c] sm:$0xf]
          %s3911 = sadd.s32 %s3871, 1
          %s3912 = smul.u32 %s3911, 4
          %s3913 = smul.addr %s3912, 4
          %s3914 = scalar_lea.vmem [#allocation3], %s3913
          %v3915 = vld [vmem:[%s3914] sm:$0xff]
          %v3916 = vld [vmem:[%s3914 + $0x8] sm:$0xff]
          %v3917 = vld [vmem:[%s3914 + $0x10] sm:$0xff]
          %v3918 = vld [vmem:[%s3914 + $0x18] sm:$0xff]
          %v3919 = vld [vmem:[%s3914 + $0x20] sm:$0xff]
          %v3920 = vld [vmem:[%s3914 + $0x28] sm:$0xff]
          %v3921 = vld [vmem:[%s3914 + $0x30] sm:$0xff]
          %v3922 = vld [vmem:[%s3914 + $0x38] sm:$0xff]
          %v3923 = vld [vmem:[%s3914 + $0x40] sm:$0xff]
          %v3924 = vld [vmem:[%s3914 + $0x48] sm:$0xff]
          %v3925 = vld [vmem:[%s3914 + $0x50] sm:$0xff]
          %v3926 = vld [vmem:[%s3914 + $0x58] sm:$0xff]
          %v3927 = vld [vmem:[%s3914 + $0x60] sm:$0xff]
          %v3928 = vld [vmem:[%s3914 + $0x68] sm:$0xff]
          %v3929 = vld [vmem:[%s3914 + $0x70] sm:$0xff]
          %v3930 = vld [vmem:[%s3914 + $0x78] sm:$0xff]
          %s3931 = scalar_lea.vmem %s3, 80
          %v3932 = vld [vmem:[%s3931] sm:$0xf]
          %v3933 = vld [vmem:[%s3931 + $0x4] sm:$0xf]
          %v3934 = vld [vmem:[%s3931 + $0x8] sm:$0xf]
          %v3935 = vld [vmem:[%s3931 + $0xc] sm:$0xf]
          %v3936 = vld [vmem:[%s3931 + $0x10] sm:$0xf]
          %v3937 = vld [vmem:[%s3931 + $0x14] sm:$0xf]
          %v3938 = vld [vmem:[%s3931 + $0x18] sm:$0xf]
          %v3939 = vld [vmem:[%s3931 + $0x1c] sm:$0xf]
          %v3940 = vld [vmem:[%s3931 + $0x20] sm:$0xf]
          %v3941 = vld [vmem:[%s3931 + $0x24] sm:$0xf]
          %v3942 = vld [vmem:[%s3931 + $0x28] sm:$0xf]
          %v3943 = vld [vmem:[%s3931 + $0x2c] sm:$0xf]
          %v3944 = vld [vmem:[%s3931 + $0x30] sm:$0xf]
          %v3945 = vld [vmem:[%s3931 + $0x34] sm:$0xf]
          %v3946 = vld [vmem:[%s3931 + $0x38] sm:$0xf]
          %v3947 = vld [vmem:[%s3931 + $0x3c] sm:$0xf]
          %v3948 = vld [vmem:[%s3931 + $0x40] sm:$0xf]
          %v3949 = vld [vmem:[%s3931 + $0x44] sm:$0xf]
          %v3950 = vld [vmem:[%s3931 + $0x48] sm:$0xf]
          %v3951 = vld [vmem:[%s3931 + $0x4c] sm:$0xf]
          %v3968 = vunpack.c.l.b16 %v3915
          %v3969 = vunpack.c.h.b16 %v3915
          %v3970 = vunpack.c.l.b16 %v3916
          %v3971 = vunpack.c.h.b16 %v3916
          %v3972 = vunpack.c.l.b16 %v3917
          %v3973 = vunpack.c.h.b16 %v3917
          %v3974 = vunpack.c.l.b16 %v3918
          %v3975 = vunpack.c.h.b16 %v3918
          %v3976 = vunpack.c.l.b16 %v3919
          %v3977 = vunpack.c.h.b16 %v3919
          %v3978 = vunpack.c.l.b16 %v3920
          %v3979 = vunpack.c.h.b16 %v3920
          %v3980 = vunpack.c.l.b16 %v3921
          %v3981 = vunpack.c.h.b16 %v3921
          %v3982 = vunpack.c.l.b16 %v3922
          %v3983 = vunpack.c.h.b16 %v3922
          %v3984 = vunpack.c.l.b16 %v3923
          %v3985 = vunpack.c.h.b16 %v3923
          %v3986 = vunpack.c.l.b16 %v3924
          %v3987 = vunpack.c.h.b16 %v3924
          %v3988 = vunpack.c.l.b16 %v3925
          %v3989 = vunpack.c.h.b16 %v3925
          %v3990 = vunpack.c.l.b16 %v3926
          %v3991 = vunpack.c.h.b16 %v3926
          %v3992 = vunpack.c.l.b16 %v3927
          %v3993 = vunpack.c.h.b16 %v3927
          %v3994 = vunpack.c.l.b16 %v3928
          %v3995 = vunpack.c.h.b16 %v3928
          %v3996 = vunpack.c.l.b16 %v3929
          %v3997 = vunpack.c.h.b16 %v3929
          %v3998 = vunpack.c.l.b16 %v3930
          %v3999 = vunpack.c.h.b16 %v3930
          %v4000 = vpack.c.b16 %v3970, %v3968
          %v4001 = vpack.c.b16 %v3971, %v3969
          %v4002 = vpack.c.b16 %v3974, %v3972
          %v4003 = vpack.c.b16 %v3975, %v3973
          %v4004 = vpack.c.b16 %v3978, %v3976
          %v4005 = vpack.c.b16 %v3979, %v3977
          %v4006 = vpack.c.b16 %v3982, %v3980
          %v4007 = vpack.c.b16 %v3983, %v3981
          %v4008 = vpack.c.b16 %v3986, %v3984
          %v4009 = vpack.c.b16 %v3987, %v3985
          %v4010 = vpack.c.b16 %v3990, %v3988
          %v4011 = vpack.c.b16 %v3991, %v3989
          %v4012 = vpack.c.b16 %v3994, %v3992
          %v4013 = vpack.c.b16 %v3995, %v3993
          %v4014 = vpack.c.b16 %v3998, %v3996
          %v4015 = vpack.c.b16 %v3999, %v3997
          %v4044 = vunpack.c.l.b16 %v3932
          %v4045 = vunpack.c.l.b16 %v3933
          %v4046 = vunpack.c.l.b16 %v3934
          %v4047 = vunpack.c.l.b16 %v3935
          %v4048 = vunpack.c.l.b16 %v3936
          %v4049 = vunpack.c.l.b16 %v3937
          %v4050 = vunpack.c.l.b16 %v3938
          %v4051 = vunpack.c.l.b16 %v3939
          %v4052 = vunpack.c.l.b16 %v3940
          %v4053 = vunpack.c.l.b16 %v3941
          %v4054 = vunpack.c.l.b16 %v3942
          %v4055 = vunpack.c.l.b16 %v3943
          %v4056 = vunpack.c.l.b16 %v3944
          %v4057 = vunpack.c.l.b16 %v3945
          %v4058 = vunpack.c.l.b16 %v3946
          %v4059 = vunpack.c.l.b16 %v3947
          %v4060 = vunpack.c.l.b16 %v3948
          %v4061 = vunpack.c.l.b16 %v3949
          %v4062 = vunpack.c.l.b16 %v3950
          %v4063 = vunpack.c.l.b16 %v3951
          %v4064 = vpack.c.b16 %v4045, %v4044
          %v4065 = vpack.c.b16 %v4047, %v4046
          %v4066 = vpack.c.b16 %v4049, %v4048
          %v4067 = vpack.c.b16 %v4051, %v4050
          %v4068 = vpack.c.b16 %v4053, %v4052
          %v4069 = vpack.c.b16 %v4055, %v4054
          %v4070 = vpack.c.b16 %v4057, %v4056
          %v4071 = vpack.c.b16 %v4059, %v4058
          %v4072 = vpack.c.b16 %v4061, %v4060
          %v4073 = vpack.c.b16 %v4063, %v4062
          %vm4084 = vcmask 261120
          %v4086 = vsel %vm4084, %v4001, 0
          %v4089 = vsel %vm4084, %v4003, 0
          %v4092 = vsel %vm4084, %v4005, 0
          %v4095 = vsel %vm4084, %v4007, 0
          %v4098 = vsel %vm4084, %v4009, 0
          %v4101 = vsel %vm4084, %v4011, 0
          %v4104 = vsel %vm4084, %v4013, 0
          %v4107 = vsel %vm4084, %v4015, 0
          %4109 = vmatpush.bf16.msra.mxu0 %v4071
          %4110 = vmatpush.bf16.msra.mxu0 %v4070
          %4111 = vmatpush.bf16.msra.mxu0 %v4069
          %4112 = vmatpush.bf16.msra.mxu0 %v4068
          %4113 = vmatpush.bf16.msra.mxu0 %v4067
          %4114 = vmatpush.bf16.msra.mxu0 %v4066
          %4115 = vmatpush.bf16.msra.mxu0 %v4065
          %4116 = vmatpush.bf16.msra.mxu0 %v4064
          %4117 = vmatmul.bf16.gmra.mxu0 %v4000
          %v4118 = vpop.f32.mrf.mxu0
          %v4119 = vadd.f32 0.0, %v4118
          %v4120 = vpop.f32.mrf.mxu0
          %v4121 = vadd.f32 0.0, %v4120
          %4122 = vmatmul.bf16.gmra.mxu0 %v4002
          %v4123 = vpop.f32.mrf.mxu0
          %v4124 = vadd.f32 0.0, %v4123
          %v4125 = vpop.f32.mrf.mxu0
          %v4126 = vadd.f32 0.0, %v4125
          %4127 = vmatmul.bf16.gmra.mxu0 %v4004
          %v4128 = vpop.f32.mrf.mxu0
          %v4129 = vadd.f32 0.0, %v4128
          %v4130 = vpop.f32.mrf.mxu0
          %v4131 = vadd.f32 0.0, %v4130
          %4132 = vmatmul.bf16.gmra.mxu0 %v4006
          %v4133 = vpop.f32.mrf.mxu0
          %v4134 = vadd.f32 0.0, %v4133
          %v4135 = vpop.f32.mrf.mxu0
          %v4136 = vadd.f32 0.0, %v4135
          %4137 = vmatmul.bf16.gmra.mxu0 %v4008
          %v4138 = vpop.f32.mrf.mxu0
          %v4139 = vadd.f32 0.0, %v4138
          %v4140 = vpop.f32.mrf.mxu0
          %v4141 = vadd.f32 0.0, %v4140
          %4142 = vmatmul.bf16.gmra.mxu0 %v4010
          %v4143 = vpop.f32.mrf.mxu0
          %v4144 = vadd.f32 0.0, %v4143
          %v4145 = vpop.f32.mrf.mxu0
          %v4146 = vadd.f32 0.0, %v4145
          %4147 = vmatmul.bf16.gmra.mxu0 %v4012
          %v4148 = vpop.f32.mrf.mxu0
          %v4149 = vadd.f32 0.0, %v4148
          %v4150 = vpop.f32.mrf.mxu0
          %v4151 = vadd.f32 0.0, %v4150
          %4152 = vmatmul.bf16.gmra.mxu0 %v4014
          %v4153 = vpop.f32.mrf.mxu0
          %v4154 = vadd.f32 0.0, %v4153
          %v4155 = vpop.f32.mrf.mxu0
          %v4156 = vadd.f32 0.0, %v4155
          %4157 = vdwg.mxu0
          %4158 = vmatpush.bf16.msra.mxu0 0
          %4159 = vmatpush.bf16.msra.mxu0 0
          %4160 = vmatpush.bf16.msra.mxu0 0
          %4161 = vmatpush.bf16.msra.mxu0 0
          %4162 = vmatpush.bf16.msra.mxu0 0
          %4163 = vmatpush.bf16.msra.mxu0 0
          %4164 = vmatpush.bf16.msra.mxu0 %v4073
          %4165 = vmatpush.bf16.msra.mxu0 %v4072
          %4166 = vmatmul.bf16.gmra.mxu0 %v4086
          %v4167 = vpop.f32.mrf.mxu0
          %v4168 = vadd.f32 %v4119, %v4167
          %v4169 = vpop.f32.mrf.mxu0
          %v4170 = vadd.f32 %v4121, %v4169
          %4171 = vmatmul.bf16.gmra.mxu0 %v4089
          %v4172 = vpop.f32.mrf.mxu0
          %v4173 = vadd.f32 %v4124, %v4172
          %v4174 = vpop.f32.mrf.mxu0
          %v4175 = vadd.f32 %v4126, %v4174
          %4176 = vmatmul.bf16.gmra.mxu0 %v4092
          %v4177 = vpop.f32.mrf.mxu0
          %v4178 = vadd.f32 %v4129, %v4177
          %v4179 = vpop.f32.mrf.mxu0
          %v4180 = vadd.f32 %v4131, %v4179
          %4181 = vmatmul.bf16.gmra.mxu0 %v4095
          %v4182 = vpop.f32.mrf.mxu0
          %v4183 = vadd.f32 %v4134, %v4182
          %v4184 = vpop.f32.mrf.mxu0
          %v4185 = vadd.f32 %v4136, %v4184
          %4186 = vmatmul.bf16.gmra.mxu0 %v4098
          %v4187 = vpop.f32.mrf.mxu0
          %v4188 = vadd.f32 %v4139, %v4187
          %v4189 = vpop.f32.mrf.mxu0
          %v4190 = vadd.f32 %v4141, %v4189
          %4191 = vmatmul.bf16.gmra.mxu0 %v4101
          %v4192 = vpop.f32.mrf.mxu0
          %v4193 = vadd.f32 %v4144, %v4192
          %v4194 = vpop.f32.mrf.mxu0
          %v4195 = vadd.f32 %v4146, %v4194
          %4196 = vmatmul.bf16.gmra.mxu0 %v4104
          %v4197 = vpop.f32.mrf.mxu0
          %v4198 = vadd.f32 %v4149, %v4197
          %v4199 = vpop.f32.mrf.mxu0
          %v4200 = vadd.f32 %v4151, %v4199
          %4201 = vmatmul.bf16.gmra.mxu0 %v4107
          %v4202 = vpop.f32.mrf.mxu0
          %v4203 = vadd.f32 %v4154, %v4202
          %v4204 = vpop.f32.mrf.mxu0
          %v4205 = vadd.f32 %v4156, %v4204
          %4206 = vdwg.mxu0
          %v4223 = vunpack.c.l.b16 %v3875
          %v4224 = vunpack.c.h.b16 %v3875
          %v4225 = vunpack.c.l.b16 %v3876
          %v4226 = vunpack.c.h.b16 %v3876
          %v4227 = vunpack.c.l.b16 %v3877
          %v4228 = vunpack.c.h.b16 %v3877
          %v4229 = vunpack.c.l.b16 %v3878
          %v4230 = vunpack.c.h.b16 %v3878
          %v4231 = vunpack.c.l.b16 %v3879
          %v4232 = vunpack.c.h.b16 %v3879
          %v4233 = vunpack.c.l.b16 %v3880
          %v4234 = vunpack.c.h.b16 %v3880
          %v4235 = vunpack.c.l.b16 %v3881
          %v4236 = vunpack.c.h.b16 %v3881
          %v4237 = vunpack.c.l.b16 %v3882
          %v4238 = vunpack.c.h.b16 %v3882
          %v4239 = vunpack.c.l.b16 %v3883
          %v4240 = vunpack.c.h.b16 %v3883
          %v4241 = vunpack.c.l.b16 %v3884
          %v4242 = vunpack.c.h.b16 %v3884
          %v4243 = vunpack.c.l.b16 %v3885
          %v4244 = vunpack.c.h.b16 %v3885
          %v4245 = vunpack.c.l.b16 %v3886
          %v4246 = vunpack.c.h.b16 %v3886
          %v4247 = vunpack.c.l.b16 %v3887
          %v4248 = vunpack.c.h.b16 %v3887
          %v4249 = vunpack.c.l.b16 %v3888
          %v4250 = vunpack.c.h.b16 %v3888
          %v4251 = vunpack.c.l.b16 %v3889
          %v4252 = vunpack.c.h.b16 %v3889
          %v4253 = vunpack.c.l.b16 %v3890
          %v4254 = vunpack.c.h.b16 %v3890
          %v4255 = vpack.c.b16 %v4225, %v4223
          %v4256 = vpack.c.b16 %v4226, %v4224
          %v4257 = vpack.c.b16 %v4229, %v4227
          %v4258 = vpack.c.b16 %v4230, %v4228
          %v4259 = vpack.c.b16 %v4233, %v4231
          %v4260 = vpack.c.b16 %v4234, %v4232
          %v4261 = vpack.c.b16 %v4237, %v4235
          %v4262 = vpack.c.b16 %v4238, %v4236
          %v4263 = vpack.c.b16 %v4241, %v4239
          %v4264 = vpack.c.b16 %v4242, %v4240
          %v4265 = vpack.c.b16 %v4245, %v4243
          %v4266 = vpack.c.b16 %v4246, %v4244
          %v4267 = vpack.c.b16 %v4249, %v4247
          %v4268 = vpack.c.b16 %v4250, %v4248
          %v4269 = vpack.c.b16 %v4253, %v4251
          %v4270 = vpack.c.b16 %v4254, %v4252
          %v4299 = vunpack.c.l.b16 %v3891
          %v4300 = vunpack.c.l.b16 %v3892
          %v4301 = vunpack.c.l.b16 %v3893
          %v4302 = vunpack.c.l.b16 %v3894
          %v4303 = vunpack.c.l.b16 %v3895
          %v4304 = vunpack.c.l.b16 %v3896
          %v4305 = vunpack.c.l.b16 %v3897
          %v4306 = vunpack.c.l.b16 %v3898
          %v4307 = vunpack.c.l.b16 %v3899
          %v4308 = vunpack.c.l.b16 %v3900
          %v4309 = vunpack.c.l.b16 %v3901
          %v4310 = vunpack.c.l.b16 %v3902
          %v4311 = vunpack.c.l.b16 %v3903
          %v4312 = vunpack.c.l.b16 %v3904
          %v4313 = vunpack.c.l.b16 %v3905
          %v4314 = vunpack.c.l.b16 %v3906
          %v4315 = vunpack.c.l.b16 %v3907
          %v4316 = vunpack.c.l.b16 %v3908
          %v4317 = vunpack.c.l.b16 %v3909
          %v4318 = vunpack.c.l.b16 %v3910
          %v4319 = vpack.c.b16 %v4300, %v4299
          %v4320 = vpack.c.b16 %v4302, %v4301
          %v4321 = vpack.c.b16 %v4304, %v4303
          %v4322 = vpack.c.b16 %v4306, %v4305
          %v4323 = vpack.c.b16 %v4308, %v4307
          %v4324 = vpack.c.b16 %v4310, %v4309
          %v4325 = vpack.c.b16 %v4312, %v4311
          %v4326 = vpack.c.b16 %v4314, %v4313
          %v4327 = vpack.c.b16 %v4316, %v4315
          %v4328 = vpack.c.b16 %v4318, %v4317
          %v4340 = vsel %vm4084, %v4256, 0
          %v4343 = vsel %vm4084, %v4258, 0
          %v4346 = vsel %vm4084, %v4260, 0
          %v4349 = vsel %vm4084, %v4262, 0
          %v4352 = vsel %vm4084, %v4264, 0
          %v4355 = vsel %vm4084, %v4266, 0
          %v4358 = vsel %vm4084, %v4268, 0
          %v4361 = vsel %vm4084, %v4270, 0
          %4363 = vmatpush.bf16.msra.mxu0 %v4326
          %4364 = vmatpush.bf16.msra.mxu0 %v4325
          %4365 = vmatpush.bf16.msra.mxu0 %v4324
          %4366 = vmatpush.bf16.msra.mxu0 %v4323
          %4367 = vmatpush.bf16.msra.mxu0 %v4322
          %4368 = vmatpush.bf16.msra.mxu0 %v4321
          %4369 = vmatpush.bf16.msra.mxu0 %v4320
          %4370 = vmatpush.bf16.msra.mxu0 %v4319
          %4371 = vmatmul.bf16.gmra.mxu0 %v4255
          %v4372 = vpop.f32.mrf.mxu0
          %v4373 = vadd.f32 %v4168, %v4372
          %v4374 = vpop.f32.mrf.mxu0
          %v4375 = vadd.f32 %v4170, %v4374
          %4376 = vmatmul.bf16.gmra.mxu0 %v4257
          %v4377 = vpop.f32.mrf.mxu0
          %v4378 = vadd.f32 %v4173, %v4377
          %v4379 = vpop.f32.mrf.mxu0
          %v4380 = vadd.f32 %v4175, %v4379
          %4381 = vmatmul.bf16.gmra.mxu0 %v4259
          %v4382 = vpop.f32.mrf.mxu0
          %v4383 = vadd.f32 %v4178, %v4382
          %v4384 = vpop.f32.mrf.mxu0
          %v4385 = vadd.f32 %v4180, %v4384
          %4386 = vmatmul.bf16.gmra.mxu0 %v4261
          %v4387 = vpop.f32.mrf.mxu0
          %v4388 = vadd.f32 %v4183, %v4387
          %v4389 = vpop.f32.mrf.mxu0
          %v4390 = vadd.f32 %v4185, %v4389
          %4391 = vmatmul.bf16.gmra.mxu0 %v4263
          %v4392 = vpop.f32.mrf.mxu0
          %v4393 = vadd.f32 %v4188, %v4392
          %v4394 = vpop.f32.mrf.mxu0
          %v4395 = vadd.f32 %v4190, %v4394
          %4396 = vmatmul.bf16.gmra.mxu0 %v4265
          %v4397 = vpop.f32.mrf.mxu0
          %v4398 = vadd.f32 %v4193, %v4397
          %v4399 = vpop.f32.mrf.mxu0
          %v4400 = vadd.f32 %v4195, %v4399
          %4401 = vmatmul.bf16.gmra.mxu0 %v4267
          %v4402 = vpop.f32.mrf.mxu0
          %v4403 = vadd.f32 %v4198, %v4402
          %v4404 = vpop.f32.mrf.mxu0
          %v4405 = vadd.f32 %v4200, %v4404
          %4406 = vmatmul.bf16.gmra.mxu0 %v4269
          %v4407 = vpop.f32.mrf.mxu0
          %v4408 = vadd.f32 %v4203, %v4407
          %v4409 = vpop.f32.mrf.mxu0
          %v4410 = vadd.f32 %v4205, %v4409
          %4411 = vdwg.mxu0
          %4412 = vmatpush.bf16.msra.mxu0 0
          %4413 = vmatpush.bf16.msra.mxu0 0
          %4414 = vmatpush.bf16.msra.mxu0 0
          %4415 = vmatpush.bf16.msra.mxu0 0
          %4416 = vmatpush.bf16.msra.mxu0 0
          %4417 = vmatpush.bf16.msra.mxu0 0
          %4418 = vmatpush.bf16.msra.mxu0 %v4328
          %4419 = vmatpush.bf16.msra.mxu0 %v4327
          %4420 = vmatmul.bf16.gmra.mxu0 %v4340
          %v4421 = vpop.f32.mrf.mxu0
          %v4422 = vadd.f32 %v4373, %v4421
          %v4423 = vpop.f32.mrf.mxu0
          %v4424 = vadd.f32 %v4375, %v4423
          %4425 = vmatmul.bf16.gmra.mxu0 %v4343
          %v4426 = vpop.f32.mrf.mxu0
          %v4427 = vadd.f32 %v4378, %v4426
          %v4428 = vpop.f32.mrf.mxu0
          %v4429 = vadd.f32 %v4380, %v4428
          %4430 = vmatmul.bf16.gmra.mxu0 %v4346
          %v4431 = vpop.f32.mrf.mxu0
          %v4432 = vadd.f32 %v4383, %v4431
          %v4433 = vpop.f32.mrf.mxu0
          %v4434 = vadd.f32 %v4385, %v4433
          %4435 = vmatmul.bf16.gmra.mxu0 %v4349
          %v4436 = vpop.f32.mrf.mxu0
          %v4437 = vadd.f32 %v4388, %v4436
          %v4438 = vpop.f32.mrf.mxu0
          %v4439 = vadd.f32 %v4390, %v4438
          %4440 = vmatmul.bf16.gmra.mxu0 %v4352
          %v4441 = vpop.f32.mrf.mxu0
          %v4442 = vadd.f32 %v4393, %v4441
          %v4443 = vpop.f32.mrf.mxu0
          %v4444 = vadd.f32 %v4395, %v4443
          %4445 = vmatmul.bf16.gmra.mxu0 %v4355
          %v4446 = vpop.f32.mrf.mxu0
          %v4447 = vadd.f32 %v4398, %v4446
          %v4448 = vpop.f32.mrf.mxu0
          %v4449 = vadd.f32 %v4400, %v4448
          %4450 = vmatmul.bf16.gmra.mxu0 %v4358
          %v4451 = vpop.f32.mrf.mxu0
          %v4452 = vadd.f32 %v4403, %v4451
          %v4453 = vpop.f32.mrf.mxu0
          %v4454 = vadd.f32 %v4405, %v4453
          %4455 = vmatmul.bf16.gmra.mxu0 %v4361
          %v4456 = vpop.f32.mrf.mxu0
          %v4457 = vadd.f32 %v4408, %v4456
          %v4458 = vpop.f32.mrf.mxu0
          %v4459 = vadd.f32 %v4410, %v4458
          %4460 = vdwg.mxu0
          %s4461 = sadd.s32 %s3871, 2
          %s4462 = smul.u32 %s4461, 4
          %s4463 = smul.addr %s4462, 4
          %s4464 = scalar_lea.vmem [#allocation3], %s4463
          %v4465 = vld [vmem:[%s4464] sm:$0xff]
          %v4466 = vld [vmem:[%s4464 + $0x8] sm:$0xff]
          %v4467 = vld [vmem:[%s4464 + $0x10] sm:$0xff]
          %v4468 = vld [vmem:[%s4464 + $0x18] sm:$0xff]
          %v4469 = vld [vmem:[%s4464 + $0x20] sm:$0xff]
          %v4470 = vld [vmem:[%s4464 + $0x28] sm:$0xff]
          %v4471 = vld [vmem:[%s4464 + $0x30] sm:$0xff]
          %v4472 = vld [vmem:[%s4464 + $0x38] sm:$0xff]
          %v4473 = vld [vmem:[%s4464 + $0x40] sm:$0xff]
          %v4474 = vld [vmem:[%s4464 + $0x48] sm:$0xff]
          %v4475 = vld [vmem:[%s4464 + $0x50] sm:$0xff]
          %v4476 = vld [vmem:[%s4464 + $0x58] sm:$0xff]
          %v4477 = vld [vmem:[%s4464 + $0x60] sm:$0xff]
          %v4478 = vld [vmem:[%s4464 + $0x68] sm:$0xff]
          %v4479 = vld [vmem:[%s4464 + $0x70] sm:$0xff]
          %v4480 = vld [vmem:[%s4464 + $0x78] sm:$0xff]
          %s4481 = scalar_lea.vmem %s3, 160
          %v4482 = vld [vmem:[%s4481] sm:$0xf]
          %v4483 = vld [vmem:[%s4481 + $0x4] sm:$0xf]
          %v4484 = vld [vmem:[%s4481 + $0x8] sm:$0xf]
          %v4485 = vld [vmem:[%s4481 + $0xc] sm:$0xf]
          %v4486 = vld [vmem:[%s4481 + $0x10] sm:$0xf]
          %v4487 = vld [vmem:[%s4481 + $0x14] sm:$0xf]
          %v4488 = vld [vmem:[%s4481 + $0x18] sm:$0xf]
          %v4489 = vld [vmem:[%s4481 + $0x1c] sm:$0xf]
          %v4490 = vld [vmem:[%s4481 + $0x20] sm:$0xf]
          %v4491 = vld [vmem:[%s4481 + $0x24] sm:$0xf]
          %v4492 = vld [vmem:[%s4481 + $0x28] sm:$0xf]
          %v4493 = vld [vmem:[%s4481 + $0x2c] sm:$0xf]
          %v4494 = vld [vmem:[%s4481 + $0x30] sm:$0xf]
          %v4495 = vld [vmem:[%s4481 + $0x34] sm:$0xf]
          %v4496 = vld [vmem:[%s4481 + $0x38] sm:$0xf]
          %v4497 = vld [vmem:[%s4481 + $0x3c] sm:$0xf]
          %v4498 = vld [vmem:[%s4481 + $0x40] sm:$0xf]
          %v4499 = vld [vmem:[%s4481 + $0x44] sm:$0xf]
          %v4500 = vld [vmem:[%s4481 + $0x48] sm:$0xf]
          %v4501 = vld [vmem:[%s4481 + $0x4c] sm:$0xf]
          %v4518 = vunpack.c.l.b16 %v4465
          %v4519 = vunpack.c.h.b16 %v4465
          %v4520 = vunpack.c.l.b16 %v4466
          %v4521 = vunpack.c.h.b16 %v4466
          %v4522 = vunpack.c.l.b16 %v4467
          %v4523 = vunpack.c.h.b16 %v4467
          %v4524 = vunpack.c.l.b16 %v4468
          %v4525 = vunpack.c.h.b16 %v4468
          %v4526 = vunpack.c.l.b16 %v4469
          %v4527 = vunpack.c.h.b16 %v4469
          %v4528 = vunpack.c.l.b16 %v4470
          %v4529 = vunpack.c.h.b16 %v4470
          %v4530 = vunpack.c.l.b16 %v4471
          %v4531 = vunpack.c.h.b16 %v4471
          %v4532 = vunpack.c.l.b16 %v4472
          %v4533 = vunpack.c.h.b16 %v4472
          %v4534 = vunpack.c.l.b16 %v4473
          %v4535 = vunpack.c.h.b16 %v4473
          %v4536 = vunpack.c.l.b16 %v4474
          %v4537 = vunpack.c.h.b16 %v4474
          %v4538 = vunpack.c.l.b16 %v4475
          %v4539 = vunpack.c.h.b16 %v4475
          %v4540 = vunpack.c.l.b16 %v4476
          %v4541 = vunpack.c.h.b16 %v4476
          %v4542 = vunpack.c.l.b16 %v4477
          %v4543 = vunpack.c.h.b16 %v4477
          %v4544 = vunpack.c.l.b16 %v4478
          %v4545 = vunpack.c.h.b16 %v4478
          %v4546 = vunpack.c.l.b16 %v4479
          %v4547 = vunpack.c.h.b16 %v4479
          %v4548 = vunpack.c.l.b16 %v4480
          %v4549 = vunpack.c.h.b16 %v4480
          %v4550 = vpack.c.b16 %v4520, %v4518
          %v4551 = vpack.c.b16 %v4521, %v4519
          %v4552 = vpack.c.b16 %v4524, %v4522
          %v4553 = vpack.c.b16 %v4525, %v4523
          %v4554 = vpack.c.b16 %v4528, %v4526
          %v4555 = vpack.c.b16 %v4529, %v4527
          %v4556 = vpack.c.b16 %v4532, %v4530
          %v4557 = vpack.c.b16 %v4533, %v4531
          %v4558 = vpack.c.b16 %v4536, %v4534
          %v4559 = vpack.c.b16 %v4537, %v4535
          %v4560 = vpack.c.b16 %v4540, %v4538
          %v4561 = vpack.c.b16 %v4541, %v4539
          %v4562 = vpack.c.b16 %v4544, %v4542
          %v4563 = vpack.c.b16 %v4545, %v4543
          %v4564 = vpack.c.b16 %v4548, %v4546
          %v4565 = vpack.c.b16 %v4549, %v4547
          %v4594 = vunpack.c.l.b16 %v4482
          %v4595 = vunpack.c.l.b16 %v4483
          %v4596 = vunpack.c.l.b16 %v4484
          %v4597 = vunpack.c.l.b16 %v4485
          %v4598 = vunpack.c.l.b16 %v4486
          %v4599 = vunpack.c.l.b16 %v4487
          %v4600 = vunpack.c.l.b16 %v4488
          %v4601 = vunpack.c.l.b16 %v4489
          %v4602 = vunpack.c.l.b16 %v4490
          %v4603 = vunpack.c.l.b16 %v4491
          %v4604 = vunpack.c.l.b16 %v4492
          %v4605 = vunpack.c.l.b16 %v4493
          %v4606 = vunpack.c.l.b16 %v4494
          %v4607 = vunpack.c.l.b16 %v4495
          %v4608 = vunpack.c.l.b16 %v4496
          %v4609 = vunpack.c.l.b16 %v4497
          %v4610 = vunpack.c.l.b16 %v4498
          %v4611 = vunpack.c.l.b16 %v4499
          %v4612 = vunpack.c.l.b16 %v4500
          %v4613 = vunpack.c.l.b16 %v4501
          %v4614 = vpack.c.b16 %v4595, %v4594
          %v4615 = vpack.c.b16 %v4597, %v4596
          %v4616 = vpack.c.b16 %v4599, %v4598
          %v4617 = vpack.c.b16 %v4601, %v4600
          %v4618 = vpack.c.b16 %v4603, %v4602
          %v4619 = vpack.c.b16 %v4605, %v4604
          %v4620 = vpack.c.b16 %v4607, %v4606
          %v4621 = vpack.c.b16 %v4609, %v4608
          %v4622 = vpack.c.b16 %v4611, %v4610
          %v4623 = vpack.c.b16 %v4613, %v4612
          %v4635 = vsel %vm4084, %v4551, 0
          %v4638 = vsel %vm4084, %v4553, 0
          %v4641 = vsel %vm4084, %v4555, 0
          %v4644 = vsel %vm4084, %v4557, 0
          %v4647 = vsel %vm4084, %v4559, 0
          %v4650 = vsel %vm4084, %v4561, 0
          %v4653 = vsel %vm4084, %v4563, 0
          %v4656 = vsel %vm4084, %v4565, 0
          %4658 = vmatpush.bf16.msra.mxu0 %v4621
          %4659 = vmatpush.bf16.msra.mxu0 %v4620
          %4660 = vmatpush.bf16.msra.mxu0 %v4619
          %4661 = vmatpush.bf16.msra.mxu0 %v4618
          %4662 = vmatpush.bf16.msra.mxu0 %v4617
          %4663 = vmatpush.bf16.msra.mxu0 %v4616
          %4664 = vmatpush.bf16.msra.mxu0 %v4615
          %4665 = vmatpush.bf16.msra.mxu0 %v4614
          %4666 = vmatmul.bf16.gmra.mxu0 %v4550
          %v4667 = vpop.f32.mrf.mxu0
          %v4668 = vadd.f32 0.0, %v4667
          %v4669 = vpop.f32.mrf.mxu0
          %v4670 = vadd.f32 0.0, %v4669
          %4671 = vmatmul.bf16.gmra.mxu0 %v4552
          %v4672 = vpop.f32.mrf.mxu0
          %v4673 = vadd.f32 0.0, %v4672
          %v4674 = vpop.f32.mrf.mxu0
          %v4675 = vadd.f32 0.0, %v4674
          %4676 = vmatmul.bf16.gmra.mxu0 %v4554
          %v4677 = vpop.f32.mrf.mxu0
          %v4678 = vadd.f32 0.0, %v4677
          %v4679 = vpop.f32.mrf.mxu0
          %v4680 = vadd.f32 0.0, %v4679
          %4681 = vmatmul.bf16.gmra.mxu0 %v4556
          %v4682 = vpop.f32.mrf.mxu0
          %v4683 = vadd.f32 0.0, %v4682
          %v4684 = vpop.f32.mrf.mxu0
          %v4685 = vadd.f32 0.0, %v4684
          %4686 = vmatmul.bf16.gmra.mxu0 %v4558
          %v4687 = vpop.f32.mrf.mxu0
          %v4688 = vadd.f32 0.0, %v4687
          %v4689 = vpop.f32.mrf.mxu0
          %v4690 = vadd.f32 0.0, %v4689
          %4691 = vmatmul.bf16.gmra.mxu0 %v4560
          %v4692 = vpop.f32.mrf.mxu0
          %v4693 = vadd.f32 0.0, %v4692
          %v4694 = vpop.f32.mrf.mxu0
          %v4695 = vadd.f32 0.0, %v4694
          %4696 = vmatmul.bf16.gmra.mxu0 %v4562
          %v4697 = vpop.f32.mrf.mxu0
          %v4698 = vadd.f32 0.0, %v4697
          %v4699 = vpop.f32.mrf.mxu0
          %v4700 = vadd.f32 0.0, %v4699
          %4701 = vmatmul.bf16.gmra.mxu0 %v4564
          %v4702 = vpop.f32.mrf.mxu0
          %v4703 = vadd.f32 0.0, %v4702
          %v4704 = vpop.f32.mrf.mxu0
          %v4705 = vadd.f32 0.0, %v4704
          %4706 = vdwg.mxu0
          %4707 = vmatpush.bf16.msra.mxu0 0
          %4708 = vmatpush.bf16.msra.mxu0 0
          %4709 = vmatpush.bf16.msra.mxu0 0
          %4710 = vmatpush.bf16.msra.mxu0 0
          %4711 = vmatpush.bf16.msra.mxu0 0
          %4712 = vmatpush.bf16.msra.mxu0 0
          %4713 = vmatpush.bf16.msra.mxu0 %v4623
          %4714 = vmatpush.bf16.msra.mxu0 %v4622
          %4715 = vmatmul.bf16.gmra.mxu0 %v4635
          %v4716 = vpop.f32.mrf.mxu0
          %v4717 = vadd.f32 %v4668, %v4716
          %v4718 = vpop.f32.mrf.mxu0
          %v4719 = vadd.f32 %v4670, %v4718
          %4720 = vmatmul.bf16.gmra.mxu0 %v4638
          %v4721 = vpop.f32.mrf.mxu0
          %v4722 = vadd.f32 %v4673, %v4721
          %v4723 = vpop.f32.mrf.mxu0
          %v4724 = vadd.f32 %v4675, %v4723
          %4725 = vmatmul.bf16.gmra.mxu0 %v4641
          %v4726 = vpop.f32.mrf.mxu0
          %v4727 = vadd.f32 %v4678, %v4726
          %v4728 = vpop.f32.mrf.mxu0
          %v4729 = vadd.f32 %v4680, %v4728
          %4730 = vmatmul.bf16.gmra.mxu0 %v4644
          %v4731 = vpop.f32.mrf.mxu0
          %v4732 = vadd.f32 %v4683, %v4731
          %v4733 = vpop.f32.mrf.mxu0
          %v4734 = vadd.f32 %v4685, %v4733
          %4735 = vmatmul.bf16.gmra.mxu0 %v4647
          %v4736 = vpop.f32.mrf.mxu0
          %v4737 = vadd.f32 %v4688, %v4736
          %v4738 = vpop.f32.mrf.mxu0
          %v4739 = vadd.f32 %v4690, %v4738
          %4740 = vmatmul.bf16.gmra.mxu0 %v4650
          %v4741 = vpop.f32.mrf.mxu0
          %v4742 = vadd.f32 %v4693, %v4741
          %v4743 = vpop.f32.mrf.mxu0
          %v4744 = vadd.f32 %v4695, %v4743
          %4745 = vmatmul.bf16.gmra.mxu0 %v4653
          %v4746 = vpop.f32.mrf.mxu0
          %v4747 = vadd.f32 %v4698, %v4746
          %v4748 = vpop.f32.mrf.mxu0
          %v4749 = vadd.f32 %v4700, %v4748
          %4750 = vmatmul.bf16.gmra.mxu0 %v4656
          %v4751 = vpop.f32.mrf.mxu0
          %v4752 = vadd.f32 %v4703, %v4751
          %v4753 = vpop.f32.mrf.mxu0
          %v4754 = vadd.f32 %v4705, %v4753
          %4755 = vdwg.mxu0
          %v4756 = vadd.f32 %v4422, %v4717
          %v4757 = vadd.f32 %v4424, %v4719
          %v4758 = vadd.f32 %v4427, %v4722
          %v4759 = vadd.f32 %v4429, %v4724
          %v4760 = vadd.f32 %v4432, %v4727
          %v4761 = vadd.f32 %v4434, %v4729
          %v4762 = vadd.f32 %v4437, %v4732
          %v4763 = vadd.f32 %v4439, %v4734
          %v4764 = vadd.f32 %v4442, %v4737
          %v4765 = vadd.f32 %v4444, %v4739
          %v4766 = vadd.f32 %v4447, %v4742
          %v4767 = vadd.f32 %v4449, %v4744
          %v4768 = vadd.f32 %v4452, %v4747
          %v4769 = vadd.f32 %v4454, %v4749
          %v4770 = vadd.f32 %v4457, %v4752
          %v4771 = vadd.f32 %v4459, %v4754
          %s4772 = sadd.s32 %s3871, 3
          %s4773 = smul.u32 %s4772, 4
          %s4774 = smul.addr %s4773, 4
          %s4775 = scalar_lea.vmem [#allocation3], %s4774
          %v4776 = vld [vmem:[%s4775] sm:$0xff]
          %v4777 = vld [vmem:[%s4775 + $0x8] sm:$0xff]
          %v4778 = vld [vmem:[%s4775 + $0x10] sm:$0xff]
          %v4779 = vld [vmem:[%s4775 + $0x18] sm:$0xff]
          %v4780 = vld [vmem:[%s4775 + $0x20] sm:$0xff]
          %v4781 = vld [vmem:[%s4775 + $0x28] sm:$0xff]
          %v4782 = vld [vmem:[%s4775 + $0x30] sm:$0xff]
          %v4783 = vld [vmem:[%s4775 + $0x38] sm:$0xff]
          %v4784 = vld [vmem:[%s4775 + $0x40] sm:$0xff]
          %v4785 = vld [vmem:[%s4775 + $0x48] sm:$0xff]
          %v4786 = vld [vmem:[%s4775 + $0x50] sm:$0xff]
          %v4787 = vld [vmem:[%s4775 + $0x58] sm:$0xff]
          %v4788 = vld [vmem:[%s4775 + $0x60] sm:$0xff]
          %v4789 = vld [vmem:[%s4775 + $0x68] sm:$0xff]
          %v4790 = vld [vmem:[%s4775 + $0x70] sm:$0xff]
          %v4791 = vld [vmem:[%s4775 + $0x78] sm:$0xff]
          %s4792 = scalar_lea.vmem %s3, 240
          %v4793 = vld [vmem:[%s4792] sm:$0xf]
          %v4794 = vld [vmem:[%s4792 + $0x4] sm:$0xf]
          %v4795 = vld [vmem:[%s4792 + $0x8] sm:$0xf]
          %v4796 = vld [vmem:[%s4792 + $0xc] sm:$0xf]
          %v4797 = vld [vmem:[%s4792 + $0x10] sm:$0xf]
          %v4798 = vld [vmem:[%s4792 + $0x14] sm:$0xf]
          %v4799 = vld [vmem:[%s4792 + $0x18] sm:$0xf]
          %v4800 = vld [vmem:[%s4792 + $0x1c] sm:$0xf]
          %v4801 = vld [vmem:[%s4792 + $0x20] sm:$0xf]
          %v4802 = vld [vmem:[%s4792 + $0x24] sm:$0xf]
          %v4803 = vld [vmem:[%s4792 + $0x28] sm:$0xf]
          %v4804 = vld [vmem:[%s4792 + $0x2c] sm:$0xf]
          %v4805 = vld [vmem:[%s4792 + $0x30] sm:$0xf]
          %v4806 = vld [vmem:[%s4792 + $0x34] sm:$0xf]
          %v4807 = vld [vmem:[%s4792 + $0x38] sm:$0xf]
          %v4808 = vld [vmem:[%s4792 + $0x3c] sm:$0xf]
          %v4809 = vld [vmem:[%s4792 + $0x40] sm:$0xf]
          %v4810 = vld [vmem:[%s4792 + $0x44] sm:$0xf]
          %v4811 = vld [vmem:[%s4792 + $0x48] sm:$0xf]
          %v4812 = vld [vmem:[%s4792 + $0x4c] sm:$0xf]
          %v4829 = vunpack.c.l.b16 %v4776
          %v4830 = vunpack.c.h.b16 %v4776
          %v4831 = vunpack.c.l.b16 %v4777
          %v4832 = vunpack.c.h.b16 %v4777
          %v4833 = vunpack.c.l.b16 %v4778
          %v4834 = vunpack.c.h.b16 %v4778
          %v4835 = vunpack.c.l.b16 %v4779
          %v4836 = vunpack.c.h.b16 %v4779
          %v4837 = vunpack.c.l.b16 %v4780
          %v4838 = vunpack.c.h.b16 %v4780
          %v4839 = vunpack.c.l.b16 %v4781
          %v4840 = vunpack.c.h.b16 %v4781
          %v4841 = vunpack.c.l.b16 %v4782
          %v4842 = vunpack.c.h.b16 %v4782
          %v4843 = vunpack.c.l.b16 %v4783
          %v4844 = vunpack.c.h.b16 %v4783
          %v4845 = vunpack.c.l.b16 %v4784
          %v4846 = vunpack.c.h.b16 %v4784
          %v4847 = vunpack.c.l.b16 %v4785
          %v4848 = vunpack.c.h.b16 %v4785
          %v4849 = vunpack.c.l.b16 %v4786
          %v4850 = vunpack.c.h.b16 %v4786
          %v4851 = vunpack.c.l.b16 %v4787
          %v4852 = vunpack.c.h.b16 %v4787
          %v4853 = vunpack.c.l.b16 %v4788
          %v4854 = vunpack.c.h.b16 %v4788
          %v4855 = vunpack.c.l.b16 %v4789
          %v4856 = vunpack.c.h.b16 %v4789
          %v4857 = vunpack.c.l.b16 %v4790
          %v4858 = vunpack.c.h.b16 %v4790
          %v4859 = vunpack.c.l.b16 %v4791
          %v4860 = vunpack.c.h.b16 %v4791
          %v4861 = vpack.c.b16 %v4831, %v4829
          %v4862 = vpack.c.b16 %v4832, %v4830
          %v4863 = vpack.c.b16 %v4835, %v4833
          %v4864 = vpack.c.b16 %v4836, %v4834
          %v4865 = vpack.c.b16 %v4839, %v4837
          %v4866 = vpack.c.b16 %v4840, %v4838
          %v4867 = vpack.c.b16 %v4843, %v4841
          %v4868 = vpack.c.b16 %v4844, %v4842
          %v4869 = vpack.c.b16 %v4847, %v4845
          %v4870 = vpack.c.b16 %v4848, %v4846
          %v4871 = vpack.c.b16 %v4851, %v4849
          %v4872 = vpack.c.b16 %v4852, %v4850
          %v4873 = vpack.c.b16 %v4855, %v4853
          %v4874 = vpack.c.b16 %v4856, %v4854
          %v4875 = vpack.c.b16 %v4859, %v4857
          %v4876 = vpack.c.b16 %v4860, %v4858
          %v4905 = vunpack.c.l.b16 %v4793
          %v4906 = vunpack.c.l.b16 %v4794
          %v4907 = vunpack.c.l.b16 %v4795
          %v4908 = vunpack.c.l.b16 %v4796
          %v4909 = vunpack.c.l.b16 %v4797
          %v4910 = vunpack.c.l.b16 %v4798
          %v4911 = vunpack.c.l.b16 %v4799
          %v4912 = vunpack.c.l.b16 %v4800
          %v4913 = vunpack.c.l.b16 %v4801
          %v4914 = vunpack.c.l.b16 %v4802
          %v4915 = vunpack.c.l.b16 %v4803
          %v4916 = vunpack.c.l.b16 %v4804
          %v4917 = vunpack.c.l.b16 %v4805
          %v4918 = vunpack.c.l.b16 %v4806
          %v4919 = vunpack.c.l.b16 %v4807
          %v4920 = vunpack.c.l.b16 %v4808
          %v4921 = vunpack.c.l.b16 %v4809
          %v4922 = vunpack.c.l.b16 %v4810
          %v4923 = vunpack.c.l.b16 %v4811
          %v4924 = vunpack.c.l.b16 %v4812
          %v4925 = vpack.c.b16 %v4906, %v4905
          %v4926 = vpack.c.b16 %v4908, %v4907
          %v4927 = vpack.c.b16 %v4910, %v4909
          %v4928 = vpack.c.b16 %v4912, %v4911
          %v4929 = vpack.c.b16 %v4914, %v4913
          %v4930 = vpack.c.b16 %v4916, %v4915
          %v4931 = vpack.c.b16 %v4918, %v4917
          %v4932 = vpack.c.b16 %v4920, %v4919
          %v4933 = vpack.c.b16 %v4922, %v4921
          %v4934 = vpack.c.b16 %v4924, %v4923
          %v4946 = vsel %vm4084, %v4862, 0
          %v4949 = vsel %vm4084, %v4864, 0
          %v4952 = vsel %vm4084, %v4866, 0
          %v4955 = vsel %vm4084, %v4868, 0
          %v4958 = vsel %vm4084, %v4870, 0
          %v4961 = vsel %vm4084, %v4872, 0
          %v4964 = vsel %vm4084, %v4874, 0
          %v4967 = vsel %vm4084, %v4876, 0
          %4969 = vmatpush.bf16.msra.mxu0 %v4932
          %4970 = vmatpush.bf16.msra.mxu0 %v4931
          %4971 = vmatpush.bf16.msra.mxu0 %v4930
          %4972 = vmatpush.bf16.msra.mxu0 %v4929
          %4973 = vmatpush.bf16.msra.mxu0 %v4928
          %4974 = vmatpush.bf16.msra.mxu0 %v4927
          %4975 = vmatpush.bf16.msra.mxu0 %v4926
          %4976 = vmatpush.bf16.msra.mxu0 %v4925
          %4977 = vmatmul.bf16.gmra.mxu0 %v4861
          %v4978 = vpop.f32.mrf.mxu0
          %v4979 = vadd.f32 0.0, %v4978
          %v4980 = vpop.f32.mrf.mxu0
          %v4981 = vadd.f32 0.0, %v4980
          %4982 = vmatmul.bf16.gmra.mxu0 %v4863
          %v4983 = vpop.f32.mrf.mxu0
          %v4984 = vadd.f32 0.0, %v4983
          %v4985 = vpop.f32.mrf.mxu0
          %v4986 = vadd.f32 0.0, %v4985
          %4987 = vmatmul.bf16.gmra.mxu0 %v4865
          %v4988 = vpop.f32.mrf.mxu0
          %v4989 = vadd.f32 0.0, %v4988
          %v4990 = vpop.f32.mrf.mxu0
          %v4991 = vadd.f32 0.0, %v4990
          %4992 = vmatmul.bf16.gmra.mxu0 %v4867
          %v4993 = vpop.f32.mrf.mxu0
          %v4994 = vadd.f32 0.0, %v4993
          %v4995 = vpop.f32.mrf.mxu0
          %v4996 = vadd.f32 0.0, %v4995
          %4997 = vmatmul.bf16.gmra.mxu0 %v4869
          %v4998 = vpop.f32.mrf.mxu0
          %v4999 = vadd.f32 0.0, %v4998
          %v5000 = vpop.f32.mrf.mxu0
          %v5001 = vadd.f32 0.0, %v5000
          %5002 = vmatmul.bf16.gmra.mxu0 %v4871
          %v5003 = vpop.f32.mrf.mxu0
          %v5004 = vadd.f32 0.0, %v5003
          %v5005 = vpop.f32.mrf.mxu0
          %v5006 = vadd.f32 0.0, %v5005
          %5007 = vmatmul.bf16.gmra.mxu0 %v4873
          %v5008 = vpop.f32.mrf.mxu0
          %v5009 = vadd.f32 0.0, %v5008
          %v5010 = vpop.f32.mrf.mxu0
          %v5011 = vadd.f32 0.0, %v5010
          %5012 = vmatmul.bf16.gmra.mxu0 %v4875
          %v5013 = vpop.f32.mrf.mxu0
          %v5014 = vadd.f32 0.0, %v5013
          %v5015 = vpop.f32.mrf.mxu0
          %v5016 = vadd.f32 0.0, %v5015
          %5017 = vdwg.mxu0
          %5018 = vmatpush.bf16.msra.mxu0 0
          %5019 = vmatpush.bf16.msra.mxu0 0
          %5020 = vmatpush.bf16.msra.mxu0 0
          %5021 = vmatpush.bf16.msra.mxu0 0
          %5022 = vmatpush.bf16.msra.mxu0 0
          %5023 = vmatpush.bf16.msra.mxu0 0
          %5024 = vmatpush.bf16.msra.mxu0 %v4934
          %5025 = vmatpush.bf16.msra.mxu0 %v4933
          %5026 = vmatmul.bf16.gmra.mxu0 %v4946
          %v5027 = vpop.f32.mrf.mxu0
          %v5028 = vadd.f32 %v4979, %v5027
          %v5029 = vpop.f32.mrf.mxu0
          %v5030 = vadd.f32 %v4981, %v5029
          %5031 = vmatmul.bf16.gmra.mxu0 %v4949
          %v5032 = vpop.f32.mrf.mxu0
          %v5033 = vadd.f32 %v4984, %v5032
          %v5034 = vpop.f32.mrf.mxu0
          %v5035 = vadd.f32 %v4986, %v5034
          %5036 = vmatmul.bf16.gmra.mxu0 %v4952
          %v5037 = vpop.f32.mrf.mxu0
          %v5038 = vadd.f32 %v4989, %v5037
          %v5039 = vpop.f32.mrf.mxu0
          %v5040 = vadd.f32 %v4991, %v5039
          %5041 = vmatmul.bf16.gmra.mxu0 %v4955
          %v5042 = vpop.f32.mrf.mxu0
          %v5043 = vadd.f32 %v4994, %v5042
          %v5044 = vpop.f32.mrf.mxu0
          %v5045 = vadd.f32 %v4996, %v5044
          %5046 = vmatmul.bf16.gmra.mxu0 %v4958
          %v5047 = vpop.f32.mrf.mxu0
          %v5048 = vadd.f32 %v4999, %v5047
          %v5049 = vpop.f32.mrf.mxu0
          %v5050 = vadd.f32 %v5001, %v5049
          %5051 = vmatmul.bf16.gmra.mxu0 %v4961
          %v5052 = vpop.f32.mrf.mxu0
          %v5053 = vadd.f32 %v5004, %v5052
          %v5054 = vpop.f32.mrf.mxu0
          %v5055 = vadd.f32 %v5006, %v5054
          %5056 = vmatmul.bf16.gmra.mxu0 %v4964
          %v5057 = vpop.f32.mrf.mxu0
          %v5058 = vadd.f32 %v5009, %v5057
          %v5059 = vpop.f32.mrf.mxu0
          %v5060 = vadd.f32 %v5011, %v5059
          %5061 = vmatmul.bf16.gmra.mxu0 %v4967
          %v5062 = vpop.f32.mrf.mxu0
          %v5063 = vadd.f32 %v5014, %v5062
          %v5064 = vpop.f32.mrf.mxu0
          %v5065 = vadd.f32 %v5016, %v5064
          %5066 = vdwg.mxu0
          %v5067 = vadd.f32 %v4756, %v5028
          %v5068 = vadd.f32 %v4757, %v5030
          %v5069 = vadd.f32 %v4758, %v5033
          %v5070 = vadd.f32 %v4759, %v5035
          %v5071 = vadd.f32 %v4760, %v5038
          %v5072 = vadd.f32 %v4761, %v5040
          %v5073 = vadd.f32 %v4762, %v5043
          %v5074 = vadd.f32 %v4763, %v5045
          %v5075 = vadd.f32 %v4764, %v5048
          %v5076 = vadd.f32 %v4765, %v5050
          %v5077 = vadd.f32 %v4766, %v5053
          %v5078 = vadd.f32 %v4767, %v5055
          %v5079 = vadd.f32 %v4768, %v5058
          %v5080 = vadd.f32 %v4769, %v5060
          %v5081 = vadd.f32 %v4770, %v5063
          %v5082 = vadd.f32 %v4771, %v5065
          %s5083 = sadd.s32 %s3871, 4
          %s5084 = smul.u32 %s5083, 4
          %s5085 = smul.addr %s5084, 4
          %s5086 = scalar_lea.vmem [#allocation3], %s5085
          %v5087 = vld [vmem:[%s5086] sm:$0xff]
          %v5088 = vld [vmem:[%s5086 + $0x8] sm:$0xff]
          %v5089 = vld [vmem:[%s5086 + $0x10] sm:$0xff]
          %v5090 = vld [vmem:[%s5086 + $0x18] sm:$0xff]
          %v5091 = vld [vmem:[%s5086 + $0x20] sm:$0xff]
          %v5092 = vld [vmem:[%s5086 + $0x28] sm:$0xff]
          %v5093 = vld [vmem:[%s5086 + $0x30] sm:$0xff]
          %v5094 = vld [vmem:[%s5086 + $0x38] sm:$0xff]
          %v5095 = vld [vmem:[%s5086 + $0x40] sm:$0xff]
          %v5096 = vld [vmem:[%s5086 + $0x48] sm:$0xff]
          %v5097 = vld [vmem:[%s5086 + $0x50] sm:$0xff]
          %v5098 = vld [vmem:[%s5086 + $0x58] sm:$0xff]
          %v5099 = vld [vmem:[%s5086 + $0x60] sm:$0xff]
          %v5100 = vld [vmem:[%s5086 + $0x68] sm:$0xff]
          %v5101 = vld [vmem:[%s5086 + $0x70] sm:$0xff]
          %v5102 = vld [vmem:[%s5086 + $0x78] sm:$0xff]
          %s5103 = scalar_lea.vmem %s3, 320
          %v5104 = vld [vmem:[%s5103] sm:$0xf]
          %v5105 = vld [vmem:[%s5103 + $0x4] sm:$0xf]
          %v5106 = vld [vmem:[%s5103 + $0x8] sm:$0xf]
          %v5107 = vld [vmem:[%s5103 + $0xc] sm:$0xf]
          %v5108 = vld [vmem:[%s5103 + $0x10] sm:$0xf]
          %v5109 = vld [vmem:[%s5103 + $0x14] sm:$0xf]
          %v5110 = vld [vmem:[%s5103 + $0x18] sm:$0xf]
          %v5111 = vld [vmem:[%s5103 + $0x1c] sm:$0xf]
          %v5112 = vld [vmem:[%s5103 + $0x20] sm:$0xf]
          %v5113 = vld [vmem:[%s5103 + $0x24] sm:$0xf]
          %v5114 = vld [vmem:[%s5103 + $0x28] sm:$0xf]
          %v5115 = vld [vmem:[%s5103 + $0x2c] sm:$0xf]
          %v5116 = vld [vmem:[%s5103 + $0x30] sm:$0xf]
          %v5117 = vld [vmem:[%s5103 + $0x34] sm:$0xf]
          %v5118 = vld [vmem:[%s5103 + $0x38] sm:$0xf]
          %v5119 = vld [vmem:[%s5103 + $0x3c] sm:$0xf]
          %v5120 = vld [vmem:[%s5103 + $0x40] sm:$0xf]
          %v5121 = vld [vmem:[%s5103 + $0x44] sm:$0xf]
          %v5122 = vld [vmem:[%s5103 + $0x48] sm:$0xf]
          %v5123 = vld [vmem:[%s5103 + $0x4c] sm:$0xf]
          %v5140 = vunpack.c.l.b16 %v5087
          %v5141 = vunpack.c.h.b16 %v5087
          %v5142 = vunpack.c.l.b16 %v5088
          %v5143 = vunpack.c.h.b16 %v5088
          %v5144 = vunpack.c.l.b16 %v5089
          %v5145 = vunpack.c.h.b16 %v5089
          %v5146 = vunpack.c.l.b16 %v5090
          %v5147 = vunpack.c.h.b16 %v5090
          %v5148 = vunpack.c.l.b16 %v5091
          %v5149 = vunpack.c.h.b16 %v5091
          %v5150 = vunpack.c.l.b16 %v5092
          %v5151 = vunpack.c.h.b16 %v5092
          %v5152 = vunpack.c.l.b16 %v5093
          %v5153 = vunpack.c.h.b16 %v5093
          %v5154 = vunpack.c.l.b16 %v5094
          %v5155 = vunpack.c.h.b16 %v5094
          %v5156 = vunpack.c.l.b16 %v5095
          %v5157 = vunpack.c.h.b16 %v5095
          %v5158 = vunpack.c.l.b16 %v5096
          %v5159 = vunpack.c.h.b16 %v5096
          %v5160 = vunpack.c.l.b16 %v5097
          %v5161 = vunpack.c.h.b16 %v5097
          %v5162 = vunpack.c.l.b16 %v5098
          %v5163 = vunpack.c.h.b16 %v5098
          %v5164 = vunpack.c.l.b16 %v5099
          %v5165 = vunpack.c.h.b16 %v5099
          %v5166 = vunpack.c.l.b16 %v5100
          %v5167 = vunpack.c.h.b16 %v5100
          %v5168 = vunpack.c.l.b16 %v5101
          %v5169 = vunpack.c.h.b16 %v5101
          %v5170 = vunpack.c.l.b16 %v5102
          %v5171 = vunpack.c.h.b16 %v5102
          %v5172 = vpack.c.b16 %v5142, %v5140
          %v5173 = vpack.c.b16 %v5143, %v5141
          %v5174 = vpack.c.b16 %v5146, %v5144
          %v5175 = vpack.c.b16 %v5147, %v5145
          %v5176 = vpack.c.b16 %v5150, %v5148
          %v5177 = vpack.c.b16 %v5151, %v5149
          %v5178 = vpack.c.b16 %v5154, %v5152
          %v5179 = vpack.c.b16 %v5155, %v5153
          %v5180 = vpack.c.b16 %v5158, %v5156
          %v5181 = vpack.c.b16 %v5159, %v5157
          %v5182 = vpack.c.b16 %v5162, %v5160
          %v5183 = vpack.c.b16 %v5163, %v5161
          %v5184 = vpack.c.b16 %v5166, %v5164
          %v5185 = vpack.c.b16 %v5167, %v5165
          %v5186 = vpack.c.b16 %v5170, %v5168
          %v5187 = vpack.c.b16 %v5171, %v5169
          %v5216 = vunpack.c.l.b16 %v5104
          %v5217 = vunpack.c.l.b16 %v5105
          %v5218 = vunpack.c.l.b16 %v5106
          %v5219 = vunpack.c.l.b16 %v5107
          %v5220 = vunpack.c.l.b16 %v5108
          %v5221 = vunpack.c.l.b16 %v5109
          %v5222 = vunpack.c.l.b16 %v5110
          %v5223 = vunpack.c.l.b16 %v5111
          %v5224 = vunpack.c.l.b16 %v5112
          %v5225 = vunpack.c.l.b16 %v5113
          %v5226 = vunpack.c.l.b16 %v5114
          %v5227 = vunpack.c.l.b16 %v5115
          %v5228 = vunpack.c.l.b16 %v5116
          %v5229 = vunpack.c.l.b16 %v5117
          %v5230 = vunpack.c.l.b16 %v5118
          %v5231 = vunpack.c.l.b16 %v5119
          %v5232 = vunpack.c.l.b16 %v5120
          %v5233 = vunpack.c.l.b16 %v5121
          %v5234 = vunpack.c.l.b16 %v5122
          %v5235 = vunpack.c.l.b16 %v5123
          %v5236 = vpack.c.b16 %v5217, %v5216
          %v5237 = vpack.c.b16 %v5219, %v5218
          %v5238 = vpack.c.b16 %v5221, %v5220
          %v5239 = vpack.c.b16 %v5223, %v5222
          %v5240 = vpack.c.b16 %v5225, %v5224
          %v5241 = vpack.c.b16 %v5227, %v5226
          %v5242 = vpack.c.b16 %v5229, %v5228
          %v5243 = vpack.c.b16 %v5231, %v5230
          %v5244 = vpack.c.b16 %v5233, %v5232
          %v5245 = vpack.c.b16 %v5235, %v5234
          %v5257 = vsel %vm4084, %v5173, 0
          %v5260 = vsel %vm4084, %v5175, 0
          %v5263 = vsel %vm4084, %v5177, 0
          %v5266 = vsel %vm4084, %v5179, 0
          %v5269 = vsel %vm4084, %v5181, 0
          %v5272 = vsel %vm4084, %v5183, 0
          %v5275 = vsel %vm4084, %v5185, 0
          %v5278 = vsel %vm4084, %v5187, 0
          %5280 = vmatpush.bf16.msra.mxu0 %v5243
          %5281 = vmatpush.bf16.msra.mxu0 %v5242
          %5282 = vmatpush.bf16.msra.mxu0 %v5241
          %5283 = vmatpush.bf16.msra.mxu0 %v5240
          %5284 = vmatpush.bf16.msra.mxu0 %v5239
          %5285 = vmatpush.bf16.msra.mxu0 %v5238
          %5286 = vmatpush.bf16.msra.mxu0 %v5237
          %5287 = vmatpush.bf16.msra.mxu0 %v5236
          %5288 = vmatmul.bf16.gmra.mxu0 %v5172
          %v5289 = vpop.f32.mrf.mxu0
          %v5290 = vadd.f32 0.0, %v5289
          %v5291 = vpop.f32.mrf.mxu0
          %v5292 = vadd.f32 0.0, %v5291
          %5293 = vmatmul.bf16.gmra.mxu0 %v5174
          %v5294 = vpop.f32.mrf.mxu0
          %v5295 = vadd.f32 0.0, %v5294
          %v5296 = vpop.f32.mrf.mxu0
          %v5297 = vadd.f32 0.0, %v5296
          %5298 = vmatmul.bf16.gmra.mxu0 %v5176
          %v5299 = vpop.f32.mrf.mxu0
          %v5300 = vadd.f32 0.0, %v5299
          %v5301 = vpop.f32.mrf.mxu0
          %v5302 = vadd.f32 0.0, %v5301
          %5303 = vmatmul.bf16.gmra.mxu0 %v5178
          %v5304 = vpop.f32.mrf.mxu0
          %v5305 = vadd.f32 0.0, %v5304
          %v5306 = vpop.f32.mrf.mxu0
          %v5307 = vadd.f32 0.0, %v5306
          %5308 = vmatmul.bf16.gmra.mxu0 %v5180
          %v5309 = vpop.f32.mrf.mxu0
          %v5310 = vadd.f32 0.0, %v5309
          %v5311 = vpop.f32.mrf.mxu0
          %v5312 = vadd.f32 0.0, %v5311
          %5313 = vmatmul.bf16.gmra.mxu0 %v5182
          %v5314 = vpop.f32.mrf.mxu0
          %v5315 = vadd.f32 0.0, %v5314
          %v5316 = vpop.f32.mrf.mxu0
          %v5317 = vadd.f32 0.0, %v5316
          %5318 = vmatmul.bf16.gmra.mxu0 %v5184
          %v5319 = vpop.f32.mrf.mxu0
          %v5320 = vadd.f32 0.0, %v5319
          %v5321 = vpop.f32.mrf.mxu0
          %v5322 = vadd.f32 0.0, %v5321
          %5323 = vmatmul.bf16.gmra.mxu0 %v5186
          %v5324 = vpop.f32.mrf.mxu0
          %v5325 = vadd.f32 0.0, %v5324
          %v5326 = vpop.f32.mrf.mxu0
          %v5327 = vadd.f32 0.0, %v5326
          %5328 = vdwg.mxu0
          %5329 = vmatpush.bf16.msra.mxu0 0
          %5330 = vmatpush.bf16.msra.mxu0 0
          %5331 = vmatpush.bf16.msra.mxu0 0
          %5332 = vmatpush.bf16.msra.mxu0 0
          %5333 = vmatpush.bf16.msra.mxu0 0
          %5334 = vmatpush.bf16.msra.mxu0 0
          %5335 = vmatpush.bf16.msra.mxu0 %v5245
          %5336 = vmatpush.bf16.msra.mxu0 %v5244
          %5337 = vmatmul.bf16.gmra.mxu0 %v5257
          %v5338 = vpop.f32.mrf.mxu0
          %v5339 = vadd.f32 %v5290, %v5338
          %v5340 = vpop.f32.mrf.mxu0
          %v5341 = vadd.f32 %v5292, %v5340
          %5342 = vmatmul.bf16.gmra.mxu0 %v5260
          %v5343 = vpop.f32.mrf.mxu0
          %v5344 = vadd.f32 %v5295, %v5343
          %v5345 = vpop.f32.mrf.mxu0
          %v5346 = vadd.f32 %v5297, %v5345
          %5347 = vmatmul.bf16.gmra.mxu0 %v5263
          %v5348 = vpop.f32.mrf.mxu0
          %v5349 = vadd.f32 %v5300, %v5348
          %v5350 = vpop.f32.mrf.mxu0
          %v5351 = vadd.f32 %v5302, %v5350
          %5352 = vmatmul.bf16.gmra.mxu0 %v5266
          %v5353 = vpop.f32.mrf.mxu0
          %v5354 = vadd.f32 %v5305, %v5353
          %v5355 = vpop.f32.mrf.mxu0
          %v5356 = vadd.f32 %v5307, %v5355
          %5357 = vmatmul.bf16.gmra.mxu0 %v5269
          %v5358 = vpop.f32.mrf.mxu0
          %v5359 = vadd.f32 %v5310, %v5358
          %v5360 = vpop.f32.mrf.mxu0
          %v5361 = vadd.f32 %v5312, %v5360
          %5362 = vmatmul.bf16.gmra.mxu0 %v5272
          %v5363 = vpop.f32.mrf.mxu0
          %v5364 = vadd.f32 %v5315, %v5363
          %v5365 = vpop.f32.mrf.mxu0
          %v5366 = vadd.f32 %v5317, %v5365
          %5367 = vmatmul.bf16.gmra.mxu0 %v5275
          %v5368 = vpop.f32.mrf.mxu0
          %v5369 = vadd.f32 %v5320, %v5368
          %v5370 = vpop.f32.mrf.mxu0
          %v5371 = vadd.f32 %v5322, %v5370
          %5372 = vmatmul.bf16.gmra.mxu0 %v5278
          %v5373 = vpop.f32.mrf.mxu0
          %v5374 = vadd.f32 %v5325, %v5373
          %v5375 = vpop.f32.mrf.mxu0
          %v5376 = vadd.f32 %v5327, %v5375
          %5377 = vdwg.mxu0
          %v5378 = vadd.f32 %v5067, %v5339
          %v5379 = vadd.f32 %v5068, %v5341
          %v5380 = vadd.f32 %v5069, %v5344
          %v5381 = vadd.f32 %v5070, %v5346
          %v5382 = vadd.f32 %v5071, %v5349
          %v5383 = vadd.f32 %v5072, %v5351
          %v5384 = vadd.f32 %v5073, %v5354
          %v5385 = vadd.f32 %v5074, %v5356
          %v5386 = vadd.f32 %v5075, %v5359
          %v5387 = vadd.f32 %v5076, %v5361
          %v5388 = vadd.f32 %v5077, %v5364
          %v5389 = vadd.f32 %v5078, %v5366
          %v5390 = vadd.f32 %v5079, %v5369
          %v5391 = vadd.f32 %v5080, %v5371
          %v5392 = vadd.f32 %v5081, %v5374
          %v5393 = vadd.f32 %v5082, %v5376
          %v5395 = vperm.slane %v3864, 0
          %v5397 = vadd.f32 %v5378, %v5395
          %v5398 = vadd.f32 %v5379, %v5395
          %v5399 = vadd.f32 %v5380, %v5395
          %v5400 = vadd.f32 %v5381, %v5395
          %v5401 = vadd.f32 %v5382, %v5395
          %v5402 = vadd.f32 %v5383, %v5395
          %v5403 = vadd.f32 %v5384, %v5395
          %v5404 = vadd.f32 %v5385, %v5395
          %v5405 = vadd.f32 %v5386, %v5395
          %v5406 = vadd.f32 %v5387, %v5395
          %v5407 = vadd.f32 %v5388, %v5395
          %v5408 = vadd.f32 %v5389, %v5395
          %v5409 = vadd.f32 %v5390, %v5395
          %v5410 = vadd.f32 %v5391, %v5395
          %v5411 = vadd.f32 %v5392, %v5395
          %v5412 = vadd.f32 %v5393, %v5395
          %v5413 = vsel %vm4084, %v5397, -inf
          %v5414 = vsel %vm4084, %v5399, -inf
          %v5415 = vmax.f32 %v5413, %v5414
          %v5416 = vsel %vm4084, %v5398, -inf
          %v5417 = vsel %vm4084, %v5400, -inf
          %v5418 = vmax.f32 %v5416, %v5417
          %v5419 = vsel %vm4084, %v5401, -inf
          %v5420 = vsel %vm4084, %v5403, -inf
          %v5421 = vmax.f32 %v5419, %v5420
          %v5422 = vsel %vm4084, %v5402, -inf
          %v5423 = vsel %vm4084, %v5404, -inf
          %v5424 = vmax.f32 %v5422, %v5423
          %v5425 = vsel %vm4084, %v5405, -inf
          %v5426 = vsel %vm4084, %v5407, -inf
          %v5427 = vmax.f32 %v5425, %v5426
          %v5428 = vsel %vm4084, %v5406, -inf
          %v5429 = vsel %vm4084, %v5408, -inf
          %v5430 = vmax.f32 %v5428, %v5429
          %v5431 = vsel %vm4084, %v5409, -inf
          %v5432 = vsel %vm4084, %v5411, -inf
          %v5433 = vmax.f32 %v5431, %v5432
          %v5434 = vsel %vm4084, %v5410, -inf
          %v5435 = vsel %vm4084, %v5412, -inf
          %v5436 = vmax.f32 %v5434, %v5435
          %v5437 = vpack.c.bf16 %v5418, %v5415
          %v5438 = vpack.c.bf16 %v5424, %v5421
          %v5439 = vpack.c.bf16 %v5430, %v5427
          %v5440 = vpack.c.bf16 %v5436, %v5433
          %v5449 = vunpack.c.l.b16 %v515
          %v5450 = vunpack.c.l.b16 %v516
          %v5451 = vunpack.c.l.b16 %v517
          %v5452 = vunpack.c.l.b16 %v518
          %v5453 = vunpack.c.l.b16 %v519
          %v5454 = vunpack.c.l.b16 %v520
          %v5455 = vunpack.c.l.b16 %v521
          %v5456 = vunpack.c.l.b16 %v522
          %v5457 = vpack.c.b16 %v5450, %v5449
          %v5458 = vpack.c.b16 %v5452, %v5451
          %v5459 = vpack.c.b16 %v5454, %v5453
          %v5460 = vpack.c.b16 %v5456, %v5455
          %vm5461 = vcmask 523264
          %v5463 = vsel %vm5461, %v5457, 0
          %v5466 = vsel %vm5461, %v5458, 0
          %v5469 = vsel %vm5461, %v5459, 0
          %v5472 = vsel %vm5461, %v5460, 0
          %5474 = vmatpush.bf16.msra.mxu0 0
          %5475 = vmatpush.bf16.msra.mxu0 0
          %5476 = vmatpush.bf16.msra.mxu0 0
          %5477 = vmatpush.bf16.msra.mxu0 0
          %5478 = vmatpush.bf16.msra.mxu0 %v5440
          %5479 = vmatpush.bf16.msra.mxu0 %v5439
          %5480 = vmatpush.bf16.msra.mxu0 %v5438
          %5481 = vmatpush.bf16.msra.mxu0 %v5437
          %5482 = vmatmul.bf16.gmra.mxu0 %v5463
          %v5483 = vpop.f32.mrf.mxu0
          %v5484 = vadd.f32 0.0, %v5483
          %v5485 = vpop.f32.mrf.mxu0
          %v5486 = vadd.f32 0.0, %v5485
          %5487 = vmatmul.bf16.gmra.mxu0 %v5466
          %v5488 = vpop.f32.mrf.mxu0
          %v5489 = vadd.f32 0.0, %v5488
          %v5490 = vpop.f32.mrf.mxu0
          %v5491 = vadd.f32 0.0, %v5490
          %5492 = vmatmul.bf16.gmra.mxu0 %v5469
          %v5493 = vpop.f32.mrf.mxu0
          %v5494 = vadd.f32 0.0, %v5493
          %v5495 = vpop.f32.mrf.mxu0
          %v5496 = vadd.f32 0.0, %v5495
          %5497 = vmatmul.bf16.gmra.mxu0 %v5472
          %v5498 = vpop.f32.mrf.mxu0
          %v5499 = vadd.f32 0.0, %v5498
          %v5500 = vpop.f32.mrf.mxu0
          %v5501 = vadd.f32 0.0, %v5500
          %5502 = vdwg.mxu0
          %v5503 = vsel %vm4084, %v5484, -inf
          %v5504 = vsel %vm4084, %v5494, -inf
          %v5505 = vmax.f32 %v5503, %v5504
          %v5506 = vsel %vm4084, %v5486, -inf
          %v5507 = vsel %vm4084, %v5496, -inf
          %v5508 = vmax.f32 %v5506, %v5507
          %v5509 = vsel %vm4084, %v5489, -inf
          %v5510 = vsel %vm4084, %v5499, -inf
          %v5511 = vmax.f32 %v5509, %v5510
          %v5512 = vsel %vm4084, %v5491, -inf
          %v5513 = vsel %vm4084, %v5501, -inf
          %v5514 = vmax.f32 %v5512, %v5513
          %v5515 = vpack.c.bf16 %v5505, %v5505
          %v5516 = vpack.c.bf16 %v5508, %v5508
          %v5517 = vpack.c.bf16 %v5511, %v5511
          %v5518 = vpack.c.bf16 %v5514, %v5514
          %s5519 = smul.u32 %s3866, 4
          %s5520 = sadd.s32 %s5519, 2
          %v5525 = vrot.slane %v5515, 7
          %v5526 = vrot.slane %v5525, 4
          %v5527 = vrot.slane %v5516, 7
          %v5528 = vrot.slane %v5527, 4
          %v5529 = vrot.slane %v5517, 7
          %v5530 = vrot.slane %v5529, 4
          %v5531 = vrot.slane %v5518, 7
          %v5532 = vrot.slane %v5531, 4
          %s5541 = smul.u32 %s5520, 2
          %s5542 = smul.addr %s5541, 4
          %s5543 = scalar_lea.vmem [#allocation4], %s5542
          %vm5544 = vcmask 257025
          %5545 = vst.msk [vmem:[%s5543] sm:$0xe] %vm5544, %v5525
          %5546 = vst.msk [vmem:[%s5543 + $0x4] sm:$0x1] %vm455, %v5526
          %5547 = vst.msk [vmem:[%s5543 + $0x8] sm:$0xe] %vm5544, %v5527
          %5548 = vst.msk [vmem:[%s5543 + $0xc] sm:$0x1] %vm455, %v5528
          %5549 = vst.msk [vmem:[%s5543 + $0x10] sm:$0xe] %vm5544, %v5529
          %5550 = vst.msk [vmem:[%s5543 + $0x14] sm:$0x1] %vm455, %v5530
          %5551 = vst.msk [vmem:[%s5543 + $0x18] sm:$0xe] %vm5544, %v5531
          %5552 = vst.msk [vmem:[%s5543 + $0x1c] sm:$0x1] %vm455, %v5532
        $region84: #{my_network_forward.1} parent=71 // loop_footer
          %s3870 = sadd.s32 1, %s3866
        $region85: #{my_network_forward.1} parent=71 // loop_footer_branch
          %3865 = sbr.rel target = $region81
        $region86: #{my_network_forward.1} parent=71 // loop_exit
          _
        %v5553 = vld [vmem:[#allocation4] sm:$0xf]
        %v5554 = vld [vmem:[#allocation4 + $0x8] sm:$0xf]
        %v5555 = vld [vmem:[#allocation4 + $0x10] sm:$0xf]
        %v5556 = vld [vmem:[#allocation4 + $0x18] sm:$0xf]
        %v5557 = vld [vmem:[#allocation4 + $0x20] sm:$0xf]
        %v5558 = vld [vmem:[#allocation4 + $0x28] sm:$0xf]
        %v5559 = vld [vmem:[#allocation4 + $0x30] sm:$0xf]
        %v5560 = vld [vmem:[#allocation4 + $0x38] sm:$0xf]
        %v5561 = vld [vmem:[#allocation4 + $0x40] sm:$0xf]
        %v5562 = vld [vmem:[#allocation4 + $0x48] sm:$0xf]
        %v5563 = vld [vmem:[#allocation4 + $0x50] sm:$0xf]
        %v5564 = vld [vmem:[#allocation4 + $0x58] sm:$0xf]
        %5565 = vst.msk [vmem:[#allocation5] sm:$0xf] %vm439, %v5553
        %5566 = vst.msk [vmem:[#allocation5 + $0x8] sm:$0xf] %vm439, %v5554
        %5567 = vst.msk [vmem:[#allocation5 + $0x10] sm:$0xf] %vm439, %v5555
        %5568 = vst.msk [vmem:[#allocation5 + $0x18] sm:$0xf] %vm439, %v5556
        %5569 = vst.msk [vmem:[#allocation5 + $0x20] sm:$0xf] %vm439, %v5557
        %5570 = vst.msk [vmem:[#allocation5 + $0x28] sm:$0xf] %vm439, %v5558
        %5571 = vst.msk [vmem:[#allocation5 + $0x30] sm:$0xf] %vm439, %v5559
        %5572 = vst.msk [vmem:[#allocation5 + $0x38] sm:$0xf] %vm439, %v5560
        %5573 = vst.msk [vmem:[#allocation5 + $0x40] sm:$0xf] %vm439, %v5561
        %5574 = vst.msk [vmem:[#allocation5 + $0x48] sm:$0xf] %vm439, %v5562
        %5575 = vst.msk [vmem:[#allocation5 + $0x50] sm:$0xf] %vm439, %v5563
        %5576 = vst.msk [vmem:[#allocation5 + $0x58] sm:$0xf] %vm439, %v5564
        %v5577 = vld [vmem:[#allocation4] sm:$0xf]
        %v5578 = vld [vmem:[#allocation4 + $0x4] sm:$0x1]
        %v5579 = vld [vmem:[#allocation4 + $0x8] sm:$0xf]
        %v5580 = vld [vmem:[#allocation4 + $0xc] sm:$0x1]
        %v5581 = vld [vmem:[#allocation4 + $0x10] sm:$0xf]
        %v5582 = vld [vmem:[#allocation4 + $0x14] sm:$0x1]
        %v5583 = vld [vmem:[#allocation4 + $0x18] sm:$0xf]
        %v5584 = vld [vmem:[#allocation4 + $0x1c] sm:$0x1]
        %v5585 = vld [vmem:[#allocation4 + $0x20] sm:$0xf]
        %v5586 = vld [vmem:[#allocation4 + $0x24] sm:$0x1]
        %v5587 = vld [vmem:[#allocation4 + $0x28] sm:$0xf]
        %v5588 = vld [vmem:[#allocation4 + $0x2c] sm:$0x1]
        %v5589 = vld [vmem:[#allocation4 + $0x30] sm:$0xf]
        %v5590 = vld [vmem:[#allocation4 + $0x34] sm:$0x1]
        %v5591 = vld [vmem:[#allocation4 + $0x38] sm:$0xf]
        %v5592 = vld [vmem:[#allocation4 + $0x3c] sm:$0x1]
        %v5593 = vld [vmem:[#allocation4 + $0x40] sm:$0xf]
        %v5594 = vld [vmem:[#allocation4 + $0x44] sm:$0x1]
        %v5595 = vld [vmem:[#allocation4 + $0x48] sm:$0xf]
        %v5596 = vld [vmem:[#allocation4 + $0x4c] sm:$0x1]
        %v5597 = vld [vmem:[#allocation4 + $0x50] sm:$0xf]
        %v5598 = vld [vmem:[#allocation4 + $0x54] sm:$0x1]
        %v5599 = vld [vmem:[#allocation4 + $0x58] sm:$0xf]
        %v5600 = vld [vmem:[#allocation4 + $0x5c] sm:$0x1]
        %v5602 = vshrl.u32 %v5577, 16
        %v5604 = vrot.slane %v5602, 4
        %v5605 = vshll.u32 %v5577, 16
        %v5607 = vrot.slane %v5605, 5
        %v5608 = vor.u32 %v5604, %v5607
        %v5609 = vrot.slane %v5608, 4
        %v5611 = vshll.u32 %v5578, 16
        %v5613 = vrot.slane %v5611, 5
        %v5614 = vsel %vm1671, %v5609, %v5613
        %v5616 = vshrl.u32 %v5579, 16
        %v5618 = vrot.slane %v5616, 4
        %v5619 = vshll.u32 %v5579, 16
        %v5621 = vrot.slane %v5619, 5
        %v5622 = vor.u32 %v5618, %v5621
        %v5623 = vrot.slane %v5622, 4
        %v5625 = vshll.u32 %v5580, 16
        %v5627 = vrot.slane %v5625, 5
        %v5628 = vsel %vm1671, %v5623, %v5627
        %v5630 = vshrl.u32 %v5581, 16
        %v5632 = vrot.slane %v5630, 4
        %v5633 = vshll.u32 %v5581, 16
        %v5635 = vrot.slane %v5633, 5
        %v5636 = vor.u32 %v5632, %v5635
        %v5637 = vrot.slane %v5636, 4
        %v5639 = vshll.u32 %v5582, 16
        %v5641 = vrot.slane %v5639, 5
        %v5642 = vsel %vm1671, %v5637, %v5641
        %v5644 = vshrl.u32 %v5583, 16
        %v5646 = vrot.slane %v5644, 4
        %v5647 = vshll.u32 %v5583, 16
        %v5649 = vrot.slane %v5647, 5
        %v5650 = vor.u32 %v5646, %v5649
        %v5651 = vrot.slane %v5650, 4
        %v5653 = vshll.u32 %v5584, 16
        %v5655 = vrot.slane %v5653, 5
        %v5656 = vsel %vm1671, %v5651, %v5655
        %v5658 = vshrl.u32 %v5585, 16
        %v5660 = vrot.slane %v5658, 4
        %v5661 = vshll.u32 %v5585, 16
        %v5663 = vrot.slane %v5661, 5
        %v5664 = vor.u32 %v5660, %v5663
        %v5665 = vrot.slane %v5664, 4
        %v5667 = vshll.u32 %v5586, 16
        %v5669 = vrot.slane %v5667, 5
        %v5670 = vsel %vm1671, %v5665, %v5669
        %v5672 = vshrl.u32 %v5587, 16
        %v5674 = vrot.slane %v5672, 4
        %v5675 = vshll.u32 %v5587, 16
        %v5677 = vrot.slane %v5675, 5
        %v5678 = vor.u32 %v5674, %v5677
        %v5679 = vrot.slane %v5678, 4
        %v5681 = vshll.u32 %v5588, 16
        %v5683 = vrot.slane %v5681, 5
        %v5684 = vsel %vm1671, %v5679, %v5683
        %v5686 = vshrl.u32 %v5589, 16
        %v5688 = vrot.slane %v5686, 4
        %v5689 = vshll.u32 %v5589, 16
        %v5691 = vrot.slane %v5689, 5
        %v5692 = vor.u32 %v5688, %v5691
        %v5693 = vrot.slane %v5692, 4
        %v5695 = vshll.u32 %v5590, 16
        %v5697 = vrot.slane %v5695, 5
        %v5698 = vsel %vm1671, %v5693, %v5697
        %v5700 = vshrl.u32 %v5591, 16
        %v5702 = vrot.slane %v5700, 4
        %v5703 = vshll.u32 %v5591, 16
        %v5705 = vrot.slane %v5703, 5
        %v5706 = vor.u32 %v5702, %v5705
        %v5707 = vrot.slane %v5706, 4
        %v5709 = vshll.u32 %v5592, 16
        %v5711 = vrot.slane %v5709, 5
        %v5712 = vsel %vm1671, %v5707, %v5711
        %v5714 = vshrl.u32 %v5593, 16
        %v5716 = vrot.slane %v5714, 4
        %v5717 = vshll.u32 %v5593, 16
        %v5719 = vrot.slane %v5717, 5
        %v5720 = vor.u32 %v5716, %v5719
        %v5721 = vrot.slane %v5720, 4
        %v5723 = vshll.u32 %v5594, 16
        %v5725 = vrot.slane %v5723, 5
        %v5726 = vsel %vm1671, %v5721, %v5725
        %v5728 = vshrl.u32 %v5595, 16
        %v5730 = vrot.slane %v5728, 4
        %v5731 = vshll.u32 %v5595, 16
        %v5733 = vrot.slane %v5731, 5
        %v5734 = vor.u32 %v5730, %v5733
        %v5735 = vrot.slane %v5734, 4
        %v5737 = vshll.u32 %v5596, 16
        %v5739 = vrot.slane %v5737, 5
        %v5740 = vsel %vm1671, %v5735, %v5739
        %v5742 = vshrl.u32 %v5597, 16
        %v5744 = vrot.slane %v5742, 4
        %v5745 = vshll.u32 %v5597, 16
        %v5747 = vrot.slane %v5745, 5
        %v5748 = vor.u32 %v5744, %v5747
        %v5749 = vrot.slane %v5748, 4
        %v5751 = vshll.u32 %v5598, 16
        %v5753 = vrot.slane %v5751, 5
        %v5754 = vsel %vm1671, %v5749, %v5753
        %v5756 = vshrl.u32 %v5599, 16
        %v5758 = vrot.slane %v5756, 4
        %v5759 = vshll.u32 %v5599, 16
        %v5761 = vrot.slane %v5759, 5
        %v5762 = vor.u32 %v5758, %v5761
        %v5763 = vrot.slane %v5762, 4
        %v5765 = vshll.u32 %v5600, 16
        %v5767 = vrot.slane %v5765, 5
        %v5768 = vsel %vm1671, %v5763, %v5767
        %5769 = vrot.lane.b32.xlu0 %v5614, 32
        %v5770 = vpop.permute.xlu0 %5769
        %5771 = vrot.lane.b32.xlu0 %v5628, 32
        %v5772 = vpop.permute.xlu0 %5771
        %5773 = vrot.lane.b32.xlu0 %v5642, 32
        %v5774 = vpop.permute.xlu0 %5773
        %5775 = vrot.lane.b32.xlu0 %v5656, 32
        %v5776 = vpop.permute.xlu0 %5775
        %5777 = vrot.lane.b32.xlu0 %v5670, 32
        %v5778 = vpop.permute.xlu0 %5777
        %5779 = vrot.lane.b32.xlu0 %v5684, 32
        %v5780 = vpop.permute.xlu0 %5779
        %5781 = vrot.lane.b32.xlu0 %v5698, 32
        %v5782 = vpop.permute.xlu0 %5781
        %5783 = vrot.lane.b32.xlu0 %v5712, 32
        %v5784 = vpop.permute.xlu0 %5783
        %5785 = vrot.lane.b32.xlu0 %v5726, 32
        %v5786 = vpop.permute.xlu0 %5785
        %5787 = vrot.lane.b32.xlu0 %v5740, 32
        %v5788 = vpop.permute.xlu0 %5787
        %5789 = vrot.lane.b32.xlu0 %v5754, 32
        %v5790 = vpop.permute.xlu0 %5789
        %5791 = vrot.lane.b32.xlu0 %v5768, 32
        %v5792 = vpop.permute.xlu0 %5791
        %5805 = vst.msk [vmem:[#allocation5] sm:$0xf] %vm2272, %v5770
        %5806 = vst.msk [vmem:[#allocation5 + $0x8] sm:$0xf] %vm2272, %v5772
        %5807 = vst.msk [vmem:[#allocation5 + $0x10] sm:$0xf] %vm2272, %v5774
        %5808 = vst.msk [vmem:[#allocation5 + $0x18] sm:$0xf] %vm2272, %v5776
        %5809 = vst.msk [vmem:[#allocation5 + $0x20] sm:$0xf] %vm2272, %v5778
        %5810 = vst.msk [vmem:[#allocation5 + $0x28] sm:$0xf] %vm2272, %v5780
        %5811 = vst.msk [vmem:[#allocation5 + $0x30] sm:$0xf] %vm2272, %v5782
        %5812 = vst.msk [vmem:[#allocation5 + $0x38] sm:$0xf] %vm2272, %v5784
        %5813 = vst.msk [vmem:[#allocation5 + $0x40] sm:$0xf] %vm2272, %v5786
        %5814 = vst.msk [vmem:[#allocation5 + $0x48] sm:$0xf] %vm2272, %v5788
        %5815 = vst.msk [vmem:[#allocation5 + $0x50] sm:$0xf] %vm2272, %v5790
        %5816 = vst.msk [vmem:[#allocation5 + $0x58] sm:$0xf] %vm2272, %v5792
        %v5817 = vld [vmem:[#allocation4] sm:$0xe]
        %v5818 = vld [vmem:[#allocation4 + $0x4] sm:$0x1]
        %v5819 = vld [vmem:[#allocation4 + $0x8] sm:$0xe]
        %v5820 = vld [vmem:[#allocation4 + $0xc] sm:$0x1]
        %v5821 = vld [vmem:[#allocation4 + $0x10] sm:$0xe]
        %v5822 = vld [vmem:[#allocation4 + $0x14] sm:$0x1]
        %v5823 = vld [vmem:[#allocation4 + $0x18] sm:$0xe]
        %v5824 = vld [vmem:[#allocation4 + $0x1c] sm:$0x1]
        %v5825 = vld [vmem:[#allocation4 + $0x20] sm:$0xe]
        %v5826 = vld [vmem:[#allocation4 + $0x24] sm:$0x1]
        %v5827 = vld [vmem:[#allocation4 + $0x28] sm:$0xe]
        %v5828 = vld [vmem:[#allocation4 + $0x2c] sm:$0x1]
        %v5829 = vld [vmem:[#allocation4 + $0x30] sm:$0xe]
        %v5830 = vld [vmem:[#allocation4 + $0x34] sm:$0x1]
        %v5831 = vld [vmem:[#allocation4 + $0x38] sm:$0xe]
        %v5832 = vld [vmem:[#allocation4 + $0x3c] sm:$0x1]
        %v5833 = vld [vmem:[#allocation4 + $0x40] sm:$0xe]
        %v5834 = vld [vmem:[#allocation4 + $0x44] sm:$0x1]
        %v5835 = vld [vmem:[#allocation4 + $0x48] sm:$0xe]
        %v5836 = vld [vmem:[#allocation4 + $0x4c] sm:$0x1]
        %v5837 = vld [vmem:[#allocation4 + $0x50] sm:$0xe]
        %v5838 = vld [vmem:[#allocation4 + $0x54] sm:$0x1]
        %v5839 = vld [vmem:[#allocation4 + $0x58] sm:$0xe]
        %v5840 = vld [vmem:[#allocation4 + $0x5c] sm:$0x1]
        %v5865 = vrot.slane %v5817, 5
        %v5866 = vrot.slane %v5865, 4
        %v5867 = vrot.slane %v5818, 5
        %v5868 = vsel %vm2435, %v5866, %v5867
        %v5869 = vrot.slane %v5819, 5
        %v5870 = vrot.slane %v5869, 4
        %v5871 = vrot.slane %v5820, 5
        %v5872 = vsel %vm2435, %v5870, %v5871
        %v5873 = vrot.slane %v5821, 5
        %v5874 = vrot.slane %v5873, 4
        %v5875 = vrot.slane %v5822, 5
        %v5876 = vsel %vm2435, %v5874, %v5875
        %v5877 = vrot.slane %v5823, 5
        %v5878 = vrot.slane %v5877, 4
        %v5879 = vrot.slane %v5824, 5
        %v5880 = vsel %vm2435, %v5878, %v5879
        %v5881 = vrot.slane %v5825, 5
        %v5882 = vrot.slane %v5881, 4
        %v5883 = vrot.slane %v5826, 5
        %v5884 = vsel %vm2435, %v5882, %v5883
        %v5885 = vrot.slane %v5827, 5
        %v5886 = vrot.slane %v5885, 4
        %v5887 = vrot.slane %v5828, 5
        %v5888 = vsel %vm2435, %v5886, %v5887
        %v5889 = vrot.slane %v5829, 5
        %v5890 = vrot.slane %v5889, 4
        %v5891 = vrot.slane %v5830, 5
        %v5892 = vsel %vm2435, %v5890, %v5891
        %v5893 = vrot.slane %v5831, 5
        %v5894 = vrot.slane %v5893, 4
        %v5895 = vrot.slane %v5832, 5
        %v5896 = vsel %vm2435, %v5894, %v5895
        %v5897 = vrot.slane %v5833, 5
        %v5898 = vrot.slane %v5897, 4
        %v5899 = vrot.slane %v5834, 5
        %v5900 = vsel %vm2435, %v5898, %v5899
        %v5901 = vrot.slane %v5835, 5
        %v5902 = vrot.slane %v5901, 4
        %v5903 = vrot.slane %v5836, 5
        %v5904 = vsel %vm2435, %v5902, %v5903
        %v5905 = vrot.slane %v5837, 5
        %v5906 = vrot.slane %v5905, 4
        %v5907 = vrot.slane %v5838, 5
        %v5908 = vsel %vm2435, %v5906, %v5907
        %v5909 = vrot.slane %v5839, 5
        %v5910 = vrot.slane %v5909, 4
        %v5911 = vrot.slane %v5840, 5
        %v5912 = vsel %vm2435, %v5910, %v5911
        %5913 = vrot.lane.b32.xlu0 %v5868, 64
        %v5914 = vpop.permute.xlu0 %5913
        %5915 = vrot.lane.b32.xlu0 %v5872, 64
        %v5916 = vpop.permute.xlu0 %5915
        %5917 = vrot.lane.b32.xlu0 %v5876, 64
        %v5918 = vpop.permute.xlu0 %5917
        %5919 = vrot.lane.b32.xlu0 %v5880, 64
        %v5920 = vpop.permute.xlu0 %5919
        %5921 = vrot.lane.b32.xlu0 %v5884, 64
        %v5922 = vpop.permute.xlu0 %5921
        %5923 = vrot.lane.b32.xlu0 %v5888, 64
        %v5924 = vpop.permute.xlu0 %5923
        %5925 = vrot.lane.b32.xlu0 %v5892, 64
        %v5926 = vpop.permute.xlu0 %5925
        %5927 = vrot.lane.b32.xlu0 %v5896, 64
        %v5928 = vpop.permute.xlu0 %5927
        %5929 = vrot.lane.b32.xlu0 %v5900, 64
        %v5930 = vpop.permute.xlu0 %5929
        %5931 = vrot.lane.b32.xlu0 %v5904, 64
        %v5932 = vpop.permute.xlu0 %5931
        %5933 = vrot.lane.b32.xlu0 %v5908, 64
        %v5934 = vpop.permute.xlu0 %5933
        %5935 = vrot.lane.b32.xlu0 %v5912, 64
        %v5936 = vpop.permute.xlu0 %5935
        %5949 = vst.msk [vmem:[#allocation5] sm:$0xf] %vm2696, %v5914
        %5950 = vst.msk [vmem:[#allocation5 + $0x8] sm:$0xf] %vm2696, %v5916
        %5951 = vst.msk [vmem:[#allocation5 + $0x10] sm:$0xf] %vm2696, %v5918
        %5952 = vst.msk [vmem:[#allocation5 + $0x18] sm:$0xf] %vm2696, %v5920
        %5953 = vst.msk [vmem:[#allocation5 + $0x20] sm:$0xf] %vm2696, %v5922
        %5954 = vst.msk [vmem:[#allocation5 + $0x28] sm:$0xf] %vm2696, %v5924
        %5955 = vst.msk [vmem:[#allocation5 + $0x30] sm:$0xf] %vm2696, %v5926
        %5956 = vst.msk [vmem:[#allocation5 + $0x38] sm:$0xf] %vm2696, %v5928
        %5957 = vst.msk [vmem:[#allocation5 + $0x40] sm:$0xf] %vm2696, %v5930
        %5958 = vst.msk [vmem:[#allocation5 + $0x48] sm:$0xf] %vm2696, %v5932
        %5959 = vst.msk [vmem:[#allocation5 + $0x50] sm:$0xf] %vm2696, %v5934
        %5960 = vst.msk [vmem:[#allocation5 + $0x58] sm:$0xf] %vm2696, %v5936
        %v5961 = vld [vmem:[#allocation4] sm:$0xe]
        %v5962 = vld [vmem:[#allocation4 + $0x4] sm:$0x3]
        %v5963 = vld [vmem:[#allocation4 + $0x8] sm:$0xe]
        %v5964 = vld [vmem:[#allocation4 + $0xc] sm:$0x3]
        %v5965 = vld [vmem:[#allocation4 + $0x10] sm:$0xe]
        %v5966 = vld [vmem:[#allocation4 + $0x14] sm:$0x3]
        %v5967 = vld [vmem:[#allocation4 + $0x18] sm:$0xe]
        %v5968 = vld [vmem:[#allocation4 + $0x1c] sm:$0x3]
        %v5969 = vld [vmem:[#allocation4 + $0x20] sm:$0xe]
        %v5970 = vld [vmem:[#allocation4 + $0x24] sm:$0x3]
        %v5971 = vld [vmem:[#allocation4 + $0x28] sm:$0xe]
        %v5972 = vld [vmem:[#allocation4 + $0x2c] sm:$0x3]
        %v5973 = vld [vmem:[#allocation4 + $0x30] sm:$0xe]
        %v5974 = vld [vmem:[#allocation4 + $0x34] sm:$0x3]
        %v5975 = vld [vmem:[#allocation4 + $0x38] sm:$0xe]
        %v5976 = vld [vmem:[#allocation4 + $0x3c] sm:$0x3]
        %v5977 = vld [vmem:[#allocation4 + $0x40] sm:$0xe]
        %v5978 = vld [vmem:[#allocation4 + $0x44] sm:$0x3]
        %v5979 = vld [vmem:[#allocation4 + $0x48] sm:$0xe]
        %v5980 = vld [vmem:[#allocation4 + $0x4c] sm:$0x3]
        %v5981 = vld [vmem:[#allocation4 + $0x50] sm:$0xe]
        %v5982 = vld [vmem:[#allocation4 + $0x54] sm:$0x3]
        %v5983 = vld [vmem:[#allocation4 + $0x58] sm:$0xe]
        %v5984 = vld [vmem:[#allocation4 + $0x5c] sm:$0x3]
        %v5986 = vshrl.u32 %v5961, 16
        %v5988 = vrot.slane %v5986, 5
        %v5989 = vshll.u32 %v5961, 16
        %v5991 = vrot.slane %v5989, 6
        %v5992 = vor.u32 %v5988, %v5991
        %v5993 = vrot.slane %v5992, 4
        %v5995 = vshrl.u32 %v5962, 16
        %v5997 = vrot.slane %v5995, 5
        %v5998 = vshll.u32 %v5962, 16
        %v6000 = vrot.slane %v5998, 6
        %v6001 = vor.u32 %v5997, %v6000
        %v6002 = vsel %vm2799, %v5993, %v6001
        %v6004 = vshrl.u32 %v5963, 16
        %v6006 = vrot.slane %v6004, 5
        %v6007 = vshll.u32 %v5963, 16
        %v6009 = vrot.slane %v6007, 6
        %v6010 = vor.u32 %v6006, %v6009
        %v6011 = vrot.slane %v6010, 4
        %v6013 = vshrl.u32 %v5964, 16
        %v6015 = vrot.slane %v6013, 5
        %v6016 = vshll.u32 %v5964, 16
        %v6018 = vrot.slane %v6016, 6
        %v6019 = vor.u32 %v6015, %v6018
        %v6020 = vsel %vm2799, %v6011, %v6019
        %v6022 = vshrl.u32 %v5965, 16
        %v6024 = vrot.slane %v6022, 5
        %v6025 = vshll.u32 %v5965, 16
        %v6027 = vrot.slane %v6025, 6
        %v6028 = vor.u32 %v6024, %v6027
        %v6029 = vrot.slane %v6028, 4
        %v6031 = vshrl.u32 %v5966, 16
        %v6033 = vrot.slane %v6031, 5
        %v6034 = vshll.u32 %v5966, 16
        %v6036 = vrot.slane %v6034, 6
        %v6037 = vor.u32 %v6033, %v6036
        %v6038 = vsel %vm2799, %v6029, %v6037
        %v6040 = vshrl.u32 %v5967, 16
        %v6042 = vrot.slane %v6040, 5
        %v6043 = vshll.u32 %v5967, 16
        %v6045 = vrot.slane %v6043, 6
        %v6046 = vor.u32 %v6042, %v6045
        %v6047 = vrot.slane %v6046, 4
        %v6049 = vshrl.u32 %v5968, 16
        %v6051 = vrot.slane %v6049, 5
        %v6052 = vshll.u32 %v5968, 16
        %v6054 = vrot.slane %v6052, 6
        %v6055 = vor.u32 %v6051, %v6054
        %v6056 = vsel %vm2799, %v6047, %v6055
        %v6058 = vshrl.u32 %v5969, 16
        %v6060 = vrot.slane %v6058, 5
        %v6061 = vshll.u32 %v5969, 16
        %v6063 = vrot.slane %v6061, 6
        %v6064 = vor.u32 %v6060, %v6063
        %v6065 = vrot.slane %v6064, 4
        %v6067 = vshrl.u32 %v5970, 16
        %v6069 = vrot.slane %v6067, 5
        %v6070 = vshll.u32 %v5970, 16
        %v6072 = vrot.slane %v6070, 6
        %v6073 = vor.u32 %v6069, %v6072
        %v6074 = vsel %vm2799, %v6065, %v6073
        %v6076 = vshrl.u32 %v5971, 16
        %v6078 = vrot.slane %v6076, 5
        %v6079 = vshll.u32 %v5971, 16
        %v6081 = vrot.slane %v6079, 6
        %v6082 = vor.u32 %v6078, %v6081
        %v6083 = vrot.slane %v6082, 4
        %v6085 = vshrl.u32 %v5972, 16
        %v6087 = vrot.slane %v6085, 5
        %v6088 = vshll.u32 %v5972, 16
        %v6090 = vrot.slane %v6088, 6
        %v6091 = vor.u32 %v6087, %v6090
        %v6092 = vsel %vm2799, %v6083, %v6091
        %v6094 = vshrl.u32 %v5973, 16
        %v6096 = vrot.slane %v6094, 5
        %v6097 = vshll.u32 %v5973, 16
        %v6099 = vrot.slane %v6097, 6
        %v6100 = vor.u32 %v6096, %v6099
        %v6101 = vrot.slane %v6100, 4
        %v6103 = vshrl.u32 %v5974, 16
        %v6105 = vrot.slane %v6103, 5
        %v6106 = vshll.u32 %v5974, 16
        %v6108 = vrot.slane %v6106, 6
        %v6109 = vor.u32 %v6105, %v6108
        %v6110 = vsel %vm2799, %v6101, %v6109
        %v6112 = vshrl.u32 %v5975, 16
        %v6114 = vrot.slane %v6112, 5
        %v6115 = vshll.u32 %v5975, 16
        %v6117 = vrot.slane %v6115, 6
        %v6118 = vor.u32 %v6114, %v6117
        %v6119 = vrot.slane %v6118, 4
        %v6121 = vshrl.u32 %v5976, 16
        %v6123 = vrot.slane %v6121, 5
        %v6124 = vshll.u32 %v5976, 16
        %v6126 = vrot.slane %v6124, 6
        %v6127 = vor.u32 %v6123, %v6126
        %v6128 = vsel %vm2799, %v6119, %v6127
        %v6130 = vshrl.u32 %v5977, 16
        %v6132 = vrot.slane %v6130, 5
        %v6133 = vshll.u32 %v5977, 16
        %v6135 = vrot.slane %v6133, 6
        %v6136 = vor.u32 %v6132, %v6135
        %v6137 = vrot.slane %v6136, 4
        %v6139 = vshrl.u32 %v5978, 16
        %v6141 = vrot.slane %v6139, 5
        %v6142 = vshll.u32 %v5978, 16
        %v6144 = vrot.slane %v6142, 6
        %v6145 = vor.u32 %v6141, %v6144
        %v6146 = vsel %vm2799, %v6137, %v6145
        %v6148 = vshrl.u32 %v5979, 16
        %v6150 = vrot.slane %v6148, 5
        %v6151 = vshll.u32 %v5979, 16
        %v6153 = vrot.slane %v6151, 6
        %v6154 = vor.u32 %v6150, %v6153
        %v6155 = vrot.slane %v6154, 4
        %v6157 = vshrl.u32 %v5980, 16
        %v6159 = vrot.slane %v6157, 5
        %v6160 = vshll.u32 %v5980, 16
        %v6162 = vrot.slane %v6160, 6
        %v6163 = vor.u32 %v6159, %v6162
        %v6164 = vsel %vm2799, %v6155, %v6163
        %v6166 = vshrl.u32 %v5981, 16
        %v6168 = vrot.slane %v6166, 5
        %v6169 = vshll.u32 %v5981, 16
        %v6171 = vrot.slane %v6169, 6
        %v6172 = vor.u32 %v6168, %v6171
        %v6173 = vrot.slane %v6172, 4
        %v6175 = vshrl.u32 %v5982, 16
        %v6177 = vrot.slane %v6175, 5
        %v6178 = vshll.u32 %v5982, 16
        %v6180 = vrot.slane %v6178, 6
        %v6181 = vor.u32 %v6177, %v6180
        %v6182 = vsel %vm2799, %v6173, %v6181
        %v6184 = vshrl.u32 %v5983, 16
        %v6186 = vrot.slane %v6184, 5
        %v6187 = vshll.u32 %v5983, 16
        %v6189 = vrot.slane %v6187, 6
        %v6190 = vor.u32 %v6186, %v6189
        %v6191 = vrot.slane %v6190, 4
        %v6193 = vshrl.u32 %v5984, 16
        %v6195 = vrot.slane %v6193, 5
        %v6196 = vshll.u32 %v5984, 16
        %v6198 = vrot.slane %v6196, 6
        %v6199 = vor.u32 %v6195, %v6198
        %v6200 = vsel %vm2799, %v6191, %v6199
        %6201 = vrot.lane.b32.xlu0 %v6002, 96
        %v6202 = vpop.permute.xlu0 %6201
        %6203 = vrot.lane.b32.xlu0 %v6020, 96
        %v6204 = vpop.permute.xlu0 %6203
        %6205 = vrot.lane.b32.xlu0 %v6038, 96
        %v6206 = vpop.permute.xlu0 %6205
        %6207 = vrot.lane.b32.xlu0 %v6056, 96
        %v6208 = vpop.permute.xlu0 %6207
        %6209 = vrot.lane.b32.xlu0 %v6074, 96
        %v6210 = vpop.permute.xlu0 %6209
        %6211 = vrot.lane.b32.xlu0 %v6092, 96
        %v6212 = vpop.permute.xlu0 %6211
        %6213 = vrot.lane.b32.xlu0 %v6110, 96
        %v6214 = vpop.permute.xlu0 %6213
        %6215 = vrot.lane.b32.xlu0 %v6128, 96
        %v6216 = vpop.permute.xlu0 %6215
        %6217 = vrot.lane.b32.xlu0 %v6146, 96
        %v6218 = vpop.permute.xlu0 %6217
        %6219 = vrot.lane.b32.xlu0 %v6164, 96
        %v6220 = vpop.permute.xlu0 %6219
        %6221 = vrot.lane.b32.xlu0 %v6182, 96
        %v6222 = vpop.permute.xlu0 %6221
        %6223 = vrot.lane.b32.xlu0 %v6200, 96
        %v6224 = vpop.permute.xlu0 %6223
        %6237 = vst.msk [vmem:[#allocation5] sm:$0xf] %vm3480, %v6202
        %6238 = vst.msk [vmem:[#allocation5 + $0x8] sm:$0xf] %vm3480, %v6204
        %6239 = vst.msk [vmem:[#allocation5 + $0x10] sm:$0xf] %vm3480, %v6206
        %6240 = vst.msk [vmem:[#allocation5 + $0x18] sm:$0xf] %vm3480, %v6208
        %6241 = vst.msk [vmem:[#allocation5 + $0x20] sm:$0xf] %vm3480, %v6210
        %6242 = vst.msk [vmem:[#allocation5 + $0x28] sm:$0xf] %vm3480, %v6212
        %6243 = vst.msk [vmem:[#allocation5 + $0x30] sm:$0xf] %vm3480, %v6214
        %6244 = vst.msk [vmem:[#allocation5 + $0x38] sm:$0xf] %vm3480, %v6216
        %6245 = vst.msk [vmem:[#allocation5 + $0x40] sm:$0xf] %vm3480, %v6218
        %6246 = vst.msk [vmem:[#allocation5 + $0x48] sm:$0xf] %vm3480, %v6220
        %6247 = vst.msk [vmem:[#allocation5 + $0x50] sm:$0xf] %vm3480, %v6222
        %6248 = vst.msk [vmem:[#allocation5 + $0x58] sm:$0xf] %vm3480, %v6224
        %v6249 = vld [vmem:[#allocation4] sm:$0xc]
        %v6250 = vld [vmem:[#allocation4 + $0x4] sm:$0x3]
        %v6251 = vld [vmem:[#allocation4 + $0x8] sm:$0xc]
        %v6252 = vld [vmem:[#allocation4 + $0xc] sm:$0x3]
        %v6253 = vld [vmem:[#allocation4 + $0x10] sm:$0xc]
        %v6254 = vld [vmem:[#allocation4 + $0x14] sm:$0x3]
        %v6255 = vld [vmem:[#allocation4 + $0x18] sm:$0xc]
        %v6256 = vld [vmem:[#allocation4 + $0x1c] sm:$0x3]
        %v6257 = vld [vmem:[#allocation4 + $0x20] sm:$0xc]
        %v6258 = vld [vmem:[#allocation4 + $0x24] sm:$0x3]
        %v6259 = vld [vmem:[#allocation4 + $0x28] sm:$0xc]
        %v6260 = vld [vmem:[#allocation4 + $0x2c] sm:$0x3]
        %v6261 = vld [vmem:[#allocation4 + $0x30] sm:$0xc]
        %v6262 = vld [vmem:[#allocation4 + $0x34] sm:$0x3]
        %v6263 = vld [vmem:[#allocation4 + $0x38] sm:$0xc]
        %v6264 = vld [vmem:[#allocation4 + $0x3c] sm:$0x3]
        %v6265 = vld [vmem:[#allocation4 + $0x40] sm:$0xc]
        %v6266 = vld [vmem:[#allocation4 + $0x44] sm:$0x3]
        %v6267 = vld [vmem:[#allocation4 + $0x48] sm:$0xc]
        %v6268 = vld [vmem:[#allocation4 + $0x4c] sm:$0x3]
        %v6269 = vld [vmem:[#allocation4 + $0x50] sm:$0xc]
        %v6270 = vld [vmem:[#allocation4 + $0x54] sm:$0x3]
        %v6271 = vld [vmem:[#allocation4 + $0x58] sm:$0xc]
        %v6272 = vld [vmem:[#allocation4 + $0x5c] sm:$0x3]
        %v6297 = vrot.slane %v6249, 6
        %v6298 = vrot.slane %v6297, 4
        %v6299 = vrot.slane %v6250, 6
        %v6300 = vsel %vm3643, %v6298, %v6299
        %v6301 = vrot.slane %v6251, 6
        %v6302 = vrot.slane %v6301, 4
        %v6303 = vrot.slane %v6252, 6
        %v6304 = vsel %vm3643, %v6302, %v6303
        %v6305 = vrot.slane %v6253, 6
        %v6306 = vrot.slane %v6305, 4
        %v6307 = vrot.slane %v6254, 6
        %v6308 = vsel %vm3643, %v6306, %v6307
        %v6309 = vrot.slane %v6255, 6
        %v6310 = vrot.slane %v6309, 4
        %v6311 = vrot.slane %v6256, 6
        %v6312 = vsel %vm3643, %v6310, %v6311
        %v6313 = vrot.slane %v6257, 6
        %v6314 = vrot.slane %v6313, 4
        %v6315 = vrot.slane %v6258, 6
        %v6316 = vsel %vm3643, %v6314, %v6315
        %v6317 = vrot.slane %v6259, 6
        %v6318 = vrot.slane %v6317, 4
        %v6319 = vrot.slane %v6260, 6
        %v6320 = vsel %vm3643, %v6318, %v6319
        %v6321 = vrot.slane %v6261, 6
        %v6322 = vrot.slane %v6321, 4
        %v6323 = vrot.slane %v6262, 6
        %v6324 = vsel %vm3643, %v6322, %v6323
        %v6325 = vrot.slane %v6263, 6
        %v6326 = vrot.slane %v6325, 4
        %v6327 = vrot.slane %v6264, 6
        %v6328 = vsel %vm3643, %v6326, %v6327
        %v6329 = vrot.slane %v6265, 6
        %v6330 = vrot.slane %v6329, 4
        %v6331 = vrot.slane %v6266, 6
        %v6332 = vsel %vm3643, %v6330, %v6331
        %v6333 = vrot.slane %v6267, 6
        %v6334 = vrot.slane %v6333, 4
        %v6335 = vrot.slane %v6268, 6
        %v6336 = vsel %vm3643, %v6334, %v6335
        %v6337 = vrot.slane %v6269, 6
        %v6338 = vrot.slane %v6337, 4
        %v6339 = vrot.slane %v6270, 6
        %v6340 = vsel %vm3643, %v6338, %v6339
        %v6341 = vrot.slane %v6271, 6
        %v6342 = vrot.slane %v6341, 4
        %v6343 = vrot.slane %v6272, 6
        %v6344 = vsel %vm3643, %v6342, %v6343
        %6357 = vst.msk [vmem:[#allocation5 + $0x4] sm:$0xf] %vm439, %v6300
        %6358 = vst.msk [vmem:[#allocation5 + $0xc] sm:$0xf] %vm439, %v6304
        %6359 = vst.msk [vmem:[#allocation5 + $0x14] sm:$0xf] %vm439, %v6308
        %6360 = vst.msk [vmem:[#allocation5 + $0x1c] sm:$0xf] %vm439, %v6312
        %6361 = vst.msk [vmem:[#allocation5 + $0x24] sm:$0xf] %vm439, %v6316
        %6362 = vst.msk [vmem:[#allocation5 + $0x2c] sm:$0xf] %vm439, %v6320
        %6363 = vst.msk [vmem:[#allocation5 + $0x34] sm:$0xf] %vm439, %v6324
        %6364 = vst.msk [vmem:[#allocation5 + $0x3c] sm:$0xf] %vm439, %v6328
        %6365 = vst.msk [vmem:[#allocation5 + $0x44] sm:$0xf] %vm439, %v6332
        %6366 = vst.msk [vmem:[#allocation5 + $0x4c] sm:$0xf] %vm439, %v6336
        %6367 = vst.msk [vmem:[#allocation5 + $0x54] sm:$0xf] %vm439, %v6340
        %6368 = vst.msk [vmem:[#allocation5 + $0x5c] sm:$0xf] %vm439, %v6344
        %v6369 = vld [vmem:[%s6] sm:$0x1]
        %v6370 = vld [vmem:[#allocation5] sm:$0xff]
        %v6371 = vld [vmem:[#allocation5 + $0x8] sm:$0xff]
        %v6372 = vld [vmem:[#allocation5 + $0x10] sm:$0xff]
        %v6373 = vld [vmem:[#allocation5 + $0x18] sm:$0xff]
        %v6374 = vld [vmem:[#allocation5 + $0x20] sm:$0xff]
        %v6375 = vld [vmem:[#allocation5 + $0x28] sm:$0xff]
        %v6376 = vld [vmem:[#allocation5 + $0x30] sm:$0xff]
        %v6377 = vld [vmem:[#allocation5 + $0x38] sm:$0xff]
        %v6378 = vld [vmem:[%s5] sm:$0xf]
        %v6379 = vld [vmem:[%s5 + $0x4] sm:$0xf]
        %v6380 = vld [vmem:[%s5 + $0x8] sm:$0xf]
        %v6381 = vld [vmem:[%s5 + $0xc] sm:$0xf]
        %v6382 = vld [vmem:[%s5 + $0x10] sm:$0xf]
        %v6383 = vld [vmem:[%s5 + $0x14] sm:$0xf]
        %v6384 = vld [vmem:[%s5 + $0x18] sm:$0xf]
        %v6385 = vld [vmem:[%s5 + $0x1c] sm:$0xf]
        %v6386 = vld [vmem:[%s5 + $0x20] sm:$0xf]
        %v6387 = vld [vmem:[%s5 + $0x24] sm:$0xf]
        %v6388 = vld [vmem:[%s5 + $0x28] sm:$0xf]
        %v6389 = vld [vmem:[%s5 + $0x2c] sm:$0xf]
        %v6390 = vld [vmem:[%s5 + $0x30] sm:$0xf]
        %v6391 = vld [vmem:[%s5 + $0x34] sm:$0xf]
        %v6392 = vld [vmem:[%s5 + $0x38] sm:$0xf]
        %v6393 = vld [vmem:[%s5 + $0x3c] sm:$0xf]
        %v6394 = vld [vmem:[%s5 + $0x40] sm:$0xf]
        %v6395 = vld [vmem:[%s5 + $0x44] sm:$0xf]
        %v6396 = vld [vmem:[%s5 + $0x48] sm:$0xf]
        %v6397 = vld [vmem:[%s5 + $0x4c] sm:$0xf]
        %s6398 = scalar_lea.vmem [#allocation5], 8
        %v6399 = vld [vmem:[%s6398] sm:$0xff]
        %v6400 = vld [vmem:[%s6398 + $0x8] sm:$0xff]
        %v6401 = vld [vmem:[%s6398 + $0x10] sm:$0xff]
        %v6402 = vld [vmem:[%s6398 + $0x18] sm:$0xff]
        %v6403 = vld [vmem:[%s6398 + $0x20] sm:$0xff]
        %v6404 = vld [vmem:[%s6398 + $0x28] sm:$0xff]
        %v6405 = vld [vmem:[%s6398 + $0x30] sm:$0xff]
        %v6406 = vld [vmem:[%s6398 + $0x38] sm:$0xff]
        %s6407 = scalar_lea.vmem %s5, 80
        %v6408 = vld [vmem:[%s6407] sm:$0xf]
        %v6409 = vld [vmem:[%s6407 + $0x4] sm:$0xf]
        %v6410 = vld [vmem:[%s6407 + $0x8] sm:$0xf]
        %v6411 = vld [vmem:[%s6407 + $0xc] sm:$0xf]
        %v6412 = vld [vmem:[%s6407 + $0x10] sm:$0xf]
        %v6413 = vld [vmem:[%s6407 + $0x14] sm:$0xf]
        %v6414 = vld [vmem:[%s6407 + $0x18] sm:$0xf]
        %v6415 = vld [vmem:[%s6407 + $0x1c] sm:$0xf]
        %v6416 = vld [vmem:[%s6407 + $0x20] sm:$0xf]
        %v6417 = vld [vmem:[%s6407 + $0x24] sm:$0xf]
        %v6418 = vld [vmem:[%s6407 + $0x28] sm:$0xf]
        %v6419 = vld [vmem:[%s6407 + $0x2c] sm:$0xf]
        %v6420 = vld [vmem:[%s6407 + $0x30] sm:$0xf]
        %v6421 = vld [vmem:[%s6407 + $0x34] sm:$0xf]
        %v6422 = vld [vmem:[%s6407 + $0x38] sm:$0xf]
        %v6423 = vld [vmem:[%s6407 + $0x3c] sm:$0xf]
        %v6424 = vld [vmem:[%s6407 + $0x40] sm:$0xf]
        %v6425 = vld [vmem:[%s6407 + $0x44] sm:$0xf]
        %v6426 = vld [vmem:[%s6407 + $0x48] sm:$0xf]
        %v6427 = vld [vmem:[%s6407 + $0x4c] sm:$0xf]
        %v6436 = vunpack.c.l.b16 %v6399
        %v6437 = vunpack.c.h.b16 %v6399
        %v6438 = vunpack.c.l.b16 %v6400
        %v6439 = vunpack.c.h.b16 %v6400
        %v6440 = vunpack.c.l.b16 %v6401
        %v6441 = vunpack.c.h.b16 %v6401
        %v6442 = vunpack.c.l.b16 %v6402
        %v6443 = vunpack.c.h.b16 %v6402
        %v6444 = vunpack.c.l.b16 %v6403
        %v6445 = vunpack.c.h.b16 %v6403
        %v6446 = vunpack.c.l.b16 %v6404
        %v6447 = vunpack.c.h.b16 %v6404
        %v6448 = vunpack.c.l.b16 %v6405
        %v6449 = vunpack.c.h.b16 %v6405
        %v6450 = vunpack.c.l.b16 %v6406
        %v6451 = vunpack.c.h.b16 %v6406
        %v6452 = vpack.c.b16 %v6438, %v6436
        %v6453 = vpack.c.b16 %v6439, %v6437
        %v6454 = vpack.c.b16 %v6442, %v6440
        %v6455 = vpack.c.b16 %v6443, %v6441
        %v6456 = vpack.c.b16 %v6446, %v6444
        %v6457 = vpack.c.b16 %v6447, %v6445
        %v6458 = vpack.c.b16 %v6450, %v6448
        %v6459 = vpack.c.b16 %v6451, %v6449
        %v6484 = vunpack.c.l.b16 %v6408
        %v6485 = vunpack.c.l.b16 %v6409
        %v6486 = vunpack.c.l.b16 %v6410
        %v6487 = vunpack.c.l.b16 %v6411
        %v6488 = vunpack.c.l.b16 %v6412
        %v6489 = vunpack.c.l.b16 %v6413
        %v6490 = vunpack.c.l.b16 %v6414
        %v6491 = vunpack.c.l.b16 %v6415
        %v6492 = vunpack.c.l.b16 %v6416
        %v6493 = vunpack.c.l.b16 %v6417
        %v6494 = vunpack.c.l.b16 %v6418
        %v6495 = vunpack.c.l.b16 %v6419
        %v6496 = vunpack.c.l.b16 %v6420
        %v6497 = vunpack.c.l.b16 %v6421
        %v6498 = vunpack.c.l.b16 %v6422
        %v6499 = vunpack.c.l.b16 %v6423
        %v6500 = vunpack.c.l.b16 %v6424
        %v6501 = vunpack.c.l.b16 %v6425
        %v6502 = vunpack.c.l.b16 %v6426
        %v6503 = vunpack.c.l.b16 %v6427
        %v6504 = vpack.c.b16 %v6485, %v6484
        %v6505 = vpack.c.b16 %v6487, %v6486
        %v6506 = vpack.c.b16 %v6489, %v6488
        %v6507 = vpack.c.b16 %v6491, %v6490
        %v6508 = vpack.c.b16 %v6493, %v6492
        %v6509 = vpack.c.b16 %v6495, %v6494
        %v6510 = vpack.c.b16 %v6497, %v6496
        %v6511 = vpack.c.b16 %v6499, %v6498
        %v6512 = vpack.c.b16 %v6501, %v6500
        %v6513 = vpack.c.b16 %v6503, %v6502
        %vm6524 = vcmask 261120
        %v6526 = vsel %vm6524, %v6453, 0
        %v6529 = vsel %vm6524, %v6455, 0
        %v6532 = vsel %vm6524, %v6457, 0
        %v6535 = vsel %vm6524, %v6459, 0
        %6537 = vmatpush.bf16.msra.mxu0 %v6511
        %6538 = vmatpush.bf16.msra.mxu0 %v6510
        %6539 = vmatpush.bf16.msra.mxu0 %v6509
        %6540 = vmatpush.bf16.msra.mxu0 %v6508
        %6541 = vmatpush.bf16.msra.mxu0 %v6507
        %6542 = vmatpush.bf16.msra.mxu0 %v6506
        %6543 = vmatpush.bf16.msra.mxu0 %v6505
        %6544 = vmatpush.bf16.msra.mxu0 %v6504
        %6545 = vmatmul.bf16.gmra.mxu0 %v6452
        %v6546 = vpop.f32.mrf.mxu0
        %v6547 = vadd.f32 0.0, %v6546
        %v6548 = vpop.f32.mrf.mxu0
        %v6549 = vadd.f32 0.0, %v6548
        %6550 = vmatmul.bf16.gmra.mxu0 %v6454
        %v6551 = vpop.f32.mrf.mxu0
        %v6552 = vadd.f32 0.0, %v6551
        %v6553 = vpop.f32.mrf.mxu0
        %v6554 = vadd.f32 0.0, %v6553
        %6555 = vmatmul.bf16.gmra.mxu0 %v6456
        %v6556 = vpop.f32.mrf.mxu0
        %v6557 = vadd.f32 0.0, %v6556
        %v6558 = vpop.f32.mrf.mxu0
        %v6559 = vadd.f32 0.0, %v6558
        %6560 = vmatmul.bf16.gmra.mxu0 %v6458
        %v6561 = vpop.f32.mrf.mxu0
        %v6562 = vadd.f32 0.0, %v6561
        %v6563 = vpop.f32.mrf.mxu0
        %v6564 = vadd.f32 0.0, %v6563
        %6565 = vdwg.mxu0
        %6566 = vmatpush.bf16.msra.mxu0 0
        %6567 = vmatpush.bf16.msra.mxu0 0
        %6568 = vmatpush.bf16.msra.mxu0 0
        %6569 = vmatpush.bf16.msra.mxu0 0
        %6570 = vmatpush.bf16.msra.mxu0 0
        %6571 = vmatpush.bf16.msra.mxu0 0
        %6572 = vmatpush.bf16.msra.mxu0 %v6513
        %6573 = vmatpush.bf16.msra.mxu0 %v6512
        %6574 = vmatmul.bf16.gmra.mxu0 %v6526
        %v6575 = vpop.f32.mrf.mxu0
        %v6576 = vadd.f32 %v6547, %v6575
        %v6577 = vpop.f32.mrf.mxu0
        %v6578 = vadd.f32 %v6549, %v6577
        %6579 = vmatmul.bf16.gmra.mxu0 %v6529
        %v6580 = vpop.f32.mrf.mxu0
        %v6581 = vadd.f32 %v6552, %v6580
        %v6582 = vpop.f32.mrf.mxu0
        %v6583 = vadd.f32 %v6554, %v6582
        %6584 = vmatmul.bf16.gmra.mxu0 %v6532
        %v6585 = vpop.f32.mrf.mxu0
        %v6586 = vadd.f32 %v6557, %v6585
        %v6587 = vpop.f32.mrf.mxu0
        %v6588 = vadd.f32 %v6559, %v6587
        %6589 = vmatmul.bf16.gmra.mxu0 %v6535
        %v6590 = vpop.f32.mrf.mxu0
        %v6591 = vadd.f32 %v6562, %v6590
        %v6592 = vpop.f32.mrf.mxu0
        %v6593 = vadd.f32 %v6564, %v6592
        %6594 = vdwg.mxu0
        %v6603 = vunpack.c.l.b16 %v6370
        %v6604 = vunpack.c.h.b16 %v6370
        %v6605 = vunpack.c.l.b16 %v6371
        %v6606 = vunpack.c.h.b16 %v6371
        %v6607 = vunpack.c.l.b16 %v6372
        %v6608 = vunpack.c.h.b16 %v6372
        %v6609 = vunpack.c.l.b16 %v6373
        %v6610 = vunpack.c.h.b16 %v6373
        %v6611 = vunpack.c.l.b16 %v6374
        %v6612 = vunpack.c.h.b16 %v6374
        %v6613 = vunpack.c.l.b16 %v6375
        %v6614 = vunpack.c.h.b16 %v6375
        %v6615 = vunpack.c.l.b16 %v6376
        %v6616 = vunpack.c.h.b16 %v6376
        %v6617 = vunpack.c.l.b16 %v6377
        %v6618 = vunpack.c.h.b16 %v6377
        %v6619 = vpack.c.b16 %v6605, %v6603
        %v6620 = vpack.c.b16 %v6606, %v6604
        %v6621 = vpack.c.b16 %v6609, %v6607
        %v6622 = vpack.c.b16 %v6610, %v6608
        %v6623 = vpack.c.b16 %v6613, %v6611
        %v6624 = vpack.c.b16 %v6614, %v6612
        %v6625 = vpack.c.b16 %v6617, %v6615
        %v6626 = vpack.c.b16 %v6618, %v6616
        %v6651 = vunpack.c.l.b16 %v6378
        %v6652 = vunpack.c.l.b16 %v6379
        %v6653 = vunpack.c.l.b16 %v6380
        %v6654 = vunpack.c.l.b16 %v6381
        %v6655 = vunpack.c.l.b16 %v6382
        %v6656 = vunpack.c.l.b16 %v6383
        %v6657 = vunpack.c.l.b16 %v6384
        %v6658 = vunpack.c.l.b16 %v6385
        %v6659 = vunpack.c.l.b16 %v6386
        %v6660 = vunpack.c.l.b16 %v6387
        %v6661 = vunpack.c.l.b16 %v6388
        %v6662 = vunpack.c.l.b16 %v6389
        %v6663 = vunpack.c.l.b16 %v6390
        %v6664 = vunpack.c.l.b16 %v6391
        %v6665 = vunpack.c.l.b16 %v6392
        %v6666 = vunpack.c.l.b16 %v6393
        %v6667 = vunpack.c.l.b16 %v6394
        %v6668 = vunpack.c.l.b16 %v6395
        %v6669 = vunpack.c.l.b16 %v6396
        %v6670 = vunpack.c.l.b16 %v6397
        %v6671 = vpack.c.b16 %v6652, %v6651
        %v6672 = vpack.c.b16 %v6654, %v6653
        %v6673 = vpack.c.b16 %v6656, %v6655
        %v6674 = vpack.c.b16 %v6658, %v6657
        %v6675 = vpack.c.b16 %v6660, %v6659
        %v6676 = vpack.c.b16 %v6662, %v6661
        %v6677 = vpack.c.b16 %v6664, %v6663
        %v6678 = vpack.c.b16 %v6666, %v6665
        %v6679 = vpack.c.b16 %v6668, %v6667
        %v6680 = vpack.c.b16 %v6670, %v6669
        %v6692 = vsel %vm6524, %v6620, 0
        %v6695 = vsel %vm6524, %v6622, 0
        %v6698 = vsel %vm6524, %v6624, 0
        %v6701 = vsel %vm6524, %v6626, 0
        %6703 = vmatpush.bf16.msra.mxu0 %v6678
        %6704 = vmatpush.bf16.msra.mxu0 %v6677
        %6705 = vmatpush.bf16.msra.mxu0 %v6676
        %6706 = vmatpush.bf16.msra.mxu0 %v6675
        %6707 = vmatpush.bf16.msra.mxu0 %v6674
        %6708 = vmatpush.bf16.msra.mxu0 %v6673
        %6709 = vmatpush.bf16.msra.mxu0 %v6672
        %6710 = vmatpush.bf16.msra.mxu0 %v6671
        %6711 = vmatmul.bf16.gmra.mxu0 %v6619
        %v6712 = vpop.f32.mrf.mxu0
        %v6713 = vadd.f32 %v6576, %v6712
        %v6714 = vpop.f32.mrf.mxu0
        %v6715 = vadd.f32 %v6578, %v6714
        %6716 = vmatmul.bf16.gmra.mxu0 %v6621
        %v6717 = vpop.f32.mrf.mxu0
        %v6718 = vadd.f32 %v6581, %v6717
        %v6719 = vpop.f32.mrf.mxu0
        %v6720 = vadd.f32 %v6583, %v6719
        %6721 = vmatmul.bf16.gmra.mxu0 %v6623
        %v6722 = vpop.f32.mrf.mxu0
        %v6723 = vadd.f32 %v6586, %v6722
        %v6724 = vpop.f32.mrf.mxu0
        %v6725 = vadd.f32 %v6588, %v6724
        %6726 = vmatmul.bf16.gmra.mxu0 %v6625
        %v6727 = vpop.f32.mrf.mxu0
        %v6728 = vadd.f32 %v6591, %v6727
        %v6729 = vpop.f32.mrf.mxu0
        %v6730 = vadd.f32 %v6593, %v6729
        %6731 = vdwg.mxu0
        %6732 = vmatpush.bf16.msra.mxu0 0
        %6733 = vmatpush.bf16.msra.mxu0 0
        %6734 = vmatpush.bf16.msra.mxu0 0
        %6735 = vmatpush.bf16.msra.mxu0 0
        %6736 = vmatpush.bf16.msra.mxu0 0
        %6737 = vmatpush.bf16.msra.mxu0 0
        %6738 = vmatpush.bf16.msra.mxu0 %v6680
        %6739 = vmatpush.bf16.msra.mxu0 %v6679
        %6740 = vmatmul.bf16.gmra.mxu0 %v6692
        %v6741 = vpop.f32.mrf.mxu0
        %v6742 = vadd.f32 %v6713, %v6741
        %v6743 = vpop.f32.mrf.mxu0
        %v6744 = vadd.f32 %v6715, %v6743
        %6745 = vmatmul.bf16.gmra.mxu0 %v6695
        %v6746 = vpop.f32.mrf.mxu0
        %v6747 = vadd.f32 %v6718, %v6746
        %v6748 = vpop.f32.mrf.mxu0
        %v6749 = vadd.f32 %v6720, %v6748
        %6750 = vmatmul.bf16.gmra.mxu0 %v6698
        %v6751 = vpop.f32.mrf.mxu0
        %v6752 = vadd.f32 %v6723, %v6751
        %v6753 = vpop.f32.mrf.mxu0
        %v6754 = vadd.f32 %v6725, %v6753
        %6755 = vmatmul.bf16.gmra.mxu0 %v6701
        %v6756 = vpop.f32.mrf.mxu0
        %v6757 = vadd.f32 %v6728, %v6756
        %v6758 = vpop.f32.mrf.mxu0
        %v6759 = vadd.f32 %v6730, %v6758
        %6760 = vdwg.mxu0
        %s6761 = scalar_lea.vmem [#allocation5], 16
        %v6762 = vld [vmem:[%s6761] sm:$0xff]
        %v6763 = vld [vmem:[%s6761 + $0x8] sm:$0xff]
        %v6764 = vld [vmem:[%s6761 + $0x10] sm:$0xff]
        %v6765 = vld [vmem:[%s6761 + $0x18] sm:$0xff]
        %v6766 = vld [vmem:[%s6761 + $0x20] sm:$0xff]
        %v6767 = vld [vmem:[%s6761 + $0x28] sm:$0xff]
        %v6768 = vld [vmem:[%s6761 + $0x30] sm:$0xff]
        %v6769 = vld [vmem:[%s6761 + $0x38] sm:$0xff]
        %s6770 = scalar_lea.vmem %s5, 160
        %v6771 = vld [vmem:[%s6770] sm:$0xf]
        %v6772 = vld [vmem:[%s6770 + $0x4] sm:$0xf]
        %v6773 = vld [vmem:[%s6770 + $0x8] sm:$0xf]
        %v6774 = vld [vmem:[%s6770 + $0xc] sm:$0xf]
        %v6775 = vld [vmem:[%s6770 + $0x10] sm:$0xf]
        %v6776 = vld [vmem:[%s6770 + $0x14] sm:$0xf]
        %v6777 = vld [vmem:[%s6770 + $0x18] sm:$0xf]
        %v6778 = vld [vmem:[%s6770 + $0x1c] sm:$0xf]
        %v6779 = vld [vmem:[%s6770 + $0x20] sm:$0xf]
        %v6780 = vld [vmem:[%s6770 + $0x24] sm:$0xf]
        %v6781 = vld [vmem:[%s6770 + $0x28] sm:$0xf]
        %v6782 = vld [vmem:[%s6770 + $0x2c] sm:$0xf]
        %v6783 = vld [vmem:[%s6770 + $0x30] sm:$0xf]
        %v6784 = vld [vmem:[%s6770 + $0x34] sm:$0xf]
        %v6785 = vld [vmem:[%s6770 + $0x38] sm:$0xf]
        %v6786 = vld [vmem:[%s6770 + $0x3c] sm:$0xf]
        %v6787 = vld [vmem:[%s6770 + $0x40] sm:$0xf]
        %v6788 = vld [vmem:[%s6770 + $0x44] sm:$0xf]
        %v6789 = vld [vmem:[%s6770 + $0x48] sm:$0xf]
        %v6790 = vld [vmem:[%s6770 + $0x4c] sm:$0xf]
        %v6799 = vunpack.c.l.b16 %v6762
        %v6800 = vunpack.c.h.b16 %v6762
        %v6801 = vunpack.c.l.b16 %v6763
        %v6802 = vunpack.c.h.b16 %v6763
        %v6803 = vunpack.c.l.b16 %v6764
        %v6804 = vunpack.c.h.b16 %v6764
        %v6805 = vunpack.c.l.b16 %v6765
        %v6806 = vunpack.c.h.b16 %v6765
        %v6807 = vunpack.c.l.b16 %v6766
        %v6808 = vunpack.c.h.b16 %v6766
        %v6809 = vunpack.c.l.b16 %v6767
        %v6810 = vunpack.c.h.b16 %v6767
        %v6811 = vunpack.c.l.b16 %v6768
        %v6812 = vunpack.c.h.b16 %v6768
        %v6813 = vunpack.c.l.b16 %v6769
        %v6814 = vunpack.c.h.b16 %v6769
        %v6815 = vpack.c.b16 %v6801, %v6799
        %v6816 = vpack.c.b16 %v6802, %v6800
        %v6817 = vpack.c.b16 %v6805, %v6803
        %v6818 = vpack.c.b16 %v6806, %v6804
        %v6819 = vpack.c.b16 %v6809, %v6807
        %v6820 = vpack.c.b16 %v6810, %v6808
        %v6821 = vpack.c.b16 %v6813, %v6811
        %v6822 = vpack.c.b16 %v6814, %v6812
        %v6847 = vunpack.c.l.b16 %v6771
        %v6848 = vunpack.c.l.b16 %v6772
        %v6849 = vunpack.c.l.b16 %v6773
        %v6850 = vunpack.c.l.b16 %v6774
        %v6851 = vunpack.c.l.b16 %v6775
        %v6852 = vunpack.c.l.b16 %v6776
        %v6853 = vunpack.c.l.b16 %v6777
        %v6854 = vunpack.c.l.b16 %v6778
        %v6855 = vunpack.c.l.b16 %v6779
        %v6856 = vunpack.c.l.b16 %v6780
        %v6857 = vunpack.c.l.b16 %v6781
        %v6858 = vunpack.c.l.b16 %v6782
        %v6859 = vunpack.c.l.b16 %v6783
        %v6860 = vunpack.c.l.b16 %v6784
        %v6861 = vunpack.c.l.b16 %v6785
        %v6862 = vunpack.c.l.b16 %v6786
        %v6863 = vunpack.c.l.b16 %v6787
        %v6864 = vunpack.c.l.b16 %v6788
        %v6865 = vunpack.c.l.b16 %v6789
        %v6866 = vunpack.c.l.b16 %v6790
        %v6867 = vpack.c.b16 %v6848, %v6847
        %v6868 = vpack.c.b16 %v6850, %v6849
        %v6869 = vpack.c.b16 %v6852, %v6851
        %v6870 = vpack.c.b16 %v6854, %v6853
        %v6871 = vpack.c.b16 %v6856, %v6855
        %v6872 = vpack.c.b16 %v6858, %v6857
        %v6873 = vpack.c.b16 %v6860, %v6859
        %v6874 = vpack.c.b16 %v6862, %v6861
        %v6875 = vpack.c.b16 %v6864, %v6863
        %v6876 = vpack.c.b16 %v6866, %v6865
        %v6888 = vsel %vm6524, %v6816, 0
        %v6891 = vsel %vm6524, %v6818, 0
        %v6894 = vsel %vm6524, %v6820, 0
        %v6897 = vsel %vm6524, %v6822, 0
        %6899 = vmatpush.bf16.msra.mxu0 %v6874
        %6900 = vmatpush.bf16.msra.mxu0 %v6873
        %6901 = vmatpush.bf16.msra.mxu0 %v6872
        %6902 = vmatpush.bf16.msra.mxu0 %v6871
        %6903 = vmatpush.bf16.msra.mxu0 %v6870
        %6904 = vmatpush.bf16.msra.mxu0 %v6869
        %6905 = vmatpush.bf16.msra.mxu0 %v6868
        %6906 = vmatpush.bf16.msra.mxu0 %v6867
        %6907 = vmatmul.bf16.gmra.mxu0 %v6815
        %v6908 = vpop.f32.mrf.mxu0
        %v6909 = vadd.f32 0.0, %v6908
        %v6910 = vpop.f32.mrf.mxu0
        %v6911 = vadd.f32 0.0, %v6910
        %6912 = vmatmul.bf16.gmra.mxu0 %v6817
        %v6913 = vpop.f32.mrf.mxu0
        %v6914 = vadd.f32 0.0, %v6913
        %v6915 = vpop.f32.mrf.mxu0
        %v6916 = vadd.f32 0.0, %v6915
        %6917 = vmatmul.bf16.gmra.mxu0 %v6819
        %v6918 = vpop.f32.mrf.mxu0
        %v6919 = vadd.f32 0.0, %v6918
        %v6920 = vpop.f32.mrf.mxu0
        %v6921 = vadd.f32 0.0, %v6920
        %6922 = vmatmul.bf16.gmra.mxu0 %v6821
        %v6923 = vpop.f32.mrf.mxu0
        %v6924 = vadd.f32 0.0, %v6923
        %v6925 = vpop.f32.mrf.mxu0
        %v6926 = vadd.f32 0.0, %v6925
        %6927 = vdwg.mxu0
        %6928 = vmatpush.bf16.msra.mxu0 0
        %6929 = vmatpush.bf16.msra.mxu0 0
        %6930 = vmatpush.bf16.msra.mxu0 0
        %6931 = vmatpush.bf16.msra.mxu0 0
        %6932 = vmatpush.bf16.msra.mxu0 0
        %6933 = vmatpush.bf16.msra.mxu0 0
        %6934 = vmatpush.bf16.msra.mxu0 %v6876
        %6935 = vmatpush.bf16.msra.mxu0 %v6875
        %6936 = vmatmul.bf16.gmra.mxu0 %v6888
        %v6937 = vpop.f32.mrf.mxu0
        %v6938 = vadd.f32 %v6909, %v6937
        %v6939 = vpop.f32.mrf.mxu0
        %v6940 = vadd.f32 %v6911, %v6939
        %6941 = vmatmul.bf16.gmra.mxu0 %v6891
        %v6942 = vpop.f32.mrf.mxu0
        %v6943 = vadd.f32 %v6914, %v6942
        %v6944 = vpop.f32.mrf.mxu0
        %v6945 = vadd.f32 %v6916, %v6944
        %6946 = vmatmul.bf16.gmra.mxu0 %v6894
        %v6947 = vpop.f32.mrf.mxu0
        %v6948 = vadd.f32 %v6919, %v6947
        %v6949 = vpop.f32.mrf.mxu0
        %v6950 = vadd.f32 %v6921, %v6949
        %6951 = vmatmul.bf16.gmra.mxu0 %v6897
        %v6952 = vpop.f32.mrf.mxu0
        %v6953 = vadd.f32 %v6924, %v6952
        %v6954 = vpop.f32.mrf.mxu0
        %v6955 = vadd.f32 %v6926, %v6954
        %6956 = vdwg.mxu0
        %v6957 = vadd.f32 %v6742, %v6938
        %v6958 = vadd.f32 %v6744, %v6940
        %v6959 = vadd.f32 %v6747, %v6943
        %v6960 = vadd.f32 %v6749, %v6945
        %v6961 = vadd.f32 %v6752, %v6948
        %v6962 = vadd.f32 %v6754, %v6950
        %v6963 = vadd.f32 %v6757, %v6953
        %v6964 = vadd.f32 %v6759, %v6955
        %s6965 = scalar_lea.vmem [#allocation5], 24
        %v6966 = vld [vmem:[%s6965] sm:$0xff]
        %v6967 = vld [vmem:[%s6965 + $0x8] sm:$0xff]
        %v6968 = vld [vmem:[%s6965 + $0x10] sm:$0xff]
        %v6969 = vld [vmem:[%s6965 + $0x18] sm:$0xff]
        %v6970 = vld [vmem:[%s6965 + $0x20] sm:$0xff]
        %v6971 = vld [vmem:[%s6965 + $0x28] sm:$0xff]
        %v6972 = vld [vmem:[%s6965 + $0x30] sm:$0xff]
        %v6973 = vld [vmem:[%s6965 + $0x38] sm:$0xff]
        %s6974 = scalar_lea.vmem %s5, 240
        %v6975 = vld [vmem:[%s6974] sm:$0xf]
        %v6976 = vld [vmem:[%s6974 + $0x4] sm:$0xf]
        %v6977 = vld [vmem:[%s6974 + $0x8] sm:$0xf]
        %v6978 = vld [vmem:[%s6974 + $0xc] sm:$0xf]
        %v6979 = vld [vmem:[%s6974 + $0x10] sm:$0xf]
        %v6980 = vld [vmem:[%s6974 + $0x14] sm:$0xf]
        %v6981 = vld [vmem:[%s6974 + $0x18] sm:$0xf]
        %v6982 = vld [vmem:[%s6974 + $0x1c] sm:$0xf]
        %v6983 = vld [vmem:[%s6974 + $0x20] sm:$0xf]
        %v6984 = vld [vmem:[%s6974 + $0x24] sm:$0xf]
        %v6985 = vld [vmem:[%s6974 + $0x28] sm:$0xf]
        %v6986 = vld [vmem:[%s6974 + $0x2c] sm:$0xf]
        %v6987 = vld [vmem:[%s6974 + $0x30] sm:$0xf]
        %v6988 = vld [vmem:[%s6974 + $0x34] sm:$0xf]
        %v6989 = vld [vmem:[%s6974 + $0x38] sm:$0xf]
        %v6990 = vld [vmem:[%s6974 + $0x3c] sm:$0xf]
        %v6991 = vld [vmem:[%s6974 + $0x40] sm:$0xf]
        %v6992 = vld [vmem:[%s6974 + $0x44] sm:$0xf]
        %v6993 = vld [vmem:[%s6974 + $0x48] sm:$0xf]
        %v6994 = vld [vmem:[%s6974 + $0x4c] sm:$0xf]
        %v7003 = vunpack.c.l.b16 %v6966
        %v7004 = vunpack.c.h.b16 %v6966
        %v7005 = vunpack.c.l.b16 %v6967
        %v7006 = vunpack.c.h.b16 %v6967
        %v7007 = vunpack.c.l.b16 %v6968
        %v7008 = vunpack.c.h.b16 %v6968
        %v7009 = vunpack.c.l.b16 %v6969
        %v7010 = vunpack.c.h.b16 %v6969
        %v7011 = vunpack.c.l.b16 %v6970
        %v7012 = vunpack.c.h.b16 %v6970
        %v7013 = vunpack.c.l.b16 %v6971
        %v7014 = vunpack.c.h.b16 %v6971
        %v7015 = vunpack.c.l.b16 %v6972
        %v7016 = vunpack.c.h.b16 %v6972
        %v7017 = vunpack.c.l.b16 %v6973
        %v7018 = vunpack.c.h.b16 %v6973
        %v7019 = vpack.c.b16 %v7005, %v7003
        %v7020 = vpack.c.b16 %v7006, %v7004
        %v7021 = vpack.c.b16 %v7009, %v7007
        %v7022 = vpack.c.b16 %v7010, %v7008
        %v7023 = vpack.c.b16 %v7013, %v7011
        %v7024 = vpack.c.b16 %v7014, %v7012
        %v7025 = vpack.c.b16 %v7017, %v7015
        %v7026 = vpack.c.b16 %v7018, %v7016
        %v7051 = vunpack.c.l.b16 %v6975
        %v7052 = vunpack.c.l.b16 %v6976
        %v7053 = vunpack.c.l.b16 %v6977
        %v7054 = vunpack.c.l.b16 %v6978
        %v7055 = vunpack.c.l.b16 %v6979
        %v7056 = vunpack.c.l.b16 %v6980
        %v7057 = vunpack.c.l.b16 %v6981
        %v7058 = vunpack.c.l.b16 %v6982
        %v7059 = vunpack.c.l.b16 %v6983
        %v7060 = vunpack.c.l.b16 %v6984
        %v7061 = vunpack.c.l.b16 %v6985
        %v7062 = vunpack.c.l.b16 %v6986
        %v7063 = vunpack.c.l.b16 %v6987
        %v7064 = vunpack.c.l.b16 %v6988
        %v7065 = vunpack.c.l.b16 %v6989
        %v7066 = vunpack.c.l.b16 %v6990
        %v7067 = vunpack.c.l.b16 %v6991
        %v7068 = vunpack.c.l.b16 %v6992
        %v7069 = vunpack.c.l.b16 %v6993
        %v7070 = vunpack.c.l.b16 %v6994
        %v7071 = vpack.c.b16 %v7052, %v7051
        %v7072 = vpack.c.b16 %v7054, %v7053
        %v7073 = vpack.c.b16 %v7056, %v7055
        %v7074 = vpack.c.b16 %v7058, %v7057
        %v7075 = vpack.c.b16 %v7060, %v7059
        %v7076 = vpack.c.b16 %v7062, %v7061
        %v7077 = vpack.c.b16 %v7064, %v7063
        %v7078 = vpack.c.b16 %v7066, %v7065
        %v7079 = vpack.c.b16 %v7068, %v7067
        %v7080 = vpack.c.b16 %v7070, %v7069
        %v7092 = vsel %vm6524, %v7020, 0
        %v7095 = vsel %vm6524, %v7022, 0
        %v7098 = vsel %vm6524, %v7024, 0
        %v7101 = vsel %vm6524, %v7026, 0
        %7103 = vmatpush.bf16.msra.mxu0 %v7078
        %7104 = vmatpush.bf16.msra.mxu0 %v7077
        %7105 = vmatpush.bf16.msra.mxu0 %v7076
        %7106 = vmatpush.bf16.msra.mxu0 %v7075
        %7107 = vmatpush.bf16.msra.mxu0 %v7074
        %7108 = vmatpush.bf16.msra.mxu0 %v7073
        %7109 = vmatpush.bf16.msra.mxu0 %v7072
        %7110 = vmatpush.bf16.msra.mxu0 %v7071
        %7111 = vmatmul.bf16.gmra.mxu0 %v7019
        %v7112 = vpop.f32.mrf.mxu0
        %v7113 = vadd.f32 0.0, %v7112
        %v7114 = vpop.f32.mrf.mxu0
        %v7115 = vadd.f32 0.0, %v7114
        %7116 = vmatmul.bf16.gmra.mxu0 %v7021
        %v7117 = vpop.f32.mrf.mxu0
        %v7118 = vadd.f32 0.0, %v7117
        %v7119 = vpop.f32.mrf.mxu0
        %v7120 = vadd.f32 0.0, %v7119
        %7121 = vmatmul.bf16.gmra.mxu0 %v7023
        %v7122 = vpop.f32.mrf.mxu0
        %v7123 = vadd.f32 0.0, %v7122
        %v7124 = vpop.f32.mrf.mxu0
        %v7125 = vadd.f32 0.0, %v7124
        %7126 = vmatmul.bf16.gmra.mxu0 %v7025
        %v7127 = vpop.f32.mrf.mxu0
        %v7128 = vadd.f32 0.0, %v7127
        %v7129 = vpop.f32.mrf.mxu0
        %v7130 = vadd.f32 0.0, %v7129
        %7131 = vdwg.mxu0
        %7132 = vmatpush.bf16.msra.mxu0 0
        %7133 = vmatpush.bf16.msra.mxu0 0
        %7134 = vmatpush.bf16.msra.mxu0 0
        %7135 = vmatpush.bf16.msra.mxu0 0
        %7136 = vmatpush.bf16.msra.mxu0 0
        %7137 = vmatpush.bf16.msra.mxu0 0
        %7138 = vmatpush.bf16.msra.mxu0 %v7080
        %7139 = vmatpush.bf16.msra.mxu0 %v7079
        %7140 = vmatmul.bf16.gmra.mxu0 %v7092
        %v7141 = vpop.f32.mrf.mxu0
        %v7142 = vadd.f32 %v7113, %v7141
        %v7143 = vpop.f32.mrf.mxu0
        %v7144 = vadd.f32 %v7115, %v7143
        %7145 = vmatmul.bf16.gmra.mxu0 %v7095
        %v7146 = vpop.f32.mrf.mxu0
        %v7147 = vadd.f32 %v7118, %v7146
        %v7148 = vpop.f32.mrf.mxu0
        %v7149 = vadd.f32 %v7120, %v7148
        %7150 = vmatmul.bf16.gmra.mxu0 %v7098
        %v7151 = vpop.f32.mrf.mxu0
        %v7152 = vadd.f32 %v7123, %v7151
        %v7153 = vpop.f32.mrf.mxu0
        %v7154 = vadd.f32 %v7125, %v7153
        %7155 = vmatmul.bf16.gmra.mxu0 %v7101
        %v7156 = vpop.f32.mrf.mxu0
        %v7157 = vadd.f32 %v7128, %v7156
        %v7158 = vpop.f32.mrf.mxu0
        %v7159 = vadd.f32 %v7130, %v7158
        %7160 = vdwg.mxu0
        %v7161 = vadd.f32 %v6957, %v7142
        %v7162 = vadd.f32 %v6958, %v7144
        %v7163 = vadd.f32 %v6959, %v7147
        %v7164 = vadd.f32 %v6960, %v7149
        %v7165 = vadd.f32 %v6961, %v7152
        %v7166 = vadd.f32 %v6962, %v7154
        %v7167 = vadd.f32 %v6963, %v7157
        %v7168 = vadd.f32 %v6964, %v7159
        %s7169 = scalar_lea.vmem [#allocation5], 32
        %v7170 = vld [vmem:[%s7169] sm:$0xff]
        %v7171 = vld [vmem:[%s7169 + $0x8] sm:$0xff]
        %v7172 = vld [vmem:[%s7169 + $0x10] sm:$0xff]
        %v7173 = vld [vmem:[%s7169 + $0x18] sm:$0xff]
        %v7174 = vld [vmem:[%s7169 + $0x20] sm:$0xff]
        %v7175 = vld [vmem:[%s7169 + $0x28] sm:$0xff]
        %v7176 = vld [vmem:[%s7169 + $0x30] sm:$0xff]
        %v7177 = vld [vmem:[%s7169 + $0x38] sm:$0xff]
        %s7178 = scalar_lea.vmem %s5, 320
        %v7179 = vld [vmem:[%s7178] sm:$0xf]
        %v7180 = vld [vmem:[%s7178 + $0x4] sm:$0xf]
        %v7181 = vld [vmem:[%s7178 + $0x8] sm:$0xf]
        %v7182 = vld [vmem:[%s7178 + $0xc] sm:$0xf]
        %v7183 = vld [vmem:[%s7178 + $0x10] sm:$0xf]
        %v7184 = vld [vmem:[%s7178 + $0x14] sm:$0xf]
        %v7185 = vld [vmem:[%s7178 + $0x18] sm:$0xf]
        %v7186 = vld [vmem:[%s7178 + $0x1c] sm:$0xf]
        %v7187 = vld [vmem:[%s7178 + $0x20] sm:$0xf]
        %v7188 = vld [vmem:[%s7178 + $0x24] sm:$0xf]
        %v7189 = vld [vmem:[%s7178 + $0x28] sm:$0xf]
        %v7190 = vld [vmem:[%s7178 + $0x2c] sm:$0xf]
        %v7191 = vld [vmem:[%s7178 + $0x30] sm:$0xf]
        %v7192 = vld [vmem:[%s7178 + $0x34] sm:$0xf]
        %v7193 = vld [vmem:[%s7178 + $0x38] sm:$0xf]
        %v7194 = vld [vmem:[%s7178 + $0x3c] sm:$0xf]
        %v7195 = vld [vmem:[%s7178 + $0x40] sm:$0xf]
        %v7196 = vld [vmem:[%s7178 + $0x44] sm:$0xf]
        %v7197 = vld [vmem:[%s7178 + $0x48] sm:$0xf]
        %v7198 = vld [vmem:[%s7178 + $0x4c] sm:$0xf]
        %v7207 = vunpack.c.l.b16 %v7170
        %v7208 = vunpack.c.h.b16 %v7170
        %v7209 = vunpack.c.l.b16 %v7171
        %v7210 = vunpack.c.h.b16 %v7171
        %v7211 = vunpack.c.l.b16 %v7172
        %v7212 = vunpack.c.h.b16 %v7172
        %v7213 = vunpack.c.l.b16 %v7173
        %v7214 = vunpack.c.h.b16 %v7173
        %v7215 = vunpack.c.l.b16 %v7174
        %v7216 = vunpack.c.h.b16 %v7174
        %v7217 = vunpack.c.l.b16 %v7175
        %v7218 = vunpack.c.h.b16 %v7175
        %v7219 = vunpack.c.l.b16 %v7176
        %v7220 = vunpack.c.h.b16 %v7176
        %v7221 = vunpack.c.l.b16 %v7177
        %v7222 = vunpack.c.h.b16 %v7177
        %v7223 = vpack.c.b16 %v7209, %v7207
        %v7224 = vpack.c.b16 %v7210, %v7208
        %v7225 = vpack.c.b16 %v7213, %v7211
        %v7226 = vpack.c.b16 %v7214, %v7212
        %v7227 = vpack.c.b16 %v7217, %v7215
        %v7228 = vpack.c.b16 %v7218, %v7216
        %v7229 = vpack.c.b16 %v7221, %v7219
        %v7230 = vpack.c.b16 %v7222, %v7220
        %v7255 = vunpack.c.l.b16 %v7179
        %v7256 = vunpack.c.l.b16 %v7180
        %v7257 = vunpack.c.l.b16 %v7181
        %v7258 = vunpack.c.l.b16 %v7182
        %v7259 = vunpack.c.l.b16 %v7183
        %v7260 = vunpack.c.l.b16 %v7184
        %v7261 = vunpack.c.l.b16 %v7185
        %v7262 = vunpack.c.l.b16 %v7186
        %v7263 = vunpack.c.l.b16 %v7187
        %v7264 = vunpack.c.l.b16 %v7188
        %v7265 = vunpack.c.l.b16 %v7189
        %v7266 = vunpack.c.l.b16 %v7190
        %v7267 = vunpack.c.l.b16 %v7191
        %v7268 = vunpack.c.l.b16 %v7192
        %v7269 = vunpack.c.l.b16 %v7193
        %v7270 = vunpack.c.l.b16 %v7194
        %v7271 = vunpack.c.l.b16 %v7195
        %v7272 = vunpack.c.l.b16 %v7196
        %v7273 = vunpack.c.l.b16 %v7197
        %v7274 = vunpack.c.l.b16 %v7198
        %v7275 = vpack.c.b16 %v7256, %v7255
        %v7276 = vpack.c.b16 %v7258, %v7257
        %v7277 = vpack.c.b16 %v7260, %v7259
        %v7278 = vpack.c.b16 %v7262, %v7261
        %v7279 = vpack.c.b16 %v7264, %v7263
        %v7280 = vpack.c.b16 %v7266, %v7265
        %v7281 = vpack.c.b16 %v7268, %v7267
        %v7282 = vpack.c.b16 %v7270, %v7269
        %v7283 = vpack.c.b16 %v7272, %v7271
        %v7284 = vpack.c.b16 %v7274, %v7273
        %v7296 = vsel %vm6524, %v7224, 0
        %v7299 = vsel %vm6524, %v7226, 0
        %v7302 = vsel %vm6524, %v7228, 0
        %v7305 = vsel %vm6524, %v7230, 0
        %7307 = vmatpush.bf16.msra.mxu0 %v7282
        %7308 = vmatpush.bf16.msra.mxu0 %v7281
        %7309 = vmatpush.bf16.msra.mxu0 %v7280
        %7310 = vmatpush.bf16.msra.mxu0 %v7279
        %7311 = vmatpush.bf16.msra.mxu0 %v7278
        %7312 = vmatpush.bf16.msra.mxu0 %v7277
        %7313 = vmatpush.bf16.msra.mxu0 %v7276
        %7314 = vmatpush.bf16.msra.mxu0 %v7275
        %7315 = vmatmul.bf16.gmra.mxu0 %v7223
        %v7316 = vpop.f32.mrf.mxu0
        %v7317 = vadd.f32 0.0, %v7316
        %v7318 = vpop.f32.mrf.mxu0
        %v7319 = vadd.f32 0.0, %v7318
        %7320 = vmatmul.bf16.gmra.mxu0 %v7225
        %v7321 = vpop.f32.mrf.mxu0
        %v7322 = vadd.f32 0.0, %v7321
        %v7323 = vpop.f32.mrf.mxu0
        %v7324 = vadd.f32 0.0, %v7323
        %7325 = vmatmul.bf16.gmra.mxu0 %v7227
        %v7326 = vpop.f32.mrf.mxu0
        %v7327 = vadd.f32 0.0, %v7326
        %v7328 = vpop.f32.mrf.mxu0
        %v7329 = vadd.f32 0.0, %v7328
        %7330 = vmatmul.bf16.gmra.mxu0 %v7229
        %v7331 = vpop.f32.mrf.mxu0
        %v7332 = vadd.f32 0.0, %v7331
        %v7333 = vpop.f32.mrf.mxu0
        %v7334 = vadd.f32 0.0, %v7333
        %7335 = vdwg.mxu0
        %7336 = vmatpush.bf16.msra.mxu0 0
        %7337 = vmatpush.bf16.msra.mxu0 0
        %7338 = vmatpush.bf16.msra.mxu0 0
        %7339 = vmatpush.bf16.msra.mxu0 0
        %7340 = vmatpush.bf16.msra.mxu0 0
        %7341 = vmatpush.bf16.msra.mxu0 0
        %7342 = vmatpush.bf16.msra.mxu0 %v7284
        %7343 = vmatpush.bf16.msra.mxu0 %v7283
        %7344 = vmatmul.bf16.gmra.mxu0 %v7296
        %v7345 = vpop.f32.mrf.mxu0
        %v7346 = vadd.f32 %v7317, %v7345
        %v7347 = vpop.f32.mrf.mxu0
        %v7348 = vadd.f32 %v7319, %v7347
        %7349 = vmatmul.bf16.gmra.mxu0 %v7299
        %v7350 = vpop.f32.mrf.mxu0
        %v7351 = vadd.f32 %v7322, %v7350
        %v7352 = vpop.f32.mrf.mxu0
        %v7353 = vadd.f32 %v7324, %v7352
        %7354 = vmatmul.bf16.gmra.mxu0 %v7302
        %v7355 = vpop.f32.mrf.mxu0
        %v7356 = vadd.f32 %v7327, %v7355
        %v7357 = vpop.f32.mrf.mxu0
        %v7358 = vadd.f32 %v7329, %v7357
        %7359 = vmatmul.bf16.gmra.mxu0 %v7305
        %v7360 = vpop.f32.mrf.mxu0
        %v7361 = vadd.f32 %v7332, %v7360
        %v7362 = vpop.f32.mrf.mxu0
        %v7363 = vadd.f32 %v7334, %v7362
        %7364 = vdwg.mxu0
        %v7365 = vadd.f32 %v7161, %v7346
        %v7366 = vadd.f32 %v7162, %v7348
        %v7367 = vadd.f32 %v7163, %v7351
        %v7368 = vadd.f32 %v7164, %v7353
        %v7369 = vadd.f32 %v7165, %v7356
        %v7370 = vadd.f32 %v7166, %v7358
        %v7371 = vadd.f32 %v7167, %v7361
        %v7372 = vadd.f32 %v7168, %v7363
        %v7374 = vperm.slane %v6369, 0
        %v7376 = vadd.f32 %v7365, %v7374
        %v7377 = vadd.f32 %v7366, %v7374
        %v7378 = vadd.f32 %v7367, %v7374
        %v7379 = vadd.f32 %v7368, %v7374
        %v7380 = vadd.f32 %v7369, %v7374
        %v7381 = vadd.f32 %v7370, %v7374
        %v7382 = vadd.f32 %v7371, %v7374
        %v7383 = vadd.f32 %v7372, %v7374
        %vm7384 = vcmask 523264
        %v7385 = vsel %vm7384, %v7376, -inf
        %v7386 = vsel %vm7384, %v7377, -inf
        %v7387 = vmax.f32 %v7385, %v7386
        %v7388 = vsel %vm7384, %v7378, -inf
        %v7389 = vsel %vm7384, %v7379, -inf
        %v7390 = vmax.f32 %v7388, %v7389
        %v7391 = vsel %vm7384, %v7380, -inf
        %v7392 = vsel %vm7384, %v7381, -inf
        %v7393 = vmax.f32 %v7391, %v7392
        %v7394 = vsel %vm7384, %v7382, -inf
        %v7395 = vsel %vm7384, %v7383, -inf
        %v7396 = vmax.f32 %v7394, %v7395
        %v7397 = vpack.c.bf16 %v7390, %v7387
        %v7398 = vpack.c.bf16 %v7396, %v7393
        %v7403 = vunpack.c.l.b16 %v523
        %v7404 = vunpack.c.l.b16 %v524
        %v7405 = vunpack.c.l.b16 %v525
        %v7406 = vunpack.c.l.b16 %v526
        %v7407 = vpack.c.b16 %v7404, %v7403
        %v7408 = vpack.c.b16 %v7406, %v7405
        %v7410 = vsel %vm6524, %v7407, 0
        %v7413 = vsel %vm6524, %v7408, 0
        %7415 = vmatpush.bf16.msra.mxu0 0
        %7416 = vmatpush.bf16.msra.mxu0 0
        %7417 = vmatpush.bf16.msra.mxu0 0
        %7418 = vmatpush.bf16.msra.mxu0 0
        %7419 = vmatpush.bf16.msra.mxu0 0
        %7420 = vmatpush.bf16.msra.mxu0 0
        %7421 = vmatpush.bf16.msra.mxu0 %v7398
        %7422 = vmatpush.bf16.msra.mxu0 %v7397
        %7423 = vmatmul.bf16.gmra.mxu0 %v7410
        %v7424 = vpop.f32.mrf.mxu0
        %v7425 = vadd.f32 0.0, %v7424
        %v7426 = vpop.f32.mrf.mxu0
        %v7427 = vadd.f32 0.0, %v7426
        %7428 = vmatmul.bf16.gmra.mxu0 %v7413
        %v7429 = vpop.f32.mrf.mxu0
        %v7430 = vadd.f32 0.0, %v7429
        %v7431 = vpop.f32.mrf.mxu0
        %v7432 = vadd.f32 0.0, %v7431
        %7433 = vdwg.mxu0
        %v7434 = vsel %vm7384, %v7425, -inf
        %v7435 = vsel %vm7384, %v7430, -inf
        %v7436 = vmax.f32 %v7434, %v7435
        %v7437 = vsel %vm7384, %v7427, -inf
        %v7438 = vsel %vm7384, %v7432, -inf
        %v7439 = vmax.f32 %v7437, %v7438
        %v7440 = vpack.c.bf16 %v7436, %v7436
        %v7441 = vpack.c.bf16 %v7439, %v7439
        %vm7442 = vcmask 519168
        %7443 = vst.msk [vmem:[#allocation6] sm:$0xf] %vm7442, %v7440
        %7444 = vst.msk [vmem:[#allocation6 + $0x4] sm:$0xf] %vm7442, %v7441
        %v7445 = vld [vmem:[#allocation6] sm:$0x1]
        %v7446 = vld [vmem:[#allocation6] sm:$0x2]
        %v7447 = vld [vmem:[#allocation6] sm:$0x4]
        %v7448 = vld [vmem:[#allocation6] sm:$0x8]
        %v7449 = vld [vmem:[#allocation6 + $0x4] sm:$0x1]
        %v7450 = vld [vmem:[#allocation6 + $0x4] sm:$0x2]
        %v7451 = vld [vmem:[#allocation6 + $0x4] sm:$0x4]
        %v7452 = vld [vmem:[#allocation6 + $0x4] sm:$0x8]
        %v7454 = vunpack.c.l.b16 %v7445
        %v7455 = vpack.c.b16 %v7454, %v7454
        %v7457 = vshrl.u32 %v7455, 16
        %7459 = vrot.lane.b32.xlu0 %v7457, 64
        %v7460 = vpop.permute.xlu0 %7459
        %v7462 = vunpack.c.l.b16 %v7446
        %v7463 = vpack.c.b16 %v7462, %v7462
        %v7464 = vrot.slane %v7463, 1
        %v7466 = vshrl.u32 %v7463, 16
        %v7468 = vrot.slane %v7466, 1
        %7469 = vrot.lane.b32.xlu0 %v7468, 64
        %v7470 = vpop.permute.xlu0 %7469
        %v7472 = vunpack.c.l.b16 %v7447
        %v7473 = vpack.c.b16 %v7472, %v7472
        %v7474 = vrot.slane %v7473, 2
        %v7476 = vshrl.u32 %v7473, 16
        %v7478 = vrot.slane %v7476, 2
        %7479 = vrot.lane.b32.xlu0 %v7478, 64
        %v7480 = vpop.permute.xlu0 %7479
        %v7482 = vunpack.c.l.b16 %v7448
        %v7483 = vpack.c.b16 %v7482, %v7482
        %v7484 = vrot.slane %v7483, 3
        %v7486 = vshrl.u32 %v7483, 16
        %v7488 = vrot.slane %v7486, 3
        %7489 = vrot.lane.b32.xlu0 %v7488, 64
        %v7490 = vpop.permute.xlu0 %7489
        %v7492 = vunpack.c.l.b16 %v7449
        %v7493 = vpack.c.b16 %v7492, %v7492
        %v7495 = vshrl.u32 %v7493, 16
        %7497 = vrot.lane.b32.xlu0 %v7495, 64
        %v7498 = vpop.permute.xlu0 %7497
        %v7500 = vunpack.c.l.b16 %v7450
        %v7501 = vpack.c.b16 %v7500, %v7500
        %v7502 = vrot.slane %v7501, 1
        %v7504 = vshrl.u32 %v7501, 16
        %v7506 = vrot.slane %v7504, 1
        %7507 = vrot.lane.b32.xlu0 %v7506, 64
        %v7508 = vpop.permute.xlu0 %7507
        %v7510 = vunpack.c.l.b16 %v7451
        %v7511 = vpack.c.b16 %v7510, %v7510
        %v7512 = vrot.slane %v7511, 2
        %v7514 = vshrl.u32 %v7511, 16
        %v7516 = vrot.slane %v7514, 2
        %7517 = vrot.lane.b32.xlu0 %v7516, 64
        %v7518 = vpop.permute.xlu0 %7517
        %v7520 = vunpack.c.l.b16 %v7452
        %v7521 = vpack.c.b16 %v7520, %v7520
        %v7522 = vrot.slane %v7521, 3
        %v7524 = vshrl.u32 %v7521, 16
        %v7526 = vrot.slane %v7524, 3
        %7527 = vrot.lane.b32.xlu0 %v7526, 64
        %v7528 = vpop.permute.xlu0 %7527
        %v7531 = vsel %vm7384, %v7445, %v7460
        %v7535 = vsel %vm7384, %v7464, %v7470
        %v7539 = vsel %vm7384, %v7474, %v7480
        %v7543 = vsel %vm7384, %v7484, %v7490
        %v7547 = vsel %vm7384, %v7449, %v7498
        %v7551 = vsel %vm7384, %v7502, %v7508
        %v7555 = vsel %vm7384, %v7512, %v7518
        %v7559 = vsel %vm7384, %v7522, %v7528
        %v7561 = vld [vmem:[%s7] sm:$0xf]
        %v7562 = vld [vmem:[%s7 + $0x4] sm:$0xf]
        %v7563 = vld [vmem:[%s7 + $0x8] sm:$0xf]
        %v7564 = vld [vmem:[%s7 + $0xc] sm:$0xf]
        %v7565 = vld [vmem:[%s7 + $0x10] sm:$0xf]
        %v7566 = vld [vmem:[%s7 + $0x14] sm:$0xf]
        %v7567 = vld [vmem:[%s7 + $0x18] sm:$0xf]
        %v7568 = vld [vmem:[%s7 + $0x1c] sm:$0xf]
        %v7569 = vld [vmem:[%s7 + $0x20] sm:$0xf]
        %v7570 = vld [vmem:[%s7 + $0x24] sm:$0xf]
        %v7571 = vld [vmem:[%s7 + $0x28] sm:$0xf]
        %v7572 = vld [vmem:[%s7 + $0x2c] sm:$0xf]
        %v7573 = vld [vmem:[%s7 + $0x30] sm:$0xf]
        %v7574 = vld [vmem:[%s7 + $0x34] sm:$0xf]
        %v7575 = vld [vmem:[%s7 + $0x38] sm:$0xf]
        %v7576 = vld [vmem:[%s7 + $0x3c] sm:$0xf]
        %v7577 = vld [vmem:[%s7 + $0x40] sm:$0xf]
        %v7578 = vld [vmem:[%s7 + $0x44] sm:$0xf]
        %v7579 = vld [vmem:[%s7 + $0x48] sm:$0xf]
        %v7580 = vld [vmem:[%s7 + $0x4c] sm:$0xf]
        %v7581 = vld [vmem:[%s7 + $0x50] sm:$0xf]
        %v7582 = vld [vmem:[%s7 + $0x54] sm:$0xf]
        %v7583 = vld [vmem:[%s7 + $0x58] sm:$0xf]
        %v7584 = vld [vmem:[%s7 + $0x5c] sm:$0xf]
        %v7585 = vld [vmem:[%s7 + $0x60] sm:$0xf]
        %v7586 = vld [vmem:[%s7 + $0x64] sm:$0xf]
        %v7587 = vld [vmem:[%s7 + $0x68] sm:$0xf]
        %v7588 = vld [vmem:[%s7 + $0x6c] sm:$0xf]
        %v7589 = vld [vmem:[%s7 + $0x70] sm:$0xf]
        %v7590 = vld [vmem:[%s7 + $0x74] sm:$0xf]
        %v7591 = vld [vmem:[%s7 + $0x78] sm:$0xf]
        %v7592 = vld [vmem:[%s7 + $0x7c] sm:$0xf]
        %v7593 = vld [vmem:[%s7 + $0x80] sm:$0xf]
        %v7594 = vld [vmem:[%s7 + $0x84] sm:$0xf]
        %v7595 = vld [vmem:[%s7 + $0x88] sm:$0xf]
        %v7596 = vld [vmem:[%s7 + $0x8c] sm:$0xf]
        %v7597 = vld [vmem:[%s7 + $0x90] sm:$0xf]
        %v7598 = vld [vmem:[%s7 + $0x94] sm:$0xf]
        %v7599 = vld [vmem:[%s7 + $0x98] sm:$0xf]
        %v7600 = vld [vmem:[%s7 + $0x9c] sm:$0xf]
        %v7601 = vld [vmem:[%s7 + $0xa0] sm:$0xf]
        %v7602 = vld [vmem:[%s7 + $0xa4] sm:$0xf]
        %v7603 = vld [vmem:[%s7 + $0xa8] sm:$0xf]
        %v7604 = vld [vmem:[%s7 + $0xac] sm:$0xf]
        %v7605 = vld [vmem:[%s7 + $0xb0] sm:$0xf]
        %v7606 = vld [vmem:[%s7 + $0xb4] sm:$0xf]
        %v7607 = vld [vmem:[%s7 + $0xb8] sm:$0xf]
        %v7608 = vld [vmem:[%s7 + $0xbc] sm:$0xf]
        %v7609 = vld [vmem:[%s7 + $0xc0] sm:$0xf]
        %v7610 = vld [vmem:[%s7 + $0xc4] sm:$0xf]
        %v7611 = vld [vmem:[%s7 + $0xc8] sm:$0xf]
        %v7612 = vld [vmem:[%s7 + $0xcc] sm:$0xf]
        %v7613 = vld [vmem:[%s7 + $0xd0] sm:$0xf]
        %v7614 = vld [vmem:[%s7 + $0xd4] sm:$0xf]
        %v7615 = vld [vmem:[%s7 + $0xd8] sm:$0xf]
        %v7616 = vld [vmem:[%s7 + $0xdc] sm:$0xf]
        %v7617 = vld [vmem:[%s7 + $0xe0] sm:$0xf]
        %v7618 = vld [vmem:[%s7 + $0xe4] sm:$0xf]
        %v7619 = vld [vmem:[%s7 + $0xe8] sm:$0xf]
        %v7620 = vld [vmem:[%s7 + $0xec] sm:$0xf]
        %v7621 = vld [vmem:[%s7 + $0xf0] sm:$0xf]
        %v7622 = vld [vmem:[%s7 + $0xf4] sm:$0xf]
        %v7623 = vld [vmem:[%s7 + $0xf8] sm:$0xf]
        %v7624 = vld [vmem:[%s7 + $0xfc] sm:$0xf]
        %v7625 = vld [vmem:[%s7 + $0x100] sm:$0xf]
        %v7626 = vld [vmem:[%s7 + $0x104] sm:$0xf]
        %v7627 = vld [vmem:[%s7 + $0x108] sm:$0xf]
        %v7628 = vld [vmem:[%s7 + $0x10c] sm:$0xf]
        %v7629 = vld [vmem:[%s7 + $0x110] sm:$0xf]
        %v7630 = vld [vmem:[%s7 + $0x114] sm:$0xf]
        %v7631 = vld [vmem:[%s7 + $0x118] sm:$0xf]
        %v7632 = vld [vmem:[%s7 + $0x11c] sm:$0xf]
        %v7633 = vld [vmem:[%s7 + $0x120] sm:$0xf]
        %v7634 = vld [vmem:[%s7 + $0x124] sm:$0xf]
        %v7635 = vld [vmem:[%s7 + $0x128] sm:$0xf]
        %v7636 = vld [vmem:[%s7 + $0x12c] sm:$0xf]
        %v7637 = vld [vmem:[%s7 + $0x130] sm:$0xf]
        %v7638 = vld [vmem:[%s7 + $0x134] sm:$0xf]
        %v7639 = vld [vmem:[%s7 + $0x138] sm:$0xf]
        %v7640 = vld [vmem:[%s7 + $0x13c] sm:$0xf]
        %v7641 = vld [vmem:[%s7 + $0x140] sm:$0xf]
        %v7642 = vld [vmem:[%s7 + $0x144] sm:$0xf]
        %v7643 = vld [vmem:[%s7 + $0x148] sm:$0xf]
        %v7644 = vld [vmem:[%s7 + $0x14c] sm:$0xf]
        %v7645 = vld [vmem:[%s7 + $0x150] sm:$0xf]
        %v7646 = vld [vmem:[%s7 + $0x154] sm:$0xf]
        %v7647 = vld [vmem:[%s7 + $0x158] sm:$0xf]
        %v7648 = vld [vmem:[%s7 + $0x15c] sm:$0xf]
        %v7649 = vld [vmem:[%s7 + $0x160] sm:$0xf]
        %v7650 = vld [vmem:[%s7 + $0x164] sm:$0xf]
        %v7651 = vld [vmem:[%s7 + $0x168] sm:$0xf]
        %v7652 = vld [vmem:[%s7 + $0x16c] sm:$0xf]
        %v7653 = vld [vmem:[%s7 + $0x170] sm:$0xf]
        %v7654 = vld [vmem:[%s7 + $0x174] sm:$0xf]
        %v7655 = vld [vmem:[%s7 + $0x178] sm:$0xf]
        %v7656 = vld [vmem:[%s7 + $0x17c] sm:$0xf]
        %v7657 = vld [vmem:[%s7 + $0x180] sm:$0xf]
        %v7658 = vld [vmem:[%s7 + $0x184] sm:$0xf]
        %v7659 = vld [vmem:[%s7 + $0x188] sm:$0xf]
        %v7660 = vld [vmem:[%s7 + $0x18c] sm:$0xf]
        %v7661 = vld [vmem:[%s7 + $0x190] sm:$0xf]
        %v7662 = vld [vmem:[%s7 + $0x194] sm:$0xf]
        %v7663 = vld [vmem:[%s7 + $0x198] sm:$0xf]
        %v7664 = vld [vmem:[%s7 + $0x19c] sm:$0xf]
        %v7665 = vld [vmem:[%s7 + $0x1a0] sm:$0xf]
        %v7666 = vld [vmem:[%s7 + $0x1a4] sm:$0xf]
        %v7667 = vld [vmem:[%s7 + $0x1a8] sm:$0xf]
        %v7668 = vld [vmem:[%s7 + $0x1ac] sm:$0xf]
        %v7669 = vld [vmem:[%s7 + $0x1b0] sm:$0xf]
        %v7670 = vld [vmem:[%s7 + $0x1b4] sm:$0xf]
        %v7671 = vld [vmem:[%s7 + $0x1b8] sm:$0xf]
        %v7672 = vld [vmem:[%s7 + $0x1bc] sm:$0xf]
        %v7673 = vld [vmem:[%s7 + $0x1c0] sm:$0xf]
        %v7674 = vld [vmem:[%s7 + $0x1c4] sm:$0xf]
        %v7675 = vld [vmem:[%s7 + $0x1c8] sm:$0xf]
        %v7676 = vld [vmem:[%s7 + $0x1cc] sm:$0xf]
        %v7677 = vld [vmem:[%s7 + $0x1d0] sm:$0xf]
        %v7678 = vld [vmem:[%s7 + $0x1d4] sm:$0xf]
        %v7679 = vld [vmem:[%s7 + $0x1d8] sm:$0xf]
        %v7680 = vld [vmem:[%s7 + $0x1dc] sm:$0xf]
        %v7681 = vld [vmem:[%s7 + $0x1e0] sm:$0xf]
        %v7682 = vld [vmem:[%s7 + $0x1e4] sm:$0xf]
        %v7683 = vld [vmem:[%s7 + $0x1e8] sm:$0xf]
        %v7684 = vld [vmem:[%s7 + $0x1ec] sm:$0xf]
        %v7685 = vld [vmem:[%s7 + $0x1f0] sm:$0xf]
        %v7686 = vld [vmem:[%s7 + $0x1f4] sm:$0xf]
        %v7687 = vld [vmem:[%s7 + $0x1f8] sm:$0xf]
        %v7688 = vld [vmem:[%s7 + $0x1fc] sm:$0xf]
        %v7689 = vld [vmem:[%s8] sm:$0x1]
        %v7818 = vunpack.c.l.b16 %v7561
        %v7819 = vunpack.c.l.b16 %v7562
        %v7820 = vunpack.c.l.b16 %v7563
        %v7821 = vunpack.c.l.b16 %v7564
        %v7822 = vunpack.c.l.b16 %v7565
        %v7823 = vunpack.c.l.b16 %v7566
        %v7824 = vunpack.c.l.b16 %v7567
        %v7825 = vunpack.c.l.b16 %v7568
        %v7826 = vunpack.c.l.b16 %v7569
        %v7827 = vunpack.c.l.b16 %v7570
        %v7828 = vunpack.c.l.b16 %v7571
        %v7829 = vunpack.c.l.b16 %v7572
        %v7830 = vunpack.c.l.b16 %v7573
        %v7831 = vunpack.c.l.b16 %v7574
        %v7832 = vunpack.c.l.b16 %v7575
        %v7833 = vunpack.c.l.b16 %v7576
        %v7834 = vunpack.c.l.b16 %v7577
        %v7835 = vunpack.c.l.b16 %v7578
        %v7836 = vunpack.c.l.b16 %v7579
        %v7837 = vunpack.c.l.b16 %v7580
        %v7838 = vunpack.c.l.b16 %v7581
        %v7839 = vunpack.c.l.b16 %v7582
        %v7840 = vunpack.c.l.b16 %v7583
        %v7841 = vunpack.c.l.b16 %v7584
        %v7842 = vunpack.c.l.b16 %v7585
        %v7843 = vunpack.c.l.b16 %v7586
        %v7844 = vunpack.c.l.b16 %v7587
        %v7845 = vunpack.c.l.b16 %v7588
        %v7846 = vunpack.c.l.b16 %v7589
        %v7847 = vunpack.c.l.b16 %v7590
        %v7848 = vunpack.c.l.b16 %v7591
        %v7849 = vunpack.c.l.b16 %v7592
        %v7850 = vunpack.c.l.b16 %v7593
        %v7851 = vunpack.c.l.b16 %v7594
        %v7852 = vunpack.c.l.b16 %v7595
        %v7853 = vunpack.c.l.b16 %v7596
        %v7854 = vunpack.c.l.b16 %v7597
        %v7855 = vunpack.c.l.b16 %v7598
        %v7856 = vunpack.c.l.b16 %v7599
        %v7857 = vunpack.c.l.b16 %v7600
        %v7858 = vunpack.c.l.b16 %v7601
        %v7859 = vunpack.c.l.b16 %v7602
        %v7860 = vunpack.c.l.b16 %v7603
        %v7861 = vunpack.c.l.b16 %v7604
        %v7862 = vunpack.c.l.b16 %v7605
        %v7863 = vunpack.c.l.b16 %v7606
        %v7864 = vunpack.c.l.b16 %v7607
        %v7865 = vunpack.c.l.b16 %v7608
        %v7866 = vunpack.c.l.b16 %v7609
        %v7867 = vunpack.c.l.b16 %v7610
        %v7868 = vunpack.c.l.b16 %v7611
        %v7869 = vunpack.c.l.b16 %v7612
        %v7870 = vunpack.c.l.b16 %v7613
        %v7871 = vunpack.c.l.b16 %v7614
        %v7872 = vunpack.c.l.b16 %v7615
        %v7873 = vunpack.c.l.b16 %v7616
        %v7874 = vunpack.c.l.b16 %v7617
        %v7875 = vunpack.c.l.b16 %v7618
        %v7876 = vunpack.c.l.b16 %v7619
        %v7877 = vunpack.c.l.b16 %v7620
        %v7878 = vunpack.c.l.b16 %v7621
        %v7879 = vunpack.c.l.b16 %v7622
        %v7880 = vunpack.c.l.b16 %v7623
        %v7881 = vunpack.c.l.b16 %v7624
        %v7882 = vunpack.c.l.b16 %v7625
        %v7883 = vunpack.c.l.b16 %v7626
        %v7884 = vunpack.c.l.b16 %v7627
        %v7885 = vunpack.c.l.b16 %v7628
        %v7886 = vunpack.c.l.b16 %v7629
        %v7887 = vunpack.c.l.b16 %v7630
        %v7888 = vunpack.c.l.b16 %v7631
        %v7889 = vunpack.c.l.b16 %v7632
        %v7890 = vunpack.c.l.b16 %v7633
        %v7891 = vunpack.c.l.b16 %v7634
        %v7892 = vunpack.c.l.b16 %v7635
        %v7893 = vunpack.c.l.b16 %v7636
        %v7894 = vunpack.c.l.b16 %v7637
        %v7895 = vunpack.c.l.b16 %v7638
        %v7896 = vunpack.c.l.b16 %v7639
        %v7897 = vunpack.c.l.b16 %v7640
        %v7898 = vunpack.c.l.b16 %v7641
        %v7899 = vunpack.c.l.b16 %v7642
        %v7900 = vunpack.c.l.b16 %v7643
        %v7901 = vunpack.c.l.b16 %v7644
        %v7902 = vunpack.c.l.b16 %v7645
        %v7903 = vunpack.c.l.b16 %v7646
        %v7904 = vunpack.c.l.b16 %v7647
        %v7905 = vunpack.c.l.b16 %v7648
        %v7906 = vunpack.c.l.b16 %v7649
        %v7907 = vunpack.c.l.b16 %v7650
        %v7908 = vunpack.c.l.b16 %v7651
        %v7909 = vunpack.c.l.b16 %v7652
        %v7910 = vunpack.c.l.b16 %v7653
        %v7911 = vunpack.c.l.b16 %v7654
        %v7912 = vunpack.c.l.b16 %v7655
        %v7913 = vunpack.c.l.b16 %v7656
        %v7914 = vunpack.c.l.b16 %v7657
        %v7915 = vunpack.c.l.b16 %v7658
        %v7916 = vunpack.c.l.b16 %v7659
        %v7917 = vunpack.c.l.b16 %v7660
        %v7918 = vunpack.c.l.b16 %v7661
        %v7919 = vunpack.c.l.b16 %v7662
        %v7920 = vunpack.c.l.b16 %v7663
        %v7921 = vunpack.c.l.b16 %v7664
        %v7922 = vunpack.c.l.b16 %v7665
        %v7923 = vunpack.c.l.b16 %v7666
        %v7924 = vunpack.c.l.b16 %v7667
        %v7925 = vunpack.c.l.b16 %v7668
        %v7926 = vunpack.c.l.b16 %v7669
        %v7927 = vunpack.c.l.b16 %v7670
        %v7928 = vunpack.c.l.b16 %v7671
        %v7929 = vunpack.c.l.b16 %v7672
        %v7930 = vunpack.c.l.b16 %v7673
        %v7931 = vunpack.c.l.b16 %v7674
        %v7932 = vunpack.c.l.b16 %v7675
        %v7933 = vunpack.c.l.b16 %v7676
        %v7934 = vunpack.c.l.b16 %v7677
        %v7935 = vunpack.c.l.b16 %v7678
        %v7936 = vunpack.c.l.b16 %v7679
        %v7937 = vunpack.c.l.b16 %v7680
        %v7938 = vunpack.c.l.b16 %v7681
        %v7939 = vunpack.c.l.b16 %v7682
        %v7940 = vunpack.c.l.b16 %v7683
        %v7941 = vunpack.c.l.b16 %v7684
        %v7942 = vunpack.c.l.b16 %v7685
        %v7943 = vunpack.c.l.b16 %v7686
        %v7944 = vunpack.c.l.b16 %v7687
        %v7945 = vunpack.c.l.b16 %v7688
        %v7946 = vpack.c.b16 %v7819, %v7818
        %v7947 = vpack.c.b16 %v7821, %v7820
        %v7948 = vpack.c.b16 %v7823, %v7822
        %v7949 = vpack.c.b16 %v7825, %v7824
        %v7950 = vpack.c.b16 %v7827, %v7826
        %v7951 = vpack.c.b16 %v7829, %v7828
        %v7952 = vpack.c.b16 %v7831, %v7830
        %v7953 = vpack.c.b16 %v7833, %v7832
        %v7954 = vpack.c.b16 %v7835, %v7834
        %v7955 = vpack.c.b16 %v7837, %v7836
        %v7956 = vpack.c.b16 %v7839, %v7838
        %v7957 = vpack.c.b16 %v7841, %v7840
        %v7958 = vpack.c.b16 %v7843, %v7842
        %v7959 = vpack.c.b16 %v7845, %v7844
        %v7960 = vpack.c.b16 %v7847, %v7846
        %v7961 = vpack.c.b16 %v7849, %v7848
        %v7962 = vpack.c.b16 %v7851, %v7850
        %v7963 = vpack.c.b16 %v7853, %v7852
        %v7964 = vpack.c.b16 %v7855, %v7854
        %v7965 = vpack.c.b16 %v7857, %v7856
        %v7966 = vpack.c.b16 %v7859, %v7858
        %v7967 = vpack.c.b16 %v7861, %v7860
        %v7968 = vpack.c.b16 %v7863, %v7862
        %v7969 = vpack.c.b16 %v7865, %v7864
        %v7970 = vpack.c.b16 %v7867, %v7866
        %v7971 = vpack.c.b16 %v7869, %v7868
        %v7972 = vpack.c.b16 %v7871, %v7870
        %v7973 = vpack.c.b16 %v7873, %v7872
        %v7974 = vpack.c.b16 %v7875, %v7874
        %v7975 = vpack.c.b16 %v7877, %v7876
        %v7976 = vpack.c.b16 %v7879, %v7878
        %v7977 = vpack.c.b16 %v7881, %v7880
        %v7978 = vpack.c.b16 %v7883, %v7882
        %v7979 = vpack.c.b16 %v7885, %v7884
        %v7980 = vpack.c.b16 %v7887, %v7886
        %v7981 = vpack.c.b16 %v7889, %v7888
        %v7982 = vpack.c.b16 %v7891, %v7890
        %v7983 = vpack.c.b16 %v7893, %v7892
        %v7984 = vpack.c.b16 %v7895, %v7894
        %v7985 = vpack.c.b16 %v7897, %v7896
        %v7986 = vpack.c.b16 %v7899, %v7898
        %v7987 = vpack.c.b16 %v7901, %v7900
        %v7988 = vpack.c.b16 %v7903, %v7902
        %v7989 = vpack.c.b16 %v7905, %v7904
        %v7990 = vpack.c.b16 %v7907, %v7906
        %v7991 = vpack.c.b16 %v7909, %v7908
        %v7992 = vpack.c.b16 %v7911, %v7910
        %v7993 = vpack.c.b16 %v7913, %v7912
        %v7994 = vpack.c.b16 %v7915, %v7914
        %v7995 = vpack.c.b16 %v7917, %v7916
        %v7996 = vpack.c.b16 %v7919, %v7918
        %v7997 = vpack.c.b16 %v7921, %v7920
        %v7998 = vpack.c.b16 %v7923, %v7922
        %v7999 = vpack.c.b16 %v7925, %v7924
        %v8000 = vpack.c.b16 %v7927, %v7926
        %v8001 = vpack.c.b16 %v7929, %v7928
        %v8002 = vpack.c.b16 %v7931, %v7930
        %v8003 = vpack.c.b16 %v7933, %v7932
        %v8004 = vpack.c.b16 %v7935, %v7934
        %v8005 = vpack.c.b16 %v7937, %v7936
        %v8006 = vpack.c.b16 %v7939, %v7938
        %v8007 = vpack.c.b16 %v7941, %v7940
        %v8008 = vpack.c.b16 %v7943, %v7942
        %v8009 = vpack.c.b16 %v7945, %v7944
        %8074 = vmatpush.bf16.msra.mxu0 %v7953
        %8075 = vmatpush.bf16.msra.mxu0 %v7952
        %8076 = vmatpush.bf16.msra.mxu0 %v7951
        %8077 = vmatpush.bf16.msra.mxu0 %v7950
        %8078 = vmatpush.bf16.msra.mxu0 %v7949
        %8079 = vmatpush.bf16.msra.mxu0 %v7948
        %8080 = vmatpush.bf16.msra.mxu0 %v7947
        %8081 = vmatpush.bf16.msra.mxu0 %v7946
        %8082 = vmatmul.bf16.gmra.mxu0 %v7531
        %v8083 = vpop.f32.mrf.mxu0
        %v8084 = vadd.f32 %v7689, %v8083
        %v8085 = vpop.f32.mrf.mxu0
        %8086 = vdwg.mxu0
        %8087 = vmatpush.bf16.msra.mxu0 %v7961
        %8088 = vmatpush.bf16.msra.mxu0 %v7960
        %8089 = vmatpush.bf16.msra.mxu0 %v7959
        %8090 = vmatpush.bf16.msra.mxu0 %v7958
        %8091 = vmatpush.bf16.msra.mxu0 %v7957
        %8092 = vmatpush.bf16.msra.mxu0 %v7956
        %8093 = vmatpush.bf16.msra.mxu0 %v7955
        %8094 = vmatpush.bf16.msra.mxu0 %v7954
        %8095 = vmatmul.bf16.gmra.mxu0 %v7535
        %v8096 = vpop.f32.mrf.mxu0
        %v8097 = vadd.f32 %v8084, %v8096
        %v8098 = vpop.f32.mrf.mxu0
        %8099 = vdwg.mxu0
        %8100 = vmatpush.bf16.msra.mxu0 %v7969
        %8101 = vmatpush.bf16.msra.mxu0 %v7968
        %8102 = vmatpush.bf16.msra.mxu0 %v7967
        %8103 = vmatpush.bf16.msra.mxu0 %v7966
        %8104 = vmatpush.bf16.msra.mxu0 %v7965
        %8105 = vmatpush.bf16.msra.mxu0 %v7964
        %8106 = vmatpush.bf16.msra.mxu0 %v7963
        %8107 = vmatpush.bf16.msra.mxu0 %v7962
        %8108 = vmatmul.bf16.gmra.mxu0 %v7539
        %v8109 = vpop.f32.mrf.mxu0
        %v8110 = vadd.f32 %v8097, %v8109
        %v8111 = vpop.f32.mrf.mxu0
        %8112 = vdwg.mxu0
        %8113 = vmatpush.bf16.msra.mxu0 %v7977
        %8114 = vmatpush.bf16.msra.mxu0 %v7976
        %8115 = vmatpush.bf16.msra.mxu0 %v7975
        %8116 = vmatpush.bf16.msra.mxu0 %v7974
        %8117 = vmatpush.bf16.msra.mxu0 %v7973
        %8118 = vmatpush.bf16.msra.mxu0 %v7972
        %8119 = vmatpush.bf16.msra.mxu0 %v7971
        %8120 = vmatpush.bf16.msra.mxu0 %v7970
        %8121 = vmatmul.bf16.gmra.mxu0 %v7543
        %v8122 = vpop.f32.mrf.mxu0
        %v8123 = vadd.f32 %v8110, %v8122
        %v8124 = vpop.f32.mrf.mxu0
        %8125 = vdwg.mxu0
        %8126 = vmatpush.bf16.msra.mxu0 %v7985
        %8127 = vmatpush.bf16.msra.mxu0 %v7984
        %8128 = vmatpush.bf16.msra.mxu0 %v7983
        %8129 = vmatpush.bf16.msra.mxu0 %v7982
        %8130 = vmatpush.bf16.msra.mxu0 %v7981
        %8131 = vmatpush.bf16.msra.mxu0 %v7980
        %8132 = vmatpush.bf16.msra.mxu0 %v7979
        %8133 = vmatpush.bf16.msra.mxu0 %v7978
        %8134 = vmatmul.bf16.gmra.mxu0 %v7547
        %v8135 = vpop.f32.mrf.mxu0
        %v8136 = vadd.f32 %v8123, %v8135
        %v8137 = vpop.f32.mrf.mxu0
        %8138 = vdwg.mxu0
        %8139 = vmatpush.bf16.msra.mxu0 %v7993
        %8140 = vmatpush.bf16.msra.mxu0 %v7992
        %8141 = vmatpush.bf16.msra.mxu0 %v7991
        %8142 = vmatpush.bf16.msra.mxu0 %v7990
        %8143 = vmatpush.bf16.msra.mxu0 %v7989
        %8144 = vmatpush.bf16.msra.mxu0 %v7988
        %8145 = vmatpush.bf16.msra.mxu0 %v7987
        %8146 = vmatpush.bf16.msra.mxu0 %v7986
        %8147 = vmatmul.bf16.gmra.mxu0 %v7551
        %v8148 = vpop.f32.mrf.mxu0
        %v8149 = vadd.f32 %v8136, %v8148
        %v8150 = vpop.f32.mrf.mxu0
        %8151 = vdwg.mxu0
        %8152 = vmatpush.bf16.msra.mxu0 %v8001
        %8153 = vmatpush.bf16.msra.mxu0 %v8000
        %8154 = vmatpush.bf16.msra.mxu0 %v7999
        %8155 = vmatpush.bf16.msra.mxu0 %v7998
        %8156 = vmatpush.bf16.msra.mxu0 %v7997
        %8157 = vmatpush.bf16.msra.mxu0 %v7996
        %8158 = vmatpush.bf16.msra.mxu0 %v7995
        %8159 = vmatpush.bf16.msra.mxu0 %v7994
        %8160 = vmatmul.bf16.gmra.mxu0 %v7555
        %v8161 = vpop.f32.mrf.mxu0
        %v8162 = vadd.f32 %v8149, %v8161
        %v8163 = vpop.f32.mrf.mxu0
        %8164 = vdwg.mxu0
        %8165 = vmatpush.bf16.msra.mxu0 %v8009
        %8166 = vmatpush.bf16.msra.mxu0 %v8008
        %8167 = vmatpush.bf16.msra.mxu0 %v8007
        %8168 = vmatpush.bf16.msra.mxu0 %v8006
        %8169 = vmatpush.bf16.msra.mxu0 %v8005
        %8170 = vmatpush.bf16.msra.mxu0 %v8004
        %8171 = vmatpush.bf16.msra.mxu0 %v8003
        %8172 = vmatpush.bf16.msra.mxu0 %v8002
        %8173 = vmatmul.bf16.gmra.mxu0 %v7559
        %v8174 = vpop.f32.mrf.mxu0
        %v8175 = vadd.f32 %v8162, %v8174
        %v8176 = vpop.f32.mrf.mxu0
        %8177 = vdwg.mxu0
        %v8178 = vld [vmem:[%s9] sm:$0xff]
        %v8179 = vld [vmem:[%s9 + $0x8] sm:$0xff]
        %v8180 = vld [vmem:[%s9 + $0x10] sm:$0xff]
        %v8181 = vld [vmem:[%s9 + $0x18] sm:$0xff]
        %v8182 = vld [vmem:[%s9 + $0x20] sm:$0xff]
        %v8183 = vld [vmem:[%s9 + $0x28] sm:$0xff]
        %v8184 = vld [vmem:[%s9 + $0x30] sm:$0xff]
        %v8185 = vld [vmem:[%s9 + $0x38] sm:$0xff]
        %v8186 = vld [vmem:[%s10] sm:$0x1]
        %v8188 = vsel %vm7384, %v8175, 0
        %8190 = vmatpush.msra.mxu0 0.0
        %8191 = vmatpush.msra.mxu0 0.0
        %8192 = vmatpush.msra.mxu0 0.0
        %8193 = vmatpush.msra.mxu0 0.0
        %8194 = vmatpush.msra.mxu0 0.0
        %8195 = vmatpush.msra.mxu0 0.0
        %8196 = vmatpush.msra.mxu0 0.0
        %8197 = vmatpush.msra.mxu0 0.0
        %8198 = vmatpush.msra.mxu0 %v8185
        %8199 = vmatpush.msra.mxu0 %v8184
        %8200 = vmatpush.msra.mxu0 %v8183
        %8201 = vmatpush.msra.mxu0 %v8182
        %8202 = vmatpush.msra.mxu0 %v8181
        %8203 = vmatpush.msra.mxu0 %v8180
        %8204 = vmatpush.msra.mxu0 %v8179
        %8205 = vmatpush.msra.mxu0 %v8178
        %8206 = vmatmul.f32.gmra.mxu0 %v8188
        %v8207 = vpop.f32.mrf.mxu0
        %v8208 = vadd.f32 %v8186, %v8207
        %8209 = vdwg.mxu0
        %8210 = vst [vmem:[%s432] sm:$0x1] %v8208
        %s8211 = sand.u32 %s313, 1
        %s8212 = scalar_lea.sflag [#allocation8], %s8211
        %s8213 = sand.u32 %s313, 1
        %s8214 = scalar_lea.vmem [#allocation7], %s8213
        // Predicated region
        $region87: #{my_network_forward.1} parent=71 // pred_check
          %p8215 = pneg %p323
        $region88: #{my_network_forward.1} parent=71 // pred_check_branch
          %8217 = sbr.rel (%p8215) target = $region90
        $region89: #{my_network_forward.1} parent=71 // pred_region
          %8219 = vsyncadd %s8212, 0
          %s8220 = scalar_lea.hbm %s13, %s27
          %s8222 = sshll.u32 %s8214, 4
          %s8223 = int_to_ptr.vmem [resolvable:$true] %s8222
          %s8224 = sshll.u32 %s8220, 4
          %s8225 = int_to_ptr.hbm [resolvable:$true] %s8224
          %8227 = dma.vmem_to_hbm [thread:$0]  %s8223, 16, %s8225, %s8212
        $region90: #{my_network_forward.1} parent=71 // pred_fallthru
          _
      $region72: #{my_network_forward.1} parent=5 // pred_fallthru
        _
      %p8228 = scmp.le.s32.totalorder 2, %s22
      // Predicated region
      $region91: #{my_network_forward.1} parent=5 // pred_check
        %p8229 = pneg %p8228
      $region92: #{my_network_forward.1} parent=5 // pred_check_branch
        %8231 = sbr.rel (%p8229) target = $region94
      $region93: #{my_network_forward.1} parent=5 // pred_region
        %s8232 = ssub.s32 %s22, 2
        // Predicated region
        $region95: #{my_network_forward.1} parent=93 // pred_check
          %p8233 = pneg %p329
        $region96: #{my_network_forward.1} parent=93 // pred_check_branch
          %8235 = sbr.rel (%p8233) target = $region98
        $region97: #{my_network_forward.1} parent=93 // pred_region
          %s8236 = sand.u32 %s314, 1
          %s8237 = scalar_lea.sflag [#allocation8], %s8236
          %s8238 = sand.u32 %s314, 1
          %s8239 = scalar_lea.vmem [#allocation7], %s8238
          %8241 = dma.done %s8237, 16
        $region98: #{my_network_forward.1} parent=93 // pred_fallthru
          _
      $region94: #{my_network_forward.1} parent=5 // pred_fallthru
        _
    $region6: #{my_network_forward.1} parent=1 // loop_footer
      %s26 = sadd.s32 1, %s22
    $region7: #{my_network_forward.1} parent=1 // loop_footer_branch
      %21 = sbr.rel target = $region3
    $region8: #{my_network_forward.1} parent=1 // loop_exit
      _
    %8242 = vsyncpa [#allocation8], 1
    %s8243 = scalar_lea.sflag [#allocation8], 1
    %8244 = vsyncpa %s8243, 1

</llo_original>
